<compile_context>
chip_gen: v6e
topology: v6e:2x2x1
jax: 0.10.0
libtpu: 0.0.40
codegen_flags: <defaults>
</compile_context>

<pallas_src>
import functools
import math

import jax
import jax.numpy as jnp
from jax import lax
from jax.experimental import pallas as pl
from jax.experimental.pallas import tpu as pltpu

# ---- structural hyper-parameters of combinedModel (scaled-down but faithful) ----
EMB = 48                    # embedding_size
N_HEADS = 2                 # n_heads == n_heads_temporal
ATT_EMB = EMB * N_HEADS     # attention_embedding = 96
FFN = 100                   # transformer dim_feedforward
FFN_PAD = 128               # zero-padded FFN width (lane-dense)
UPSCALE = 0.05
UPSCALE2 = 0.5
N_CLASSES = 2               # synthetic encoder output
LN_EPS = 1e-5
BN_EPS = 1e-5
GTA_E1_PAD = 8              # zero-padded width for the degenerate E1 = 3 dimension
OUT_W = 128                 # packed lane-dense output width: [logits | FC | tw | 0]

# ---- packed one-row parameter slab layout (one DMA for all vector params) ----
VEC_ROWS, VEC_W = 24, 256
(V_EMB_W, V_EMB_B, V_BQKV, V_BO, V_LN1G, V_LN1B, V_B1, V_B2, V_LN2G, V_LN2B,
 V_UP_B, V_ROI_BQK, V_GTA_BE, V_BN_G, V_BN_B, V_BN_M, V_BN_V, V_BA1, V_WA2,
 V_BA2, V_ENC_B) = range(21)


# --------------------------------------------------------------------------------
# The single fused kernel: one grid step == B_BLK batch elements.
# --------------------------------------------------------------------------------
def _fused_forward_kernel(
    x_ref,        # (1, Bb, R, W)   raw signal, temporal axis last (pre-transposed)
    vec_ref,      # (VEC_ROWS, VEC_W)  all one-row params
    wqkv_ref,     # (D, 3D)   packed [Wq | Wk | Wv] (pre-transposed)
    wo_ref,       # (D, D)    out_proj.weight.T (head-ordered rows)
    w1_ref,       # (D, FFN_PAD)
    w2_ref,       # (FFN_PAD, D)
    up_w_ref,     # (D, E)
    roi_wqk_ref,  # (E, 2E)   packed ROI [Wq | Wk]
    pos_ref,      # (R, E)    ROI positional embedding
    gta_we_ref,   # (F, E1P)  gta_embed (zero-padded 3 -> 8)
    wa1_ref,      # (E1P, E2) gta_attend layer 1
    enc_w_ref,    # (F, C)    encoder stand-in probe
    out_ref,      # (1, Bb, OUT_W)  packed [logits | FC | time_w | zero pad]
        *, n_heads):
    f32, bf16 = jnp.float32, jnp.bfloat16
    Bb, R, W = x_ref.shape[1], x_ref.shape[2], x_ref.shape[3]
    D = wo_ref.shape[0]
    E = up_w_ref.shape[1]
    E1P = gta_we_ref.shape[1]
    E2 = wa1_ref.shape[1]
    C = enc_w_ref.shape[1]
    FFN_P = w1_ref.shape[1]
    F = R * R
    NH = n_heads
    hd, hd_r = D // NH, E // NH
    BR = Bb * R
    M = BR * W
    inv_sqrt_hd = 1.0 / math.sqrt(hd)
    inv_sqrt_hdr = 1.0 / math.sqrt(hd_r)

    def vec(row, n):                         # static slice of the param slab -> (1, n)
        return vec_ref[row:row + 1, 0:n]

    # ---- 1. embedder: sigmoid(Linear(1 -> D)); x already in (b, r, w) row order ----
    xt = x_ref[0]                                                  # (Bb, R, W)
    h = jax.nn.sigmoid(xt[..., None] * vec(V_EMB_W, D) + vec(V_EMB_B, D))
    h = h.reshape(M, D)                                            # rows (b, r, w)

    # ---- 2. TransformerEncoderLayer (post-norm, NH heads, relu FFN) ----
    qkv = jnp.dot(h.astype(bf16), wqkv_ref[...].astype(bf16),
                  preferred_element_type=f32) + vec(V_BQKV, 3 * D)  # (M, 3D)

    def split_heads(off):
        # heads stacked on the leading batch axis -> (NH*BR, W, hd), head-major
        parts = [qkv[:, off + hh * hd: off + (hh + 1) * hd].reshape(BR, W, hd)
                 for hh in range(NH)]
        return jnp.concatenate(parts, axis=0)

    q = split_heads(0) * inv_sqrt_hd
    k = split_heads(D)
    v = split_heads(2 * D)
    s = jnp.einsum('bqd,bkd->bqk', q.astype(bf16), k.astype(bf16),
                   preferred_element_type=f32)                      # (NH*BR, W, W)
    s = s - jnp.max(s, axis=-1, keepdims=True)
    p = jnp.exp(s)
    p = p * pl.reciprocal(jnp.sum(p, axis=-1, keepdims=True), approx=True)
    ctx = jnp.einsum('bqk,bkd->bqd', p.astype(bf16), v.astype(bf16),
                     preferred_element_type=f32)                    # (NH*BR, W, hd)
    ctx_r = ctx.reshape(NH, BR, W, hd)
    ctx_cat = jnp.concatenate([ctx_r[hh] for hh in range(NH)], axis=-1)  # (BR, W, D)
    attn = jnp.dot(ctx_cat.reshape(M, D).astype(bf16), wo_ref[...].astype(bf16),
                   preferred_element_type=f32) + vec(V_BO, D)

    h1 = h + attn                                                   # add & LN1
    mu = jnp.mean(h1, axis=-1, keepdims=True)
    var = jnp.mean(jnp.square(h1 - mu), axis=-1, keepdims=True)
    h1 = (h1 - mu) * lax.rsqrt(var + LN_EPS) * vec(V_LN1G, D) + vec(V_LN1B, D)

    ff = jnp.dot(h1.astype(bf16), w1_ref[...].astype(bf16),
                 preferred_element_type=f32) + vec(V_B1, FFN_P)
    ff = jnp.maximum(ff, 0.0)
    ff = jnp.dot(ff.astype(bf16), w2_ref[...].astype(bf16),
                 preferred_element_type=f32) + vec(V_B2, D)
    h2 = h1 + ff                                                    # add & LN2
    mu2 = jnp.mean(h2, axis=-1, keepdims=True)
    var2 = jnp.mean(jnp.square(h2 - mu2), axis=-1, keepdims=True)
    h2 = (h2 - mu2) * lax.rsqrt(var2 + LN_EPS) * vec(V_LN2G, D) + vec(V_LN2B, D)

    # ---- 3. up_sample MLP: Linear(D -> E) ----
    u = jnp.dot(h2.astype(bf16), up_w_ref[...].astype(bf16),
                preferred_element_type=f32) + vec(V_UP_B, E)        # (M, E)

    # ---- 4. + ROI positional embedding (dropout = identity in eval) ----
    y = u.reshape(Bb, R, W, E) + pos_ref[...][:, None, :]           # (Bb, R, W, E)

    # ---- 5. ROI nn.MultiheadAttention softmax WEIGHTS (averaged over heads) ----
    qk = jnp.dot(y.reshape(M, E).astype(bf16), roi_wqk_ref[...].astype(bf16),
                 preferred_element_type=f32) + vec(V_ROI_BQK, 2 * E)  # (M, 2E)

    def roi_heads(off):
        # reorder the thin projection only: (b,r,w) rows -> (b,w) batch of R rows,
        # heads stacked head-major on the leading axis -> (NH*Bb*W, R, hd_r)
        t = qk[:, off:off + E].reshape(Bb, R, W, E)
        t = jnp.transpose(t, (0, 2, 1, 3)).reshape(Bb * W, R, E)
        parts = [t[:, :, hh * hd_r:(hh + 1) * hd_r] for hh in range(NH)]
        return jnp.concatenate(parts, axis=0)

    rq = roi_heads(0) * inv_sqrt_hdr
    rk = roi_heads(E)
    s2 = jnp.einsum('bqd,bkd->bqk', rq.astype(bf16), rk.astype(bf16),
                    preferred_element_type=f32)                     # (NH*Bb*W, R, R)
    s2 = s2 - jnp.max(s2, axis=-1, keepdims=True)
    p2 = jnp.exp(s2)
    p2 = p2 / jnp.sum(p2, axis=-1, keepdims=True)   # exact: these weights ARE the FC output
    attn_w = jnp.mean(p2.reshape(NH, Bb * W, R, R), axis=0)         # head average
    attn_w = attn_w.reshape(Bb, W, F)                               # (Bb, W, R*R)

    # ---- 6. gta_attention (dimension='time'); BatchNorm/Dropout in eval semantics ----
    readout = (attn_w * jnp.mean(attn_w, axis=1, keepdims=True)).reshape(Bb * W, F)
    e = jnp.dot(readout, gta_we_ref[...], preferred_element_type=f32) + vec(V_GTA_BE, E1P)
    e = (e - vec(V_BN_M, E1P)) * lax.rsqrt(vec(V_BN_V, E1P) + BN_EPS) \
        * vec(V_BN_G, E1P) + vec(V_BN_B, E1P)
    e = jnp.maximum(e, 0.0)
    a = jnp.maximum(jnp.dot(e, wa1_ref[...], preferred_element_type=f32)
                    + vec(V_BA1, E2), 0.0)
    g = jnp.sum(a * vec(V_WA2, E2), axis=-1, keepdims=True) + vec(V_BA2, 1)  # (Bb*W, 1)
    g = g * jnp.clip(g + 3.0, 0.0, 6.0) * (1.0 / 6.0)               # Hardswish
    g3 = g.reshape(Bb, W, 1)
    fc = jnp.mean(attn_w * g3, axis=1)                              # (Bb, F)

    # ---- 7. encoder stand-in: linear probe on the flattened FC matrix ----
    # TODO(synk): the real `encoder` is an externally injected CNN (not specified
    # here); stand-in is a deterministic linear probe on the flattened (R, R) FC.
    logits = jnp.dot(fc, enc_w_ref[...], preferred_element_type=f32) + vec(V_ENC_B, C)

    # ---- 8. one lane-dense packed output: [logits | FC | time_w | zero pad] ----
    pad = jnp.zeros((Bb, OUT_W - C - F - W), f32)
    out_ref[0] = jnp.concatenate([logits, fc, g3.reshape(Bb, W), pad], axis=-1)


# --------------------------------------------------------------------------------
# Parameter init (deterministic, synthetic, TPU-friendly packing / padding)
# --------------------------------------------------------------------------------
def init_params(key, R):
    D, E = EMB, ATT_EMB
    F = R * R
    E1 = int(round(UPSCALE * F))          # 3 for R=8 (degenerate width)
    E1P = GTA_E1_PAD                      # zero-padded to 8 lanes (results unchanged)
    E2 = int(round(UPSCALE2 * F))         # 32 for R=8
    assert E1 <= E1P
    keys = jax.random.split(key, 24)

    def w(k, shape, scale=0.05):
        return scale * jax.random.normal(k, shape, jnp.float32)

    # -- one slab holding every one-row parameter (single DMA) --
    vecs = jnp.zeros((VEC_ROWS, VEC_W), jnp.float32)

    def put(slab, row, val):
        val = jnp.asarray(val, jnp.float32).reshape(-1)
        return slab.at[row, :val.shape[0]].set(val)

    vecs = put(vecs, V_EMB_W, w(keys[0], (D,)))
    vecs = put(vecs, V_EMB_B, w(keys[1], (D,)))
    vecs = put(vecs, V_BQKV, w(keys[2], (3 * D,)))
    vecs = put(vecs, V_BO, w(keys[3], (D,)))
    vecs = put(vecs, V_LN1G, jnp.ones((D,), jnp.float32))
    vecs = put(vecs, V_B1,
               jnp.zeros((FFN_PAD,), jnp.float32).at[:FFN].set(w(keys[4], (FFN,))))
    vecs = put(vecs, V_B2, w(keys[5], (D,)))
    vecs = put(vecs, V_LN2G, jnp.ones((D,), jnp.float32))
    vecs = put(vecs, V_UP_B, w(keys[6], (E,)))
    vecs = put(vecs, V_ROI_BQK, w(keys[7], (2 * E,)))
    vecs = put(vecs, V_GTA_BE,
               jnp.zeros((E1P,), jnp.float32).at[:E1].set(w(keys[8], (E1,))))
    vecs = put(vecs, V_BN_G, jnp.zeros((E1P,), jnp.float32).at[:E1].set(1.0))
    vecs = put(vecs, V_BN_V, jnp.ones((E1P,), jnp.float32))
    vecs = put(vecs, V_BA1, w(keys[9], (E2,)))
    vecs = put(vecs, V_WA2, w(keys[10], (E2,)))
    vecs = put(vecs, V_BA2, w(keys[11], (1,)))
    vecs = put(vecs, V_ENC_B, w(keys[12], (N_CLASSES,)))
    # rows V_LN1B, V_LN2B, V_BN_B, V_BN_M stay zero (beta = 0, running_mean = 0)

    return {
        'vecs': vecs,
        'wqkv': w(keys[13], (D, 3 * D)),          # packed [Wq | Wk | Wv]
        'wo': w(keys[14], (D, D)),                # out_proj.weight.T (head-ordered)
        'w1': jnp.zeros((D, FFN_PAD), jnp.float32).at[:, :FFN].set(w(keys[15], (D, FFN))),
        'w2': jnp.zeros((FFN_PAD, D), jnp.float32).at[:FFN, :].set(w(keys[16], (FFN, D))),
        'up_w': w(keys[17], (D, E)),
        'roi_wqk': w(keys[18], (E, 2 * E)),       # packed [Wq | Wk] (weights-only path)
        'pos': jnp.zeros((R, E), jnp.float32),    # nn.Parameter(torch.zeros(...))
        'gta_we': jnp.zeros((F, E1P), jnp.float32).at[:, :E1].set(w(keys[19], (F, E1))),
        'wa1': jnp.zeros((E1P, E2), jnp.float32).at[:E1, :].set(w(keys[20], (E1, E2))),
        'enc_w': w(keys[21], (F, N_CLASSES)),
    }


# --------------------------------------------------------------------------------
# Full forward pass of combinedModel (division = 1) -- one fused pallas_call
# --------------------------------------------------------------------------------
def combined_model_forward(x, params, b_blk=None):
    # x: (B, W, R, T=1) with W == time_points (division == 1), matching torch layout
    B, W, R, T = x.shape
    F = R * R
    C = N_CLASSES

    if b_blk is None:
        # Target ~256 rows (= b_blk*R*W) of matmul work per grid step.  On a
        # single-TC chip (v5e/v6e) a collapsed grid is optimal; on v7x pass
        # b_blk = max(1, B // 2) if you want >= 2 parallel steps for the 2 TCs.
        b_blk = max(1, min(B, max(1, 256 // (R * W))))
    n_steps = -(-B // b_blk)
    b_pad = n_steps * b_blk

    # (B, W, R, 1) -> (B, R, W): drop T, move the temporal axis to lanes so the
    # embedded tensor is produced directly in transformer (b, r, w) row order
    # (replaces an in-kernel relayout of the D-wide activations).
    x_rw = jnp.swapaxes(x.reshape(B, W, R), 1, 2)
    if b_pad != B:
        x_rw = jnp.concatenate(
            [x_rw, jnp.zeros((b_pad - B, R, W), x_rw.dtype)], axis=0)
    x_steps = x_rw.reshape(n_steps, b_blk, R, W)

    p = params
    weight_args = (p['vecs'], p['wqkv'], p['wo'], p['w1'], p['w2'],
                   p['up_w'], p['roi_wqk'], p['pos'],
                   p['gta_we'], p['wa1'], p['enc_w'])

    def const_spec(a):
        # constant block index -> the pipeline fetches each weight exactly once
        return pl.BlockSpec(a.shape, lambda i, _n=a.ndim: (0,) * _n)

    kernel = functools.partial(_fused_forward_kernel, n_heads=N_HEADS)

    packed = pl.pallas_call(
        kernel,
        out_shape=jax.ShapeDtypeStruct((n_steps, b_blk, OUT_W), jnp.float32),
        grid=(n_steps,),
        in_specs=[pl.BlockSpec((1, b_blk, R, W), lambda i: (i, 0, 0, 0))]
                 + [const_spec(a) for a in weight_args],
        out_specs=pl.BlockSpec((1, b_blk, OUT_W), lambda i: (i, 0, 0)),
        compiler_params=pltpu.CompilerParams(
            dimension_semantics=("parallel",)),
    )(x_steps, *weight_args)

    packed = packed.reshape(b_pad, OUT_W)[:B]
    logits = packed[:, :C]
    FC = packed[:, C:C + F].reshape(B, R, R)
    time_w = packed[:, C + F:C + F + W]
    kl_loss = 0.0
    return logits / 1.0, kl_loss, FC, 'temporal_FC', time_w


if __name__ == "__main__":
    key = jax.random.PRNGKey(0)
    kx, kp = jax.random.split(key)
    B, W, R, T = 2, 8, 8, 1          # W plays the role of time_points (division = 1)
    x = jax.random.normal(kx, (B, W, R, T), jnp.float32)
    targets = jnp.zeros((B,), jnp.int32)   # unused by the forward (matches torch signature)
    params = init_params(kp, R)

    logits, kl_loss, FC, tag, time_w = combined_model_forward(x, params)
    jax.block_until_ready((logits, FC, time_w))

    assert logits.shape == (B, N_CLASSES)
    assert FC.shape == (B, R, R)
    assert time_w.shape == (B, W)
    assert tag == 'temporal_FC'
    assert bool(jnp.all(jnp.isfinite(logits)))
    assert bool(jnp.all(jnp.isfinite(FC)))
    # semantic smoke test: ROI attention rows sum to 1, so each FC row must sum
    # to the time-average of the (Hardswish) attention weights.
    row_sums = FC.sum(-1)                                        # (B, R)
    expect = jnp.broadcast_to(time_w.mean(-1, keepdims=True), row_sums.shape)
    assert bool(jnp.allclose(row_sums, expect, atol=1e-3)), "FC / time-weight identity failed"
    print("KERNEL_OK")
</pallas_src>

<mosaic_0001>
module attributes {stable_mosaic.version = 11 : i64} {
  func.func @_fused_forward_kernel(%arg0: i32, %arg1: memref<1x2x8x8xf32, #tpu.memory_space<vmem>>, %arg2: memref<24x256xf32, #tpu.memory_space<vmem>>, %arg3: memref<48x144xf32, #tpu.memory_space<vmem>>, %arg4: memref<48x48xf32, #tpu.memory_space<vmem>>, %arg5: memref<48x128xf32, #tpu.memory_space<vmem>>, %arg6: memref<128x48xf32, #tpu.memory_space<vmem>>, %arg7: memref<48x96xf32, #tpu.memory_space<vmem>>, %arg8: memref<96x192xf32, #tpu.memory_space<vmem>>, %arg9: memref<8x96xf32, #tpu.memory_space<vmem>>, %arg10: memref<64x8xf32, #tpu.memory_space<vmem>>, %arg11: memref<8x32xf32, #tpu.memory_space<vmem>>, %arg12: memref<64x2xf32, #tpu.memory_space<vmem>>, %arg13: memref<1x2x128xf32, #tpu.memory_space<vmem>>) attributes {dimension_semantics = [#tpu.dimension_semantics<parallel>], iteration_bounds = array<i64: 1>, scalar_prefetch = 0 : i64, scratch_operands = 0 : i64, tpu.core_type = #tpu.core_type<tc>, window_params = [{transform_indices = @transform_0, window_bounds = array<i64: 1, 2, 8, 8>}, {pipeline_mode = #tpu.pipeline_mode<synchronous>, transform_indices = @transform_1, window_bounds = array<i64: 24, 256>}, {pipeline_mode = #tpu.pipeline_mode<synchronous>, transform_indices = @transform_2, window_bounds = array<i64: 48, 144>}, {pipeline_mode = #tpu.pipeline_mode<synchronous>, transform_indices = @transform_3, window_bounds = array<i64: 48, 48>}, {pipeline_mode = #tpu.pipeline_mode<synchronous>, transform_indices = @transform_4, window_bounds = array<i64: 48, 128>}, {pipeline_mode = #tpu.pipeline_mode<synchronous>, transform_indices = @transform_5, window_bounds = array<i64: 128, 48>}, {pipeline_mode = #tpu.pipeline_mode<synchronous>, transform_indices = @transform_6, window_bounds = array<i64: 48, 96>}, {pipeline_mode = #tpu.pipeline_mode<synchronous>, transform_indices = @transform_7, window_bounds = array<i64: 96, 192>}, {pipeline_mode = #tpu.pipeline_mode<synchronous>, transform_indices = @transform_8, window_bounds = array<i64: 8, 96>}, {pipeline_mode = #tpu.pipeline_mode<synchronous>, transform_indices = @transform_9, window_bounds = array<i64: 64, 8>}, {pipeline_mode = #tpu.pipeline_mode<synchronous>, transform_indices = @transform_10, window_bounds = array<i64: 8, 32>}, {pipeline_mode = #tpu.pipeline_mode<synchronous>, transform_indices = @transform_11, window_bounds = array<i64: 64, 2>}, {transform_indices = @transform_12, window_bounds = array<i64: 1, 2, 128>}]} {
    %c0 = arith.constant 0 : index
    %c0_0 = arith.constant 0 : index
    %c0_1 = arith.constant 0 : index
    %c0_2 = arith.constant 0 : index
    %0 = vector.load %arg1[%c0, %c0_0, %c0_1, %c0_2] : memref<1x2x8x8xf32, #tpu.memory_space<vmem>>, vector<1x2x8x8xf32>
    %1 = vector.shape_cast %0 : vector<1x2x8x8xf32> to vector<2x8x8xf32>
    %2 = vector.shape_cast %1 : vector<2x8x8xf32> to vector<2x8x8x1xf32>
    %c0_3 = arith.constant 0 : index
    %c0_4 = arith.constant 0 : index
    %3 = vector.load %arg2[%c0_3, %c0_4] : memref<24x256xf32, #tpu.memory_space<vmem>>, vector<1x48xf32>
    %4 = vector.shape_cast %3 : vector<1x48xf32> to vector<1x1x1x48xf32>
    %5 = vector.broadcast %2 : vector<2x8x8x1xf32> to vector<2x8x8x48xf32>
    %6 = vector.broadcast %4 : vector<1x1x1x48xf32> to vector<2x8x8x48xf32>
    %7 = arith.mulf %5, %6 : vector<2x8x8x48xf32>
    %c1 = arith.constant 1 : index
    %c0_5 = arith.constant 0 : index
    %8 = vector.load %arg2[%c1, %c0_5] : memref<24x256xf32, #tpu.memory_space<vmem>>, vector<1x48xf32>
    %9 = vector.shape_cast %8 : vector<1x48xf32> to vector<1x1x1x48xf32>
    %10 = vector.broadcast %9 : vector<1x1x1x48xf32> to vector<2x8x8x48xf32>
    %11 = arith.addf %7, %10 : vector<2x8x8x48xf32>
    %12 = arith.negf %11 : vector<2x8x8x48xf32>
    %13 = math.exp %12 : vector<2x8x8x48xf32>
    %cst = arith.constant 1.000000e+00 : f32
    %14 = vector.broadcast %cst : f32 to vector<2x8x8x48xf32>
    %15 = arith.addf %14, %13 : vector<2x8x8x48xf32>
    %16 = arith.divf %14, %15 : vector<2x8x8x48xf32>
    %17 = vector.shape_cast %16 : vector<2x8x8x48xf32> to vector<128x48xf32>
    %18 = arith.truncf %17 : vector<128x48xf32> to vector<128x48xbf16>
    %c0_6 = arith.constant 0 : index
    %c0_7 = arith.constant 0 : index
    %19 = vector.load %arg3[%c0_6, %c0_7] : memref<48x144xf32, #tpu.memory_space<vmem>>, vector<48x144xf32>
    %20 = arith.truncf %19 : vector<48x144xf32> to vector<48x144xbf16>
    %cst_8 = arith.constant dense<0.000000e+00> : vector<128x144xf32>
    %21 = tpu.matmul %18, %20, %cst_8 {dimension_numbers = #tpu.dot_dimension_numbers<[1], [0], [0], [1], [0, 0, 1, 1], [], []>} : vector<128x48xbf16>, vector<48x144xbf16>, vector<128x144xf32> -> vector<128x144xf32>
    %c2 = arith.constant 2 : index
    %c0_9 = arith.constant 0 : index
    %22 = vector.load %arg2[%c2, %c0_9] : memref<24x256xf32, #tpu.memory_space<vmem>>, vector<1x144xf32>
    %23 = vector.broadcast %22 : vector<1x144xf32> to vector<128x144xf32>
    %24 = arith.addf %21, %23 : vector<128x144xf32>
    %25 = vector.extract_strided_slice %24 {offsets = [0, 0], sizes = [128, 24], strides = [1, 1]} : vector<128x144xf32> to vector<128x24xf32>
    %26 = vector.shape_cast %25 : vector<128x24xf32> to vector<16x8x24xf32>
    %27 = vector.extract_strided_slice %24 {offsets = [0, 24], sizes = [128, 24], strides = [1, 1]} : vector<128x144xf32> to vector<128x24xf32>
    %28 = vector.shape_cast %27 : vector<128x24xf32> to vector<16x8x24xf32>
    %29 = tpu.concatenate %26, %28 in 0 : vector<16x8x24xf32>, vector<16x8x24xf32> -> vector<32x8x24xf32>
    %cst_10 = arith.constant 0.204124153 : f32
    %30 = vector.broadcast %cst_10 : f32 to vector<32x8x24xf32>
    %31 = arith.mulf %29, %30 : vector<32x8x24xf32>
    %32 = vector.extract_strided_slice %24 {offsets = [0, 48], sizes = [128, 24], strides = [1, 1]} : vector<128x144xf32> to vector<128x24xf32>
    %33 = vector.shape_cast %32 : vector<128x24xf32> to vector<16x8x24xf32>
    %34 = vector.extract_strided_slice %24 {offsets = [0, 72], sizes = [128, 24], strides = [1, 1]} : vector<128x144xf32> to vector<128x24xf32>
    %35 = vector.shape_cast %34 : vector<128x24xf32> to vector<16x8x24xf32>
    %36 = tpu.concatenate %33, %35 in 0 : vector<16x8x24xf32>, vector<16x8x24xf32> -> vector<32x8x24xf32>
    %37 = vector.extract_strided_slice %24 {offsets = [0, 96], sizes = [128, 24], strides = [1, 1]} : vector<128x144xf32> to vector<128x24xf32>
    %38 = vector.shape_cast %37 : vector<128x24xf32> to vector<16x8x24xf32>
    %39 = vector.extract_strided_slice %24 {offsets = [0, 120], sizes = [128, 24], strides = [1, 1]} : vector<128x144xf32> to vector<128x24xf32>
    %40 = vector.shape_cast %39 : vector<128x24xf32> to vector<16x8x24xf32>
    %41 = tpu.concatenate %38, %40 in 0 : vector<16x8x24xf32>, vector<16x8x24xf32> -> vector<32x8x24xf32>
    %42 = arith.truncf %31 : vector<32x8x24xf32> to vector<32x8x24xbf16>
    %43 = arith.truncf %36 : vector<32x8x24xf32> to vector<32x8x24xbf16>
    "tpu.trace_start"() <{level = 10 : i32, message = "bqd,bkd->bqk"}> : () -> ()
    %cst_11 = arith.constant dense<0.000000e+00> : vector<32x8x8xf32>
    %44 = tpu.matmul %42, %43, %cst_11 {dimension_numbers = #tpu.dot_dimension_numbers<[2], [2], [1], [1], [0, 0, 0, 1, 1, 1], [0], [0]>} : vector<32x8x24xbf16>, vector<32x8x24xbf16>, vector<32x8x8xf32> -> vector<32x8x8xf32>
    "tpu.trace_stop"() : () -> ()
    %cst_12 = arith.constant dense<0xFF800000> : vector<32x8xf32>
    %45 = vector.multi_reduction <maximumf>, %44, %cst_12 [2] : vector<32x8x8xf32> to vector<32x8xf32>
    %46 = vector.shape_cast %45 : vector<32x8xf32> to vector<32x8x1xf32>
    %47 = vector.broadcast %46 : vector<32x8x1xf32> to vector<32x8x8xf32>
    %48 = arith.subf %44, %47 : vector<32x8x8xf32>
    %49 = math.exp %48 : vector<32x8x8xf32>
    %cst_13 = arith.constant dense<0.000000e+00> : vector<32x8xf32>
    %50 = vector.multi_reduction <add>, %49, %cst_13 [2] : vector<32x8x8xf32> to vector<32x8xf32>
    %51 = vector.shape_cast %50 : vector<32x8xf32> to vector<32x8x1xf32>
    %52 = tpu.reciprocal %51 {approx = true} : vector<32x8x1xf32> -> vector<32x8x1xf32>
    %53 = vector.broadcast %52 : vector<32x8x1xf32> to vector<32x8x8xf32>
    %54 = arith.mulf %49, %53 : vector<32x8x8xf32>
    %55 = arith.truncf %54 : vector<32x8x8xf32> to vector<32x8x8xbf16>
    %56 = arith.truncf %41 : vector<32x8x24xf32> to vector<32x8x24xbf16>
    "tpu.trace_start"() <{level = 10 : i32, message = "bqk,bkd->bqd"}> : () -> ()
    %cst_14 = arith.constant dense<0.000000e+00> : vector<32x8x24xf32>
    %57 = tpu.matmul %55, %56, %cst_14 {dimension_numbers = #tpu.dot_dimension_numbers<[2], [1], [1], [2], [0, 0, 0, 1, 1, 2], [0], [0]>} : vector<32x8x8xbf16>, vector<32x8x24xbf16>, vector<32x8x24xf32> -> vector<32x8x24xf32>
    "tpu.trace_stop"() : () -> ()
    %58 = vector.shape_cast %57 : vector<32x8x24xf32> to vector<2x16x8x24xf32>
    %59 = vector.extract_strided_slice %58 {offsets = [0, 0, 0, 0], sizes = [1, 16, 8, 24], strides = [1, 1, 1, 1]} : vector<2x16x8x24xf32> to vector<1x16x8x24xf32>
    %60 = vector.shape_cast %59 : vector<1x16x8x24xf32> to vector<16x8x24xf32>
    %61 = vector.extract_strided_slice %58 {offsets = [1, 0, 0, 0], sizes = [1, 16, 8, 24], strides = [1, 1, 1, 1]} : vector<2x16x8x24xf32> to vector<1x16x8x24xf32>
    %62 = vector.shape_cast %61 : vector<1x16x8x24xf32> to vector<16x8x24xf32>
    %63 = tpu.concatenate %60, %62 in 2 : vector<16x8x24xf32>, vector<16x8x24xf32> -> vector<16x8x48xf32>
    %64 = vector.shape_cast %63 : vector<16x8x48xf32> to vector<128x48xf32>
    %65 = arith.truncf %64 : vector<128x48xf32> to vector<128x48xbf16>
    %c0_15 = arith.constant 0 : index
    %c0_16 = arith.constant 0 : index
    %66 = vector.load %arg4[%c0_15, %c0_16] : memref<48x48xf32, #tpu.memory_space<vmem>>, vector<48x48xf32>
    %67 = arith.truncf %66 : vector<48x48xf32> to vector<48x48xbf16>
    %cst_17 = arith.constant dense<0.000000e+00> : vector<128x48xf32>
    %68 = tpu.matmul %65, %67, %cst_17 {dimension_numbers = #tpu.dot_dimension_numbers<[1], [0], [0], [1], [0, 0, 1, 1], [], []>} : vector<128x48xbf16>, vector<48x48xbf16>, vector<128x48xf32> -> vector<128x48xf32>
    %c3 = arith.constant 3 : index
    %c0_18 = arith.constant 0 : index
    %69 = vector.load %arg2[%c3, %c0_18] : memref<24x256xf32, #tpu.memory_space<vmem>>, vector<1x48xf32>
    %70 = vector.broadcast %69 : vector<1x48xf32> to vector<128x48xf32>
    %71 = arith.addf %68, %70 : vector<128x48xf32>
    %72 = arith.addf %17, %71 : vector<128x48xf32>
    %cst_19 = arith.constant dense<0.000000e+00> : vector<128xf32>
    %73 = vector.multi_reduction <add>, %72, %cst_19 [1] : vector<128x48xf32> to vector<128xf32>
    %74 = vector.shape_cast %73 : vector<128xf32> to vector<128x1xf32>
    %cst_20 = arith.constant 4.800000e+01 : f32
    %75 = vector.broadcast %cst_20 : f32 to vector<128x1xf32>
    %76 = arith.divf %74, %75 : vector<128x1xf32>
    %77 = vector.broadcast %76 : vector<128x1xf32> to vector<128x48xf32>
    %78 = arith.subf %72, %77 : vector<128x48xf32>
    %79 = arith.mulf %78, %78 : vector<128x48xf32>
    %cst_21 = arith.constant dense<0.000000e+00> : vector<128xf32>
    %80 = vector.multi_reduction <add>, %79, %cst_21 [1] : vector<128x48xf32> to vector<128xf32>
    %81 = vector.shape_cast %80 : vector<128xf32> to vector<128x1xf32>
    %cst_22 = arith.constant 4.800000e+01 : f32
    %82 = vector.broadcast %cst_22 : f32 to vector<128x1xf32>
    %83 = arith.divf %81, %82 : vector<128x1xf32>
    %84 = vector.broadcast %76 : vector<128x1xf32> to vector<128x48xf32>
    %85 = arith.subf %72, %84 : vector<128x48xf32>
    %cst_23 = arith.constant 9.99999974E-6 : f32
    %86 = vector.broadcast %cst_23 : f32 to vector<128x1xf32>
    %87 = arith.addf %83, %86 : vector<128x1xf32>
    %88 = math.rsqrt %87 : vector<128x1xf32>
    %89 = vector.broadcast %88 : vector<128x1xf32> to vector<128x48xf32>
    %90 = arith.mulf %85, %89 : vector<128x48xf32>
    %c4 = arith.constant 4 : index
    %c0_24 = arith.constant 0 : index
    %91 = vector.load %arg2[%c4, %c0_24] : memref<24x256xf32, #tpu.memory_space<vmem>>, vector<1x48xf32>
    %92 = vector.broadcast %91 : vector<1x48xf32> to vector<128x48xf32>
    %93 = arith.mulf %90, %92 : vector<128x48xf32>
    %c5 = arith.constant 5 : index
    %c0_25 = arith.constant 0 : index
    %94 = vector.load %arg2[%c5, %c0_25] : memref<24x256xf32, #tpu.memory_space<vmem>>, vector<1x48xf32>
    %95 = vector.broadcast %94 : vector<1x48xf32> to vector<128x48xf32>
    %96 = arith.addf %93, %95 : vector<128x48xf32>
    %97 = arith.truncf %96 : vector<128x48xf32> to vector<128x48xbf16>
    %c0_26 = arith.constant 0 : index
    %c0_27 = arith.constant 0 : index
    %98 = vector.load %arg5[%c0_26, %c0_27] : memref<48x128xf32, #tpu.memory_space<vmem>>, vector<48x128xf32>
    %99 = arith.truncf %98 : vector<48x128xf32> to vector<48x128xbf16>
    %cst_28 = arith.constant dense<0.000000e+00> : vector<128x128xf32>
    %100 = tpu.matmul %97, %99, %cst_28 {dimension_numbers = #tpu.dot_dimension_numbers<[1], [0], [0], [1], [0, 0, 1, 1], [], []>} : vector<128x48xbf16>, vector<48x128xbf16>, vector<128x128xf32> -> vector<128x128xf32>
    %c6 = arith.constant 6 : index
    %c0_29 = arith.constant 0 : index
    %101 = vector.load %arg2[%c6, %c0_29] : memref<24x256xf32, #tpu.memory_space<vmem>>, vector<1x128xf32>
    %102 = vector.broadcast %101 : vector<1x128xf32> to vector<128x128xf32>
    %103 = arith.addf %100, %102 : vector<128x128xf32>
    %cst_30 = arith.constant 0.000000e+00 : f32
    %104 = vector.broadcast %cst_30 : f32 to vector<128x128xf32>
    %105 = arith.maximumf %103, %104 : vector<128x128xf32>
    %106 = arith.truncf %105 : vector<128x128xf32> to vector<128x128xbf16>
    %c0_31 = arith.constant 0 : index
    %c0_32 = arith.constant 0 : index
    %107 = vector.load %arg6[%c0_31, %c0_32] : memref<128x48xf32, #tpu.memory_space<vmem>>, vector<128x48xf32>
    %108 = arith.truncf %107 : vector<128x48xf32> to vector<128x48xbf16>
    %cst_33 = arith.constant dense<0.000000e+00> : vector<128x48xf32>
    %109 = tpu.matmul %106, %108, %cst_33 {dimension_numbers = #tpu.dot_dimension_numbers<[1], [0], [0], [1], [0, 0, 1, 1], [], []>} : vector<128x128xbf16>, vector<128x48xbf16>, vector<128x48xf32> -> vector<128x48xf32>
    %c7 = arith.constant 7 : index
    %c0_34 = arith.constant 0 : index
    %110 = vector.load %arg2[%c7, %c0_34] : memref<24x256xf32, #tpu.memory_space<vmem>>, vector<1x48xf32>
    %111 = vector.broadcast %110 : vector<1x48xf32> to vector<128x48xf32>
    %112 = arith.addf %109, %111 : vector<128x48xf32>
    %113 = arith.addf %96, %112 : vector<128x48xf32>
    %cst_35 = arith.constant dense<0.000000e+00> : vector<128xf32>
    %114 = vector.multi_reduction <add>, %113, %cst_35 [1] : vector<128x48xf32> to vector<128xf32>
    %115 = vector.shape_cast %114 : vector<128xf32> to vector<128x1xf32>
    %cst_36 = arith.constant 4.800000e+01 : f32
    %116 = vector.broadcast %cst_36 : f32 to vector<128x1xf32>
    %117 = arith.divf %115, %116 : vector<128x1xf32>
    %118 = vector.broadcast %117 : vector<128x1xf32> to vector<128x48xf32>
    %119 = arith.subf %113, %118 : vector<128x48xf32>
    %120 = arith.mulf %119, %119 : vector<128x48xf32>
    %cst_37 = arith.constant dense<0.000000e+00> : vector<128xf32>
    %121 = vector.multi_reduction <add>, %120, %cst_37 [1] : vector<128x48xf32> to vector<128xf32>
    %122 = vector.shape_cast %121 : vector<128xf32> to vector<128x1xf32>
    %cst_38 = arith.constant 4.800000e+01 : f32
    %123 = vector.broadcast %cst_38 : f32 to vector<128x1xf32>
    %124 = arith.divf %122, %123 : vector<128x1xf32>
    %125 = vector.broadcast %117 : vector<128x1xf32> to vector<128x48xf32>
    %126 = arith.subf %113, %125 : vector<128x48xf32>
    %cst_39 = arith.constant 9.99999974E-6 : f32
    %127 = vector.broadcast %cst_39 : f32 to vector<128x1xf32>
    %128 = arith.addf %124, %127 : vector<128x1xf32>
    %129 = math.rsqrt %128 : vector<128x1xf32>
    %130 = vector.broadcast %129 : vector<128x1xf32> to vector<128x48xf32>
    %131 = arith.mulf %126, %130 : vector<128x48xf32>
    %c8 = arith.constant 8 : index
    %c0_40 = arith.constant 0 : index
    %132 = vector.load %arg2[%c8, %c0_40] : memref<24x256xf32, #tpu.memory_space<vmem>>, vector<1x48xf32>
    %133 = vector.broadcast %132 : vector<1x48xf32> to vector<128x48xf32>
    %134 = arith.mulf %131, %133 : vector<128x48xf32>
    %c9 = arith.constant 9 : index
    %c0_41 = arith.constant 0 : index
    %135 = vector.load %arg2[%c9, %c0_41] : memref<24x256xf32, #tpu.memory_space<vmem>>, vector<1x48xf32>
    %136 = vector.broadcast %135 : vector<1x48xf32> to vector<128x48xf32>
    %137 = arith.addf %134, %136 : vector<128x48xf32>
    %138 = arith.truncf %137 : vector<128x48xf32> to vector<128x48xbf16>
    %c0_42 = arith.constant 0 : index
    %c0_43 = arith.constant 0 : index
    %139 = vector.load %arg7[%c0_42, %c0_43] : memref<48x96xf32, #tpu.memory_space<vmem>>, vector<48x96xf32>
    %140 = arith.truncf %139 : vector<48x96xf32> to vector<48x96xbf16>
    %cst_44 = arith.constant dense<0.000000e+00> : vector<128x96xf32>
    %141 = tpu.matmul %138, %140, %cst_44 {dimension_numbers = #tpu.dot_dimension_numbers<[1], [0], [0], [1], [0, 0, 1, 1], [], []>} : vector<128x48xbf16>, vector<48x96xbf16>, vector<128x96xf32> -> vector<128x96xf32>
    %c10 = arith.constant 10 : index
    %c0_45 = arith.constant 0 : index
    %142 = vector.load %arg2[%c10, %c0_45] : memref<24x256xf32, #tpu.memory_space<vmem>>, vector<1x96xf32>
    %143 = vector.broadcast %142 : vector<1x96xf32> to vector<128x96xf32>
    %144 = arith.addf %141, %143 : vector<128x96xf32>
    %145 = vector.shape_cast %144 : vector<128x96xf32> to vector<2x8x8x96xf32>
    %c0_46 = arith.constant 0 : index
    %c0_47 = arith.constant 0 : index
    %146 = vector.load %arg9[%c0_46, %c0_47] : memref<8x96xf32, #tpu.memory_space<vmem>>, vector<8x96xf32>
    %147 = vector.shape_cast %146 : vector<8x96xf32> to vector<8x1x96xf32>
    %148 = vector.shape_cast %147 : vector<8x1x96xf32> to vector<1x8x1x96xf32>
    %149 = vector.broadcast %148 : vector<1x8x1x96xf32> to vector<2x8x8x96xf32>
    %150 = arith.addf %145, %149 : vector<2x8x8x96xf32>
    %151 = vector.shape_cast %150 : vector<2x8x8x96xf32> to vector<128x96xf32>
    %152 = arith.truncf %151 : vector<128x96xf32> to vector<128x96xbf16>
    %c0_48 = arith.constant 0 : index
    %c0_49 = arith.constant 0 : index
    %153 = vector.load %arg8[%c0_48, %c0_49] : memref<96x192xf32, #tpu.memory_space<vmem>>, vector<96x192xf32>
    %154 = arith.truncf %153 : vector<96x192xf32> to vector<96x192xbf16>
    %cst_50 = arith.constant dense<0.000000e+00> : vector<128x192xf32>
    %155 = tpu.matmul %152, %154, %cst_50 {dimension_numbers = #tpu.dot_dimension_numbers<[1], [0], [0], [1], [0, 0, 1, 1], [], []>} : vector<128x96xbf16>, vector<96x192xbf16>, vector<128x192xf32> -> vector<128x192xf32>
    %c11 = arith.constant 11 : index
    %c0_51 = arith.constant 0 : index
    %156 = vector.load %arg2[%c11, %c0_51] : memref<24x256xf32, #tpu.memory_space<vmem>>, vector<1x192xf32>
    %157 = vector.broadcast %156 : vector<1x192xf32> to vector<128x192xf32>
    %158 = arith.addf %155, %157 : vector<128x192xf32>
    %159 = vector.extract_strided_slice %158 {offsets = [0, 0], sizes = [128, 96], strides = [1, 1]} : vector<128x192xf32> to vector<128x96xf32>
    %160 = vector.shape_cast %159 : vector<128x96xf32> to vector<2x8x8x96xf32>
    %161 = tpu.transpose %160, [0, 2, 1, 3] : vector<2x8x8x96xf32> -> vector<2x8x8x96xf32>
    %162 = vector.shape_cast %161 : vector<2x8x8x96xf32> to vector<16x8x96xf32>
    %163 = vector.extract_strided_slice %162 {offsets = [0, 0, 0], sizes = [16, 8, 48], strides = [1, 1, 1]} : vector<16x8x96xf32> to vector<16x8x48xf32>
    %164 = vector.extract_strided_slice %162 {offsets = [0, 0, 48], sizes = [16, 8, 48], strides = [1, 1, 1]} : vector<16x8x96xf32> to vector<16x8x48xf32>
    %165 = tpu.concatenate %163, %164 in 0 : vector<16x8x48xf32>, vector<16x8x48xf32> -> vector<32x8x48xf32>
    %cst_52 = arith.constant 0.144337565 : f32
    %166 = vector.broadcast %cst_52 : f32 to vector<32x8x48xf32>
    %167 = arith.mulf %165, %166 : vector<32x8x48xf32>
    %168 = vector.extract_strided_slice %158 {offsets = [0, 96], sizes = [128, 96], strides = [1, 1]} : vector<128x192xf32> to vector<128x96xf32>
    %169 = vector.shape_cast %168 : vector<128x96xf32> to vector<2x8x8x96xf32>
    %170 = tpu.transpose %169, [0, 2, 1, 3] : vector<2x8x8x96xf32> -> vector<2x8x8x96xf32>
    %171 = vector.shape_cast %170 : vector<2x8x8x96xf32> to vector<16x8x96xf32>
    %172 = vector.extract_strided_slice %171 {offsets = [0, 0, 0], sizes = [16, 8, 48], strides = [1, 1, 1]} : vector<16x8x96xf32> to vector<16x8x48xf32>
    %173 = vector.extract_strided_slice %171 {offsets = [0, 0, 48], sizes = [16, 8, 48], strides = [1, 1, 1]} : vector<16x8x96xf32> to vector<16x8x48xf32>
    %174 = tpu.concatenate %172, %173 in 0 : vector<16x8x48xf32>, vector<16x8x48xf32> -> vector<32x8x48xf32>
    %175 = arith.truncf %167 : vector<32x8x48xf32> to vector<32x8x48xbf16>
    %176 = arith.truncf %174 : vector<32x8x48xf32> to vector<32x8x48xbf16>
    "tpu.trace_start"() <{level = 10 : i32, message = "bqd,bkd->bqk"}> : () -> ()
    %cst_53 = arith.constant dense<0.000000e+00> : vector<32x8x8xf32>
    %177 = tpu.matmul %175, %176, %cst_53 {dimension_numbers = #tpu.dot_dimension_numbers<[2], [2], [1], [1], [0, 0, 0, 1, 1, 1], [0], [0]>} : vector<32x8x48xbf16>, vector<32x8x48xbf16>, vector<32x8x8xf32> -> vector<32x8x8xf32>
    "tpu.trace_stop"() : () -> ()
    %cst_54 = arith.constant dense<0xFF800000> : vector<32x8xf32>
    %178 = vector.multi_reduction <maximumf>, %177, %cst_54 [2] : vector<32x8x8xf32> to vector<32x8xf32>
    %179 = vector.shape_cast %178 : vector<32x8xf32> to vector<32x8x1xf32>
    %180 = vector.broadcast %179 : vector<32x8x1xf32> to vector<32x8x8xf32>
    %181 = arith.subf %177, %180 : vector<32x8x8xf32>
    %182 = math.exp %181 : vector<32x8x8xf32>
    %cst_55 = arith.constant dense<0.000000e+00> : vector<32x8xf32>
    %183 = vector.multi_reduction <add>, %182, %cst_55 [2] : vector<32x8x8xf32> to vector<32x8xf32>
    %184 = vector.shape_cast %183 : vector<32x8xf32> to vector<32x8x1xf32>
    %185 = vector.broadcast %184 : vector<32x8x1xf32> to vector<32x8x8xf32>
    %186 = arith.divf %182, %185 : vector<32x8x8xf32>
    %187 = vector.shape_cast %186 : vector<32x8x8xf32> to vector<2x16x8x8xf32>
    %cst_56 = arith.constant dense<0.000000e+00> : vector<16x8x8xf32>
    %188 = vector.multi_reduction <add>, %187, %cst_56 [0] : vector<2x16x8x8xf32> to vector<16x8x8xf32>
    %cst_57 = arith.constant 2.000000e+00 : f32
    %189 = vector.broadcast %cst_57 : f32 to vector<16x8x8xf32>
    %190 = arith.divf %188, %189 : vector<16x8x8xf32>
    %191 = vector.shape_cast %190 : vector<16x8x8xf32> to vector<2x8x64xf32>
    %cst_58 = arith.constant dense<0.000000e+00> : vector<2x64xf32>
    %192 = vector.multi_reduction <add>, %191, %cst_58 [1] : vector<2x8x64xf32> to vector<2x64xf32>
    %193 = vector.shape_cast %192 : vector<2x64xf32> to vector<2x1x64xf32>
    %cst_59 = arith.constant 8.000000e+00 : f32
    %194 = vector.broadcast %cst_59 : f32 to vector<2x1x64xf32>
    %195 = arith.divf %193, %194 : vector<2x1x64xf32>
    %196 = vector.broadcast %195 : vector<2x1x64xf32> to vector<2x8x64xf32>
    %197 = arith.mulf %191, %196 : vector<2x8x64xf32>
    %198 = vector.shape_cast %197 : vector<2x8x64xf32> to vector<16x64xf32>
    %c0_60 = arith.constant 0 : index
    %c0_61 = arith.constant 0 : index
    %199 = vector.load %arg10[%c0_60, %c0_61] : memref<64x8xf32, #tpu.memory_space<vmem>>, vector<64x8xf32>
    %cst_62 = arith.constant dense<0.000000e+00> : vector<16x8xf32>
    %200 = tpu.matmul %198, %199, %cst_62 {dimension_numbers = #tpu.dot_dimension_numbers<[1], [0], [0], [1], [0, 0, 1, 1], [], []>} : vector<16x64xf32>, vector<64x8xf32>, vector<16x8xf32> -> vector<16x8xf32>
    %c12 = arith.constant 12 : index
    %c0_63 = arith.constant 0 : index
    %201 = vector.load %arg2[%c12, %c0_63] : memref<24x256xf32, #tpu.memory_space<vmem>>, vector<1x8xf32>
    %202 = vector.broadcast %201 : vector<1x8xf32> to vector<16x8xf32>
    %203 = arith.addf %200, %202 : vector<16x8xf32>
    %c15 = arith.constant 15 : index
    %c0_64 = arith.constant 0 : index
    %204 = vector.load %arg2[%c15, %c0_64] : memref<24x256xf32, #tpu.memory_space<vmem>>, vector<1x8xf32>
    %205 = vector.broadcast %204 : vector<1x8xf32> to vector<16x8xf32>
    %206 = arith.subf %203, %205 : vector<16x8xf32>
    %c16 = arith.constant 16 : index
    %c0_65 = arith.constant 0 : index
    %207 = vector.load %arg2[%c16, %c0_65] : memref<24x256xf32, #tpu.memory_space<vmem>>, vector<1x8xf32>
    %cst_66 = arith.constant 9.99999974E-6 : f32
    %208 = vector.broadcast %cst_66 : f32 to vector<1x8xf32>
    %209 = arith.addf %207, %208 : vector<1x8xf32>
    %210 = math.rsqrt %209 : vector<1x8xf32>
    %211 = vector.broadcast %210 : vector<1x8xf32> to vector<16x8xf32>
    %212 = arith.mulf %206, %211 : vector<16x8xf32>
    %c13 = arith.constant 13 : index
    %c0_67 = arith.constant 0 : index
    %213 = vector.load %arg2[%c13, %c0_67] : memref<24x256xf32, #tpu.memory_space<vmem>>, vector<1x8xf32>
    %214 = vector.broadcast %213 : vector<1x8xf32> to vector<16x8xf32>
    %215 = arith.mulf %212, %214 : vector<16x8xf32>
    %c14 = arith.constant 14 : index
    %c0_68 = arith.constant 0 : index
    %216 = vector.load %arg2[%c14, %c0_68] : memref<24x256xf32, #tpu.memory_space<vmem>>, vector<1x8xf32>
    %217 = vector.broadcast %216 : vector<1x8xf32> to vector<16x8xf32>
    %218 = arith.addf %215, %217 : vector<16x8xf32>
    %cst_69 = arith.constant 0.000000e+00 : f32
    %219 = vector.broadcast %cst_69 : f32 to vector<16x8xf32>
    %220 = arith.maximumf %218, %219 : vector<16x8xf32>
    %c0_70 = arith.constant 0 : index
    %c0_71 = arith.constant 0 : index
    %221 = vector.load %arg11[%c0_70, %c0_71] : memref<8x32xf32, #tpu.memory_space<vmem>>, vector<8x32xf32>
    %cst_72 = arith.constant dense<0.000000e+00> : vector<16x32xf32>
    %222 = tpu.matmul %220, %221, %cst_72 {dimension_numbers = #tpu.dot_dimension_numbers<[1], [0], [0], [1], [0, 0, 1, 1], [], []>} : vector<16x8xf32>, vector<8x32xf32>, vector<16x32xf32> -> vector<16x32xf32>
    %c17 = arith.constant 17 : index
    %c0_73 = arith.constant 0 : index
    %223 = vector.load %arg2[%c17, %c0_73] : memref<24x256xf32, #tpu.memory_space<vmem>>, vector<1x32xf32>
    %224 = vector.broadcast %223 : vector<1x32xf32> to vector<16x32xf32>
    %225 = arith.addf %222, %224 : vector<16x32xf32>
    %cst_74 = arith.constant 0.000000e+00 : f32
    %226 = vector.broadcast %cst_74 : f32 to vector<16x32xf32>
    %227 = arith.maximumf %225, %226 : vector<16x32xf32>
    %c18 = arith.constant 18 : index
    %c0_75 = arith.constant 0 : index
    %228 = vector.load %arg2[%c18, %c0_75] : memref<24x256xf32, #tpu.memory_space<vmem>>, vector<1x32xf32>
    %229 = vector.broadcast %228 : vector<1x32xf32> to vector<16x32xf32>
    %230 = arith.mulf %227, %229 : vector<16x32xf32>
    %cst_76 = arith.constant dense<0.000000e+00> : vector<16xf32>
    %231 = vector.multi_reduction <add>, %230, %cst_76 [1] : vector<16x32xf32> to vector<16xf32>
    %232 = vector.shape_cast %231 : vector<16xf32> to vector<16x1xf32>
    %c19 = arith.constant 19 : index
    %c0_77 = arith.constant 0 : index
    %233 = vector.load %arg2[%c19, %c0_77] : memref<24x256xf32, #tpu.memory_space<vmem>>, vector<1x1xf32>
    %234 = vector.broadcast %233 : vector<1x1xf32> to vector<16x1xf32>
    %235 = arith.addf %232, %234 : vector<16x1xf32>
    %cst_78 = arith.constant 3.000000e+00 : f32
    %236 = vector.broadcast %cst_78 : f32 to vector<16x1xf32>
    %237 = arith.addf %235, %236 : vector<16x1xf32>
    %cst_79 = arith.constant 0.000000e+00 : f32
    %cst_80 = arith.constant 6.000000e+00 : f32
    %238 = vector.broadcast %cst_79 : f32 to vector<16x1xf32>
    %239 = arith.maximumf %238, %237 : vector<16x1xf32>
    %240 = vector.broadcast %cst_80 : f32 to vector<16x1xf32>
    %241 = arith.minimumf %240, %239 : vector<16x1xf32>
    %242 = arith.mulf %235, %241 : vector<16x1xf32>
    %cst_81 = arith.constant 0.166666672 : f32
    %243 = vector.broadcast %cst_81 : f32 to vector<16x1xf32>
    %244 = arith.mulf %242, %243 : vector<16x1xf32>
    %245 = vector.shape_cast %244 : vector<16x1xf32> to vector<2x8x1xf32>
    %246 = vector.broadcast %245 : vector<2x8x1xf32> to vector<2x8x64xf32>
    %247 = arith.mulf %191, %246 : vector<2x8x64xf32>
    %cst_82 = arith.constant dense<0.000000e+00> : vector<2x64xf32>
    %248 = vector.multi_reduction <add>, %247, %cst_82 [1] : vector<2x8x64xf32> to vector<2x64xf32>
    %cst_83 = arith.constant 8.000000e+00 : f32
    %249 = vector.broadcast %cst_83 : f32 to vector<2x64xf32>
    %250 = arith.divf %248, %249 : vector<2x64xf32>
    %c0_84 = arith.constant 0 : index
    %c0_85 = arith.constant 0 : index
    %251 = vector.load %arg12[%c0_84, %c0_85] : memref<64x2xf32, #tpu.memory_space<vmem>>, vector<64x2xf32>
    %cst_86 = arith.constant dense<0.000000e+00> : vector<2x2xf32>
    %252 = tpu.matmul %250, %251, %cst_86 {dimension_numbers = #tpu.dot_dimension_numbers<[1], [0], [0], [1], [0, 0, 1, 1], [], []>} : vector<2x64xf32>, vector<64x2xf32>, vector<2x2xf32> -> vector<2x2xf32>
    %c20 = arith.constant 20 : index
    %c0_87 = arith.constant 0 : index
    %253 = vector.load %arg2[%c20, %c0_87] : memref<24x256xf32, #tpu.memory_space<vmem>>, vector<1x2xf32>
    %254 = vector.broadcast %253 : vector<1x2xf32> to vector<2x2xf32>
    %255 = arith.addf %252, %254 : vector<2x2xf32>
    %cst_88 = arith.constant 0.000000e+00 : f32
    %256 = vector.broadcast %cst_88 : f32 to vector<2x54xf32>
    %257 = vector.shape_cast %245 : vector<2x8x1xf32> to vector<2x8xf32>
    %258 = tpu.concatenate %255, %250, %257, %256 in 1 : vector<2x2xf32>, vector<2x64xf32>, vector<2x8xf32>, vector<2x54xf32> -> vector<2x128xf32>
    %c0_89 = arith.constant 0 : index
    %c0_90 = arith.constant 0 : index
    %c0_91 = arith.constant 0 : index
    %259 = vector.load %arg13[%c0_89, %c0_90, %c0_91] : memref<1x2x128xf32, #tpu.memory_space<vmem>>, vector<1x2x128xf32>
    %260 = vector.shape_cast %259 : vector<1x2x128xf32> to vector<2x128xf32>
    %261 = vector.shape_cast %258 : vector<2x128xf32> to vector<1x2x128xf32>
    tpu.vector_store %arg13[%c0_89, %c0_90, %c0_91], %261 {strides = array<i32>} : memref<1x2x128xf32, #tpu.memory_space<vmem>>, vector<1x2x128xf32>,
    return
  }
  func.func @transform_0(%arg0: i32) -> (i32, i32, i32, i32) {
    %c0_i32 = arith.constant 0 : i32
    %c0_i32_0 = arith.constant 0 : i32
    %c0_i32_1 = arith.constant 0 : i32
    %c0_i32_2 = arith.constant 0 : i32
    return %arg0, %c0_i32, %c0_i32_0, %c0_i32_1 : i32, i32, i32, i32
  }
  func.func @transform_1(%arg0: i32) -> (i32, i32) {
    %c0_i32 = arith.constant 0 : i32
    %c0_i32_0 = arith.constant 0 : i32
    %c0_i32_1 = arith.constant 0 : i32
    return %c0_i32, %c0_i32_0 : i32, i32
  }
  func.func @transform_2(%arg0: i32) -> (i32, i32) {
    %c0_i32 = arith.constant 0 : i32
    %c0_i32_0 = arith.constant 0 : i32
    %c0_i32_1 = arith.constant 0 : i32
    return %c0_i32, %c0_i32_0 : i32, i32
  }
  func.func @transform_3(%arg0: i32) -> (i32, i32) {
    %c0_i32 = arith.constant 0 : i32
    %c0_i32_0 = arith.constant 0 : i32
    %c0_i32_1 = arith.constant 0 : i32
    return %c0_i32, %c0_i32_0 : i32, i32
  }
  func.func @transform_4(%arg0: i32) -> (i32, i32) {
    %c0_i32 = arith.constant 0 : i32
    %c0_i32_0 = arith.constant 0 : i32
    %c0_i32_1 = arith.constant 0 : i32
    return %c0_i32, %c0_i32_0 : i32, i32
  }
  func.func @transform_5(%arg0: i32) -> (i32, i32) {
    %c0_i32 = arith.constant 0 : i32
    %c0_i32_0 = arith.constant 0 : i32
    %c0_i32_1 = arith.constant 0 : i32
    return %c0_i32, %c0_i32_0 : i32, i32
  }
  func.func @transform_6(%arg0: i32) -> (i32, i32) {
    %c0_i32 = arith.constant 0 : i32
    %c0_i32_0 = arith.constant 0 : i32
    %c0_i32_1 = arith.constant 0 : i32
    return %c0_i32, %c0_i32_0 : i32, i32
  }
  func.func @transform_7(%arg0: i32) -> (i32, i32) {
    %c0_i32 = arith.constant 0 : i32
    %c0_i32_0 = arith.constant 0 : i32
    %c0_i32_1 = arith.constant 0 : i32
    return %c0_i32, %c0_i32_0 : i32, i32
  }
  func.func @transform_8(%arg0: i32) -> (i32, i32) {
    %c0_i32 = arith.constant 0 : i32
    %c0_i32_0 = arith.constant 0 : i32
    %c0_i32_1 = arith.constant 0 : i32
    return %c0_i32, %c0_i32_0 : i32, i32
  }
  func.func @transform_9(%arg0: i32) -> (i32, i32) {
    %c0_i32 = arith.constant 0 : i32
    %c0_i32_0 = arith.constant 0 : i32
    %c0_i32_1 = arith.constant 0 : i32
    return %c0_i32, %c0_i32_0 : i32, i32
  }
  func.func @transform_10(%arg0: i32) -> (i32, i32) {
    %c0_i32 = arith.constant 0 : i32
    %c0_i32_0 = arith.constant 0 : i32
    %c0_i32_1 = arith.constant 0 : i32
    return %c0_i32, %c0_i32_0 : i32, i32
  }
  func.func @transform_11(%arg0: i32) -> (i32, i32) {
    %c0_i32 = arith.constant 0 : i32
    %c0_i32_0 = arith.constant 0 : i32
    %c0_i32_1 = arith.constant 0 : i32
    return %c0_i32, %c0_i32_0 : i32, i32
  }
  func.func @transform_12(%arg0: i32) -> (i32, i32, i32) {
    %c0_i32 = arith.constant 0 : i32
    %c0_i32_0 = arith.constant 0 : i32
    %c0_i32_1 = arith.constant 0 : i32
    return %arg0, %c0_i32, %c0_i32_0 : i32, i32, i32
  }
}

</mosaic_0001>

<llo_original>
// kernel: tpu_custom_call.1
$region0: #{tpu_custom_call.1}
  #allocation0 [shape = 'u32[]', space=smem, size = 0x4, offset = 0x4, fixed_abs, tag = 'smem constant byte address 0x4 - core index']
  #allocation1 [shape = 'u32[144,128]{1,0:T(1,128)}', space=vmem, size = 0x12000, scoped, tag = 'internal scratch']
  %s0 = inlined_call_operand.vmem [shape: f32[1,2,8,8], index: 0, kind: input, shape index: {}]
  %s1 = inlined_call_operand.hbm [shape: f32[24,256], index: 1, kind: input, shape index: {}]
  %s2 = inlined_call_operand.vmem [shape: f32[48,144], index: 2, kind: input, shape index: {}]
  %s3 = inlined_call_operand.hbm [shape: f32[48,48], index: 3, kind: input, shape index: {}]
  %s4 = inlined_call_operand.hbm [shape: f32[48,128], index: 4, kind: input, shape index: {}]
  %s5 = inlined_call_operand.vmem [shape: f32[128,48], index: 5, kind: input, shape index: {}]
  %s6 = inlined_call_operand.hbm [shape: f32[48,96], index: 6, kind: input, shape index: {}]
  %s7 = inlined_call_operand.vmem [shape: f32[96,192], index: 7, kind: input, shape index: {}]
  %s8 = inlined_call_operand.vmem [shape: f32[8,96], index: 8, kind: input, shape index: {}]
  %s9 = inlined_call_operand.vmem [shape: f32[64,8], index: 9, kind: input, shape index: {}]
  %s10 = inlined_call_operand.vmem [shape: f32[8,32], index: 10, kind: input, shape index: {}]
  %s11 = inlined_call_operand.vmem [shape: f32[64,2], index: 11, kind: input, shape index: {}]
  %s12 = inlined_call_operand.hbm [shape: f32[1,2,128], index: 12, kind: output, shape index: {}]
  %s13 = sld [smem:[#allocation0]]
  $region74: #{tpu_custom_call.1} parent=0
    _
  %s15 = ssub.s32 1, %s13
  %s16 = scalar_select 0, %s15, %s13
  $region1: #{tpu_custom_call.1} parent=0
    #allocation2 [shape = 'u8[24576]{0}', space=vmem, size = 0x6000, scoped, tag = 'input window, operand 1, single buffered']
    #allocation3 [shape = 's32[1]{0}', space=sflag, size = 0x4, scoped, tag = 'scoped memory for tpu_custom_call.1']
    #allocation4 [shape = 's32[1]{0}', space=sflag, size = 0x4, scoped, tag = 'scoped memory for tpu_custom_call.1']
    #allocation5 [shape = 'u8[24576]{0}', space=vmem, size = 0x6000, scoped, tag = 'input window, operand 3, single buffered']
    #allocation6 [shape = 's32[1]{0}', space=sflag, size = 0x4, scoped, tag = 'scoped memory for tpu_custom_call.1']
    #allocation7 [shape = 'u8[24576]{0}', space=vmem, size = 0x6000, scoped, tag = 'input window, operand 4, single buffered']
    #allocation8 [shape = 'u8[24576]{0}', space=vmem, size = 0x6000, scoped, tag = 'input window, operand 6, single buffered']
    #allocation9 [shape = 's32[1]{0}', space=sflag, size = 0x4, scoped, tag = 'scoped memory for tpu_custom_call.1']
    #allocation10 [shape = 'u8[1024]{0}', space=vmem, size = 0x400, scoped, tag = 'output window, operand 0, single buffered']
    %17 = vsyncpa [#allocation3], 0
    %18 = vsyncpa [#allocation6], 0
    %19 = vsyncpa [#allocation9], 0
    %20 = vsyncpa [#allocation4], 0
    // Predicated region
    $region2: #{tpu_custom_call.1} parent=1 // pred_check
      _
    $region3: #{tpu_custom_call.1} parent=1 // pred_check_branch
      %22 = sbr.rel (0) target = $region5
    $region4: #{tpu_custom_call.1} parent=1 // pred_region
      _
    $region5: #{tpu_custom_call.1} parent=1 // pred_fallthru
      _
    // Predicated region
    $region6: #{tpu_custom_call.1} parent=1 // pred_check
      _
    $region7: #{tpu_custom_call.1} parent=1 // pred_check_branch
      %24 = sbr.rel (0) target = $region9
    $region8: #{tpu_custom_call.1} parent=1 // pred_region
      %s26 = ssub.s32 768, 768
      %27 = vsyncadd [#allocation3], %s26
      %s28 = sshll.u32 [#allocation2], 4
      %s29 = int_to_ptr.vmem [resolvable:$true] %s28
      %34 = dma.hbm_to_vmem [thread:$0]  %s1, 768, %s29, [#allocation3], 256, 256, 16
    $region9: #{tpu_custom_call.1} parent=1 // pred_fallthru
      _
    // Predicated region
    $region10: #{tpu_custom_call.1} parent=1 // pred_check
      _
    $region11: #{tpu_custom_call.1} parent=1 // pred_check_branch
      %36 = sbr.rel (0) target = $region13
    $region12: #{tpu_custom_call.1} parent=1 // pred_region
      _
    $region13: #{tpu_custom_call.1} parent=1 // pred_fallthru
      _
    // Predicated region
    $region14: #{tpu_custom_call.1} parent=1 // pred_check
      _
    $region15: #{tpu_custom_call.1} parent=1 // pred_check_branch
      %38 = sbr.rel (0) target = $region17
    $region16: #{tpu_custom_call.1} parent=1 // pred_region
      %s40 = ssub.s32 768, 768
      %41 = vsyncadd [#allocation6], %s40
      %s42 = sshll.u32 [#allocation5], 4
      %s43 = int_to_ptr.vmem [resolvable:$true] %s42
      %48 = dma.hbm_to_vmem [thread:$0]  %s3, 768, %s43, [#allocation6], 128, 128, 8
    $region17: #{tpu_custom_call.1} parent=1 // pred_fallthru
      _
    // Predicated region
    $region18: #{tpu_custom_call.1} parent=1 // pred_check
      _
    $region19: #{tpu_custom_call.1} parent=1 // pred_check_branch
      %50 = sbr.rel (0) target = $region21
    $region20: #{tpu_custom_call.1} parent=1 // pred_region
      %s52 = ssub.s32 768, 768
      %53 = vsyncadd [#allocation6], %s52
      %s54 = sshll.u32 [#allocation7], 4
      %s55 = int_to_ptr.vmem [resolvable:$true] %s54
      %60 = dma.hbm_to_vmem [thread:$0]  %s4, 768, %s55, [#allocation6], 128, 128, 8
    $region21: #{tpu_custom_call.1} parent=1 // pred_fallthru
      _
    // Predicated region
    $region22: #{tpu_custom_call.1} parent=1 // pred_check
      _
    $region23: #{tpu_custom_call.1} parent=1 // pred_check_branch
      %62 = sbr.rel (0) target = $region25
    $region24: #{tpu_custom_call.1} parent=1 // pred_region
      _
    $region25: #{tpu_custom_call.1} parent=1 // pred_fallthru
      _
    // Predicated region
    $region26: #{tpu_custom_call.1} parent=1 // pred_check
      _
    $region27: #{tpu_custom_call.1} parent=1 // pred_check_branch
      %64 = sbr.rel (0) target = $region29
    $region28: #{tpu_custom_call.1} parent=1 // pred_region
      %s66 = ssub.s32 768, 768
      %67 = vsyncadd [#allocation9], %s66
      %s68 = sshll.u32 [#allocation8], 4
      %s69 = int_to_ptr.vmem [resolvable:$true] %s68
      %74 = dma.hbm_to_vmem [thread:$0]  %s6, 768, %s69, [#allocation9], 128, 128, 8
    $region29: #{tpu_custom_call.1} parent=1 // pred_fallthru
      _
    // Predicated region
    $region30: #{tpu_custom_call.1} parent=1 // pred_check
      _
    $region31: #{tpu_custom_call.1} parent=1 // pred_check_branch
      %76 = sbr.rel (0) target = $region33
    $region32: #{tpu_custom_call.1} parent=1 // pred_region
      _
    $region33: #{tpu_custom_call.1} parent=1 // pred_fallthru
      _
    // Predicated region
    $region34: #{tpu_custom_call.1} parent=1 // pred_check
      _
    $region35: #{tpu_custom_call.1} parent=1 // pred_check_branch
      %78 = sbr.rel (0) target = $region37
    $region36: #{tpu_custom_call.1} parent=1 // pred_region
      _
    $region37: #{tpu_custom_call.1} parent=1 // pred_fallthru
      _
    // Predicated region
    $region38: #{tpu_custom_call.1} parent=1 // pred_check
      _
    $region39: #{tpu_custom_call.1} parent=1 // pred_check_branch
      %80 = sbr.rel (0) target = $region41
    $region40: #{tpu_custom_call.1} parent=1 // pred_region
      _
    $region41: #{tpu_custom_call.1} parent=1 // pred_fallthru
      _
    // Predicated region
    $region42: #{tpu_custom_call.1} parent=1 // pred_check
      _
    $region43: #{tpu_custom_call.1} parent=1 // pred_check_branch
      %82 = sbr.rel (0) target = $region45
    $region44: #{tpu_custom_call.1} parent=1 // pred_region
      _
    $region45: #{tpu_custom_call.1} parent=1 // pred_fallthru
      _
    // Predicated region
    $region46: #{tpu_custom_call.1} parent=1 // pred_check
      _
    $region47: #{tpu_custom_call.1} parent=1 // pred_check_branch
      %84 = sbr.rel (0) target = $region49
    $region48: #{tpu_custom_call.1} parent=1 // pred_region
      _
    $region49: #{tpu_custom_call.1} parent=1 // pred_fallthru
      _
    // Predicated region
    $region50: #{tpu_custom_call.1} parent=1 // pred_check
      _
    $region51: #{tpu_custom_call.1} parent=1 // pred_check_branch
      %86 = sbr.rel (0) target = $region53
    $region52: #{tpu_custom_call.1} parent=1 // pred_region
      %87 = dma.done [#allocation3], 768
    $region53: #{tpu_custom_call.1} parent=1 // pred_fallthru
      _
    // Predicated region
    $region54: #{tpu_custom_call.1} parent=1 // pred_check
      _
    $region55: #{tpu_custom_call.1} parent=1 // pred_check_branch
      %89 = sbr.rel (0) target = $region57
    $region56: #{tpu_custom_call.1} parent=1 // pred_region
      %90 = dma.done [#allocation6], 768
    $region57: #{tpu_custom_call.1} parent=1 // pred_fallthru
      _
    // Predicated region
    $region58: #{tpu_custom_call.1} parent=1 // pred_check
      _
    $region59: #{tpu_custom_call.1} parent=1 // pred_check_branch
      %92 = sbr.rel (0) target = $region61
    $region60: #{tpu_custom_call.1} parent=1 // pred_region
      %93 = dma.done [#allocation6], 768
    $region61: #{tpu_custom_call.1} parent=1 // pred_fallthru
      _
    // Predicated region
    $region62: #{tpu_custom_call.1} parent=1 // pred_check
      _
    $region63: #{tpu_custom_call.1} parent=1 // pred_check_branch
      %95 = sbr.rel (0) target = $region65
    $region64: #{tpu_custom_call.1} parent=1 // pred_region
      %96 = dma.done [#allocation9], 768
    $region65: #{tpu_custom_call.1} parent=1 // pred_fallthru
      _
    %v98 = vld [vmem:[%s0] sm:$0xff]
    %v99 = vld [vmem:[%s0 + $0x8] sm:$0xff]
    %v100 = vlaneseq
    %v101 = vshrl.u32 %v100, 7
    %v102 = vsub.s32 0, %v101
    %v103 = vrot.slane %v98, %v102
    %105 = vbcast.lane.b32.xlu0 %v103, 256
    %v106 = vpop.permute.xlu0 %105
    %v107 = vlaneseq
    %v108 = vshrl.u32 %v107, 7
    %v109 = vsub.s32 1, %v108
    %v110 = vrot.slane %v98, %v109
    %112 = vbcast.lane.b32.xlu0 %v110, 256
    %v113 = vpop.permute.xlu0 %112
    %v114 = vlaneseq
    %v115 = vshrl.u32 %v114, 7
    %v116 = vsub.s32 2, %v115
    %v117 = vrot.slane %v98, %v116
    %119 = vbcast.lane.b32.xlu0 %v117, 256
    %v120 = vpop.permute.xlu0 %119
    %v121 = vlaneseq
    %v122 = vshrl.u32 %v121, 7
    %v123 = vsub.s32 3, %v122
    %v124 = vrot.slane %v98, %v123
    %126 = vbcast.lane.b32.xlu0 %v124, 256
    %v127 = vpop.permute.xlu0 %126
    %v128 = vlaneseq
    %v129 = vshrl.u32 %v128, 7
    %v130 = vsub.s32 4, %v129
    %v131 = vrot.slane %v98, %v130
    %133 = vbcast.lane.b32.xlu0 %v131, 256
    %v134 = vpop.permute.xlu0 %133
    %v135 = vlaneseq
    %v136 = vshrl.u32 %v135, 7
    %v137 = vsub.s32 5, %v136
    %v138 = vrot.slane %v98, %v137
    %140 = vbcast.lane.b32.xlu0 %v138, 256
    %v141 = vpop.permute.xlu0 %140
    %v142 = vlaneseq
    %v143 = vshrl.u32 %v142, 7
    %v144 = vsub.s32 6, %v143
    %v145 = vrot.slane %v98, %v144
    %147 = vbcast.lane.b32.xlu0 %v145, 256
    %v148 = vpop.permute.xlu0 %147
    %v149 = vlaneseq
    %v150 = vshrl.u32 %v149, 7
    %v151 = vsub.s32 7, %v150
    %v152 = vrot.slane %v98, %v151
    %154 = vbcast.lane.b32.xlu0 %v152, 256
    %v155 = vpop.permute.xlu0 %154
    %v156 = vlaneseq
    %v157 = vshrl.u32 %v156, 7
    %v158 = vsub.s32 0, %v157
    %v159 = vrot.slane %v99, %v158
    %161 = vbcast.lane.b32.xlu0 %v159, 256
    %v162 = vpop.permute.xlu0 %161
    %v163 = vlaneseq
    %v164 = vshrl.u32 %v163, 7
    %v165 = vsub.s32 1, %v164
    %v166 = vrot.slane %v99, %v165
    %168 = vbcast.lane.b32.xlu0 %v166, 256
    %v169 = vpop.permute.xlu0 %168
    %v170 = vlaneseq
    %v171 = vshrl.u32 %v170, 7
    %v172 = vsub.s32 2, %v171
    %v173 = vrot.slane %v99, %v172
    %175 = vbcast.lane.b32.xlu0 %v173, 256
    %v176 = vpop.permute.xlu0 %175
    %v177 = vlaneseq
    %v178 = vshrl.u32 %v177, 7
    %v179 = vsub.s32 3, %v178
    %v180 = vrot.slane %v99, %v179
    %182 = vbcast.lane.b32.xlu0 %v180, 256
    %v183 = vpop.permute.xlu0 %182
    %v184 = vlaneseq
    %v185 = vshrl.u32 %v184, 7
    %v186 = vsub.s32 4, %v185
    %v187 = vrot.slane %v99, %v186
    %189 = vbcast.lane.b32.xlu0 %v187, 256
    %v190 = vpop.permute.xlu0 %189
    %v191 = vlaneseq
    %v192 = vshrl.u32 %v191, 7
    %v193 = vsub.s32 5, %v192
    %v194 = vrot.slane %v99, %v193
    %196 = vbcast.lane.b32.xlu0 %v194, 256
    %v197 = vpop.permute.xlu0 %196
    %v198 = vlaneseq
    %v199 = vshrl.u32 %v198, 7
    %v200 = vsub.s32 6, %v199
    %v201 = vrot.slane %v99, %v200
    %203 = vbcast.lane.b32.xlu0 %v201, 256
    %v204 = vpop.permute.xlu0 %203
    %v205 = vlaneseq
    %v206 = vshrl.u32 %v205, 7
    %v207 = vsub.s32 7, %v206
    %v208 = vrot.slane %v99, %v207
    %210 = vbcast.lane.b32.xlu0 %v208, 256
    %v211 = vpop.permute.xlu0 %210
    %v212 = vld [vmem:[#allocation2] ss:$0 sm:$0xff]
    %v213 = vmul.f32 %v106, %v212
    %v214 = vmul.f32 %v113, %v212
    %v215 = vmul.f32 %v120, %v212
    %v216 = vmul.f32 %v127, %v212
    %v217 = vmul.f32 %v134, %v212
    %v218 = vmul.f32 %v141, %v212
    %v219 = vmul.f32 %v148, %v212
    %v220 = vmul.f32 %v155, %v212
    %v221 = vmul.f32 %v162, %v212
    %v222 = vmul.f32 %v169, %v212
    %v223 = vmul.f32 %v176, %v212
    %v224 = vmul.f32 %v183, %v212
    %v225 = vmul.f32 %v190, %v212
    %v226 = vmul.f32 %v197, %v212
    %v227 = vmul.f32 %v204, %v212
    %v228 = vmul.f32 %v211, %v212
    %v229 = vld [vmem:[#allocation2 + $0x1] ss:$0 sm:$0xff]
    %v230 = vadd.f32 %v213, %v229
    %v231 = vadd.f32 %v214, %v229
    %v232 = vadd.f32 %v215, %v229
    %v233 = vadd.f32 %v216, %v229
    %v234 = vadd.f32 %v217, %v229
    %v235 = vadd.f32 %v218, %v229
    %v236 = vadd.f32 %v219, %v229
    %v237 = vadd.f32 %v220, %v229
    %v238 = vadd.f32 %v221, %v229
    %v239 = vadd.f32 %v222, %v229
    %v240 = vadd.f32 %v223, %v229
    %v241 = vadd.f32 %v224, %v229
    %v242 = vadd.f32 %v225, %v229
    %v243 = vadd.f32 %v226, %v229
    %v244 = vadd.f32 %v227, %v229
    %v245 = vadd.f32 %v228, %v229
    %v246 = vxor.u32 %v230, 2147483648
    %v247 = vxor.u32 %v231, 2147483648
    %v248 = vxor.u32 %v232, 2147483648
    %v249 = vxor.u32 %v233, 2147483648
    %v250 = vxor.u32 %v234, 2147483648
    %v251 = vxor.u32 %v235, 2147483648
    %v252 = vxor.u32 %v236, 2147483648
    %v253 = vxor.u32 %v237, 2147483648
    %v254 = vxor.u32 %v238, 2147483648
    %v255 = vxor.u32 %v239, 2147483648
    %v256 = vxor.u32 %v240, 2147483648
    %v257 = vxor.u32 %v241, 2147483648
    %v258 = vxor.u32 %v242, 2147483648
    %v259 = vxor.u32 %v243, 2147483648
    %v260 = vxor.u32 %v244, 2147483648
    %v261 = vxor.u32 %v245, 2147483648
    %v262 = vmul.f32 %v246, 1.442695
    %v263 = vpow.pop %v262
    %v264 = vmul.f32 %v247, 1.442695
    %v265 = vpow.pop %v264
    %v266 = vmul.f32 %v248, 1.442695
    %v267 = vpow.pop %v266
    %v268 = vmul.f32 %v249, 1.442695
    %v269 = vpow.pop %v268
    %v270 = vmul.f32 %v250, 1.442695
    %v271 = vpow.pop %v270
    %v272 = vmul.f32 %v251, 1.442695
    %v273 = vpow.pop %v272
    %v274 = vmul.f32 %v252, 1.442695
    %v275 = vpow.pop %v274
    %v276 = vmul.f32 %v253, 1.442695
    %v277 = vpow.pop %v276
    %v278 = vmul.f32 %v254, 1.442695
    %v279 = vpow.pop %v278
    %v280 = vmul.f32 %v255, 1.442695
    %v281 = vpow.pop %v280
    %v282 = vmul.f32 %v256, 1.442695
    %v283 = vpow.pop %v282
    %v284 = vmul.f32 %v257, 1.442695
    %v285 = vpow.pop %v284
    %v286 = vmul.f32 %v258, 1.442695
    %v287 = vpow.pop %v286
    %v288 = vmul.f32 %v259, 1.442695
    %v289 = vpow.pop %v288
    %v290 = vmul.f32 %v260, 1.442695
    %v291 = vpow.pop %v290
    %v292 = vmul.f32 %v261, 1.442695
    %v293 = vpow.pop %v292
    %v294 = vadd.f32 %v263, 1.0
    %v295 = vadd.f32 %v265, 1.0
    %v296 = vadd.f32 %v267, 1.0
    %v297 = vadd.f32 %v269, 1.0
    %v298 = vadd.f32 %v271, 1.0
    %v299 = vadd.f32 %v273, 1.0
    %v300 = vadd.f32 %v275, 1.0
    %v301 = vadd.f32 %v277, 1.0
    %v302 = vadd.f32 %v279, 1.0
    %v303 = vadd.f32 %v281, 1.0
    %v304 = vadd.f32 %v283, 1.0
    %v305 = vadd.f32 %v285, 1.0
    %v306 = vadd.f32 %v287, 1.0
    %v307 = vadd.f32 %v289, 1.0
    %v308 = vadd.f32 %v291, 1.0
    %v309 = vadd.f32 %v293, 1.0
    %v310 = vrcp.pop %v294
    %v311 = vmul.f32 1.0, %v310
    %v312 = vrcp.pop %v295
    %v313 = vmul.f32 1.0, %v312
    %v314 = vrcp.pop %v296
    %v315 = vmul.f32 1.0, %v314
    %v316 = vrcp.pop %v297
    %v317 = vmul.f32 1.0, %v316
    %v318 = vrcp.pop %v298
    %v319 = vmul.f32 1.0, %v318
    %v320 = vrcp.pop %v299
    %v321 = vmul.f32 1.0, %v320
    %v322 = vrcp.pop %v300
    %v323 = vmul.f32 1.0, %v322
    %v324 = vrcp.pop %v301
    %v325 = vmul.f32 1.0, %v324
    %v326 = vrcp.pop %v302
    %v327 = vmul.f32 1.0, %v326
    %v328 = vrcp.pop %v303
    %v329 = vmul.f32 1.0, %v328
    %v330 = vrcp.pop %v304
    %v331 = vmul.f32 1.0, %v330
    %v332 = vrcp.pop %v305
    %v333 = vmul.f32 1.0, %v332
    %v334 = vrcp.pop %v306
    %v335 = vmul.f32 1.0, %v334
    %v336 = vrcp.pop %v307
    %v337 = vmul.f32 1.0, %v336
    %v338 = vrcp.pop %v308
    %v339 = vmul.f32 1.0, %v338
    %v340 = vrcp.pop %v309
    %v341 = vmul.f32 1.0, %v340
    %v342 = vpack.c.bf16 %v313, %v311
    %v343 = vpack.c.bf16 %v317, %v315
    %v344 = vpack.c.bf16 %v321, %v319
    %v345 = vpack.c.bf16 %v325, %v323
    %v346 = vpack.c.bf16 %v329, %v327
    %v347 = vpack.c.bf16 %v333, %v331
    %v348 = vpack.c.bf16 %v337, %v335
    %v349 = vpack.c.bf16 %v341, %v339
    %v350 = vld [vmem:[%s2] sm:$0xff]
    %v351 = vld [vmem:[%s2 + $0x8] sm:$0xff]
    %v352 = vld [vmem:[%s2 + $0x10] sm:$0xff]
    %v353 = vld [vmem:[%s2 + $0x18] sm:$0xff]
    %v354 = vld [vmem:[%s2 + $0x20] sm:$0xff]
    %v355 = vld [vmem:[%s2 + $0x28] sm:$0xff]
    %v356 = vld [vmem:[%s2 + $0x30] sm:$0xff]
    %v357 = vld [vmem:[%s2 + $0x38] sm:$0xff]
    %v358 = vld [vmem:[%s2 + $0x40] sm:$0xff]
    %v359 = vld [vmem:[%s2 + $0x48] sm:$0xff]
    %v360 = vld [vmem:[%s2 + $0x50] sm:$0xff]
    %v361 = vld [vmem:[%s2 + $0x58] sm:$0xff]
    %v362 = vpack.c.bf16 %v352, %v350
    %v363 = vpack.c.bf16 %v353, %v351
    %v364 = vpack.c.bf16 %v356, %v354
    %v365 = vpack.c.bf16 %v357, %v355
    %v366 = vpack.c.bf16 %v360, %v358
    %v367 = vpack.c.bf16 %v361, %v359
    %s368 = scalar_lea.vmem [#allocation2], 2
    %v369 = vld [vmem:[%s368] ss:$8 sm:$0x3]
    %v371 = vlaneseq
    %v372 = vshrl.u32 %v371, 7
    %v373 = vsub.s32 0, %v372
    %v374 = vrot.slane %v369, %v373
    %v375 = vlaneseq
    %v376 = vshrl.u32 %v375, 7
    %v377 = vsub.s32 1, %v376
    %v378 = vrot.slane %v369, %v377
    %vm381 = vcmask 392192
    %v383 = vsel %vm381, %v342, 0
    %v386 = vsel %vm381, %v343, 0
    %v389 = vsel %vm381, %v344, 0
    %v392 = vsel %vm381, %v345, 0
    %v395 = vsel %vm381, %v346, 0
    %v398 = vsel %vm381, %v347, 0
    %v401 = vsel %vm381, %v348, 0
    %v404 = vsel %vm381, %v349, 0
    %406 = vmatprep.subr.bf16.mxu0 0
    %407 = vmatpush1.bf16.msra.mxu0 0
    %408 = vmatprep.subr.bf16.mxu0 0
    %409 = vmatpush1.bf16.msra.mxu0 0
    %410 = vmatprep.subr.bf16.mxu0 0
    %411 = vmatpush1.bf16.msra.mxu0 0
    %412 = vmatprep.subr.bf16.mxu0 0
    %413 = vmatpush1.bf16.msra.mxu0 0
    %414 = vmatprep.subr.bf16.mxu0 0
    %415 = vmatpush1.bf16.msra.mxu0 0
    %416 = vmatprep.subr.bf16.mxu0 %v367
    %417 = vmatpush1.bf16.msra.mxu0 %v366
    %418 = vmatprep.subr.bf16.mxu0 %v365
    %419 = vmatpush1.bf16.msra.mxu0 %v364
    %420 = vmatprep.subr.bf16.mxu0 %v363
    %421 = vmatpush1.bf16.msra.mxu0 %v362
    %422 = vmatprep.subr.bf16.mxu0 0
    %423 = vmatpush2.bf16.msra.mxu0 0
    %424 = vmatprep.subr.bf16.mxu0 0
    %425 = vmatpush2.bf16.msra.mxu0 0
    %426 = vmatprep.subr.bf16.mxu0 0
    %427 = vmatpush2.bf16.msra.mxu0 0
    %428 = vmatprep.subr.bf16.mxu0 0
    %429 = vmatpush2.bf16.msra.mxu0 0
    %430 = vmatprep.subr.bf16.mxu0 0
    %431 = vmatpush2.bf16.msra.mxu0 0
    %432 = vmatprep.subr.bf16.mxu0 0
    %433 = vmatpush2.bf16.msra.mxu0 0
    %434 = vmatprep.subr.bf16.mxu0 0
    %435 = vmatpush2.bf16.msra.mxu0 0
    %436 = vmatprep.subr.bf16.mxu0 0
    %437 = vmatpush2.bf16.msra.mxu0 0
    %438 = vmatprep.mubr.bf16.mxu0 0
    %439 = vmatmul.mubr.bf16.gmra.mxu0 %v383
    %v440 = vpop.f32.mrf.mxu0
    %v441 = vadd.f32 %v374, %v440
    %v442 = vpop.f32.mrf.mxu0
    %v443 = vadd.f32 %v378, %v442
    %v444 = vpop.f32.mrf.mxu0
    %v445 = vadd.f32 %v374, %v444
    %v446 = vpop.f32.mrf.mxu0
    %v447 = vadd.f32 %v378, %v446
    %448 = vmatprep.mubr.bf16.mxu0 0
    %449 = vmatmul.mubr.bf16.gmra.mxu0 %v386
    %v450 = vpop.f32.mrf.mxu0
    %v451 = vadd.f32 %v374, %v450
    %v452 = vpop.f32.mrf.mxu0
    %v453 = vadd.f32 %v378, %v452
    %v454 = vpop.f32.mrf.mxu0
    %v455 = vadd.f32 %v374, %v454
    %v456 = vpop.f32.mrf.mxu0
    %v457 = vadd.f32 %v378, %v456
    %458 = vmatprep.mubr.bf16.mxu0 0
    %459 = vmatmul.mubr.bf16.gmra.mxu0 %v389
    %v460 = vpop.f32.mrf.mxu0
    %v461 = vadd.f32 %v374, %v460
    %v462 = vpop.f32.mrf.mxu0
    %v463 = vadd.f32 %v378, %v462
    %v464 = vpop.f32.mrf.mxu0
    %v465 = vadd.f32 %v374, %v464
    %v466 = vpop.f32.mrf.mxu0
    %v467 = vadd.f32 %v378, %v466
    %468 = vmatprep.mubr.bf16.mxu0 0
    %469 = vmatmul.mubr.bf16.gmra.mxu0 %v392
    %v470 = vpop.f32.mrf.mxu0
    %v471 = vadd.f32 %v374, %v470
    %v472 = vpop.f32.mrf.mxu0
    %v473 = vadd.f32 %v378, %v472
    %v474 = vpop.f32.mrf.mxu0
    %v475 = vadd.f32 %v374, %v474
    %v476 = vpop.f32.mrf.mxu0
    %v477 = vadd.f32 %v378, %v476
    %478 = vmatprep.mubr.bf16.mxu0 0
    %479 = vmatmul.mubr.bf16.gmra.mxu0 %v395
    %v480 = vpop.f32.mrf.mxu0
    %v481 = vadd.f32 %v374, %v480
    %v482 = vpop.f32.mrf.mxu0
    %v483 = vadd.f32 %v378, %v482
    %v484 = vpop.f32.mrf.mxu0
    %v485 = vadd.f32 %v374, %v484
    %v486 = vpop.f32.mrf.mxu0
    %v487 = vadd.f32 %v378, %v486
    %488 = vmatprep.mubr.bf16.mxu0 0
    %489 = vmatmul.mubr.bf16.gmra.mxu0 %v398
    %v490 = vpop.f32.mrf.mxu0
    %v491 = vadd.f32 %v374, %v490
    %v492 = vpop.f32.mrf.mxu0
    %v493 = vadd.f32 %v378, %v492
    %v494 = vpop.f32.mrf.mxu0
    %v495 = vadd.f32 %v374, %v494
    %v496 = vpop.f32.mrf.mxu0
    %v497 = vadd.f32 %v378, %v496
    %498 = vmatprep.mubr.bf16.mxu0 0
    %499 = vmatmul.mubr.bf16.gmra.mxu0 %v401
    %v500 = vpop.f32.mrf.mxu0
    %v501 = vadd.f32 %v374, %v500
    %v502 = vpop.f32.mrf.mxu0
    %v503 = vadd.f32 %v378, %v502
    %v504 = vpop.f32.mrf.mxu0
    %v505 = vadd.f32 %v374, %v504
    %v506 = vpop.f32.mrf.mxu0
    %v507 = vadd.f32 %v378, %v506
    %508 = vmatprep.mubr.bf16.mxu0 0
    %509 = vmatmul.mubr.bf16.gmra.mxu0 %v404
    %v510 = vpop.f32.mrf.mxu0
    %v511 = vadd.f32 %v374, %v510
    %v512 = vpop.f32.mrf.mxu0
    %v513 = vadd.f32 %v378, %v512
    %v514 = vpop.f32.mrf.mxu0
    %v515 = vadd.f32 %v374, %v514
    %v516 = vpop.f32.mrf.mxu0
    %v517 = vadd.f32 %v378, %v516
    %518 = vdwg.mxu0
    %535 = vrot.lane.b32.xlu0 %v441, 104
    %v536 = vpop.permute.xlu0 %535
    %537 = vrot.lane.b32.xlu0 %v445, 104
    %v538 = vpop.permute.xlu0 %537
    %539 = vrot.lane.b32.xlu0 %v451, 104
    %v540 = vpop.permute.xlu0 %539
    %541 = vrot.lane.b32.xlu0 %v455, 104
    %v542 = vpop.permute.xlu0 %541
    %543 = vrot.lane.b32.xlu0 %v461, 104
    %v544 = vpop.permute.xlu0 %543
    %545 = vrot.lane.b32.xlu0 %v465, 104
    %v546 = vpop.permute.xlu0 %545
    %547 = vrot.lane.b32.xlu0 %v471, 104
    %v548 = vpop.permute.xlu0 %547
    %549 = vrot.lane.b32.xlu0 %v475, 104
    %v550 = vpop.permute.xlu0 %549
    %551 = vrot.lane.b32.xlu0 %v481, 104
    %v552 = vpop.permute.xlu0 %551
    %553 = vrot.lane.b32.xlu0 %v485, 104
    %v554 = vpop.permute.xlu0 %553
    %555 = vrot.lane.b32.xlu0 %v491, 104
    %v556 = vpop.permute.xlu0 %555
    %557 = vrot.lane.b32.xlu0 %v495, 104
    %v558 = vpop.permute.xlu0 %557
    %559 = vrot.lane.b32.xlu0 %v501, 104
    %v560 = vpop.permute.xlu0 %559
    %561 = vrot.lane.b32.xlu0 %v505, 104
    %v562 = vpop.permute.xlu0 %561
    %563 = vrot.lane.b32.xlu0 %v511, 104
    %v564 = vpop.permute.xlu0 %563
    %565 = vrot.lane.b32.xlu0 %v515, 104
    %v566 = vpop.permute.xlu0 %565
    %v583 = vmul.f32 %v441, 0.20412415
    %v584 = vmul.f32 %v445, 0.20412415
    %v585 = vmul.f32 %v451, 0.20412415
    %v586 = vmul.f32 %v455, 0.20412415
    %v587 = vmul.f32 %v461, 0.20412415
    %v588 = vmul.f32 %v465, 0.20412415
    %v589 = vmul.f32 %v471, 0.20412415
    %v590 = vmul.f32 %v475, 0.20412415
    %v591 = vmul.f32 %v481, 0.20412415
    %v592 = vmul.f32 %v485, 0.20412415
    %v593 = vmul.f32 %v491, 0.20412415
    %v594 = vmul.f32 %v495, 0.20412415
    %v595 = vmul.f32 %v501, 0.20412415
    %v596 = vmul.f32 %v505, 0.20412415
    %v597 = vmul.f32 %v511, 0.20412415
    %v598 = vmul.f32 %v515, 0.20412415
    %v599 = vmul.f32 %v536, 0.20412415
    %v600 = vmul.f32 %v538, 0.20412415
    %v601 = vmul.f32 %v540, 0.20412415
    %v602 = vmul.f32 %v542, 0.20412415
    %v603 = vmul.f32 %v544, 0.20412415
    %v604 = vmul.f32 %v546, 0.20412415
    %v605 = vmul.f32 %v548, 0.20412415
    %v606 = vmul.f32 %v550, 0.20412415
    %v607 = vmul.f32 %v552, 0.20412415
    %v608 = vmul.f32 %v554, 0.20412415
    %v609 = vmul.f32 %v556, 0.20412415
    %v610 = vmul.f32 %v558, 0.20412415
    %v611 = vmul.f32 %v560, 0.20412415
    %v612 = vmul.f32 %v562, 0.20412415
    %v613 = vmul.f32 %v564, 0.20412415
    %v614 = vmul.f32 %v566, 0.20412415
    %631 = vrot.lane.b32.xlu0 %v443, 104
    %v632 = vpop.permute.xlu0 %631
    %633 = vrot.lane.b32.xlu0 %v447, 104
    %v634 = vpop.permute.xlu0 %633
    %635 = vrot.lane.b32.xlu0 %v453, 104
    %v636 = vpop.permute.xlu0 %635
    %637 = vrot.lane.b32.xlu0 %v457, 104
    %v638 = vpop.permute.xlu0 %637
    %639 = vrot.lane.b32.xlu0 %v463, 104
    %v640 = vpop.permute.xlu0 %639
    %641 = vrot.lane.b32.xlu0 %v467, 104
    %v642 = vpop.permute.xlu0 %641
    %643 = vrot.lane.b32.xlu0 %v473, 104
    %v644 = vpop.permute.xlu0 %643
    %645 = vrot.lane.b32.xlu0 %v477, 104
    %v646 = vpop.permute.xlu0 %645
    %647 = vrot.lane.b32.xlu0 %v483, 104
    %v648 = vpop.permute.xlu0 %647
    %649 = vrot.lane.b32.xlu0 %v487, 104
    %v650 = vpop.permute.xlu0 %649
    %651 = vrot.lane.b32.xlu0 %v493, 104
    %v652 = vpop.permute.xlu0 %651
    %653 = vrot.lane.b32.xlu0 %v497, 104
    %v654 = vpop.permute.xlu0 %653
    %655 = vrot.lane.b32.xlu0 %v503, 104
    %v656 = vpop.permute.xlu0 %655
    %657 = vrot.lane.b32.xlu0 %v507, 104
    %v658 = vpop.permute.xlu0 %657
    %659 = vrot.lane.b32.xlu0 %v513, 104
    %v660 = vpop.permute.xlu0 %659
    %661 = vrot.lane.b32.xlu0 %v517, 104
    %v662 = vpop.permute.xlu0 %661
    %vm663 = vcmask 850944
    %v664 = vsel %vm663, %v536, %v632
    %v665 = vsel %vm663, %v538, %v634
    %v666 = vsel %vm663, %v540, %v636
    %v667 = vsel %vm663, %v542, %v638
    %v668 = vsel %vm663, %v544, %v640
    %v669 = vsel %vm663, %v546, %v642
    %v670 = vsel %vm663, %v548, %v644
    %v671 = vsel %vm663, %v550, %v646
    %v672 = vsel %vm663, %v552, %v648
    %v673 = vsel %vm663, %v554, %v650
    %v674 = vsel %vm663, %v556, %v652
    %v675 = vsel %vm663, %v558, %v654
    %v676 = vsel %vm663, %v560, %v656
    %v677 = vsel %vm663, %v562, %v658
    %v678 = vsel %vm663, %v564, %v660
    %v679 = vsel %vm663, %v566, %v662
    %v696 = vpack.c.bf16 %v583, %v583
    %v697 = vpack.c.bf16 %v584, %v584
    %v698 = vpack.c.bf16 %v585, %v585
    %v699 = vpack.c.bf16 %v586, %v586
    %v700 = vpack.c.bf16 %v587, %v587
    %v701 = vpack.c.bf16 %v588, %v588
    %v702 = vpack.c.bf16 %v589, %v589
    %v703 = vpack.c.bf16 %v590, %v590
    %v704 = vpack.c.bf16 %v591, %v591
    %v705 = vpack.c.bf16 %v592, %v592
    %v706 = vpack.c.bf16 %v593, %v593
    %v707 = vpack.c.bf16 %v594, %v594
    %v708 = vpack.c.bf16 %v595, %v595
    %v709 = vpack.c.bf16 %v596, %v596
    %v710 = vpack.c.bf16 %v597, %v597
    %v711 = vpack.c.bf16 %v598, %v598
    %v712 = vpack.c.bf16 %v599, %v599
    %v713 = vpack.c.bf16 %v600, %v600
    %v714 = vpack.c.bf16 %v601, %v601
    %v715 = vpack.c.bf16 %v602, %v602
    %v716 = vpack.c.bf16 %v603, %v603
    %v717 = vpack.c.bf16 %v604, %v604
    %v718 = vpack.c.bf16 %v605, %v605
    %v719 = vpack.c.bf16 %v606, %v606
    %v720 = vpack.c.bf16 %v607, %v607
    %v721 = vpack.c.bf16 %v608, %v608
    %v722 = vpack.c.bf16 %v609, %v609
    %v723 = vpack.c.bf16 %v610, %v610
    %v724 = vpack.c.bf16 %v611, %v611
    %v725 = vpack.c.bf16 %v612, %v612
    %v726 = vpack.c.bf16 %v613, %v613
    %v727 = vpack.c.bf16 %v614, %v614
    %v728 = vpack.c.bf16 %v441, %v441
    %v729 = vpack.c.bf16 %v445, %v445
    %v730 = vpack.c.bf16 %v451, %v451
    %v731 = vpack.c.bf16 %v455, %v455
    %v732 = vpack.c.bf16 %v461, %v461
    %v733 = vpack.c.bf16 %v465, %v465
    %v734 = vpack.c.bf16 %v471, %v471
    %v735 = vpack.c.bf16 %v475, %v475
    %v736 = vpack.c.bf16 %v481, %v481
    %v737 = vpack.c.bf16 %v485, %v485
    %v738 = vpack.c.bf16 %v491, %v491
    %v739 = vpack.c.bf16 %v495, %v495
    %v740 = vpack.c.bf16 %v501, %v501
    %v741 = vpack.c.bf16 %v505, %v505
    %v742 = vpack.c.bf16 %v511, %v511
    %v743 = vpack.c.bf16 %v515, %v515
    %v744 = vpack.c.bf16 %v536, %v536
    %v745 = vpack.c.bf16 %v538, %v538
    %v746 = vpack.c.bf16 %v540, %v540
    %v747 = vpack.c.bf16 %v542, %v542
    %v748 = vpack.c.bf16 %v544, %v544
    %v749 = vpack.c.bf16 %v546, %v546
    %v750 = vpack.c.bf16 %v548, %v548
    %v751 = vpack.c.bf16 %v550, %v550
    %v752 = vpack.c.bf16 %v552, %v552
    %v753 = vpack.c.bf16 %v554, %v554
    %v754 = vpack.c.bf16 %v556, %v556
    %v755 = vpack.c.bf16 %v558, %v558
    %v756 = vpack.c.bf16 %v560, %v560
    %v757 = vpack.c.bf16 %v562, %v562
    %v758 = vpack.c.bf16 %v564, %v564
    %v759 = vpack.c.bf16 %v566, %v566
    %761 = vrot.lane.b32.xlu0 %v728, 80
    %v762 = vpop.permute.xlu0 %761
    %vm763 = vcmask 195584
    %v765 = vsel %vm763, %v696, 0
    %v768 = vsel %vm763, %v762, 0
    %770 = vmatprep.subr.bf16.mxu0 0
    %771 = vmatpush1.bf16.xpose.msra.mxu0 0
    %772 = vmatprep.subr.bf16.mxu0 0
    %773 = vmatpush1.bf16.xpose.msra.mxu0 0
    %774 = vmatprep.subr.bf16.mxu0 0
    %775 = vmatpush1.bf16.xpose.msra.mxu0 0
    %776 = vmatprep.subr.bf16.mxu0 0
    %777 = vmatpush1.bf16.xpose.msra.mxu0 0
    %778 = vmatprep.subr.bf16.mxu0 0
    %779 = vmatpush1.bf16.xpose.msra.mxu0 0
    %780 = vmatprep.subr.bf16.mxu0 0
    %781 = vmatpush1.bf16.xpose.msra.mxu0 0
    %782 = vmatprep.subr.bf16.mxu0 0
    %783 = vmatpush1.bf16.xpose.msra.mxu0 0
    %784 = vmatprep.subr.bf16.mxu0 0
    %785 = vmatpush1.bf16.xpose.msra.mxu0 %v768
    %786 = vmatprep.subr.bf16.mxu0 0
    %787 = vmatpush2.bf16.xpose.msra.mxu0 0
    %788 = vmatprep.subr.bf16.mxu0 0
    %789 = vmatpush2.bf16.xpose.msra.mxu0 0
    %790 = vmatprep.subr.bf16.mxu0 0
    %791 = vmatpush2.bf16.xpose.msra.mxu0 0
    %792 = vmatprep.subr.bf16.mxu0 0
    %793 = vmatpush2.bf16.xpose.msra.mxu0 0
    %794 = vmatprep.subr.bf16.mxu0 0
    %795 = vmatpush2.bf16.xpose.msra.mxu0 0
    %796 = vmatprep.subr.bf16.mxu0 0
    %797 = vmatpush2.bf16.xpose.msra.mxu0 0
    %798 = vmatprep.subr.bf16.mxu0 0
    %799 = vmatpush2.bf16.xpose.msra.mxu0 0
    %800 = vmatprep.subr.bf16.mxu0 0
    %801 = vmatpush2.bf16.xpose.msra.mxu0 0
    %802 = vmatprep.mubr.bf16.mxu0 0
    %803 = vmatmul.mubr.bf16.gmra.mxu0 %v765
    %v804 = vpop.f32.mrf.mxu0
    %v805 = vadd.f32 0.0, %v804
    %v806 = vpop.f32.mrf.mxu0
    %v807 = vpop.f32.mrf.mxu0
    %v808 = vpop.f32.mrf.mxu0
    %809 = vdwg.mxu0
    %811 = vrot.lane.b32.xlu0 %v729, 80
    %v812 = vpop.permute.xlu0 %811
    %v814 = vsel %vm763, %v697, 0
    %v817 = vsel %vm763, %v812, 0
    %819 = vmatprep.subr.bf16.mxu0 0
    %820 = vmatpush1.bf16.xpose.msra.mxu0 0
    %821 = vmatprep.subr.bf16.mxu0 0
    %822 = vmatpush1.bf16.xpose.msra.mxu0 0
    %823 = vmatprep.subr.bf16.mxu0 0
    %824 = vmatpush1.bf16.xpose.msra.mxu0 0
    %825 = vmatprep.subr.bf16.mxu0 0
    %826 = vmatpush1.bf16.xpose.msra.mxu0 0
    %827 = vmatprep.subr.bf16.mxu0 0
    %828 = vmatpush1.bf16.xpose.msra.mxu0 0
    %829 = vmatprep.subr.bf16.mxu0 0
    %830 = vmatpush1.bf16.xpose.msra.mxu0 0
    %831 = vmatprep.subr.bf16.mxu0 0
    %832 = vmatpush1.bf16.xpose.msra.mxu0 0
    %833 = vmatprep.subr.bf16.mxu0 0
    %834 = vmatpush1.bf16.xpose.msra.mxu0 %v817
    %835 = vmatprep.subr.bf16.mxu0 0
    %836 = vmatpush2.bf16.xpose.msra.mxu0 0
    %837 = vmatprep.subr.bf16.mxu0 0
    %838 = vmatpush2.bf16.xpose.msra.mxu0 0
    %839 = vmatprep.subr.bf16.mxu0 0
    %840 = vmatpush2.bf16.xpose.msra.mxu0 0
    %841 = vmatprep.subr.bf16.mxu0 0
    %842 = vmatpush2.bf16.xpose.msra.mxu0 0
    %843 = vmatprep.subr.bf16.mxu0 0
    %844 = vmatpush2.bf16.xpose.msra.mxu0 0
    %845 = vmatprep.subr.bf16.mxu0 0
    %846 = vmatpush2.bf16.xpose.msra.mxu0 0
    %847 = vmatprep.subr.bf16.mxu0 0
    %848 = vmatpush2.bf16.xpose.msra.mxu0 0
    %849 = vmatprep.subr.bf16.mxu0 0
    %850 = vmatpush2.bf16.xpose.msra.mxu0 0
    %851 = vmatprep.mubr.bf16.mxu0 0
    %852 = vmatmul.mubr.bf16.gmra.mxu0 %v814
    %v853 = vpop.f32.mrf.mxu0
    %v854 = vadd.f32 0.0, %v853
    %v855 = vpop.f32.mrf.mxu0
    %v856 = vpop.f32.mrf.mxu0
    %v857 = vpop.f32.mrf.mxu0
    %858 = vdwg.mxu0
    %860 = vrot.lane.b32.xlu0 %v730, 80
    %v861 = vpop.permute.xlu0 %860
    %v863 = vsel %vm763, %v698, 0
    %v866 = vsel %vm763, %v861, 0
    %868 = vmatprep.subr.bf16.mxu0 0
    %869 = vmatpush1.bf16.xpose.msra.mxu0 0
    %870 = vmatprep.subr.bf16.mxu0 0
    %871 = vmatpush1.bf16.xpose.msra.mxu0 0
    %872 = vmatprep.subr.bf16.mxu0 0
    %873 = vmatpush1.bf16.xpose.msra.mxu0 0
    %874 = vmatprep.subr.bf16.mxu0 0
    %875 = vmatpush1.bf16.xpose.msra.mxu0 0
    %876 = vmatprep.subr.bf16.mxu0 0
    %877 = vmatpush1.bf16.xpose.msra.mxu0 0
    %878 = vmatprep.subr.bf16.mxu0 0
    %879 = vmatpush1.bf16.xpose.msra.mxu0 0
    %880 = vmatprep.subr.bf16.mxu0 0
    %881 = vmatpush1.bf16.xpose.msra.mxu0 0
    %882 = vmatprep.subr.bf16.mxu0 0
    %883 = vmatpush1.bf16.xpose.msra.mxu0 %v866
    %884 = vmatprep.subr.bf16.mxu0 0
    %885 = vmatpush2.bf16.xpose.msra.mxu0 0
    %886 = vmatprep.subr.bf16.mxu0 0
    %887 = vmatpush2.bf16.xpose.msra.mxu0 0
    %888 = vmatprep.subr.bf16.mxu0 0
    %889 = vmatpush2.bf16.xpose.msra.mxu0 0
    %890 = vmatprep.subr.bf16.mxu0 0
    %891 = vmatpush2.bf16.xpose.msra.mxu0 0
    %892 = vmatprep.subr.bf16.mxu0 0
    %893 = vmatpush2.bf16.xpose.msra.mxu0 0
    %894 = vmatprep.subr.bf16.mxu0 0
    %895 = vmatpush2.bf16.xpose.msra.mxu0 0
    %896 = vmatprep.subr.bf16.mxu0 0
    %897 = vmatpush2.bf16.xpose.msra.mxu0 0
    %898 = vmatprep.subr.bf16.mxu0 0
    %899 = vmatpush2.bf16.xpose.msra.mxu0 0
    %900 = vmatprep.mubr.bf16.mxu0 0
    %901 = vmatmul.mubr.bf16.gmra.mxu0 %v863
    %v902 = vpop.f32.mrf.mxu0
    %v903 = vadd.f32 0.0, %v902
    %v904 = vpop.f32.mrf.mxu0
    %v905 = vpop.f32.mrf.mxu0
    %v906 = vpop.f32.mrf.mxu0
    %907 = vdwg.mxu0
    %909 = vrot.lane.b32.xlu0 %v731, 80
    %v910 = vpop.permute.xlu0 %909
    %v912 = vsel %vm763, %v699, 0
    %v915 = vsel %vm763, %v910, 0
    %917 = vmatprep.subr.bf16.mxu0 0
    %918 = vmatpush1.bf16.xpose.msra.mxu0 0
    %919 = vmatprep.subr.bf16.mxu0 0
    %920 = vmatpush1.bf16.xpose.msra.mxu0 0
    %921 = vmatprep.subr.bf16.mxu0 0
    %922 = vmatpush1.bf16.xpose.msra.mxu0 0
    %923 = vmatprep.subr.bf16.mxu0 0
    %924 = vmatpush1.bf16.xpose.msra.mxu0 0
    %925 = vmatprep.subr.bf16.mxu0 0
    %926 = vmatpush1.bf16.xpose.msra.mxu0 0
    %927 = vmatprep.subr.bf16.mxu0 0
    %928 = vmatpush1.bf16.xpose.msra.mxu0 0
    %929 = vmatprep.subr.bf16.mxu0 0
    %930 = vmatpush1.bf16.xpose.msra.mxu0 0
    %931 = vmatprep.subr.bf16.mxu0 0
    %932 = vmatpush1.bf16.xpose.msra.mxu0 %v915
    %933 = vmatprep.subr.bf16.mxu0 0
    %934 = vmatpush2.bf16.xpose.msra.mxu0 0
    %935 = vmatprep.subr.bf16.mxu0 0
    %936 = vmatpush2.bf16.xpose.msra.mxu0 0
    %937 = vmatprep.subr.bf16.mxu0 0
    %938 = vmatpush2.bf16.xpose.msra.mxu0 0
    %939 = vmatprep.subr.bf16.mxu0 0
    %940 = vmatpush2.bf16.xpose.msra.mxu0 0
    %941 = vmatprep.subr.bf16.mxu0 0
    %942 = vmatpush2.bf16.xpose.msra.mxu0 0
    %943 = vmatprep.subr.bf16.mxu0 0
    %944 = vmatpush2.bf16.xpose.msra.mxu0 0
    %945 = vmatprep.subr.bf16.mxu0 0
    %946 = vmatpush2.bf16.xpose.msra.mxu0 0
    %947 = vmatprep.subr.bf16.mxu0 0
    %948 = vmatpush2.bf16.xpose.msra.mxu0 0
    %949 = vmatprep.mubr.bf16.mxu0 0
    %950 = vmatmul.mubr.bf16.gmra.mxu0 %v912
    %v951 = vpop.f32.mrf.mxu0
    %v952 = vadd.f32 0.0, %v951
    %v953 = vpop.f32.mrf.mxu0
    %v954 = vpop.f32.mrf.mxu0
    %v955 = vpop.f32.mrf.mxu0
    %956 = vdwg.mxu0
    %958 = vrot.lane.b32.xlu0 %v732, 80
    %v959 = vpop.permute.xlu0 %958
    %v961 = vsel %vm763, %v700, 0
    %v964 = vsel %vm763, %v959, 0
    %966 = vmatprep.subr.bf16.mxu0 0
    %967 = vmatpush1.bf16.xpose.msra.mxu0 0
    %968 = vmatprep.subr.bf16.mxu0 0
    %969 = vmatpush1.bf16.xpose.msra.mxu0 0
    %970 = vmatprep.subr.bf16.mxu0 0
    %971 = vmatpush1.bf16.xpose.msra.mxu0 0
    %972 = vmatprep.subr.bf16.mxu0 0
    %973 = vmatpush1.bf16.xpose.msra.mxu0 0
    %974 = vmatprep.subr.bf16.mxu0 0
    %975 = vmatpush1.bf16.xpose.msra.mxu0 0
    %976 = vmatprep.subr.bf16.mxu0 0
    %977 = vmatpush1.bf16.xpose.msra.mxu0 0
    %978 = vmatprep.subr.bf16.mxu0 0
    %979 = vmatpush1.bf16.xpose.msra.mxu0 0
    %980 = vmatprep.subr.bf16.mxu0 0
    %981 = vmatpush1.bf16.xpose.msra.mxu0 %v964
    %982 = vmatprep.subr.bf16.mxu0 0
    %983 = vmatpush2.bf16.xpose.msra.mxu0 0
    %984 = vmatprep.subr.bf16.mxu0 0
    %985 = vmatpush2.bf16.xpose.msra.mxu0 0
    %986 = vmatprep.subr.bf16.mxu0 0
    %987 = vmatpush2.bf16.xpose.msra.mxu0 0
    %988 = vmatprep.subr.bf16.mxu0 0
    %989 = vmatpush2.bf16.xpose.msra.mxu0 0
    %990 = vmatprep.subr.bf16.mxu0 0
    %991 = vmatpush2.bf16.xpose.msra.mxu0 0
    %992 = vmatprep.subr.bf16.mxu0 0
    %993 = vmatpush2.bf16.xpose.msra.mxu0 0
    %994 = vmatprep.subr.bf16.mxu0 0
    %995 = vmatpush2.bf16.xpose.msra.mxu0 0
    %996 = vmatprep.subr.bf16.mxu0 0
    %997 = vmatpush2.bf16.xpose.msra.mxu0 0
    %998 = vmatprep.mubr.bf16.mxu0 0
    %999 = vmatmul.mubr.bf16.gmra.mxu0 %v961
    %v1000 = vpop.f32.mrf.mxu0
    %v1001 = vadd.f32 0.0, %v1000
    %v1002 = vpop.f32.mrf.mxu0
    %v1003 = vpop.f32.mrf.mxu0
    %v1004 = vpop.f32.mrf.mxu0
    %1005 = vdwg.mxu0
    %1007 = vrot.lane.b32.xlu0 %v733, 80
    %v1008 = vpop.permute.xlu0 %1007
    %v1010 = vsel %vm763, %v701, 0
    %v1013 = vsel %vm763, %v1008, 0
    %1015 = vmatprep.subr.bf16.mxu0 0
    %1016 = vmatpush1.bf16.xpose.msra.mxu0 0
    %1017 = vmatprep.subr.bf16.mxu0 0
    %1018 = vmatpush1.bf16.xpose.msra.mxu0 0
    %1019 = vmatprep.subr.bf16.mxu0 0
    %1020 = vmatpush1.bf16.xpose.msra.mxu0 0
    %1021 = vmatprep.subr.bf16.mxu0 0
    %1022 = vmatpush1.bf16.xpose.msra.mxu0 0
    %1023 = vmatprep.subr.bf16.mxu0 0
    %1024 = vmatpush1.bf16.xpose.msra.mxu0 0
    %1025 = vmatprep.subr.bf16.mxu0 0
    %1026 = vmatpush1.bf16.xpose.msra.mxu0 0
    %1027 = vmatprep.subr.bf16.mxu0 0
    %1028 = vmatpush1.bf16.xpose.msra.mxu0 0
    %1029 = vmatprep.subr.bf16.mxu0 0
    %1030 = vmatpush1.bf16.xpose.msra.mxu0 %v1013
    %1031 = vmatprep.subr.bf16.mxu0 0
    %1032 = vmatpush2.bf16.xpose.msra.mxu0 0
    %1033 = vmatprep.subr.bf16.mxu0 0
    %1034 = vmatpush2.bf16.xpose.msra.mxu0 0
    %1035 = vmatprep.subr.bf16.mxu0 0
    %1036 = vmatpush2.bf16.xpose.msra.mxu0 0
    %1037 = vmatprep.subr.bf16.mxu0 0
    %1038 = vmatpush2.bf16.xpose.msra.mxu0 0
    %1039 = vmatprep.subr.bf16.mxu0 0
    %1040 = vmatpush2.bf16.xpose.msra.mxu0 0
    %1041 = vmatprep.subr.bf16.mxu0 0
    %1042 = vmatpush2.bf16.xpose.msra.mxu0 0
    %1043 = vmatprep.subr.bf16.mxu0 0
    %1044 = vmatpush2.bf16.xpose.msra.mxu0 0
    %1045 = vmatprep.subr.bf16.mxu0 0
    %1046 = vmatpush2.bf16.xpose.msra.mxu0 0
    %1047 = vmatprep.mubr.bf16.mxu0 0
    %1048 = vmatmul.mubr.bf16.gmra.mxu0 %v1010
    %v1049 = vpop.f32.mrf.mxu0
    %v1050 = vadd.f32 0.0, %v1049
    %v1051 = vpop.f32.mrf.mxu0
    %v1052 = vpop.f32.mrf.mxu0
    %v1053 = vpop.f32.mrf.mxu0
    %1054 = vdwg.mxu0
    %1056 = vrot.lane.b32.xlu0 %v734, 80
    %v1057 = vpop.permute.xlu0 %1056
    %v1059 = vsel %vm763, %v702, 0
    %v1062 = vsel %vm763, %v1057, 0
    %1064 = vmatprep.subr.bf16.mxu0 0
    %1065 = vmatpush1.bf16.xpose.msra.mxu0 0
    %1066 = vmatprep.subr.bf16.mxu0 0
    %1067 = vmatpush1.bf16.xpose.msra.mxu0 0
    %1068 = vmatprep.subr.bf16.mxu0 0
    %1069 = vmatpush1.bf16.xpose.msra.mxu0 0
    %1070 = vmatprep.subr.bf16.mxu0 0
    %1071 = vmatpush1.bf16.xpose.msra.mxu0 0
    %1072 = vmatprep.subr.bf16.mxu0 0
    %1073 = vmatpush1.bf16.xpose.msra.mxu0 0
    %1074 = vmatprep.subr.bf16.mxu0 0
    %1075 = vmatpush1.bf16.xpose.msra.mxu0 0
    %1076 = vmatprep.subr.bf16.mxu0 0
    %1077 = vmatpush1.bf16.xpose.msra.mxu0 0
    %1078 = vmatprep.subr.bf16.mxu0 0
    %1079 = vmatpush1.bf16.xpose.msra.mxu0 %v1062
    %1080 = vmatprep.subr.bf16.mxu0 0
    %1081 = vmatpush2.bf16.xpose.msra.mxu0 0
    %1082 = vmatprep.subr.bf16.mxu0 0
    %1083 = vmatpush2.bf16.xpose.msra.mxu0 0
    %1084 = vmatprep.subr.bf16.mxu0 0
    %1085 = vmatpush2.bf16.xpose.msra.mxu0 0
    %1086 = vmatprep.subr.bf16.mxu0 0
    %1087 = vmatpush2.bf16.xpose.msra.mxu0 0
    %1088 = vmatprep.subr.bf16.mxu0 0
    %1089 = vmatpush2.bf16.xpose.msra.mxu0 0
    %1090 = vmatprep.subr.bf16.mxu0 0
    %1091 = vmatpush2.bf16.xpose.msra.mxu0 0
    %1092 = vmatprep.subr.bf16.mxu0 0
    %1093 = vmatpush2.bf16.xpose.msra.mxu0 0
    %1094 = vmatprep.subr.bf16.mxu0 0
    %1095 = vmatpush2.bf16.xpose.msra.mxu0 0
    %1096 = vmatprep.mubr.bf16.mxu0 0
    %1097 = vmatmul.mubr.bf16.gmra.mxu0 %v1059
    %v1098 = vpop.f32.mrf.mxu0
    %v1099 = vadd.f32 0.0, %v1098
    %v1100 = vpop.f32.mrf.mxu0
    %v1101 = vpop.f32.mrf.mxu0
    %v1102 = vpop.f32.mrf.mxu0
    %1103 = vdwg.mxu0
    %1105 = vrot.lane.b32.xlu0 %v735, 80
    %v1106 = vpop.permute.xlu0 %1105
    %v1108 = vsel %vm763, %v703, 0
    %v1111 = vsel %vm763, %v1106, 0
    %1113 = vmatprep.subr.bf16.mxu0 0
    %1114 = vmatpush1.bf16.xpose.msra.mxu0 0
    %1115 = vmatprep.subr.bf16.mxu0 0
    %1116 = vmatpush1.bf16.xpose.msra.mxu0 0
    %1117 = vmatprep.subr.bf16.mxu0 0
    %1118 = vmatpush1.bf16.xpose.msra.mxu0 0
    %1119 = vmatprep.subr.bf16.mxu0 0
    %1120 = vmatpush1.bf16.xpose.msra.mxu0 0
    %1121 = vmatprep.subr.bf16.mxu0 0
    %1122 = vmatpush1.bf16.xpose.msra.mxu0 0
    %1123 = vmatprep.subr.bf16.mxu0 0
    %1124 = vmatpush1.bf16.xpose.msra.mxu0 0
    %1125 = vmatprep.subr.bf16.mxu0 0
    %1126 = vmatpush1.bf16.xpose.msra.mxu0 0
    %1127 = vmatprep.subr.bf16.mxu0 0
    %1128 = vmatpush1.bf16.xpose.msra.mxu0 %v1111
    %1129 = vmatprep.subr.bf16.mxu0 0
    %1130 = vmatpush2.bf16.xpose.msra.mxu0 0
    %1131 = vmatprep.subr.bf16.mxu0 0
    %1132 = vmatpush2.bf16.xpose.msra.mxu0 0
    %1133 = vmatprep.subr.bf16.mxu0 0
    %1134 = vmatpush2.bf16.xpose.msra.mxu0 0
    %1135 = vmatprep.subr.bf16.mxu0 0
    %1136 = vmatpush2.bf16.xpose.msra.mxu0 0
    %1137 = vmatprep.subr.bf16.mxu0 0
    %1138 = vmatpush2.bf16.xpose.msra.mxu0 0
    %1139 = vmatprep.subr.bf16.mxu0 0
    %1140 = vmatpush2.bf16.xpose.msra.mxu0 0
    %1141 = vmatprep.subr.bf16.mxu0 0
    %1142 = vmatpush2.bf16.xpose.msra.mxu0 0
    %1143 = vmatprep.subr.bf16.mxu0 0
    %1144 = vmatpush2.bf16.xpose.msra.mxu0 0
    %1145 = vmatprep.mubr.bf16.mxu0 0
    %1146 = vmatmul.mubr.bf16.gmra.mxu0 %v1108
    %v1147 = vpop.f32.mrf.mxu0
    %v1148 = vadd.f32 0.0, %v1147
    %v1149 = vpop.f32.mrf.mxu0
    %v1150 = vpop.f32.mrf.mxu0
    %v1151 = vpop.f32.mrf.mxu0
    %1152 = vdwg.mxu0
    %1154 = vrot.lane.b32.xlu0 %v736, 80
    %v1155 = vpop.permute.xlu0 %1154
    %v1157 = vsel %vm763, %v704, 0
    %v1160 = vsel %vm763, %v1155, 0
    %1162 = vmatprep.subr.bf16.mxu0 0
    %1163 = vmatpush1.bf16.xpose.msra.mxu0 0
    %1164 = vmatprep.subr.bf16.mxu0 0
    %1165 = vmatpush1.bf16.xpose.msra.mxu0 0
    %1166 = vmatprep.subr.bf16.mxu0 0
    %1167 = vmatpush1.bf16.xpose.msra.mxu0 0
    %1168 = vmatprep.subr.bf16.mxu0 0
    %1169 = vmatpush1.bf16.xpose.msra.mxu0 0
    %1170 = vmatprep.subr.bf16.mxu0 0
    %1171 = vmatpush1.bf16.xpose.msra.mxu0 0
    %1172 = vmatprep.subr.bf16.mxu0 0
    %1173 = vmatpush1.bf16.xpose.msra.mxu0 0
    %1174 = vmatprep.subr.bf16.mxu0 0
    %1175 = vmatpush1.bf16.xpose.msra.mxu0 0
    %1176 = vmatprep.subr.bf16.mxu0 0
    %1177 = vmatpush1.bf16.xpose.msra.mxu0 %v1160
    %1178 = vmatprep.subr.bf16.mxu0 0
    %1179 = vmatpush2.bf16.xpose.msra.mxu0 0
    %1180 = vmatprep.subr.bf16.mxu0 0
    %1181 = vmatpush2.bf16.xpose.msra.mxu0 0
    %1182 = vmatprep.subr.bf16.mxu0 0
    %1183 = vmatpush2.bf16.xpose.msra.mxu0 0
    %1184 = vmatprep.subr.bf16.mxu0 0
    %1185 = vmatpush2.bf16.xpose.msra.mxu0 0
    %1186 = vmatprep.subr.bf16.mxu0 0
    %1187 = vmatpush2.bf16.xpose.msra.mxu0 0
    %1188 = vmatprep.subr.bf16.mxu0 0
    %1189 = vmatpush2.bf16.xpose.msra.mxu0 0
    %1190 = vmatprep.subr.bf16.mxu0 0
    %1191 = vmatpush2.bf16.xpose.msra.mxu0 0
    %1192 = vmatprep.subr.bf16.mxu0 0
    %1193 = vmatpush2.bf16.xpose.msra.mxu0 0
    %1194 = vmatprep.mubr.bf16.mxu0 0
    %1195 = vmatmul.mubr.bf16.gmra.mxu0 %v1157
    %v1196 = vpop.f32.mrf.mxu0
    %v1197 = vadd.f32 0.0, %v1196
    %v1198 = vpop.f32.mrf.mxu0
    %v1199 = vpop.f32.mrf.mxu0
    %v1200 = vpop.f32.mrf.mxu0
    %1201 = vdwg.mxu0
    %1203 = vrot.lane.b32.xlu0 %v737, 80
    %v1204 = vpop.permute.xlu0 %1203
    %v1206 = vsel %vm763, %v705, 0
    %v1209 = vsel %vm763, %v1204, 0
    %1211 = vmatprep.subr.bf16.mxu0 0
    %1212 = vmatpush1.bf16.xpose.msra.mxu0 0
    %1213 = vmatprep.subr.bf16.mxu0 0
    %1214 = vmatpush1.bf16.xpose.msra.mxu0 0
    %1215 = vmatprep.subr.bf16.mxu0 0
    %1216 = vmatpush1.bf16.xpose.msra.mxu0 0
    %1217 = vmatprep.subr.bf16.mxu0 0
    %1218 = vmatpush1.bf16.xpose.msra.mxu0 0
    %1219 = vmatprep.subr.bf16.mxu0 0
    %1220 = vmatpush1.bf16.xpose.msra.mxu0 0
    %1221 = vmatprep.subr.bf16.mxu0 0
    %1222 = vmatpush1.bf16.xpose.msra.mxu0 0
    %1223 = vmatprep.subr.bf16.mxu0 0
    %1224 = vmatpush1.bf16.xpose.msra.mxu0 0
    %1225 = vmatprep.subr.bf16.mxu0 0
    %1226 = vmatpush1.bf16.xpose.msra.mxu0 %v1209
    %1227 = vmatprep.subr.bf16.mxu0 0
    %1228 = vmatpush2.bf16.xpose.msra.mxu0 0
    %1229 = vmatprep.subr.bf16.mxu0 0
    %1230 = vmatpush2.bf16.xpose.msra.mxu0 0
    %1231 = vmatprep.subr.bf16.mxu0 0
    %1232 = vmatpush2.bf16.xpose.msra.mxu0 0
    %1233 = vmatprep.subr.bf16.mxu0 0
    %1234 = vmatpush2.bf16.xpose.msra.mxu0 0
    %1235 = vmatprep.subr.bf16.mxu0 0
    %1236 = vmatpush2.bf16.xpose.msra.mxu0 0
    %1237 = vmatprep.subr.bf16.mxu0 0
    %1238 = vmatpush2.bf16.xpose.msra.mxu0 0
    %1239 = vmatprep.subr.bf16.mxu0 0
    %1240 = vmatpush2.bf16.xpose.msra.mxu0 0
    %1241 = vmatprep.subr.bf16.mxu0 0
    %1242 = vmatpush2.bf16.xpose.msra.mxu0 0
    %1243 = vmatprep.mubr.bf16.mxu0 0
    %1244 = vmatmul.mubr.bf16.gmra.mxu0 %v1206
    %v1245 = vpop.f32.mrf.mxu0
    %v1246 = vadd.f32 0.0, %v1245
    %v1247 = vpop.f32.mrf.mxu0
    %v1248 = vpop.f32.mrf.mxu0
    %v1249 = vpop.f32.mrf.mxu0
    %1250 = vdwg.mxu0
    %1252 = vrot.lane.b32.xlu0 %v738, 80
    %v1253 = vpop.permute.xlu0 %1252
    %v1255 = vsel %vm763, %v706, 0
    %v1258 = vsel %vm763, %v1253, 0
    %1260 = vmatprep.subr.bf16.mxu0 0
    %1261 = vmatpush1.bf16.xpose.msra.mxu0 0
    %1262 = vmatprep.subr.bf16.mxu0 0
    %1263 = vmatpush1.bf16.xpose.msra.mxu0 0
    %1264 = vmatprep.subr.bf16.mxu0 0
    %1265 = vmatpush1.bf16.xpose.msra.mxu0 0
    %1266 = vmatprep.subr.bf16.mxu0 0
    %1267 = vmatpush1.bf16.xpose.msra.mxu0 0
    %1268 = vmatprep.subr.bf16.mxu0 0
    %1269 = vmatpush1.bf16.xpose.msra.mxu0 0
    %1270 = vmatprep.subr.bf16.mxu0 0
    %1271 = vmatpush1.bf16.xpose.msra.mxu0 0
    %1272 = vmatprep.subr.bf16.mxu0 0
    %1273 = vmatpush1.bf16.xpose.msra.mxu0 0
    %1274 = vmatprep.subr.bf16.mxu0 0
    %1275 = vmatpush1.bf16.xpose.msra.mxu0 %v1258
    %1276 = vmatprep.subr.bf16.mxu0 0
    %1277 = vmatpush2.bf16.xpose.msra.mxu0 0
    %1278 = vmatprep.subr.bf16.mxu0 0
    %1279 = vmatpush2.bf16.xpose.msra.mxu0 0
    %1280 = vmatprep.subr.bf16.mxu0 0
    %1281 = vmatpush2.bf16.xpose.msra.mxu0 0
    %1282 = vmatprep.subr.bf16.mxu0 0
    %1283 = vmatpush2.bf16.xpose.msra.mxu0 0
    %1284 = vmatprep.subr.bf16.mxu0 0
    %1285 = vmatpush2.bf16.xpose.msra.mxu0 0
    %1286 = vmatprep.subr.bf16.mxu0 0
    %1287 = vmatpush2.bf16.xpose.msra.mxu0 0
    %1288 = vmatprep.subr.bf16.mxu0 0
    %1289 = vmatpush2.bf16.xpose.msra.mxu0 0
    %1290 = vmatprep.subr.bf16.mxu0 0
    %1291 = vmatpush2.bf16.xpose.msra.mxu0 0
    %1292 = vmatprep.mubr.bf16.mxu0 0
    %1293 = vmatmul.mubr.bf16.gmra.mxu0 %v1255
    %v1294 = vpop.f32.mrf.mxu0
    %v1295 = vadd.f32 0.0, %v1294
    %v1296 = vpop.f32.mrf.mxu0
    %v1297 = vpop.f32.mrf.mxu0
    %v1298 = vpop.f32.mrf.mxu0
    %1299 = vdwg.mxu0
    %1301 = vrot.lane.b32.xlu0 %v739, 80
    %v1302 = vpop.permute.xlu0 %1301
    %v1304 = vsel %vm763, %v707, 0
    %v1307 = vsel %vm763, %v1302, 0
    %1309 = vmatprep.subr.bf16.mxu0 0
    %1310 = vmatpush1.bf16.xpose.msra.mxu0 0
    %1311 = vmatprep.subr.bf16.mxu0 0
    %1312 = vmatpush1.bf16.xpose.msra.mxu0 0
    %1313 = vmatprep.subr.bf16.mxu0 0
    %1314 = vmatpush1.bf16.xpose.msra.mxu0 0
    %1315 = vmatprep.subr.bf16.mxu0 0
    %1316 = vmatpush1.bf16.xpose.msra.mxu0 0
    %1317 = vmatprep.subr.bf16.mxu0 0
    %1318 = vmatpush1.bf16.xpose.msra.mxu0 0
    %1319 = vmatprep.subr.bf16.mxu0 0
    %1320 = vmatpush1.bf16.xpose.msra.mxu0 0
    %1321 = vmatprep.subr.bf16.mxu0 0
    %1322 = vmatpush1.bf16.xpose.msra.mxu0 0
    %1323 = vmatprep.subr.bf16.mxu0 0
    %1324 = vmatpush1.bf16.xpose.msra.mxu0 %v1307
    %1325 = vmatprep.subr.bf16.mxu0 0
    %1326 = vmatpush2.bf16.xpose.msra.mxu0 0
    %1327 = vmatprep.subr.bf16.mxu0 0
    %1328 = vmatpush2.bf16.xpose.msra.mxu0 0
    %1329 = vmatprep.subr.bf16.mxu0 0
    %1330 = vmatpush2.bf16.xpose.msra.mxu0 0
    %1331 = vmatprep.subr.bf16.mxu0 0
    %1332 = vmatpush2.bf16.xpose.msra.mxu0 0
    %1333 = vmatprep.subr.bf16.mxu0 0
    %1334 = vmatpush2.bf16.xpose.msra.mxu0 0
    %1335 = vmatprep.subr.bf16.mxu0 0
    %1336 = vmatpush2.bf16.xpose.msra.mxu0 0
    %1337 = vmatprep.subr.bf16.mxu0 0
    %1338 = vmatpush2.bf16.xpose.msra.mxu0 0
    %1339 = vmatprep.subr.bf16.mxu0 0
    %1340 = vmatpush2.bf16.xpose.msra.mxu0 0
    %1341 = vmatprep.mubr.bf16.mxu0 0
    %1342 = vmatmul.mubr.bf16.gmra.mxu0 %v1304
    %v1343 = vpop.f32.mrf.mxu0
    %v1344 = vadd.f32 0.0, %v1343
    %v1345 = vpop.f32.mrf.mxu0
    %v1346 = vpop.f32.mrf.mxu0
    %v1347 = vpop.f32.mrf.mxu0
    %1348 = vdwg.mxu0
    %1350 = vrot.lane.b32.xlu0 %v740, 80
    %v1351 = vpop.permute.xlu0 %1350
    %v1353 = vsel %vm763, %v708, 0
    %v1356 = vsel %vm763, %v1351, 0
    %1358 = vmatprep.subr.bf16.mxu0 0
    %1359 = vmatpush1.bf16.xpose.msra.mxu0 0
    %1360 = vmatprep.subr.bf16.mxu0 0
    %1361 = vmatpush1.bf16.xpose.msra.mxu0 0
    %1362 = vmatprep.subr.bf16.mxu0 0
    %1363 = vmatpush1.bf16.xpose.msra.mxu0 0
    %1364 = vmatprep.subr.bf16.mxu0 0
    %1365 = vmatpush1.bf16.xpose.msra.mxu0 0
    %1366 = vmatprep.subr.bf16.mxu0 0
    %1367 = vmatpush1.bf16.xpose.msra.mxu0 0
    %1368 = vmatprep.subr.bf16.mxu0 0
    %1369 = vmatpush1.bf16.xpose.msra.mxu0 0
    %1370 = vmatprep.subr.bf16.mxu0 0
    %1371 = vmatpush1.bf16.xpose.msra.mxu0 0
    %1372 = vmatprep.subr.bf16.mxu0 0
    %1373 = vmatpush1.bf16.xpose.msra.mxu0 %v1356
    %1374 = vmatprep.subr.bf16.mxu0 0
    %1375 = vmatpush2.bf16.xpose.msra.mxu0 0
    %1376 = vmatprep.subr.bf16.mxu0 0
    %1377 = vmatpush2.bf16.xpose.msra.mxu0 0
    %1378 = vmatprep.subr.bf16.mxu0 0
    %1379 = vmatpush2.bf16.xpose.msra.mxu0 0
    %1380 = vmatprep.subr.bf16.mxu0 0
    %1381 = vmatpush2.bf16.xpose.msra.mxu0 0
    %1382 = vmatprep.subr.bf16.mxu0 0
    %1383 = vmatpush2.bf16.xpose.msra.mxu0 0
    %1384 = vmatprep.subr.bf16.mxu0 0
    %1385 = vmatpush2.bf16.xpose.msra.mxu0 0
    %1386 = vmatprep.subr.bf16.mxu0 0
    %1387 = vmatpush2.bf16.xpose.msra.mxu0 0
    %1388 = vmatprep.subr.bf16.mxu0 0
    %1389 = vmatpush2.bf16.xpose.msra.mxu0 0
    %1390 = vmatprep.mubr.bf16.mxu0 0
    %1391 = vmatmul.mubr.bf16.gmra.mxu0 %v1353
    %v1392 = vpop.f32.mrf.mxu0
    %v1393 = vadd.f32 0.0, %v1392
    %v1394 = vpop.f32.mrf.mxu0
    %v1395 = vpop.f32.mrf.mxu0
    %v1396 = vpop.f32.mrf.mxu0
    %1397 = vdwg.mxu0
    %1399 = vrot.lane.b32.xlu0 %v741, 80
    %v1400 = vpop.permute.xlu0 %1399
    %v1402 = vsel %vm763, %v709, 0
    %v1405 = vsel %vm763, %v1400, 0
    %1407 = vmatprep.subr.bf16.mxu0 0
    %1408 = vmatpush1.bf16.xpose.msra.mxu0 0
    %1409 = vmatprep.subr.bf16.mxu0 0
    %1410 = vmatpush1.bf16.xpose.msra.mxu0 0
    %1411 = vmatprep.subr.bf16.mxu0 0
    %1412 = vmatpush1.bf16.xpose.msra.mxu0 0
    %1413 = vmatprep.subr.bf16.mxu0 0
    %1414 = vmatpush1.bf16.xpose.msra.mxu0 0
    %1415 = vmatprep.subr.bf16.mxu0 0
    %1416 = vmatpush1.bf16.xpose.msra.mxu0 0
    %1417 = vmatprep.subr.bf16.mxu0 0
    %1418 = vmatpush1.bf16.xpose.msra.mxu0 0
    %1419 = vmatprep.subr.bf16.mxu0 0
    %1420 = vmatpush1.bf16.xpose.msra.mxu0 0
    %1421 = vmatprep.subr.bf16.mxu0 0
    %1422 = vmatpush1.bf16.xpose.msra.mxu0 %v1405
    %1423 = vmatprep.subr.bf16.mxu0 0
    %1424 = vmatpush2.bf16.xpose.msra.mxu0 0
    %1425 = vmatprep.subr.bf16.mxu0 0
    %1426 = vmatpush2.bf16.xpose.msra.mxu0 0
    %1427 = vmatprep.subr.bf16.mxu0 0
    %1428 = vmatpush2.bf16.xpose.msra.mxu0 0
    %1429 = vmatprep.subr.bf16.mxu0 0
    %1430 = vmatpush2.bf16.xpose.msra.mxu0 0
    %1431 = vmatprep.subr.bf16.mxu0 0
    %1432 = vmatpush2.bf16.xpose.msra.mxu0 0
    %1433 = vmatprep.subr.bf16.mxu0 0
    %1434 = vmatpush2.bf16.xpose.msra.mxu0 0
    %1435 = vmatprep.subr.bf16.mxu0 0
    %1436 = vmatpush2.bf16.xpose.msra.mxu0 0
    %1437 = vmatprep.subr.bf16.mxu0 0
    %1438 = vmatpush2.bf16.xpose.msra.mxu0 0
    %1439 = vmatprep.mubr.bf16.mxu0 0
    %1440 = vmatmul.mubr.bf16.gmra.mxu0 %v1402
    %v1441 = vpop.f32.mrf.mxu0
    %v1442 = vadd.f32 0.0, %v1441
    %v1443 = vpop.f32.mrf.mxu0
    %v1444 = vpop.f32.mrf.mxu0
    %v1445 = vpop.f32.mrf.mxu0
    %1446 = vdwg.mxu0
    %1448 = vrot.lane.b32.xlu0 %v742, 80
    %v1449 = vpop.permute.xlu0 %1448
    %v1451 = vsel %vm763, %v710, 0
    %v1454 = vsel %vm763, %v1449, 0
    %1456 = vmatprep.subr.bf16.mxu0 0
    %1457 = vmatpush1.bf16.xpose.msra.mxu0 0
    %1458 = vmatprep.subr.bf16.mxu0 0
    %1459 = vmatpush1.bf16.xpose.msra.mxu0 0
    %1460 = vmatprep.subr.bf16.mxu0 0
    %1461 = vmatpush1.bf16.xpose.msra.mxu0 0
    %1462 = vmatprep.subr.bf16.mxu0 0
    %1463 = vmatpush1.bf16.xpose.msra.mxu0 0
    %1464 = vmatprep.subr.bf16.mxu0 0
    %1465 = vmatpush1.bf16.xpose.msra.mxu0 0
    %1466 = vmatprep.subr.bf16.mxu0 0
    %1467 = vmatpush1.bf16.xpose.msra.mxu0 0
    %1468 = vmatprep.subr.bf16.mxu0 0
    %1469 = vmatpush1.bf16.xpose.msra.mxu0 0
    %1470 = vmatprep.subr.bf16.mxu0 0
    %1471 = vmatpush1.bf16.xpose.msra.mxu0 %v1454
    %1472 = vmatprep.subr.bf16.mxu0 0
    %1473 = vmatpush2.bf16.xpose.msra.mxu0 0
    %1474 = vmatprep.subr.bf16.mxu0 0
    %1475 = vmatpush2.bf16.xpose.msra.mxu0 0
    %1476 = vmatprep.subr.bf16.mxu0 0
    %1477 = vmatpush2.bf16.xpose.msra.mxu0 0
    %1478 = vmatprep.subr.bf16.mxu0 0
    %1479 = vmatpush2.bf16.xpose.msra.mxu0 0
    %1480 = vmatprep.subr.bf16.mxu0 0
    %1481 = vmatpush2.bf16.xpose.msra.mxu0 0
    %1482 = vmatprep.subr.bf16.mxu0 0
    %1483 = vmatpush2.bf16.xpose.msra.mxu0 0
    %1484 = vmatprep.subr.bf16.mxu0 0
    %1485 = vmatpush2.bf16.xpose.msra.mxu0 0
    %1486 = vmatprep.subr.bf16.mxu0 0
    %1487 = vmatpush2.bf16.xpose.msra.mxu0 0
    %1488 = vmatprep.mubr.bf16.mxu0 0
    %1489 = vmatmul.mubr.bf16.gmra.mxu0 %v1451
    %v1490 = vpop.f32.mrf.mxu0
    %v1491 = vadd.f32 0.0, %v1490
    %v1492 = vpop.f32.mrf.mxu0
    %v1493 = vpop.f32.mrf.mxu0
    %v1494 = vpop.f32.mrf.mxu0
    %1495 = vdwg.mxu0
    %1497 = vrot.lane.b32.xlu0 %v743, 80
    %v1498 = vpop.permute.xlu0 %1497
    %v1500 = vsel %vm763, %v711, 0
    %v1503 = vsel %vm763, %v1498, 0
    %1505 = vmatprep.subr.bf16.mxu0 0
    %1506 = vmatpush1.bf16.xpose.msra.mxu0 0
    %1507 = vmatprep.subr.bf16.mxu0 0
    %1508 = vmatpush1.bf16.xpose.msra.mxu0 0
    %1509 = vmatprep.subr.bf16.mxu0 0
    %1510 = vmatpush1.bf16.xpose.msra.mxu0 0
    %1511 = vmatprep.subr.bf16.mxu0 0
    %1512 = vmatpush1.bf16.xpose.msra.mxu0 0
    %1513 = vmatprep.subr.bf16.mxu0 0
    %1514 = vmatpush1.bf16.xpose.msra.mxu0 0
    %1515 = vmatprep.subr.bf16.mxu0 0
    %1516 = vmatpush1.bf16.xpose.msra.mxu0 0
    %1517 = vmatprep.subr.bf16.mxu0 0
    %1518 = vmatpush1.bf16.xpose.msra.mxu0 0
    %1519 = vmatprep.subr.bf16.mxu0 0
    %1520 = vmatpush1.bf16.xpose.msra.mxu0 %v1503
    %1521 = vmatprep.subr.bf16.mxu0 0
    %1522 = vmatpush2.bf16.xpose.msra.mxu0 0
    %1523 = vmatprep.subr.bf16.mxu0 0
    %1524 = vmatpush2.bf16.xpose.msra.mxu0 0
    %1525 = vmatprep.subr.bf16.mxu0 0
    %1526 = vmatpush2.bf16.xpose.msra.mxu0 0
    %1527 = vmatprep.subr.bf16.mxu0 0
    %1528 = vmatpush2.bf16.xpose.msra.mxu0 0
    %1529 = vmatprep.subr.bf16.mxu0 0
    %1530 = vmatpush2.bf16.xpose.msra.mxu0 0
    %1531 = vmatprep.subr.bf16.mxu0 0
    %1532 = vmatpush2.bf16.xpose.msra.mxu0 0
    %1533 = vmatprep.subr.bf16.mxu0 0
    %1534 = vmatpush2.bf16.xpose.msra.mxu0 0
    %1535 = vmatprep.subr.bf16.mxu0 0
    %1536 = vmatpush2.bf16.xpose.msra.mxu0 0
    %1537 = vmatprep.mubr.bf16.mxu0 0
    %1538 = vmatmul.mubr.bf16.gmra.mxu0 %v1500
    %v1539 = vpop.f32.mrf.mxu0
    %v1540 = vadd.f32 0.0, %v1539
    %v1541 = vpop.f32.mrf.mxu0
    %v1542 = vpop.f32.mrf.mxu0
    %v1543 = vpop.f32.mrf.mxu0
    %1544 = vdwg.mxu0
    %1546 = vrot.lane.b32.xlu0 %v744, 80
    %v1547 = vpop.permute.xlu0 %1546
    %v1549 = vsel %vm763, %v712, 0
    %v1552 = vsel %vm763, %v1547, 0
    %1554 = vmatprep.subr.bf16.mxu0 0
    %1555 = vmatpush1.bf16.xpose.msra.mxu0 0
    %1556 = vmatprep.subr.bf16.mxu0 0
    %1557 = vmatpush1.bf16.xpose.msra.mxu0 0
    %1558 = vmatprep.subr.bf16.mxu0 0
    %1559 = vmatpush1.bf16.xpose.msra.mxu0 0
    %1560 = vmatprep.subr.bf16.mxu0 0
    %1561 = vmatpush1.bf16.xpose.msra.mxu0 0
    %1562 = vmatprep.subr.bf16.mxu0 0
    %1563 = vmatpush1.bf16.xpose.msra.mxu0 0
    %1564 = vmatprep.subr.bf16.mxu0 0
    %1565 = vmatpush1.bf16.xpose.msra.mxu0 0
    %1566 = vmatprep.subr.bf16.mxu0 0
    %1567 = vmatpush1.bf16.xpose.msra.mxu0 0
    %1568 = vmatprep.subr.bf16.mxu0 0
    %1569 = vmatpush1.bf16.xpose.msra.mxu0 %v1552
    %1570 = vmatprep.subr.bf16.mxu0 0
    %1571 = vmatpush2.bf16.xpose.msra.mxu0 0
    %1572 = vmatprep.subr.bf16.mxu0 0
    %1573 = vmatpush2.bf16.xpose.msra.mxu0 0
    %1574 = vmatprep.subr.bf16.mxu0 0
    %1575 = vmatpush2.bf16.xpose.msra.mxu0 0
    %1576 = vmatprep.subr.bf16.mxu0 0
    %1577 = vmatpush2.bf16.xpose.msra.mxu0 0
    %1578 = vmatprep.subr.bf16.mxu0 0
    %1579 = vmatpush2.bf16.xpose.msra.mxu0 0
    %1580 = vmatprep.subr.bf16.mxu0 0
    %1581 = vmatpush2.bf16.xpose.msra.mxu0 0
    %1582 = vmatprep.subr.bf16.mxu0 0
    %1583 = vmatpush2.bf16.xpose.msra.mxu0 0
    %1584 = vmatprep.subr.bf16.mxu0 0
    %1585 = vmatpush2.bf16.xpose.msra.mxu0 0
    %1586 = vmatprep.mubr.bf16.mxu0 0
    %1587 = vmatmul.mubr.bf16.gmra.mxu0 %v1549
    %v1588 = vpop.f32.mrf.mxu0
    %v1589 = vadd.f32 0.0, %v1588
    %v1590 = vpop.f32.mrf.mxu0
    %v1591 = vpop.f32.mrf.mxu0
    %v1592 = vpop.f32.mrf.mxu0
    %1593 = vdwg.mxu0
    %1595 = vrot.lane.b32.xlu0 %v745, 80
    %v1596 = vpop.permute.xlu0 %1595
    %v1598 = vsel %vm763, %v713, 0
    %v1601 = vsel %vm763, %v1596, 0
    %1603 = vmatprep.subr.bf16.mxu0 0
    %1604 = vmatpush1.bf16.xpose.msra.mxu0 0
    %1605 = vmatprep.subr.bf16.mxu0 0
    %1606 = vmatpush1.bf16.xpose.msra.mxu0 0
    %1607 = vmatprep.subr.bf16.mxu0 0
    %1608 = vmatpush1.bf16.xpose.msra.mxu0 0
    %1609 = vmatprep.subr.bf16.mxu0 0
    %1610 = vmatpush1.bf16.xpose.msra.mxu0 0
    %1611 = vmatprep.subr.bf16.mxu0 0
    %1612 = vmatpush1.bf16.xpose.msra.mxu0 0
    %1613 = vmatprep.subr.bf16.mxu0 0
    %1614 = vmatpush1.bf16.xpose.msra.mxu0 0
    %1615 = vmatprep.subr.bf16.mxu0 0
    %1616 = vmatpush1.bf16.xpose.msra.mxu0 0
    %1617 = vmatprep.subr.bf16.mxu0 0
    %1618 = vmatpush1.bf16.xpose.msra.mxu0 %v1601
    %1619 = vmatprep.subr.bf16.mxu0 0
    %1620 = vmatpush2.bf16.xpose.msra.mxu0 0
    %1621 = vmatprep.subr.bf16.mxu0 0
    %1622 = vmatpush2.bf16.xpose.msra.mxu0 0
    %1623 = vmatprep.subr.bf16.mxu0 0
    %1624 = vmatpush2.bf16.xpose.msra.mxu0 0
    %1625 = vmatprep.subr.bf16.mxu0 0
    %1626 = vmatpush2.bf16.xpose.msra.mxu0 0
    %1627 = vmatprep.subr.bf16.mxu0 0
    %1628 = vmatpush2.bf16.xpose.msra.mxu0 0
    %1629 = vmatprep.subr.bf16.mxu0 0
    %1630 = vmatpush2.bf16.xpose.msra.mxu0 0
    %1631 = vmatprep.subr.bf16.mxu0 0
    %1632 = vmatpush2.bf16.xpose.msra.mxu0 0
    %1633 = vmatprep.subr.bf16.mxu0 0
    %1634 = vmatpush2.bf16.xpose.msra.mxu0 0
    %1635 = vmatprep.mubr.bf16.mxu0 0
    %1636 = vmatmul.mubr.bf16.gmra.mxu0 %v1598
    %v1637 = vpop.f32.mrf.mxu0
    %v1638 = vadd.f32 0.0, %v1637
    %v1639 = vpop.f32.mrf.mxu0
    %v1640 = vpop.f32.mrf.mxu0
    %v1641 = vpop.f32.mrf.mxu0
    %1642 = vdwg.mxu0
    %1644 = vrot.lane.b32.xlu0 %v746, 80
    %v1645 = vpop.permute.xlu0 %1644
    %v1647 = vsel %vm763, %v714, 0
    %v1650 = vsel %vm763, %v1645, 0
    %1652 = vmatprep.subr.bf16.mxu0 0
    %1653 = vmatpush1.bf16.xpose.msra.mxu0 0
    %1654 = vmatprep.subr.bf16.mxu0 0
    %1655 = vmatpush1.bf16.xpose.msra.mxu0 0
    %1656 = vmatprep.subr.bf16.mxu0 0
    %1657 = vmatpush1.bf16.xpose.msra.mxu0 0
    %1658 = vmatprep.subr.bf16.mxu0 0
    %1659 = vmatpush1.bf16.xpose.msra.mxu0 0
    %1660 = vmatprep.subr.bf16.mxu0 0
    %1661 = vmatpush1.bf16.xpose.msra.mxu0 0
    %1662 = vmatprep.subr.bf16.mxu0 0
    %1663 = vmatpush1.bf16.xpose.msra.mxu0 0
    %1664 = vmatprep.subr.bf16.mxu0 0
    %1665 = vmatpush1.bf16.xpose.msra.mxu0 0
    %1666 = vmatprep.subr.bf16.mxu0 0
    %1667 = vmatpush1.bf16.xpose.msra.mxu0 %v1650
    %1668 = vmatprep.subr.bf16.mxu0 0
    %1669 = vmatpush2.bf16.xpose.msra.mxu0 0
    %1670 = vmatprep.subr.bf16.mxu0 0
    %1671 = vmatpush2.bf16.xpose.msra.mxu0 0
    %1672 = vmatprep.subr.bf16.mxu0 0
    %1673 = vmatpush2.bf16.xpose.msra.mxu0 0
    %1674 = vmatprep.subr.bf16.mxu0 0
    %1675 = vmatpush2.bf16.xpose.msra.mxu0 0
    %1676 = vmatprep.subr.bf16.mxu0 0
    %1677 = vmatpush2.bf16.xpose.msra.mxu0 0
    %1678 = vmatprep.subr.bf16.mxu0 0
    %1679 = vmatpush2.bf16.xpose.msra.mxu0 0
    %1680 = vmatprep.subr.bf16.mxu0 0
    %1681 = vmatpush2.bf16.xpose.msra.mxu0 0
    %1682 = vmatprep.subr.bf16.mxu0 0
    %1683 = vmatpush2.bf16.xpose.msra.mxu0 0
    %1684 = vmatprep.mubr.bf16.mxu0 0
    %1685 = vmatmul.mubr.bf16.gmra.mxu0 %v1647
    %v1686 = vpop.f32.mrf.mxu0
    %v1687 = vadd.f32 0.0, %v1686
    %v1688 = vpop.f32.mrf.mxu0
    %v1689 = vpop.f32.mrf.mxu0
    %v1690 = vpop.f32.mrf.mxu0
    %1691 = vdwg.mxu0
    %1693 = vrot.lane.b32.xlu0 %v747, 80
    %v1694 = vpop.permute.xlu0 %1693
    %v1696 = vsel %vm763, %v715, 0
    %v1699 = vsel %vm763, %v1694, 0
    %1701 = vmatprep.subr.bf16.mxu0 0
    %1702 = vmatpush1.bf16.xpose.msra.mxu0 0
    %1703 = vmatprep.subr.bf16.mxu0 0
    %1704 = vmatpush1.bf16.xpose.msra.mxu0 0
    %1705 = vmatprep.subr.bf16.mxu0 0
    %1706 = vmatpush1.bf16.xpose.msra.mxu0 0
    %1707 = vmatprep.subr.bf16.mxu0 0
    %1708 = vmatpush1.bf16.xpose.msra.mxu0 0
    %1709 = vmatprep.subr.bf16.mxu0 0
    %1710 = vmatpush1.bf16.xpose.msra.mxu0 0
    %1711 = vmatprep.subr.bf16.mxu0 0
    %1712 = vmatpush1.bf16.xpose.msra.mxu0 0
    %1713 = vmatprep.subr.bf16.mxu0 0
    %1714 = vmatpush1.bf16.xpose.msra.mxu0 0
    %1715 = vmatprep.subr.bf16.mxu0 0
    %1716 = vmatpush1.bf16.xpose.msra.mxu0 %v1699
    %1717 = vmatprep.subr.bf16.mxu0 0
    %1718 = vmatpush2.bf16.xpose.msra.mxu0 0
    %1719 = vmatprep.subr.bf16.mxu0 0
    %1720 = vmatpush2.bf16.xpose.msra.mxu0 0
    %1721 = vmatprep.subr.bf16.mxu0 0
    %1722 = vmatpush2.bf16.xpose.msra.mxu0 0
    %1723 = vmatprep.subr.bf16.mxu0 0
    %1724 = vmatpush2.bf16.xpose.msra.mxu0 0
    %1725 = vmatprep.subr.bf16.mxu0 0
    %1726 = vmatpush2.bf16.xpose.msra.mxu0 0
    %1727 = vmatprep.subr.bf16.mxu0 0
    %1728 = vmatpush2.bf16.xpose.msra.mxu0 0
    %1729 = vmatprep.subr.bf16.mxu0 0
    %1730 = vmatpush2.bf16.xpose.msra.mxu0 0
    %1731 = vmatprep.subr.bf16.mxu0 0
    %1732 = vmatpush2.bf16.xpose.msra.mxu0 0
    %1733 = vmatprep.mubr.bf16.mxu0 0
    %1734 = vmatmul.mubr.bf16.gmra.mxu0 %v1696
    %v1735 = vpop.f32.mrf.mxu0
    %v1736 = vadd.f32 0.0, %v1735
    %v1737 = vpop.f32.mrf.mxu0
    %v1738 = vpop.f32.mrf.mxu0
    %v1739 = vpop.f32.mrf.mxu0
    %1740 = vdwg.mxu0
    %1742 = vrot.lane.b32.xlu0 %v748, 80
    %v1743 = vpop.permute.xlu0 %1742
    %v1745 = vsel %vm763, %v716, 0
    %v1748 = vsel %vm763, %v1743, 0
    %1750 = vmatprep.subr.bf16.mxu0 0
    %1751 = vmatpush1.bf16.xpose.msra.mxu0 0
    %1752 = vmatprep.subr.bf16.mxu0 0
    %1753 = vmatpush1.bf16.xpose.msra.mxu0 0
    %1754 = vmatprep.subr.bf16.mxu0 0
    %1755 = vmatpush1.bf16.xpose.msra.mxu0 0
    %1756 = vmatprep.subr.bf16.mxu0 0
    %1757 = vmatpush1.bf16.xpose.msra.mxu0 0
    %1758 = vmatprep.subr.bf16.mxu0 0
    %1759 = vmatpush1.bf16.xpose.msra.mxu0 0
    %1760 = vmatprep.subr.bf16.mxu0 0
    %1761 = vmatpush1.bf16.xpose.msra.mxu0 0
    %1762 = vmatprep.subr.bf16.mxu0 0
    %1763 = vmatpush1.bf16.xpose.msra.mxu0 0
    %1764 = vmatprep.subr.bf16.mxu0 0
    %1765 = vmatpush1.bf16.xpose.msra.mxu0 %v1748
    %1766 = vmatprep.subr.bf16.mxu0 0
    %1767 = vmatpush2.bf16.xpose.msra.mxu0 0
    %1768 = vmatprep.subr.bf16.mxu0 0
    %1769 = vmatpush2.bf16.xpose.msra.mxu0 0
    %1770 = vmatprep.subr.bf16.mxu0 0
    %1771 = vmatpush2.bf16.xpose.msra.mxu0 0
    %1772 = vmatprep.subr.bf16.mxu0 0
    %1773 = vmatpush2.bf16.xpose.msra.mxu0 0
    %1774 = vmatprep.subr.bf16.mxu0 0
    %1775 = vmatpush2.bf16.xpose.msra.mxu0 0
    %1776 = vmatprep.subr.bf16.mxu0 0
    %1777 = vmatpush2.bf16.xpose.msra.mxu0 0
    %1778 = vmatprep.subr.bf16.mxu0 0
    %1779 = vmatpush2.bf16.xpose.msra.mxu0 0
    %1780 = vmatprep.subr.bf16.mxu0 0
    %1781 = vmatpush2.bf16.xpose.msra.mxu0 0
    %1782 = vmatprep.mubr.bf16.mxu0 0
    %1783 = vmatmul.mubr.bf16.gmra.mxu0 %v1745
    %v1784 = vpop.f32.mrf.mxu0
    %v1785 = vadd.f32 0.0, %v1784
    %v1786 = vpop.f32.mrf.mxu0
    %v1787 = vpop.f32.mrf.mxu0
    %v1788 = vpop.f32.mrf.mxu0
    %1789 = vdwg.mxu0
    %1791 = vrot.lane.b32.xlu0 %v749, 80
    %v1792 = vpop.permute.xlu0 %1791
    %v1794 = vsel %vm763, %v717, 0
    %v1797 = vsel %vm763, %v1792, 0
    %1799 = vmatprep.subr.bf16.mxu0 0
    %1800 = vmatpush1.bf16.xpose.msra.mxu0 0
    %1801 = vmatprep.subr.bf16.mxu0 0
    %1802 = vmatpush1.bf16.xpose.msra.mxu0 0
    %1803 = vmatprep.subr.bf16.mxu0 0
    %1804 = vmatpush1.bf16.xpose.msra.mxu0 0
    %1805 = vmatprep.subr.bf16.mxu0 0
    %1806 = vmatpush1.bf16.xpose.msra.mxu0 0
    %1807 = vmatprep.subr.bf16.mxu0 0
    %1808 = vmatpush1.bf16.xpose.msra.mxu0 0
    %1809 = vmatprep.subr.bf16.mxu0 0
    %1810 = vmatpush1.bf16.xpose.msra.mxu0 0
    %1811 = vmatprep.subr.bf16.mxu0 0
    %1812 = vmatpush1.bf16.xpose.msra.mxu0 0
    %1813 = vmatprep.subr.bf16.mxu0 0
    %1814 = vmatpush1.bf16.xpose.msra.mxu0 %v1797
    %1815 = vmatprep.subr.bf16.mxu0 0
    %1816 = vmatpush2.bf16.xpose.msra.mxu0 0
    %1817 = vmatprep.subr.bf16.mxu0 0
    %1818 = vmatpush2.bf16.xpose.msra.mxu0 0
    %1819 = vmatprep.subr.bf16.mxu0 0
    %1820 = vmatpush2.bf16.xpose.msra.mxu0 0
    %1821 = vmatprep.subr.bf16.mxu0 0
    %1822 = vmatpush2.bf16.xpose.msra.mxu0 0
    %1823 = vmatprep.subr.bf16.mxu0 0
    %1824 = vmatpush2.bf16.xpose.msra.mxu0 0
    %1825 = vmatprep.subr.bf16.mxu0 0
    %1826 = vmatpush2.bf16.xpose.msra.mxu0 0
    %1827 = vmatprep.subr.bf16.mxu0 0
    %1828 = vmatpush2.bf16.xpose.msra.mxu0 0
    %1829 = vmatprep.subr.bf16.mxu0 0
    %1830 = vmatpush2.bf16.xpose.msra.mxu0 0
    %1831 = vmatprep.mubr.bf16.mxu0 0
    %1832 = vmatmul.mubr.bf16.gmra.mxu0 %v1794
    %v1833 = vpop.f32.mrf.mxu0
    %v1834 = vadd.f32 0.0, %v1833
    %v1835 = vpop.f32.mrf.mxu0
    %v1836 = vpop.f32.mrf.mxu0
    %v1837 = vpop.f32.mrf.mxu0
    %1838 = vdwg.mxu0
    %1840 = vrot.lane.b32.xlu0 %v750, 80
    %v1841 = vpop.permute.xlu0 %1840
    %v1843 = vsel %vm763, %v718, 0
    %v1846 = vsel %vm763, %v1841, 0
    %1848 = vmatprep.subr.bf16.mxu0 0
    %1849 = vmatpush1.bf16.xpose.msra.mxu0 0
    %1850 = vmatprep.subr.bf16.mxu0 0
    %1851 = vmatpush1.bf16.xpose.msra.mxu0 0
    %1852 = vmatprep.subr.bf16.mxu0 0
    %1853 = vmatpush1.bf16.xpose.msra.mxu0 0
    %1854 = vmatprep.subr.bf16.mxu0 0
    %1855 = vmatpush1.bf16.xpose.msra.mxu0 0
    %1856 = vmatprep.subr.bf16.mxu0 0
    %1857 = vmatpush1.bf16.xpose.msra.mxu0 0
    %1858 = vmatprep.subr.bf16.mxu0 0
    %1859 = vmatpush1.bf16.xpose.msra.mxu0 0
    %1860 = vmatprep.subr.bf16.mxu0 0
    %1861 = vmatpush1.bf16.xpose.msra.mxu0 0
    %1862 = vmatprep.subr.bf16.mxu0 0
    %1863 = vmatpush1.bf16.xpose.msra.mxu0 %v1846
    %1864 = vmatprep.subr.bf16.mxu0 0
    %1865 = vmatpush2.bf16.xpose.msra.mxu0 0
    %1866 = vmatprep.subr.bf16.mxu0 0
    %1867 = vmatpush2.bf16.xpose.msra.mxu0 0
    %1868 = vmatprep.subr.bf16.mxu0 0
    %1869 = vmatpush2.bf16.xpose.msra.mxu0 0
    %1870 = vmatprep.subr.bf16.mxu0 0
    %1871 = vmatpush2.bf16.xpose.msra.mxu0 0
    %1872 = vmatprep.subr.bf16.mxu0 0
    %1873 = vmatpush2.bf16.xpose.msra.mxu0 0
    %1874 = vmatprep.subr.bf16.mxu0 0
    %1875 = vmatpush2.bf16.xpose.msra.mxu0 0
    %1876 = vmatprep.subr.bf16.mxu0 0
    %1877 = vmatpush2.bf16.xpose.msra.mxu0 0
    %1878 = vmatprep.subr.bf16.mxu0 0
    %1879 = vmatpush2.bf16.xpose.msra.mxu0 0
    %1880 = vmatprep.mubr.bf16.mxu0 0
    %1881 = vmatmul.mubr.bf16.gmra.mxu0 %v1843
    %v1882 = vpop.f32.mrf.mxu0
    %v1883 = vadd.f32 0.0, %v1882
    %v1884 = vpop.f32.mrf.mxu0
    %v1885 = vpop.f32.mrf.mxu0
    %v1886 = vpop.f32.mrf.mxu0
    %1887 = vdwg.mxu0
    %1889 = vrot.lane.b32.xlu0 %v751, 80
    %v1890 = vpop.permute.xlu0 %1889
    %v1892 = vsel %vm763, %v719, 0
    %v1895 = vsel %vm763, %v1890, 0
    %1897 = vmatprep.subr.bf16.mxu0 0
    %1898 = vmatpush1.bf16.xpose.msra.mxu0 0
    %1899 = vmatprep.subr.bf16.mxu0 0
    %1900 = vmatpush1.bf16.xpose.msra.mxu0 0
    %1901 = vmatprep.subr.bf16.mxu0 0
    %1902 = vmatpush1.bf16.xpose.msra.mxu0 0
    %1903 = vmatprep.subr.bf16.mxu0 0
    %1904 = vmatpush1.bf16.xpose.msra.mxu0 0
    %1905 = vmatprep.subr.bf16.mxu0 0
    %1906 = vmatpush1.bf16.xpose.msra.mxu0 0
    %1907 = vmatprep.subr.bf16.mxu0 0
    %1908 = vmatpush1.bf16.xpose.msra.mxu0 0
    %1909 = vmatprep.subr.bf16.mxu0 0
    %1910 = vmatpush1.bf16.xpose.msra.mxu0 0
    %1911 = vmatprep.subr.bf16.mxu0 0
    %1912 = vmatpush1.bf16.xpose.msra.mxu0 %v1895
    %1913 = vmatprep.subr.bf16.mxu0 0
    %1914 = vmatpush2.bf16.xpose.msra.mxu0 0
    %1915 = vmatprep.subr.bf16.mxu0 0
    %1916 = vmatpush2.bf16.xpose.msra.mxu0 0
    %1917 = vmatprep.subr.bf16.mxu0 0
    %1918 = vmatpush2.bf16.xpose.msra.mxu0 0
    %1919 = vmatprep.subr.bf16.mxu0 0
    %1920 = vmatpush2.bf16.xpose.msra.mxu0 0
    %1921 = vmatprep.subr.bf16.mxu0 0
    %1922 = vmatpush2.bf16.xpose.msra.mxu0 0
    %1923 = vmatprep.subr.bf16.mxu0 0
    %1924 = vmatpush2.bf16.xpose.msra.mxu0 0
    %1925 = vmatprep.subr.bf16.mxu0 0
    %1926 = vmatpush2.bf16.xpose.msra.mxu0 0
    %1927 = vmatprep.subr.bf16.mxu0 0
    %1928 = vmatpush2.bf16.xpose.msra.mxu0 0
    %1929 = vmatprep.mubr.bf16.mxu0 0
    %1930 = vmatmul.mubr.bf16.gmra.mxu0 %v1892
    %v1931 = vpop.f32.mrf.mxu0
    %v1932 = vadd.f32 0.0, %v1931
    %v1933 = vpop.f32.mrf.mxu0
    %v1934 = vpop.f32.mrf.mxu0
    %v1935 = vpop.f32.mrf.mxu0
    %1936 = vdwg.mxu0
    %1938 = vrot.lane.b32.xlu0 %v752, 80
    %v1939 = vpop.permute.xlu0 %1938
    %v1941 = vsel %vm763, %v720, 0
    %v1944 = vsel %vm763, %v1939, 0
    %1946 = vmatprep.subr.bf16.mxu0 0
    %1947 = vmatpush1.bf16.xpose.msra.mxu0 0
    %1948 = vmatprep.subr.bf16.mxu0 0
    %1949 = vmatpush1.bf16.xpose.msra.mxu0 0
    %1950 = vmatprep.subr.bf16.mxu0 0
    %1951 = vmatpush1.bf16.xpose.msra.mxu0 0
    %1952 = vmatprep.subr.bf16.mxu0 0
    %1953 = vmatpush1.bf16.xpose.msra.mxu0 0
    %1954 = vmatprep.subr.bf16.mxu0 0
    %1955 = vmatpush1.bf16.xpose.msra.mxu0 0
    %1956 = vmatprep.subr.bf16.mxu0 0
    %1957 = vmatpush1.bf16.xpose.msra.mxu0 0
    %1958 = vmatprep.subr.bf16.mxu0 0
    %1959 = vmatpush1.bf16.xpose.msra.mxu0 0
    %1960 = vmatprep.subr.bf16.mxu0 0
    %1961 = vmatpush1.bf16.xpose.msra.mxu0 %v1944
    %1962 = vmatprep.subr.bf16.mxu0 0
    %1963 = vmatpush2.bf16.xpose.msra.mxu0 0
    %1964 = vmatprep.subr.bf16.mxu0 0
    %1965 = vmatpush2.bf16.xpose.msra.mxu0 0
    %1966 = vmatprep.subr.bf16.mxu0 0
    %1967 = vmatpush2.bf16.xpose.msra.mxu0 0
    %1968 = vmatprep.subr.bf16.mxu0 0
    %1969 = vmatpush2.bf16.xpose.msra.mxu0 0
    %1970 = vmatprep.subr.bf16.mxu0 0
    %1971 = vmatpush2.bf16.xpose.msra.mxu0 0
    %1972 = vmatprep.subr.bf16.mxu0 0
    %1973 = vmatpush2.bf16.xpose.msra.mxu0 0
    %1974 = vmatprep.subr.bf16.mxu0 0
    %1975 = vmatpush2.bf16.xpose.msra.mxu0 0
    %1976 = vmatprep.subr.bf16.mxu0 0
    %1977 = vmatpush2.bf16.xpose.msra.mxu0 0
    %1978 = vmatprep.mubr.bf16.mxu0 0
    %1979 = vmatmul.mubr.bf16.gmra.mxu0 %v1941
    %v1980 = vpop.f32.mrf.mxu0
    %v1981 = vadd.f32 0.0, %v1980
    %v1982 = vpop.f32.mrf.mxu0
    %v1983 = vpop.f32.mrf.mxu0
    %v1984 = vpop.f32.mrf.mxu0
    %1985 = vdwg.mxu0
    %1987 = vrot.lane.b32.xlu0 %v753, 80
    %v1988 = vpop.permute.xlu0 %1987
    %v1990 = vsel %vm763, %v721, 0
    %v1993 = vsel %vm763, %v1988, 0
    %1995 = vmatprep.subr.bf16.mxu0 0
    %1996 = vmatpush1.bf16.xpose.msra.mxu0 0
    %1997 = vmatprep.subr.bf16.mxu0 0
    %1998 = vmatpush1.bf16.xpose.msra.mxu0 0
    %1999 = vmatprep.subr.bf16.mxu0 0
    %2000 = vmatpush1.bf16.xpose.msra.mxu0 0
    %2001 = vmatprep.subr.bf16.mxu0 0
    %2002 = vmatpush1.bf16.xpose.msra.mxu0 0
    %2003 = vmatprep.subr.bf16.mxu0 0
    %2004 = vmatpush1.bf16.xpose.msra.mxu0 0
    %2005 = vmatprep.subr.bf16.mxu0 0
    %2006 = vmatpush1.bf16.xpose.msra.mxu0 0
    %2007 = vmatprep.subr.bf16.mxu0 0
    %2008 = vmatpush1.bf16.xpose.msra.mxu0 0
    %2009 = vmatprep.subr.bf16.mxu0 0
    %2010 = vmatpush1.bf16.xpose.msra.mxu0 %v1993
    %2011 = vmatprep.subr.bf16.mxu0 0
    %2012 = vmatpush2.bf16.xpose.msra.mxu0 0
    %2013 = vmatprep.subr.bf16.mxu0 0
    %2014 = vmatpush2.bf16.xpose.msra.mxu0 0
    %2015 = vmatprep.subr.bf16.mxu0 0
    %2016 = vmatpush2.bf16.xpose.msra.mxu0 0
    %2017 = vmatprep.subr.bf16.mxu0 0
    %2018 = vmatpush2.bf16.xpose.msra.mxu0 0
    %2019 = vmatprep.subr.bf16.mxu0 0
    %2020 = vmatpush2.bf16.xpose.msra.mxu0 0
    %2021 = vmatprep.subr.bf16.mxu0 0
    %2022 = vmatpush2.bf16.xpose.msra.mxu0 0
    %2023 = vmatprep.subr.bf16.mxu0 0
    %2024 = vmatpush2.bf16.xpose.msra.mxu0 0
    %2025 = vmatprep.subr.bf16.mxu0 0
    %2026 = vmatpush2.bf16.xpose.msra.mxu0 0
    %2027 = vmatprep.mubr.bf16.mxu0 0
    %2028 = vmatmul.mubr.bf16.gmra.mxu0 %v1990
    %v2029 = vpop.f32.mrf.mxu0
    %v2030 = vadd.f32 0.0, %v2029
    %v2031 = vpop.f32.mrf.mxu0
    %v2032 = vpop.f32.mrf.mxu0
    %v2033 = vpop.f32.mrf.mxu0
    %2034 = vdwg.mxu0
    %2036 = vrot.lane.b32.xlu0 %v754, 80
    %v2037 = vpop.permute.xlu0 %2036
    %v2039 = vsel %vm763, %v722, 0
    %v2042 = vsel %vm763, %v2037, 0
    %2044 = vmatprep.subr.bf16.mxu0 0
    %2045 = vmatpush1.bf16.xpose.msra.mxu0 0
    %2046 = vmatprep.subr.bf16.mxu0 0
    %2047 = vmatpush1.bf16.xpose.msra.mxu0 0
    %2048 = vmatprep.subr.bf16.mxu0 0
    %2049 = vmatpush1.bf16.xpose.msra.mxu0 0
    %2050 = vmatprep.subr.bf16.mxu0 0
    %2051 = vmatpush1.bf16.xpose.msra.mxu0 0
    %2052 = vmatprep.subr.bf16.mxu0 0
    %2053 = vmatpush1.bf16.xpose.msra.mxu0 0
    %2054 = vmatprep.subr.bf16.mxu0 0
    %2055 = vmatpush1.bf16.xpose.msra.mxu0 0
    %2056 = vmatprep.subr.bf16.mxu0 0
    %2057 = vmatpush1.bf16.xpose.msra.mxu0 0
    %2058 = vmatprep.subr.bf16.mxu0 0
    %2059 = vmatpush1.bf16.xpose.msra.mxu0 %v2042
    %2060 = vmatprep.subr.bf16.mxu0 0
    %2061 = vmatpush2.bf16.xpose.msra.mxu0 0
    %2062 = vmatprep.subr.bf16.mxu0 0
    %2063 = vmatpush2.bf16.xpose.msra.mxu0 0
    %2064 = vmatprep.subr.bf16.mxu0 0
    %2065 = vmatpush2.bf16.xpose.msra.mxu0 0
    %2066 = vmatprep.subr.bf16.mxu0 0
    %2067 = vmatpush2.bf16.xpose.msra.mxu0 0
    %2068 = vmatprep.subr.bf16.mxu0 0
    %2069 = vmatpush2.bf16.xpose.msra.mxu0 0
    %2070 = vmatprep.subr.bf16.mxu0 0
    %2071 = vmatpush2.bf16.xpose.msra.mxu0 0
    %2072 = vmatprep.subr.bf16.mxu0 0
    %2073 = vmatpush2.bf16.xpose.msra.mxu0 0
    %2074 = vmatprep.subr.bf16.mxu0 0
    %2075 = vmatpush2.bf16.xpose.msra.mxu0 0
    %2076 = vmatprep.mubr.bf16.mxu0 0
    %2077 = vmatmul.mubr.bf16.gmra.mxu0 %v2039
    %v2078 = vpop.f32.mrf.mxu0
    %v2079 = vadd.f32 0.0, %v2078
    %v2080 = vpop.f32.mrf.mxu0
    %v2081 = vpop.f32.mrf.mxu0
    %v2082 = vpop.f32.mrf.mxu0
    %2083 = vdwg.mxu0
    %2085 = vrot.lane.b32.xlu0 %v755, 80
    %v2086 = vpop.permute.xlu0 %2085
    %v2088 = vsel %vm763, %v723, 0
    %v2091 = vsel %vm763, %v2086, 0
    %2093 = vmatprep.subr.bf16.mxu0 0
    %2094 = vmatpush1.bf16.xpose.msra.mxu0 0
    %2095 = vmatprep.subr.bf16.mxu0 0
    %2096 = vmatpush1.bf16.xpose.msra.mxu0 0
    %2097 = vmatprep.subr.bf16.mxu0 0
    %2098 = vmatpush1.bf16.xpose.msra.mxu0 0
    %2099 = vmatprep.subr.bf16.mxu0 0
    %2100 = vmatpush1.bf16.xpose.msra.mxu0 0
    %2101 = vmatprep.subr.bf16.mxu0 0
    %2102 = vmatpush1.bf16.xpose.msra.mxu0 0
    %2103 = vmatprep.subr.bf16.mxu0 0
    %2104 = vmatpush1.bf16.xpose.msra.mxu0 0
    %2105 = vmatprep.subr.bf16.mxu0 0
    %2106 = vmatpush1.bf16.xpose.msra.mxu0 0
    %2107 = vmatprep.subr.bf16.mxu0 0
    %2108 = vmatpush1.bf16.xpose.msra.mxu0 %v2091
    %2109 = vmatprep.subr.bf16.mxu0 0
    %2110 = vmatpush2.bf16.xpose.msra.mxu0 0
    %2111 = vmatprep.subr.bf16.mxu0 0
    %2112 = vmatpush2.bf16.xpose.msra.mxu0 0
    %2113 = vmatprep.subr.bf16.mxu0 0
    %2114 = vmatpush2.bf16.xpose.msra.mxu0 0
    %2115 = vmatprep.subr.bf16.mxu0 0
    %2116 = vmatpush2.bf16.xpose.msra.mxu0 0
    %2117 = vmatprep.subr.bf16.mxu0 0
    %2118 = vmatpush2.bf16.xpose.msra.mxu0 0
    %2119 = vmatprep.subr.bf16.mxu0 0
    %2120 = vmatpush2.bf16.xpose.msra.mxu0 0
    %2121 = vmatprep.subr.bf16.mxu0 0
    %2122 = vmatpush2.bf16.xpose.msra.mxu0 0
    %2123 = vmatprep.subr.bf16.mxu0 0
    %2124 = vmatpush2.bf16.xpose.msra.mxu0 0
    %2125 = vmatprep.mubr.bf16.mxu0 0
    %2126 = vmatmul.mubr.bf16.gmra.mxu0 %v2088
    %v2127 = vpop.f32.mrf.mxu0
    %v2128 = vadd.f32 0.0, %v2127
    %v2129 = vpop.f32.mrf.mxu0
    %v2130 = vpop.f32.mrf.mxu0
    %v2131 = vpop.f32.mrf.mxu0
    %2132 = vdwg.mxu0
    %2134 = vrot.lane.b32.xlu0 %v756, 80
    %v2135 = vpop.permute.xlu0 %2134
    %v2137 = vsel %vm763, %v724, 0
    %v2140 = vsel %vm763, %v2135, 0
    %2142 = vmatprep.subr.bf16.mxu0 0
    %2143 = vmatpush1.bf16.xpose.msra.mxu0 0
    %2144 = vmatprep.subr.bf16.mxu0 0
    %2145 = vmatpush1.bf16.xpose.msra.mxu0 0
    %2146 = vmatprep.subr.bf16.mxu0 0
    %2147 = vmatpush1.bf16.xpose.msra.mxu0 0
    %2148 = vmatprep.subr.bf16.mxu0 0
    %2149 = vmatpush1.bf16.xpose.msra.mxu0 0
    %2150 = vmatprep.subr.bf16.mxu0 0
    %2151 = vmatpush1.bf16.xpose.msra.mxu0 0
    %2152 = vmatprep.subr.bf16.mxu0 0
    %2153 = vmatpush1.bf16.xpose.msra.mxu0 0
    %2154 = vmatprep.subr.bf16.mxu0 0
    %2155 = vmatpush1.bf16.xpose.msra.mxu0 0
    %2156 = vmatprep.subr.bf16.mxu0 0
    %2157 = vmatpush1.bf16.xpose.msra.mxu0 %v2140
    %2158 = vmatprep.subr.bf16.mxu0 0
    %2159 = vmatpush2.bf16.xpose.msra.mxu0 0
    %2160 = vmatprep.subr.bf16.mxu0 0
    %2161 = vmatpush2.bf16.xpose.msra.mxu0 0
    %2162 = vmatprep.subr.bf16.mxu0 0
    %2163 = vmatpush2.bf16.xpose.msra.mxu0 0
    %2164 = vmatprep.subr.bf16.mxu0 0
    %2165 = vmatpush2.bf16.xpose.msra.mxu0 0
    %2166 = vmatprep.subr.bf16.mxu0 0
    %2167 = vmatpush2.bf16.xpose.msra.mxu0 0
    %2168 = vmatprep.subr.bf16.mxu0 0
    %2169 = vmatpush2.bf16.xpose.msra.mxu0 0
    %2170 = vmatprep.subr.bf16.mxu0 0
    %2171 = vmatpush2.bf16.xpose.msra.mxu0 0
    %2172 = vmatprep.subr.bf16.mxu0 0
    %2173 = vmatpush2.bf16.xpose.msra.mxu0 0
    %2174 = vmatprep.mubr.bf16.mxu0 0
    %2175 = vmatmul.mubr.bf16.gmra.mxu0 %v2137
    %v2176 = vpop.f32.mrf.mxu0
    %v2177 = vadd.f32 0.0, %v2176
    %v2178 = vpop.f32.mrf.mxu0
    %v2179 = vpop.f32.mrf.mxu0
    %v2180 = vpop.f32.mrf.mxu0
    %2181 = vdwg.mxu0
    %2183 = vrot.lane.b32.xlu0 %v757, 80
    %v2184 = vpop.permute.xlu0 %2183
    %v2186 = vsel %vm763, %v725, 0
    %v2189 = vsel %vm763, %v2184, 0
    %2191 = vmatprep.subr.bf16.mxu0 0
    %2192 = vmatpush1.bf16.xpose.msra.mxu0 0
    %2193 = vmatprep.subr.bf16.mxu0 0
    %2194 = vmatpush1.bf16.xpose.msra.mxu0 0
    %2195 = vmatprep.subr.bf16.mxu0 0
    %2196 = vmatpush1.bf16.xpose.msra.mxu0 0
    %2197 = vmatprep.subr.bf16.mxu0 0
    %2198 = vmatpush1.bf16.xpose.msra.mxu0 0
    %2199 = vmatprep.subr.bf16.mxu0 0
    %2200 = vmatpush1.bf16.xpose.msra.mxu0 0
    %2201 = vmatprep.subr.bf16.mxu0 0
    %2202 = vmatpush1.bf16.xpose.msra.mxu0 0
    %2203 = vmatprep.subr.bf16.mxu0 0
    %2204 = vmatpush1.bf16.xpose.msra.mxu0 0
    %2205 = vmatprep.subr.bf16.mxu0 0
    %2206 = vmatpush1.bf16.xpose.msra.mxu0 %v2189
    %2207 = vmatprep.subr.bf16.mxu0 0
    %2208 = vmatpush2.bf16.xpose.msra.mxu0 0
    %2209 = vmatprep.subr.bf16.mxu0 0
    %2210 = vmatpush2.bf16.xpose.msra.mxu0 0
    %2211 = vmatprep.subr.bf16.mxu0 0
    %2212 = vmatpush2.bf16.xpose.msra.mxu0 0
    %2213 = vmatprep.subr.bf16.mxu0 0
    %2214 = vmatpush2.bf16.xpose.msra.mxu0 0
    %2215 = vmatprep.subr.bf16.mxu0 0
    %2216 = vmatpush2.bf16.xpose.msra.mxu0 0
    %2217 = vmatprep.subr.bf16.mxu0 0
    %2218 = vmatpush2.bf16.xpose.msra.mxu0 0
    %2219 = vmatprep.subr.bf16.mxu0 0
    %2220 = vmatpush2.bf16.xpose.msra.mxu0 0
    %2221 = vmatprep.subr.bf16.mxu0 0
    %2222 = vmatpush2.bf16.xpose.msra.mxu0 0
    %2223 = vmatprep.mubr.bf16.mxu0 0
    %2224 = vmatmul.mubr.bf16.gmra.mxu0 %v2186
    %v2225 = vpop.f32.mrf.mxu0
    %v2226 = vadd.f32 0.0, %v2225
    %v2227 = vpop.f32.mrf.mxu0
    %v2228 = vpop.f32.mrf.mxu0
    %v2229 = vpop.f32.mrf.mxu0
    %2230 = vdwg.mxu0
    %2232 = vrot.lane.b32.xlu0 %v758, 80
    %v2233 = vpop.permute.xlu0 %2232
    %v2235 = vsel %vm763, %v726, 0
    %v2238 = vsel %vm763, %v2233, 0
    %2240 = vmatprep.subr.bf16.mxu0 0
    %2241 = vmatpush1.bf16.xpose.msra.mxu0 0
    %2242 = vmatprep.subr.bf16.mxu0 0
    %2243 = vmatpush1.bf16.xpose.msra.mxu0 0
    %2244 = vmatprep.subr.bf16.mxu0 0
    %2245 = vmatpush1.bf16.xpose.msra.mxu0 0
    %2246 = vmatprep.subr.bf16.mxu0 0
    %2247 = vmatpush1.bf16.xpose.msra.mxu0 0
    %2248 = vmatprep.subr.bf16.mxu0 0
    %2249 = vmatpush1.bf16.xpose.msra.mxu0 0
    %2250 = vmatprep.subr.bf16.mxu0 0
    %2251 = vmatpush1.bf16.xpose.msra.mxu0 0
    %2252 = vmatprep.subr.bf16.mxu0 0
    %2253 = vmatpush1.bf16.xpose.msra.mxu0 0
    %2254 = vmatprep.subr.bf16.mxu0 0
    %2255 = vmatpush1.bf16.xpose.msra.mxu0 %v2238
    %2256 = vmatprep.subr.bf16.mxu0 0
    %2257 = vmatpush2.bf16.xpose.msra.mxu0 0
    %2258 = vmatprep.subr.bf16.mxu0 0
    %2259 = vmatpush2.bf16.xpose.msra.mxu0 0
    %2260 = vmatprep.subr.bf16.mxu0 0
    %2261 = vmatpush2.bf16.xpose.msra.mxu0 0
    %2262 = vmatprep.subr.bf16.mxu0 0
    %2263 = vmatpush2.bf16.xpose.msra.mxu0 0
    %2264 = vmatprep.subr.bf16.mxu0 0
    %2265 = vmatpush2.bf16.xpose.msra.mxu0 0
    %2266 = vmatprep.subr.bf16.mxu0 0
    %2267 = vmatpush2.bf16.xpose.msra.mxu0 0
    %2268 = vmatprep.subr.bf16.mxu0 0
    %2269 = vmatpush2.bf16.xpose.msra.mxu0 0
    %2270 = vmatprep.subr.bf16.mxu0 0
    %2271 = vmatpush2.bf16.xpose.msra.mxu0 0
    %2272 = vmatprep.mubr.bf16.mxu0 0
    %2273 = vmatmul.mubr.bf16.gmra.mxu0 %v2235
    %v2274 = vpop.f32.mrf.mxu0
    %v2275 = vadd.f32 0.0, %v2274
    %v2276 = vpop.f32.mrf.mxu0
    %v2277 = vpop.f32.mrf.mxu0
    %v2278 = vpop.f32.mrf.mxu0
    %2279 = vdwg.mxu0
    %2281 = vrot.lane.b32.xlu0 %v759, 80
    %v2282 = vpop.permute.xlu0 %2281
    %v2284 = vsel %vm763, %v727, 0
    %v2287 = vsel %vm763, %v2282, 0
    %2289 = vmatprep.subr.bf16.mxu0 0
    %2290 = vmatpush1.bf16.xpose.msra.mxu0 0
    %2291 = vmatprep.subr.bf16.mxu0 0
    %2292 = vmatpush1.bf16.xpose.msra.mxu0 0
    %2293 = vmatprep.subr.bf16.mxu0 0
    %2294 = vmatpush1.bf16.xpose.msra.mxu0 0
    %2295 = vmatprep.subr.bf16.mxu0 0
    %2296 = vmatpush1.bf16.xpose.msra.mxu0 0
    %2297 = vmatprep.subr.bf16.mxu0 0
    %2298 = vmatpush1.bf16.xpose.msra.mxu0 0
    %2299 = vmatprep.subr.bf16.mxu0 0
    %2300 = vmatpush1.bf16.xpose.msra.mxu0 0
    %2301 = vmatprep.subr.bf16.mxu0 0
    %2302 = vmatpush1.bf16.xpose.msra.mxu0 0
    %2303 = vmatprep.subr.bf16.mxu0 0
    %2304 = vmatpush1.bf16.xpose.msra.mxu0 %v2287
    %2305 = vmatprep.subr.bf16.mxu0 0
    %2306 = vmatpush2.bf16.xpose.msra.mxu0 0
    %2307 = vmatprep.subr.bf16.mxu0 0
    %2308 = vmatpush2.bf16.xpose.msra.mxu0 0
    %2309 = vmatprep.subr.bf16.mxu0 0
    %2310 = vmatpush2.bf16.xpose.msra.mxu0 0
    %2311 = vmatprep.subr.bf16.mxu0 0
    %2312 = vmatpush2.bf16.xpose.msra.mxu0 0
    %2313 = vmatprep.subr.bf16.mxu0 0
    %2314 = vmatpush2.bf16.xpose.msra.mxu0 0
    %2315 = vmatprep.subr.bf16.mxu0 0
    %2316 = vmatpush2.bf16.xpose.msra.mxu0 0
    %2317 = vmatprep.subr.bf16.mxu0 0
    %2318 = vmatpush2.bf16.xpose.msra.mxu0 0
    %2319 = vmatprep.subr.bf16.mxu0 0
    %2320 = vmatpush2.bf16.xpose.msra.mxu0 0
    %2321 = vmatprep.mubr.bf16.mxu0 0
    %2322 = vmatmul.mubr.bf16.gmra.mxu0 %v2284
    %v2323 = vpop.f32.mrf.mxu0
    %v2324 = vadd.f32 0.0, %v2323
    %v2325 = vpop.f32.mrf.mxu0
    %v2326 = vpop.f32.mrf.mxu0
    %v2327 = vpop.f32.mrf.mxu0
    %2328 = vdwg.mxu0
    %vm2329 = vcmask 64512
    %v2330 = vsel %vm2329, %v805, -inf
    %2331 = vmax.xlane.f32.xlu0 %v2330
    %v2332 = vpop.xlane.xlu0 %2331
    %v2333 = vsel %vm2329, %v854, -inf
    %2334 = vmax.xlane.f32.xlu0 %v2333
    %v2335 = vpop.xlane.xlu0 %2334
    %v2336 = vsel %vm2329, %v903, -inf
    %2337 = vmax.xlane.f32.xlu0 %v2336
    %v2338 = vpop.xlane.xlu0 %2337
    %v2339 = vsel %vm2329, %v952, -inf
    %2340 = vmax.xlane.f32.xlu0 %v2339
    %v2341 = vpop.xlane.xlu0 %2340
    %v2342 = vsel %vm2329, %v1001, -inf
    %2343 = vmax.xlane.f32.xlu0 %v2342
    %v2344 = vpop.xlane.xlu0 %2343
    %v2345 = vsel %vm2329, %v1050, -inf
    %2346 = vmax.xlane.f32.xlu0 %v2345
    %v2347 = vpop.xlane.xlu0 %2346
    %v2348 = vsel %vm2329, %v1099, -inf
    %2349 = vmax.xlane.f32.xlu0 %v2348
    %v2350 = vpop.xlane.xlu0 %2349
    %v2351 = vsel %vm2329, %v1148, -inf
    %2352 = vmax.xlane.f32.xlu0 %v2351
    %v2353 = vpop.xlane.xlu0 %2352
    %v2354 = vsel %vm2329, %v1197, -inf
    %2355 = vmax.xlane.f32.xlu0 %v2354
    %v2356 = vpop.xlane.xlu0 %2355
    %v2357 = vsel %vm2329, %v1246, -inf
    %2358 = vmax.xlane.f32.xlu0 %v2357
    %v2359 = vpop.xlane.xlu0 %2358
    %v2360 = vsel %vm2329, %v1295, -inf
    %2361 = vmax.xlane.f32.xlu0 %v2360
    %v2362 = vpop.xlane.xlu0 %2361
    %v2363 = vsel %vm2329, %v1344, -inf
    %2364 = vmax.xlane.f32.xlu0 %v2363
    %v2365 = vpop.xlane.xlu0 %2364
    %v2366 = vsel %vm2329, %v1393, -inf
    %2367 = vmax.xlane.f32.xlu0 %v2366
    %v2368 = vpop.xlane.xlu0 %2367
    %v2369 = vsel %vm2329, %v1442, -inf
    %2370 = vmax.xlane.f32.xlu0 %v2369
    %v2371 = vpop.xlane.xlu0 %2370
    %v2372 = vsel %vm2329, %v1491, -inf
    %2373 = vmax.xlane.f32.xlu0 %v2372
    %v2374 = vpop.xlane.xlu0 %2373
    %v2375 = vsel %vm2329, %v1540, -inf
    %2376 = vmax.xlane.f32.xlu0 %v2375
    %v2377 = vpop.xlane.xlu0 %2376
    %v2378 = vsel %vm2329, %v1589, -inf
    %2379 = vmax.xlane.f32.xlu0 %v2378
    %v2380 = vpop.xlane.xlu0 %2379
    %v2381 = vsel %vm2329, %v1638, -inf
    %2382 = vmax.xlane.f32.xlu0 %v2381
    %v2383 = vpop.xlane.xlu0 %2382
    %v2384 = vsel %vm2329, %v1687, -inf
    %2385 = vmax.xlane.f32.xlu0 %v2384
    %v2386 = vpop.xlane.xlu0 %2385
    %v2387 = vsel %vm2329, %v1736, -inf
    %2388 = vmax.xlane.f32.xlu0 %v2387
    %v2389 = vpop.xlane.xlu0 %2388
    %v2390 = vsel %vm2329, %v1785, -inf
    %2391 = vmax.xlane.f32.xlu0 %v2390
    %v2392 = vpop.xlane.xlu0 %2391
    %v2393 = vsel %vm2329, %v1834, -inf
    %2394 = vmax.xlane.f32.xlu0 %v2393
    %v2395 = vpop.xlane.xlu0 %2394
    %v2396 = vsel %vm2329, %v1883, -inf
    %2397 = vmax.xlane.f32.xlu0 %v2396
    %v2398 = vpop.xlane.xlu0 %2397
    %v2399 = vsel %vm2329, %v1932, -inf
    %2400 = vmax.xlane.f32.xlu0 %v2399
    %v2401 = vpop.xlane.xlu0 %2400
    %v2402 = vsel %vm2329, %v1981, -inf
    %2403 = vmax.xlane.f32.xlu0 %v2402
    %v2404 = vpop.xlane.xlu0 %2403
    %v2405 = vsel %vm2329, %v2030, -inf
    %2406 = vmax.xlane.f32.xlu0 %v2405
    %v2407 = vpop.xlane.xlu0 %2406
    %v2408 = vsel %vm2329, %v2079, -inf
    %2409 = vmax.xlane.f32.xlu0 %v2408
    %v2410 = vpop.xlane.xlu0 %2409
    %v2411 = vsel %vm2329, %v2128, -inf
    %2412 = vmax.xlane.f32.xlu0 %v2411
    %v2413 = vpop.xlane.xlu0 %2412
    %v2414 = vsel %vm2329, %v2177, -inf
    %2415 = vmax.xlane.f32.xlu0 %v2414
    %v2416 = vpop.xlane.xlu0 %2415
    %v2417 = vsel %vm2329, %v2226, -inf
    %2418 = vmax.xlane.f32.xlu0 %v2417
    %v2419 = vpop.xlane.xlu0 %2418
    %v2420 = vsel %vm2329, %v2275, -inf
    %2421 = vmax.xlane.f32.xlu0 %v2420
    %v2422 = vpop.xlane.xlu0 %2421
    %v2423 = vsel %vm2329, %v2324, -inf
    %2424 = vmax.xlane.f32.xlu0 %v2423
    %v2425 = vpop.xlane.xlu0 %2424
    %v2426 = vsub.f32 %v805, %v2332
    %v2427 = vsub.f32 %v854, %v2335
    %v2428 = vsub.f32 %v903, %v2338
    %v2429 = vsub.f32 %v952, %v2341
    %v2430 = vsub.f32 %v1001, %v2344
    %v2431 = vsub.f32 %v1050, %v2347
    %v2432 = vsub.f32 %v1099, %v2350
    %v2433 = vsub.f32 %v1148, %v2353
    %v2434 = vsub.f32 %v1197, %v2356
    %v2435 = vsub.f32 %v1246, %v2359
    %v2436 = vsub.f32 %v1295, %v2362
    %v2437 = vsub.f32 %v1344, %v2365
    %v2438 = vsub.f32 %v1393, %v2368
    %v2439 = vsub.f32 %v1442, %v2371
    %v2440 = vsub.f32 %v1491, %v2374
    %v2441 = vsub.f32 %v1540, %v2377
    %v2442 = vsub.f32 %v1589, %v2380
    %v2443 = vsub.f32 %v1638, %v2383
    %v2444 = vsub.f32 %v1687, %v2386
    %v2445 = vsub.f32 %v1736, %v2389
    %v2446 = vsub.f32 %v1785, %v2392
    %v2447 = vsub.f32 %v1834, %v2395
    %v2448 = vsub.f32 %v1883, %v2398
    %v2449 = vsub.f32 %v1932, %v2401
    %v2450 = vsub.f32 %v1981, %v2404
    %v2451 = vsub.f32 %v2030, %v2407
    %v2452 = vsub.f32 %v2079, %v2410
    %v2453 = vsub.f32 %v2128, %v2413
    %v2454 = vsub.f32 %v2177, %v2416
    %v2455 = vsub.f32 %v2226, %v2419
    %v2456 = vsub.f32 %v2275, %v2422
    %v2457 = vsub.f32 %v2324, %v2425
    %v2458 = vmul.f32 %v2426, 1.442695
    %v2459 = vpow.pop %v2458
    %v2460 = vmul.f32 %v2427, 1.442695
    %v2461 = vpow.pop %v2460
    %v2462 = vmul.f32 %v2428, 1.442695
    %v2463 = vpow.pop %v2462
    %v2464 = vmul.f32 %v2429, 1.442695
    %v2465 = vpow.pop %v2464
    %v2466 = vmul.f32 %v2430, 1.442695
    %v2467 = vpow.pop %v2466
    %v2468 = vmul.f32 %v2431, 1.442695
    %v2469 = vpow.pop %v2468
    %v2470 = vmul.f32 %v2432, 1.442695
    %v2471 = vpow.pop %v2470
    %v2472 = vmul.f32 %v2433, 1.442695
    %v2473 = vpow.pop %v2472
    %v2474 = vmul.f32 %v2434, 1.442695
    %v2475 = vpow.pop %v2474
    %v2476 = vmul.f32 %v2435, 1.442695
    %v2477 = vpow.pop %v2476
    %v2478 = vmul.f32 %v2436, 1.442695
    %v2479 = vpow.pop %v2478
    %v2480 = vmul.f32 %v2437, 1.442695
    %v2481 = vpow.pop %v2480
    %v2482 = vmul.f32 %v2438, 1.442695
    %v2483 = vpow.pop %v2482
    %v2484 = vmul.f32 %v2439, 1.442695
    %v2485 = vpow.pop %v2484
    %v2486 = vmul.f32 %v2440, 1.442695
    %v2487 = vpow.pop %v2486
    %v2488 = vmul.f32 %v2441, 1.442695
    %v2489 = vpow.pop %v2488
    %v2490 = vmul.f32 %v2442, 1.442695
    %v2491 = vpow.pop %v2490
    %v2492 = vmul.f32 %v2443, 1.442695
    %v2493 = vpow.pop %v2492
    %v2494 = vmul.f32 %v2444, 1.442695
    %v2495 = vpow.pop %v2494
    %v2496 = vmul.f32 %v2445, 1.442695
    %v2497 = vpow.pop %v2496
    %v2498 = vmul.f32 %v2446, 1.442695
    %v2499 = vpow.pop %v2498
    %v2500 = vmul.f32 %v2447, 1.442695
    %v2501 = vpow.pop %v2500
    %v2502 = vmul.f32 %v2448, 1.442695
    %v2503 = vpow.pop %v2502
    %v2504 = vmul.f32 %v2449, 1.442695
    %v2505 = vpow.pop %v2504
    %v2506 = vmul.f32 %v2450, 1.442695
    %v2507 = vpow.pop %v2506
    %v2508 = vmul.f32 %v2451, 1.442695
    %v2509 = vpow.pop %v2508
    %v2510 = vmul.f32 %v2452, 1.442695
    %v2511 = vpow.pop %v2510
    %v2512 = vmul.f32 %v2453, 1.442695
    %v2513 = vpow.pop %v2512
    %v2514 = vmul.f32 %v2454, 1.442695
    %v2515 = vpow.pop %v2514
    %v2516 = vmul.f32 %v2455, 1.442695
    %v2517 = vpow.pop %v2516
    %v2518 = vmul.f32 %v2456, 1.442695
    %v2519 = vpow.pop %v2518
    %v2520 = vmul.f32 %v2457, 1.442695
    %v2521 = vpow.pop %v2520
    %v2522 = vsel %vm2329, %v2459, 0.0
    %2523 = vadd.xlane.f32.xlu0 %v2522
    %v2524 = vpop.xlane.xlu0 %2523
    %v2525 = vsel %vm2329, %v2461, 0.0
    %2526 = vadd.xlane.f32.xlu0 %v2525
    %v2527 = vpop.xlane.xlu0 %2526
    %v2528 = vsel %vm2329, %v2463, 0.0
    %2529 = vadd.xlane.f32.xlu0 %v2528
    %v2530 = vpop.xlane.xlu0 %2529
    %v2531 = vsel %vm2329, %v2465, 0.0
    %2532 = vadd.xlane.f32.xlu0 %v2531
    %v2533 = vpop.xlane.xlu0 %2532
    %v2534 = vsel %vm2329, %v2467, 0.0
    %2535 = vadd.xlane.f32.xlu0 %v2534
    %v2536 = vpop.xlane.xlu0 %2535
    %v2537 = vsel %vm2329, %v2469, 0.0
    %2538 = vadd.xlane.f32.xlu0 %v2537
    %v2539 = vpop.xlane.xlu0 %2538
    %v2540 = vsel %vm2329, %v2471, 0.0
    %2541 = vadd.xlane.f32.xlu0 %v2540
    %v2542 = vpop.xlane.xlu0 %2541
    %v2543 = vsel %vm2329, %v2473, 0.0
    %2544 = vadd.xlane.f32.xlu0 %v2543
    %v2545 = vpop.xlane.xlu0 %2544
    %v2546 = vsel %vm2329, %v2475, 0.0
    %2547 = vadd.xlane.f32.xlu0 %v2546
    %v2548 = vpop.xlane.xlu0 %2547
    %v2549 = vsel %vm2329, %v2477, 0.0
    %2550 = vadd.xlane.f32.xlu0 %v2549
    %v2551 = vpop.xlane.xlu0 %2550
    %v2552 = vsel %vm2329, %v2479, 0.0
    %2553 = vadd.xlane.f32.xlu0 %v2552
    %v2554 = vpop.xlane.xlu0 %2553
    %v2555 = vsel %vm2329, %v2481, 0.0
    %2556 = vadd.xlane.f32.xlu0 %v2555
    %v2557 = vpop.xlane.xlu0 %2556
    %v2558 = vsel %vm2329, %v2483, 0.0
    %2559 = vadd.xlane.f32.xlu0 %v2558
    %v2560 = vpop.xlane.xlu0 %2559
    %v2561 = vsel %vm2329, %v2485, 0.0
    %2562 = vadd.xlane.f32.xlu0 %v2561
    %v2563 = vpop.xlane.xlu0 %2562
    %v2564 = vsel %vm2329, %v2487, 0.0
    %2565 = vadd.xlane.f32.xlu0 %v2564
    %v2566 = vpop.xlane.xlu0 %2565
    %v2567 = vsel %vm2329, %v2489, 0.0
    %2568 = vadd.xlane.f32.xlu0 %v2567
    %v2569 = vpop.xlane.xlu0 %2568
    %v2570 = vsel %vm2329, %v2491, 0.0
    %2571 = vadd.xlane.f32.xlu0 %v2570
    %v2572 = vpop.xlane.xlu0 %2571
    %v2573 = vsel %vm2329, %v2493, 0.0
    %2574 = vadd.xlane.f32.xlu0 %v2573
    %v2575 = vpop.xlane.xlu0 %2574
    %v2576 = vsel %vm2329, %v2495, 0.0
    %2577 = vadd.xlane.f32.xlu0 %v2576
    %v2578 = vpop.xlane.xlu0 %2577
    %v2579 = vsel %vm2329, %v2497, 0.0
    %2580 = vadd.xlane.f32.xlu0 %v2579
    %v2581 = vpop.xlane.xlu0 %2580
    %v2582 = vsel %vm2329, %v2499, 0.0
    %2583 = vadd.xlane.f32.xlu0 %v2582
    %v2584 = vpop.xlane.xlu0 %2583
    %v2585 = vsel %vm2329, %v2501, 0.0
    %2586 = vadd.xlane.f32.xlu0 %v2585
    %v2587 = vpop.xlane.xlu0 %2586
    %v2588 = vsel %vm2329, %v2503, 0.0
    %2589 = vadd.xlane.f32.xlu0 %v2588
    %v2590 = vpop.xlane.xlu0 %2589
    %v2591 = vsel %vm2329, %v2505, 0.0
    %2592 = vadd.xlane.f32.xlu0 %v2591
    %v2593 = vpop.xlane.xlu0 %2592
    %v2594 = vsel %vm2329, %v2507, 0.0
    %2595 = vadd.xlane.f32.xlu0 %v2594
    %v2596 = vpop.xlane.xlu0 %2595
    %v2597 = vsel %vm2329, %v2509, 0.0
    %2598 = vadd.xlane.f32.xlu0 %v2597
    %v2599 = vpop.xlane.xlu0 %2598
    %v2600 = vsel %vm2329, %v2511, 0.0
    %2601 = vadd.xlane.f32.xlu0 %v2600
    %v2602 = vpop.xlane.xlu0 %2601
    %v2603 = vsel %vm2329, %v2513, 0.0
    %2604 = vadd.xlane.f32.xlu0 %v2603
    %v2605 = vpop.xlane.xlu0 %2604
    %v2606 = vsel %vm2329, %v2515, 0.0
    %2607 = vadd.xlane.f32.xlu0 %v2606
    %v2608 = vpop.xlane.xlu0 %2607
    %v2609 = vsel %vm2329, %v2517, 0.0
    %2610 = vadd.xlane.f32.xlu0 %v2609
    %v2611 = vpop.xlane.xlu0 %2610
    %v2612 = vsel %vm2329, %v2519, 0.0
    %2613 = vadd.xlane.f32.xlu0 %v2612
    %v2614 = vpop.xlane.xlu0 %2613
    %v2615 = vsel %vm2329, %v2521, 0.0
    %2616 = vadd.xlane.f32.xlu0 %v2615
    %v2617 = vpop.xlane.xlu0 %2616
    %v2618 = vrcp.pop %v2524
    %v2619 = vrcp.pop %v2527
    %v2620 = vrcp.pop %v2530
    %v2621 = vrcp.pop %v2533
    %v2622 = vrcp.pop %v2536
    %v2623 = vrcp.pop %v2539
    %v2624 = vrcp.pop %v2542
    %v2625 = vrcp.pop %v2545
    %v2626 = vrcp.pop %v2548
    %v2627 = vrcp.pop %v2551
    %v2628 = vrcp.pop %v2554
    %v2629 = vrcp.pop %v2557
    %v2630 = vrcp.pop %v2560
    %v2631 = vrcp.pop %v2563
    %v2632 = vrcp.pop %v2566
    %v2633 = vrcp.pop %v2569
    %v2634 = vrcp.pop %v2572
    %v2635 = vrcp.pop %v2575
    %v2636 = vrcp.pop %v2578
    %v2637 = vrcp.pop %v2581
    %v2638 = vrcp.pop %v2584
    %v2639 = vrcp.pop %v2587
    %v2640 = vrcp.pop %v2590
    %v2641 = vrcp.pop %v2593
    %v2642 = vrcp.pop %v2596
    %v2643 = vrcp.pop %v2599
    %v2644 = vrcp.pop %v2602
    %v2645 = vrcp.pop %v2605
    %v2646 = vrcp.pop %v2608
    %v2647 = vrcp.pop %v2611
    %v2648 = vrcp.pop %v2614
    %v2649 = vrcp.pop %v2617
    %v2650 = vmul.f32 %v2459, %v2618
    %v2651 = vmul.f32 %v2461, %v2619
    %v2652 = vmul.f32 %v2463, %v2620
    %v2653 = vmul.f32 %v2465, %v2621
    %v2654 = vmul.f32 %v2467, %v2622
    %v2655 = vmul.f32 %v2469, %v2623
    %v2656 = vmul.f32 %v2471, %v2624
    %v2657 = vmul.f32 %v2473, %v2625
    %v2658 = vmul.f32 %v2475, %v2626
    %v2659 = vmul.f32 %v2477, %v2627
    %v2660 = vmul.f32 %v2479, %v2628
    %v2661 = vmul.f32 %v2481, %v2629
    %v2662 = vmul.f32 %v2483, %v2630
    %v2663 = vmul.f32 %v2485, %v2631
    %v2664 = vmul.f32 %v2487, %v2632
    %v2665 = vmul.f32 %v2489, %v2633
    %v2666 = vmul.f32 %v2491, %v2634
    %v2667 = vmul.f32 %v2493, %v2635
    %v2668 = vmul.f32 %v2495, %v2636
    %v2669 = vmul.f32 %v2497, %v2637
    %v2670 = vmul.f32 %v2499, %v2638
    %v2671 = vmul.f32 %v2501, %v2639
    %v2672 = vmul.f32 %v2503, %v2640
    %v2673 = vmul.f32 %v2505, %v2641
    %v2674 = vmul.f32 %v2507, %v2642
    %v2675 = vmul.f32 %v2509, %v2643
    %v2676 = vmul.f32 %v2511, %v2644
    %v2677 = vmul.f32 %v2513, %v2645
    %v2678 = vmul.f32 %v2515, %v2646
    %v2679 = vmul.f32 %v2517, %v2647
    %v2680 = vmul.f32 %v2519, %v2648
    %v2681 = vmul.f32 %v2521, %v2649
    %v2682 = vpack.c.bf16 %v2650, %v2650
    %v2683 = vpack.c.bf16 %v2651, %v2651
    %v2684 = vpack.c.bf16 %v2652, %v2652
    %v2685 = vpack.c.bf16 %v2653, %v2653
    %v2686 = vpack.c.bf16 %v2654, %v2654
    %v2687 = vpack.c.bf16 %v2655, %v2655
    %v2688 = vpack.c.bf16 %v2656, %v2656
    %v2689 = vpack.c.bf16 %v2657, %v2657
    %v2690 = vpack.c.bf16 %v2658, %v2658
    %v2691 = vpack.c.bf16 %v2659, %v2659
    %v2692 = vpack.c.bf16 %v2660, %v2660
    %v2693 = vpack.c.bf16 %v2661, %v2661
    %v2694 = vpack.c.bf16 %v2662, %v2662
    %v2695 = vpack.c.bf16 %v2663, %v2663
    %v2696 = vpack.c.bf16 %v2664, %v2664
    %v2697 = vpack.c.bf16 %v2665, %v2665
    %v2698 = vpack.c.bf16 %v2666, %v2666
    %v2699 = vpack.c.bf16 %v2667, %v2667
    %v2700 = vpack.c.bf16 %v2668, %v2668
    %v2701 = vpack.c.bf16 %v2669, %v2669
    %v2702 = vpack.c.bf16 %v2670, %v2670
    %v2703 = vpack.c.bf16 %v2671, %v2671
    %v2704 = vpack.c.bf16 %v2672, %v2672
    %v2705 = vpack.c.bf16 %v2673, %v2673
    %v2706 = vpack.c.bf16 %v2674, %v2674
    %v2707 = vpack.c.bf16 %v2675, %v2675
    %v2708 = vpack.c.bf16 %v2676, %v2676
    %v2709 = vpack.c.bf16 %v2677, %v2677
    %v2710 = vpack.c.bf16 %v2678, %v2678
    %v2711 = vpack.c.bf16 %v2679, %v2679
    %v2712 = vpack.c.bf16 %v2680, %v2680
    %v2713 = vpack.c.bf16 %v2681, %v2681
    %v2714 = vpack.c.bf16 %v664, %v664
    %v2715 = vpack.c.bf16 %v665, %v665
    %v2716 = vpack.c.bf16 %v666, %v666
    %v2717 = vpack.c.bf16 %v667, %v667
    %v2718 = vpack.c.bf16 %v668, %v668
    %v2719 = vpack.c.bf16 %v669, %v669
    %v2720 = vpack.c.bf16 %v670, %v670
    %v2721 = vpack.c.bf16 %v671, %v671
    %v2722 = vpack.c.bf16 %v672, %v672
    %v2723 = vpack.c.bf16 %v673, %v673
    %v2724 = vpack.c.bf16 %v674, %v674
    %v2725 = vpack.c.bf16 %v675, %v675
    %v2726 = vpack.c.bf16 %v676, %v676
    %v2727 = vpack.c.bf16 %v677, %v677
    %v2728 = vpack.c.bf16 %v678, %v678
    %v2729 = vpack.c.bf16 %v679, %v679
    %2730 = vrot.lane.b32.xlu0 %v728, 32
    %v2731 = vpop.permute.xlu0 %2730
    %v2733 = vsel %vm2329, %v2682, 0
    %vm2735 = vcmask 1043456
    %v2737 = vsel %vm2735, %v2731, 0
    %2739 = vmatprep.subr.bf16.mxu0 0
    %2740 = vmatpush1.bf16.msra.mxu0 0
    %2741 = vmatprep.subr.bf16.mxu0 0
    %2742 = vmatpush1.bf16.msra.mxu0 0
    %2743 = vmatprep.subr.bf16.mxu0 0
    %2744 = vmatpush1.bf16.msra.mxu0 0
    %2745 = vmatprep.subr.bf16.mxu0 0
    %2746 = vmatpush1.bf16.msra.mxu0 0
    %2747 = vmatprep.subr.bf16.mxu0 0
    %2748 = vmatpush1.bf16.msra.mxu0 0
    %2749 = vmatprep.subr.bf16.mxu0 0
    %2750 = vmatpush1.bf16.msra.mxu0 0
    %2751 = vmatprep.subr.bf16.mxu0 0
    %2752 = vmatpush1.bf16.msra.mxu0 0
    %2753 = vmatprep.subr.bf16.mxu0 0
    %2754 = vmatpush1.bf16.msra.mxu0 %v2737
    %2755 = vmatprep.subr.bf16.mxu0 0
    %2756 = vmatpush2.bf16.msra.mxu0 0
    %2757 = vmatprep.subr.bf16.mxu0 0
    %2758 = vmatpush2.bf16.msra.mxu0 0
    %2759 = vmatprep.subr.bf16.mxu0 0
    %2760 = vmatpush2.bf16.msra.mxu0 0
    %2761 = vmatprep.subr.bf16.mxu0 0
    %2762 = vmatpush2.bf16.msra.mxu0 0
    %2763 = vmatprep.subr.bf16.mxu0 0
    %2764 = vmatpush2.bf16.msra.mxu0 0
    %2765 = vmatprep.subr.bf16.mxu0 0
    %2766 = vmatpush2.bf16.msra.mxu0 0
    %2767 = vmatprep.subr.bf16.mxu0 0
    %2768 = vmatpush2.bf16.msra.mxu0 0
    %2769 = vmatprep.subr.bf16.mxu0 0
    %2770 = vmatpush2.bf16.msra.mxu0 0
    %2771 = vmatprep.mubr.bf16.mxu0 0
    %2772 = vmatmul.mubr.bf16.gmra.mxu0 %v2733
    %v2773 = vpop.f32.mrf.mxu0
    %v2774 = vadd.f32 0.0, %v2773
    %v2775 = vpop.f32.mrf.mxu0
    %v2776 = vpop.f32.mrf.mxu0
    %v2777 = vpop.f32.mrf.mxu0
    %2778 = vdwg.mxu0
    %2779 = vrot.lane.b32.xlu0 %v729, 32
    %v2780 = vpop.permute.xlu0 %2779
    %v2782 = vsel %vm2329, %v2683, 0
    %v2785 = vsel %vm2735, %v2780, 0
    %2787 = vmatprep.subr.bf16.mxu0 0
    %2788 = vmatpush1.bf16.msra.mxu0 0
    %2789 = vmatprep.subr.bf16.mxu0 0
    %2790 = vmatpush1.bf16.msra.mxu0 0
    %2791 = vmatprep.subr.bf16.mxu0 0
    %2792 = vmatpush1.bf16.msra.mxu0 0
    %2793 = vmatprep.subr.bf16.mxu0 0
    %2794 = vmatpush1.bf16.msra.mxu0 0
    %2795 = vmatprep.subr.bf16.mxu0 0
    %2796 = vmatpush1.bf16.msra.mxu0 0
    %2797 = vmatprep.subr.bf16.mxu0 0
    %2798 = vmatpush1.bf16.msra.mxu0 0
    %2799 = vmatprep.subr.bf16.mxu0 0
    %2800 = vmatpush1.bf16.msra.mxu0 0
    %2801 = vmatprep.subr.bf16.mxu0 0
    %2802 = vmatpush1.bf16.msra.mxu0 %v2785
    %2803 = vmatprep.subr.bf16.mxu0 0
    %2804 = vmatpush2.bf16.msra.mxu0 0
    %2805 = vmatprep.subr.bf16.mxu0 0
    %2806 = vmatpush2.bf16.msra.mxu0 0
    %2807 = vmatprep.subr.bf16.mxu0 0
    %2808 = vmatpush2.bf16.msra.mxu0 0
    %2809 = vmatprep.subr.bf16.mxu0 0
    %2810 = vmatpush2.bf16.msra.mxu0 0
    %2811 = vmatprep.subr.bf16.mxu0 0
    %2812 = vmatpush2.bf16.msra.mxu0 0
    %2813 = vmatprep.subr.bf16.mxu0 0
    %2814 = vmatpush2.bf16.msra.mxu0 0
    %2815 = vmatprep.subr.bf16.mxu0 0
    %2816 = vmatpush2.bf16.msra.mxu0 0
    %2817 = vmatprep.subr.bf16.mxu0 0
    %2818 = vmatpush2.bf16.msra.mxu0 0
    %2819 = vmatprep.mubr.bf16.mxu0 0
    %2820 = vmatmul.mubr.bf16.gmra.mxu0 %v2782
    %v2821 = vpop.f32.mrf.mxu0
    %v2822 = vadd.f32 0.0, %v2821
    %v2823 = vpop.f32.mrf.mxu0
    %v2824 = vpop.f32.mrf.mxu0
    %v2825 = vpop.f32.mrf.mxu0
    %2826 = vdwg.mxu0
    %2827 = vrot.lane.b32.xlu0 %v730, 32
    %v2828 = vpop.permute.xlu0 %2827
    %v2830 = vsel %vm2329, %v2684, 0
    %v2833 = vsel %vm2735, %v2828, 0
    %2835 = vmatprep.subr.bf16.mxu0 0
    %2836 = vmatpush1.bf16.msra.mxu0 0
    %2837 = vmatprep.subr.bf16.mxu0 0
    %2838 = vmatpush1.bf16.msra.mxu0 0
    %2839 = vmatprep.subr.bf16.mxu0 0
    %2840 = vmatpush1.bf16.msra.mxu0 0
    %2841 = vmatprep.subr.bf16.mxu0 0
    %2842 = vmatpush1.bf16.msra.mxu0 0
    %2843 = vmatprep.subr.bf16.mxu0 0
    %2844 = vmatpush1.bf16.msra.mxu0 0
    %2845 = vmatprep.subr.bf16.mxu0 0
    %2846 = vmatpush1.bf16.msra.mxu0 0
    %2847 = vmatprep.subr.bf16.mxu0 0
    %2848 = vmatpush1.bf16.msra.mxu0 0
    %2849 = vmatprep.subr.bf16.mxu0 0
    %2850 = vmatpush1.bf16.msra.mxu0 %v2833
    %2851 = vmatprep.subr.bf16.mxu0 0
    %2852 = vmatpush2.bf16.msra.mxu0 0
    %2853 = vmatprep.subr.bf16.mxu0 0
    %2854 = vmatpush2.bf16.msra.mxu0 0
    %2855 = vmatprep.subr.bf16.mxu0 0
    %2856 = vmatpush2.bf16.msra.mxu0 0
    %2857 = vmatprep.subr.bf16.mxu0 0
    %2858 = vmatpush2.bf16.msra.mxu0 0
    %2859 = vmatprep.subr.bf16.mxu0 0
    %2860 = vmatpush2.bf16.msra.mxu0 0
    %2861 = vmatprep.subr.bf16.mxu0 0
    %2862 = vmatpush2.bf16.msra.mxu0 0
    %2863 = vmatprep.subr.bf16.mxu0 0
    %2864 = vmatpush2.bf16.msra.mxu0 0
    %2865 = vmatprep.subr.bf16.mxu0 0
    %2866 = vmatpush2.bf16.msra.mxu0 0
    %2867 = vmatprep.mubr.bf16.mxu0 0
    %2868 = vmatmul.mubr.bf16.gmra.mxu0 %v2830
    %v2869 = vpop.f32.mrf.mxu0
    %v2870 = vadd.f32 0.0, %v2869
    %v2871 = vpop.f32.mrf.mxu0
    %v2872 = vpop.f32.mrf.mxu0
    %v2873 = vpop.f32.mrf.mxu0
    %2874 = vdwg.mxu0
    %2875 = vrot.lane.b32.xlu0 %v731, 32
    %v2876 = vpop.permute.xlu0 %2875
    %v2878 = vsel %vm2329, %v2685, 0
    %v2881 = vsel %vm2735, %v2876, 0
    %2883 = vmatprep.subr.bf16.mxu0 0
    %2884 = vmatpush1.bf16.msra.mxu0 0
    %2885 = vmatprep.subr.bf16.mxu0 0
    %2886 = vmatpush1.bf16.msra.mxu0 0
    %2887 = vmatprep.subr.bf16.mxu0 0
    %2888 = vmatpush1.bf16.msra.mxu0 0
    %2889 = vmatprep.subr.bf16.mxu0 0
    %2890 = vmatpush1.bf16.msra.mxu0 0
    %2891 = vmatprep.subr.bf16.mxu0 0
    %2892 = vmatpush1.bf16.msra.mxu0 0
    %2893 = vmatprep.subr.bf16.mxu0 0
    %2894 = vmatpush1.bf16.msra.mxu0 0
    %2895 = vmatprep.subr.bf16.mxu0 0
    %2896 = vmatpush1.bf16.msra.mxu0 0
    %2897 = vmatprep.subr.bf16.mxu0 0
    %2898 = vmatpush1.bf16.msra.mxu0 %v2881
    %2899 = vmatprep.subr.bf16.mxu0 0
    %2900 = vmatpush2.bf16.msra.mxu0 0
    %2901 = vmatprep.subr.bf16.mxu0 0
    %2902 = vmatpush2.bf16.msra.mxu0 0
    %2903 = vmatprep.subr.bf16.mxu0 0
    %2904 = vmatpush2.bf16.msra.mxu0 0
    %2905 = vmatprep.subr.bf16.mxu0 0
    %2906 = vmatpush2.bf16.msra.mxu0 0
    %2907 = vmatprep.subr.bf16.mxu0 0
    %2908 = vmatpush2.bf16.msra.mxu0 0
    %2909 = vmatprep.subr.bf16.mxu0 0
    %2910 = vmatpush2.bf16.msra.mxu0 0
    %2911 = vmatprep.subr.bf16.mxu0 0
    %2912 = vmatpush2.bf16.msra.mxu0 0
    %2913 = vmatprep.subr.bf16.mxu0 0
    %2914 = vmatpush2.bf16.msra.mxu0 0
    %2915 = vmatprep.mubr.bf16.mxu0 0
    %2916 = vmatmul.mubr.bf16.gmra.mxu0 %v2878
    %v2917 = vpop.f32.mrf.mxu0
    %v2918 = vadd.f32 0.0, %v2917
    %v2919 = vpop.f32.mrf.mxu0
    %v2920 = vpop.f32.mrf.mxu0
    %v2921 = vpop.f32.mrf.mxu0
    %2922 = vdwg.mxu0
    %2923 = vrot.lane.b32.xlu0 %v732, 32
    %v2924 = vpop.permute.xlu0 %2923
    %v2926 = vsel %vm2329, %v2686, 0
    %v2929 = vsel %vm2735, %v2924, 0
    %2931 = vmatprep.subr.bf16.mxu0 0
    %2932 = vmatpush1.bf16.msra.mxu0 0
    %2933 = vmatprep.subr.bf16.mxu0 0
    %2934 = vmatpush1.bf16.msra.mxu0 0
    %2935 = vmatprep.subr.bf16.mxu0 0
    %2936 = vmatpush1.bf16.msra.mxu0 0
    %2937 = vmatprep.subr.bf16.mxu0 0
    %2938 = vmatpush1.bf16.msra.mxu0 0
    %2939 = vmatprep.subr.bf16.mxu0 0
    %2940 = vmatpush1.bf16.msra.mxu0 0
    %2941 = vmatprep.subr.bf16.mxu0 0
    %2942 = vmatpush1.bf16.msra.mxu0 0
    %2943 = vmatprep.subr.bf16.mxu0 0
    %2944 = vmatpush1.bf16.msra.mxu0 0
    %2945 = vmatprep.subr.bf16.mxu0 0
    %2946 = vmatpush1.bf16.msra.mxu0 %v2929
    %2947 = vmatprep.subr.bf16.mxu0 0
    %2948 = vmatpush2.bf16.msra.mxu0 0
    %2949 = vmatprep.subr.bf16.mxu0 0
    %2950 = vmatpush2.bf16.msra.mxu0 0
    %2951 = vmatprep.subr.bf16.mxu0 0
    %2952 = vmatpush2.bf16.msra.mxu0 0
    %2953 = vmatprep.subr.bf16.mxu0 0
    %2954 = vmatpush2.bf16.msra.mxu0 0
    %2955 = vmatprep.subr.bf16.mxu0 0
    %2956 = vmatpush2.bf16.msra.mxu0 0
    %2957 = vmatprep.subr.bf16.mxu0 0
    %2958 = vmatpush2.bf16.msra.mxu0 0
    %2959 = vmatprep.subr.bf16.mxu0 0
    %2960 = vmatpush2.bf16.msra.mxu0 0
    %2961 = vmatprep.subr.bf16.mxu0 0
    %2962 = vmatpush2.bf16.msra.mxu0 0
    %2963 = vmatprep.mubr.bf16.mxu0 0
    %2964 = vmatmul.mubr.bf16.gmra.mxu0 %v2926
    %v2965 = vpop.f32.mrf.mxu0
    %v2966 = vadd.f32 0.0, %v2965
    %v2967 = vpop.f32.mrf.mxu0
    %v2968 = vpop.f32.mrf.mxu0
    %v2969 = vpop.f32.mrf.mxu0
    %2970 = vdwg.mxu0
    %2971 = vrot.lane.b32.xlu0 %v733, 32
    %v2972 = vpop.permute.xlu0 %2971
    %v2974 = vsel %vm2329, %v2687, 0
    %v2977 = vsel %vm2735, %v2972, 0
    %2979 = vmatprep.subr.bf16.mxu0 0
    %2980 = vmatpush1.bf16.msra.mxu0 0
    %2981 = vmatprep.subr.bf16.mxu0 0
    %2982 = vmatpush1.bf16.msra.mxu0 0
    %2983 = vmatprep.subr.bf16.mxu0 0
    %2984 = vmatpush1.bf16.msra.mxu0 0
    %2985 = vmatprep.subr.bf16.mxu0 0
    %2986 = vmatpush1.bf16.msra.mxu0 0
    %2987 = vmatprep.subr.bf16.mxu0 0
    %2988 = vmatpush1.bf16.msra.mxu0 0
    %2989 = vmatprep.subr.bf16.mxu0 0
    %2990 = vmatpush1.bf16.msra.mxu0 0
    %2991 = vmatprep.subr.bf16.mxu0 0
    %2992 = vmatpush1.bf16.msra.mxu0 0
    %2993 = vmatprep.subr.bf16.mxu0 0
    %2994 = vmatpush1.bf16.msra.mxu0 %v2977
    %2995 = vmatprep.subr.bf16.mxu0 0
    %2996 = vmatpush2.bf16.msra.mxu0 0
    %2997 = vmatprep.subr.bf16.mxu0 0
    %2998 = vmatpush2.bf16.msra.mxu0 0
    %2999 = vmatprep.subr.bf16.mxu0 0
    %3000 = vmatpush2.bf16.msra.mxu0 0
    %3001 = vmatprep.subr.bf16.mxu0 0
    %3002 = vmatpush2.bf16.msra.mxu0 0
    %3003 = vmatprep.subr.bf16.mxu0 0
    %3004 = vmatpush2.bf16.msra.mxu0 0
    %3005 = vmatprep.subr.bf16.mxu0 0
    %3006 = vmatpush2.bf16.msra.mxu0 0
    %3007 = vmatprep.subr.bf16.mxu0 0
    %3008 = vmatpush2.bf16.msra.mxu0 0
    %3009 = vmatprep.subr.bf16.mxu0 0
    %3010 = vmatpush2.bf16.msra.mxu0 0
    %3011 = vmatprep.mubr.bf16.mxu0 0
    %3012 = vmatmul.mubr.bf16.gmra.mxu0 %v2974
    %v3013 = vpop.f32.mrf.mxu0
    %v3014 = vadd.f32 0.0, %v3013
    %v3015 = vpop.f32.mrf.mxu0
    %v3016 = vpop.f32.mrf.mxu0
    %v3017 = vpop.f32.mrf.mxu0
    %3018 = vdwg.mxu0
    %3019 = vrot.lane.b32.xlu0 %v734, 32
    %v3020 = vpop.permute.xlu0 %3019
    %v3022 = vsel %vm2329, %v2688, 0
    %v3025 = vsel %vm2735, %v3020, 0
    %3027 = vmatprep.subr.bf16.mxu0 0
    %3028 = vmatpush1.bf16.msra.mxu0 0
    %3029 = vmatprep.subr.bf16.mxu0 0
    %3030 = vmatpush1.bf16.msra.mxu0 0
    %3031 = vmatprep.subr.bf16.mxu0 0
    %3032 = vmatpush1.bf16.msra.mxu0 0
    %3033 = vmatprep.subr.bf16.mxu0 0
    %3034 = vmatpush1.bf16.msra.mxu0 0
    %3035 = vmatprep.subr.bf16.mxu0 0
    %3036 = vmatpush1.bf16.msra.mxu0 0
    %3037 = vmatprep.subr.bf16.mxu0 0
    %3038 = vmatpush1.bf16.msra.mxu0 0
    %3039 = vmatprep.subr.bf16.mxu0 0
    %3040 = vmatpush1.bf16.msra.mxu0 0
    %3041 = vmatprep.subr.bf16.mxu0 0
    %3042 = vmatpush1.bf16.msra.mxu0 %v3025
    %3043 = vmatprep.subr.bf16.mxu0 0
    %3044 = vmatpush2.bf16.msra.mxu0 0
    %3045 = vmatprep.subr.bf16.mxu0 0
    %3046 = vmatpush2.bf16.msra.mxu0 0
    %3047 = vmatprep.subr.bf16.mxu0 0
    %3048 = vmatpush2.bf16.msra.mxu0 0
    %3049 = vmatprep.subr.bf16.mxu0 0
    %3050 = vmatpush2.bf16.msra.mxu0 0
    %3051 = vmatprep.subr.bf16.mxu0 0
    %3052 = vmatpush2.bf16.msra.mxu0 0
    %3053 = vmatprep.subr.bf16.mxu0 0
    %3054 = vmatpush2.bf16.msra.mxu0 0
    %3055 = vmatprep.subr.bf16.mxu0 0
    %3056 = vmatpush2.bf16.msra.mxu0 0
    %3057 = vmatprep.subr.bf16.mxu0 0
    %3058 = vmatpush2.bf16.msra.mxu0 0
    %3059 = vmatprep.mubr.bf16.mxu0 0
    %3060 = vmatmul.mubr.bf16.gmra.mxu0 %v3022
    %v3061 = vpop.f32.mrf.mxu0
    %v3062 = vadd.f32 0.0, %v3061
    %v3063 = vpop.f32.mrf.mxu0
    %v3064 = vpop.f32.mrf.mxu0
    %v3065 = vpop.f32.mrf.mxu0
    %3066 = vdwg.mxu0
    %3067 = vrot.lane.b32.xlu0 %v735, 32
    %v3068 = vpop.permute.xlu0 %3067
    %v3070 = vsel %vm2329, %v2689, 0
    %v3073 = vsel %vm2735, %v3068, 0
    %3075 = vmatprep.subr.bf16.mxu0 0
    %3076 = vmatpush1.bf16.msra.mxu0 0
    %3077 = vmatprep.subr.bf16.mxu0 0
    %3078 = vmatpush1.bf16.msra.mxu0 0
    %3079 = vmatprep.subr.bf16.mxu0 0
    %3080 = vmatpush1.bf16.msra.mxu0 0
    %3081 = vmatprep.subr.bf16.mxu0 0
    %3082 = vmatpush1.bf16.msra.mxu0 0
    %3083 = vmatprep.subr.bf16.mxu0 0
    %3084 = vmatpush1.bf16.msra.mxu0 0
    %3085 = vmatprep.subr.bf16.mxu0 0
    %3086 = vmatpush1.bf16.msra.mxu0 0
    %3087 = vmatprep.subr.bf16.mxu0 0
    %3088 = vmatpush1.bf16.msra.mxu0 0
    %3089 = vmatprep.subr.bf16.mxu0 0
    %3090 = vmatpush1.bf16.msra.mxu0 %v3073
    %3091 = vmatprep.subr.bf16.mxu0 0
    %3092 = vmatpush2.bf16.msra.mxu0 0
    %3093 = vmatprep.subr.bf16.mxu0 0
    %3094 = vmatpush2.bf16.msra.mxu0 0
    %3095 = vmatprep.subr.bf16.mxu0 0
    %3096 = vmatpush2.bf16.msra.mxu0 0
    %3097 = vmatprep.subr.bf16.mxu0 0
    %3098 = vmatpush2.bf16.msra.mxu0 0
    %3099 = vmatprep.subr.bf16.mxu0 0
    %3100 = vmatpush2.bf16.msra.mxu0 0
    %3101 = vmatprep.subr.bf16.mxu0 0
    %3102 = vmatpush2.bf16.msra.mxu0 0
    %3103 = vmatprep.subr.bf16.mxu0 0
    %3104 = vmatpush2.bf16.msra.mxu0 0
    %3105 = vmatprep.subr.bf16.mxu0 0
    %3106 = vmatpush2.bf16.msra.mxu0 0
    %3107 = vmatprep.mubr.bf16.mxu0 0
    %3108 = vmatmul.mubr.bf16.gmra.mxu0 %v3070
    %v3109 = vpop.f32.mrf.mxu0
    %v3110 = vadd.f32 0.0, %v3109
    %v3111 = vpop.f32.mrf.mxu0
    %v3112 = vpop.f32.mrf.mxu0
    %v3113 = vpop.f32.mrf.mxu0
    %3114 = vdwg.mxu0
    %3115 = vrot.lane.b32.xlu0 %v736, 32
    %v3116 = vpop.permute.xlu0 %3115
    %v3118 = vsel %vm2329, %v2690, 0
    %v3121 = vsel %vm2735, %v3116, 0
    %3123 = vmatprep.subr.bf16.mxu0 0
    %3124 = vmatpush1.bf16.msra.mxu0 0
    %3125 = vmatprep.subr.bf16.mxu0 0
    %3126 = vmatpush1.bf16.msra.mxu0 0
    %3127 = vmatprep.subr.bf16.mxu0 0
    %3128 = vmatpush1.bf16.msra.mxu0 0
    %3129 = vmatprep.subr.bf16.mxu0 0
    %3130 = vmatpush1.bf16.msra.mxu0 0
    %3131 = vmatprep.subr.bf16.mxu0 0
    %3132 = vmatpush1.bf16.msra.mxu0 0
    %3133 = vmatprep.subr.bf16.mxu0 0
    %3134 = vmatpush1.bf16.msra.mxu0 0
    %3135 = vmatprep.subr.bf16.mxu0 0
    %3136 = vmatpush1.bf16.msra.mxu0 0
    %3137 = vmatprep.subr.bf16.mxu0 0
    %3138 = vmatpush1.bf16.msra.mxu0 %v3121
    %3139 = vmatprep.subr.bf16.mxu0 0
    %3140 = vmatpush2.bf16.msra.mxu0 0
    %3141 = vmatprep.subr.bf16.mxu0 0
    %3142 = vmatpush2.bf16.msra.mxu0 0
    %3143 = vmatprep.subr.bf16.mxu0 0
    %3144 = vmatpush2.bf16.msra.mxu0 0
    %3145 = vmatprep.subr.bf16.mxu0 0
    %3146 = vmatpush2.bf16.msra.mxu0 0
    %3147 = vmatprep.subr.bf16.mxu0 0
    %3148 = vmatpush2.bf16.msra.mxu0 0
    %3149 = vmatprep.subr.bf16.mxu0 0
    %3150 = vmatpush2.bf16.msra.mxu0 0
    %3151 = vmatprep.subr.bf16.mxu0 0
    %3152 = vmatpush2.bf16.msra.mxu0 0
    %3153 = vmatprep.subr.bf16.mxu0 0
    %3154 = vmatpush2.bf16.msra.mxu0 0
    %3155 = vmatprep.mubr.bf16.mxu0 0
    %3156 = vmatmul.mubr.bf16.gmra.mxu0 %v3118
    %v3157 = vpop.f32.mrf.mxu0
    %v3158 = vadd.f32 0.0, %v3157
    %v3159 = vpop.f32.mrf.mxu0
    %v3160 = vpop.f32.mrf.mxu0
    %v3161 = vpop.f32.mrf.mxu0
    %3162 = vdwg.mxu0
    %3163 = vrot.lane.b32.xlu0 %v737, 32
    %v3164 = vpop.permute.xlu0 %3163
    %v3166 = vsel %vm2329, %v2691, 0
    %v3169 = vsel %vm2735, %v3164, 0
    %3171 = vmatprep.subr.bf16.mxu0 0
    %3172 = vmatpush1.bf16.msra.mxu0 0
    %3173 = vmatprep.subr.bf16.mxu0 0
    %3174 = vmatpush1.bf16.msra.mxu0 0
    %3175 = vmatprep.subr.bf16.mxu0 0
    %3176 = vmatpush1.bf16.msra.mxu0 0
    %3177 = vmatprep.subr.bf16.mxu0 0
    %3178 = vmatpush1.bf16.msra.mxu0 0
    %3179 = vmatprep.subr.bf16.mxu0 0
    %3180 = vmatpush1.bf16.msra.mxu0 0
    %3181 = vmatprep.subr.bf16.mxu0 0
    %3182 = vmatpush1.bf16.msra.mxu0 0
    %3183 = vmatprep.subr.bf16.mxu0 0
    %3184 = vmatpush1.bf16.msra.mxu0 0
    %3185 = vmatprep.subr.bf16.mxu0 0
    %3186 = vmatpush1.bf16.msra.mxu0 %v3169
    %3187 = vmatprep.subr.bf16.mxu0 0
    %3188 = vmatpush2.bf16.msra.mxu0 0
    %3189 = vmatprep.subr.bf16.mxu0 0
    %3190 = vmatpush2.bf16.msra.mxu0 0
    %3191 = vmatprep.subr.bf16.mxu0 0
    %3192 = vmatpush2.bf16.msra.mxu0 0
    %3193 = vmatprep.subr.bf16.mxu0 0
    %3194 = vmatpush2.bf16.msra.mxu0 0
    %3195 = vmatprep.subr.bf16.mxu0 0
    %3196 = vmatpush2.bf16.msra.mxu0 0
    %3197 = vmatprep.subr.bf16.mxu0 0
    %3198 = vmatpush2.bf16.msra.mxu0 0
    %3199 = vmatprep.subr.bf16.mxu0 0
    %3200 = vmatpush2.bf16.msra.mxu0 0
    %3201 = vmatprep.subr.bf16.mxu0 0
    %3202 = vmatpush2.bf16.msra.mxu0 0
    %3203 = vmatprep.mubr.bf16.mxu0 0
    %3204 = vmatmul.mubr.bf16.gmra.mxu0 %v3166
    %v3205 = vpop.f32.mrf.mxu0
    %v3206 = vadd.f32 0.0, %v3205
    %v3207 = vpop.f32.mrf.mxu0
    %v3208 = vpop.f32.mrf.mxu0
    %v3209 = vpop.f32.mrf.mxu0
    %3210 = vdwg.mxu0
    %3211 = vrot.lane.b32.xlu0 %v738, 32
    %v3212 = vpop.permute.xlu0 %3211
    %v3214 = vsel %vm2329, %v2692, 0
    %v3217 = vsel %vm2735, %v3212, 0
    %3219 = vmatprep.subr.bf16.mxu0 0
    %3220 = vmatpush1.bf16.msra.mxu0 0
    %3221 = vmatprep.subr.bf16.mxu0 0
    %3222 = vmatpush1.bf16.msra.mxu0 0
    %3223 = vmatprep.subr.bf16.mxu0 0
    %3224 = vmatpush1.bf16.msra.mxu0 0
    %3225 = vmatprep.subr.bf16.mxu0 0
    %3226 = vmatpush1.bf16.msra.mxu0 0
    %3227 = vmatprep.subr.bf16.mxu0 0
    %3228 = vmatpush1.bf16.msra.mxu0 0
    %3229 = vmatprep.subr.bf16.mxu0 0
    %3230 = vmatpush1.bf16.msra.mxu0 0
    %3231 = vmatprep.subr.bf16.mxu0 0
    %3232 = vmatpush1.bf16.msra.mxu0 0
    %3233 = vmatprep.subr.bf16.mxu0 0
    %3234 = vmatpush1.bf16.msra.mxu0 %v3217
    %3235 = vmatprep.subr.bf16.mxu0 0
    %3236 = vmatpush2.bf16.msra.mxu0 0
    %3237 = vmatprep.subr.bf16.mxu0 0
    %3238 = vmatpush2.bf16.msra.mxu0 0
    %3239 = vmatprep.subr.bf16.mxu0 0
    %3240 = vmatpush2.bf16.msra.mxu0 0
    %3241 = vmatprep.subr.bf16.mxu0 0
    %3242 = vmatpush2.bf16.msra.mxu0 0
    %3243 = vmatprep.subr.bf16.mxu0 0
    %3244 = vmatpush2.bf16.msra.mxu0 0
    %3245 = vmatprep.subr.bf16.mxu0 0
    %3246 = vmatpush2.bf16.msra.mxu0 0
    %3247 = vmatprep.subr.bf16.mxu0 0
    %3248 = vmatpush2.bf16.msra.mxu0 0
    %3249 = vmatprep.subr.bf16.mxu0 0
    %3250 = vmatpush2.bf16.msra.mxu0 0
    %3251 = vmatprep.mubr.bf16.mxu0 0
    %3252 = vmatmul.mubr.bf16.gmra.mxu0 %v3214
    %v3253 = vpop.f32.mrf.mxu0
    %v3254 = vadd.f32 0.0, %v3253
    %v3255 = vpop.f32.mrf.mxu0
    %v3256 = vpop.f32.mrf.mxu0
    %v3257 = vpop.f32.mrf.mxu0
    %3258 = vdwg.mxu0
    %3259 = vrot.lane.b32.xlu0 %v739, 32
    %v3260 = vpop.permute.xlu0 %3259
    %v3262 = vsel %vm2329, %v2693, 0
    %v3265 = vsel %vm2735, %v3260, 0
    %3267 = vmatprep.subr.bf16.mxu0 0
    %3268 = vmatpush1.bf16.msra.mxu0 0
    %3269 = vmatprep.subr.bf16.mxu0 0
    %3270 = vmatpush1.bf16.msra.mxu0 0
    %3271 = vmatprep.subr.bf16.mxu0 0
    %3272 = vmatpush1.bf16.msra.mxu0 0
    %3273 = vmatprep.subr.bf16.mxu0 0
    %3274 = vmatpush1.bf16.msra.mxu0 0
    %3275 = vmatprep.subr.bf16.mxu0 0
    %3276 = vmatpush1.bf16.msra.mxu0 0
    %3277 = vmatprep.subr.bf16.mxu0 0
    %3278 = vmatpush1.bf16.msra.mxu0 0
    %3279 = vmatprep.subr.bf16.mxu0 0
    %3280 = vmatpush1.bf16.msra.mxu0 0
    %3281 = vmatprep.subr.bf16.mxu0 0
    %3282 = vmatpush1.bf16.msra.mxu0 %v3265
    %3283 = vmatprep.subr.bf16.mxu0 0
    %3284 = vmatpush2.bf16.msra.mxu0 0
    %3285 = vmatprep.subr.bf16.mxu0 0
    %3286 = vmatpush2.bf16.msra.mxu0 0
    %3287 = vmatprep.subr.bf16.mxu0 0
    %3288 = vmatpush2.bf16.msra.mxu0 0
    %3289 = vmatprep.subr.bf16.mxu0 0
    %3290 = vmatpush2.bf16.msra.mxu0 0
    %3291 = vmatprep.subr.bf16.mxu0 0
    %3292 = vmatpush2.bf16.msra.mxu0 0
    %3293 = vmatprep.subr.bf16.mxu0 0
    %3294 = vmatpush2.bf16.msra.mxu0 0
    %3295 = vmatprep.subr.bf16.mxu0 0
    %3296 = vmatpush2.bf16.msra.mxu0 0
    %3297 = vmatprep.subr.bf16.mxu0 0
    %3298 = vmatpush2.bf16.msra.mxu0 0
    %3299 = vmatprep.mubr.bf16.mxu0 0
    %3300 = vmatmul.mubr.bf16.gmra.mxu0 %v3262
    %v3301 = vpop.f32.mrf.mxu0
    %v3302 = vadd.f32 0.0, %v3301
    %v3303 = vpop.f32.mrf.mxu0
    %v3304 = vpop.f32.mrf.mxu0
    %v3305 = vpop.f32.mrf.mxu0
    %3306 = vdwg.mxu0
    %3307 = vrot.lane.b32.xlu0 %v740, 32
    %v3308 = vpop.permute.xlu0 %3307
    %v3310 = vsel %vm2329, %v2694, 0
    %v3313 = vsel %vm2735, %v3308, 0
    %3315 = vmatprep.subr.bf16.mxu0 0
    %3316 = vmatpush1.bf16.msra.mxu0 0
    %3317 = vmatprep.subr.bf16.mxu0 0
    %3318 = vmatpush1.bf16.msra.mxu0 0
    %3319 = vmatprep.subr.bf16.mxu0 0
    %3320 = vmatpush1.bf16.msra.mxu0 0
    %3321 = vmatprep.subr.bf16.mxu0 0
    %3322 = vmatpush1.bf16.msra.mxu0 0
    %3323 = vmatprep.subr.bf16.mxu0 0
    %3324 = vmatpush1.bf16.msra.mxu0 0
    %3325 = vmatprep.subr.bf16.mxu0 0
    %3326 = vmatpush1.bf16.msra.mxu0 0
    %3327 = vmatprep.subr.bf16.mxu0 0
    %3328 = vmatpush1.bf16.msra.mxu0 0
    %3329 = vmatprep.subr.bf16.mxu0 0
    %3330 = vmatpush1.bf16.msra.mxu0 %v3313
    %3331 = vmatprep.subr.bf16.mxu0 0
    %3332 = vmatpush2.bf16.msra.mxu0 0
    %3333 = vmatprep.subr.bf16.mxu0 0
    %3334 = vmatpush2.bf16.msra.mxu0 0
    %3335 = vmatprep.subr.bf16.mxu0 0
    %3336 = vmatpush2.bf16.msra.mxu0 0
    %3337 = vmatprep.subr.bf16.mxu0 0
    %3338 = vmatpush2.bf16.msra.mxu0 0
    %3339 = vmatprep.subr.bf16.mxu0 0
    %3340 = vmatpush2.bf16.msra.mxu0 0
    %3341 = vmatprep.subr.bf16.mxu0 0
    %3342 = vmatpush2.bf16.msra.mxu0 0
    %3343 = vmatprep.subr.bf16.mxu0 0
    %3344 = vmatpush2.bf16.msra.mxu0 0
    %3345 = vmatprep.subr.bf16.mxu0 0
    %3346 = vmatpush2.bf16.msra.mxu0 0
    %3347 = vmatprep.mubr.bf16.mxu0 0
    %3348 = vmatmul.mubr.bf16.gmra.mxu0 %v3310
    %v3349 = vpop.f32.mrf.mxu0
    %v3350 = vadd.f32 0.0, %v3349
    %v3351 = vpop.f32.mrf.mxu0
    %v3352 = vpop.f32.mrf.mxu0
    %v3353 = vpop.f32.mrf.mxu0
    %3354 = vdwg.mxu0
    %3355 = vrot.lane.b32.xlu0 %v741, 32
    %v3356 = vpop.permute.xlu0 %3355
    %v3358 = vsel %vm2329, %v2695, 0
    %v3361 = vsel %vm2735, %v3356, 0
    %3363 = vmatprep.subr.bf16.mxu0 0
    %3364 = vmatpush1.bf16.msra.mxu0 0
    %3365 = vmatprep.subr.bf16.mxu0 0
    %3366 = vmatpush1.bf16.msra.mxu0 0
    %3367 = vmatprep.subr.bf16.mxu0 0
    %3368 = vmatpush1.bf16.msra.mxu0 0
    %3369 = vmatprep.subr.bf16.mxu0 0
    %3370 = vmatpush1.bf16.msra.mxu0 0
    %3371 = vmatprep.subr.bf16.mxu0 0
    %3372 = vmatpush1.bf16.msra.mxu0 0
    %3373 = vmatprep.subr.bf16.mxu0 0
    %3374 = vmatpush1.bf16.msra.mxu0 0
    %3375 = vmatprep.subr.bf16.mxu0 0
    %3376 = vmatpush1.bf16.msra.mxu0 0
    %3377 = vmatprep.subr.bf16.mxu0 0
    %3378 = vmatpush1.bf16.msra.mxu0 %v3361
    %3379 = vmatprep.subr.bf16.mxu0 0
    %3380 = vmatpush2.bf16.msra.mxu0 0
    %3381 = vmatprep.subr.bf16.mxu0 0
    %3382 = vmatpush2.bf16.msra.mxu0 0
    %3383 = vmatprep.subr.bf16.mxu0 0
    %3384 = vmatpush2.bf16.msra.mxu0 0
    %3385 = vmatprep.subr.bf16.mxu0 0
    %3386 = vmatpush2.bf16.msra.mxu0 0
    %3387 = vmatprep.subr.bf16.mxu0 0
    %3388 = vmatpush2.bf16.msra.mxu0 0
    %3389 = vmatprep.subr.bf16.mxu0 0
    %3390 = vmatpush2.bf16.msra.mxu0 0
    %3391 = vmatprep.subr.bf16.mxu0 0
    %3392 = vmatpush2.bf16.msra.mxu0 0
    %3393 = vmatprep.subr.bf16.mxu0 0
    %3394 = vmatpush2.bf16.msra.mxu0 0
    %3395 = vmatprep.mubr.bf16.mxu0 0
    %3396 = vmatmul.mubr.bf16.gmra.mxu0 %v3358
    %v3397 = vpop.f32.mrf.mxu0
    %v3398 = vadd.f32 0.0, %v3397
    %v3399 = vpop.f32.mrf.mxu0
    %v3400 = vpop.f32.mrf.mxu0
    %v3401 = vpop.f32.mrf.mxu0
    %3402 = vdwg.mxu0
    %3403 = vrot.lane.b32.xlu0 %v742, 32
    %v3404 = vpop.permute.xlu0 %3403
    %v3406 = vsel %vm2329, %v2696, 0
    %v3409 = vsel %vm2735, %v3404, 0
    %3411 = vmatprep.subr.bf16.mxu0 0
    %3412 = vmatpush1.bf16.msra.mxu0 0
    %3413 = vmatprep.subr.bf16.mxu0 0
    %3414 = vmatpush1.bf16.msra.mxu0 0
    %3415 = vmatprep.subr.bf16.mxu0 0
    %3416 = vmatpush1.bf16.msra.mxu0 0
    %3417 = vmatprep.subr.bf16.mxu0 0
    %3418 = vmatpush1.bf16.msra.mxu0 0
    %3419 = vmatprep.subr.bf16.mxu0 0
    %3420 = vmatpush1.bf16.msra.mxu0 0
    %3421 = vmatprep.subr.bf16.mxu0 0
    %3422 = vmatpush1.bf16.msra.mxu0 0
    %3423 = vmatprep.subr.bf16.mxu0 0
    %3424 = vmatpush1.bf16.msra.mxu0 0
    %3425 = vmatprep.subr.bf16.mxu0 0
    %3426 = vmatpush1.bf16.msra.mxu0 %v3409
    %3427 = vmatprep.subr.bf16.mxu0 0
    %3428 = vmatpush2.bf16.msra.mxu0 0
    %3429 = vmatprep.subr.bf16.mxu0 0
    %3430 = vmatpush2.bf16.msra.mxu0 0
    %3431 = vmatprep.subr.bf16.mxu0 0
    %3432 = vmatpush2.bf16.msra.mxu0 0
    %3433 = vmatprep.subr.bf16.mxu0 0
    %3434 = vmatpush2.bf16.msra.mxu0 0
    %3435 = vmatprep.subr.bf16.mxu0 0
    %3436 = vmatpush2.bf16.msra.mxu0 0
    %3437 = vmatprep.subr.bf16.mxu0 0
    %3438 = vmatpush2.bf16.msra.mxu0 0
    %3439 = vmatprep.subr.bf16.mxu0 0
    %3440 = vmatpush2.bf16.msra.mxu0 0
    %3441 = vmatprep.subr.bf16.mxu0 0
    %3442 = vmatpush2.bf16.msra.mxu0 0
    %3443 = vmatprep.mubr.bf16.mxu0 0
    %3444 = vmatmul.mubr.bf16.gmra.mxu0 %v3406
    %v3445 = vpop.f32.mrf.mxu0
    %v3446 = vadd.f32 0.0, %v3445
    %v3447 = vpop.f32.mrf.mxu0
    %v3448 = vpop.f32.mrf.mxu0
    %v3449 = vpop.f32.mrf.mxu0
    %3450 = vdwg.mxu0
    %3451 = vrot.lane.b32.xlu0 %v743, 32
    %v3452 = vpop.permute.xlu0 %3451
    %v3454 = vsel %vm2329, %v2697, 0
    %v3457 = vsel %vm2735, %v3452, 0
    %3459 = vmatprep.subr.bf16.mxu0 0
    %3460 = vmatpush1.bf16.msra.mxu0 0
    %3461 = vmatprep.subr.bf16.mxu0 0
    %3462 = vmatpush1.bf16.msra.mxu0 0
    %3463 = vmatprep.subr.bf16.mxu0 0
    %3464 = vmatpush1.bf16.msra.mxu0 0
    %3465 = vmatprep.subr.bf16.mxu0 0
    %3466 = vmatpush1.bf16.msra.mxu0 0
    %3467 = vmatprep.subr.bf16.mxu0 0
    %3468 = vmatpush1.bf16.msra.mxu0 0
    %3469 = vmatprep.subr.bf16.mxu0 0
    %3470 = vmatpush1.bf16.msra.mxu0 0
    %3471 = vmatprep.subr.bf16.mxu0 0
    %3472 = vmatpush1.bf16.msra.mxu0 0
    %3473 = vmatprep.subr.bf16.mxu0 0
    %3474 = vmatpush1.bf16.msra.mxu0 %v3457
    %3475 = vmatprep.subr.bf16.mxu0 0
    %3476 = vmatpush2.bf16.msra.mxu0 0
    %3477 = vmatprep.subr.bf16.mxu0 0
    %3478 = vmatpush2.bf16.msra.mxu0 0
    %3479 = vmatprep.subr.bf16.mxu0 0
    %3480 = vmatpush2.bf16.msra.mxu0 0
    %3481 = vmatprep.subr.bf16.mxu0 0
    %3482 = vmatpush2.bf16.msra.mxu0 0
    %3483 = vmatprep.subr.bf16.mxu0 0
    %3484 = vmatpush2.bf16.msra.mxu0 0
    %3485 = vmatprep.subr.bf16.mxu0 0
    %3486 = vmatpush2.bf16.msra.mxu0 0
    %3487 = vmatprep.subr.bf16.mxu0 0
    %3488 = vmatpush2.bf16.msra.mxu0 0
    %3489 = vmatprep.subr.bf16.mxu0 0
    %3490 = vmatpush2.bf16.msra.mxu0 0
    %3491 = vmatprep.mubr.bf16.mxu0 0
    %3492 = vmatmul.mubr.bf16.gmra.mxu0 %v3454
    %v3493 = vpop.f32.mrf.mxu0
    %v3494 = vadd.f32 0.0, %v3493
    %v3495 = vpop.f32.mrf.mxu0
    %v3496 = vpop.f32.mrf.mxu0
    %v3497 = vpop.f32.mrf.mxu0
    %3498 = vdwg.mxu0
    %3500 = vrot.lane.b32.xlu0 %v2714, 32
    %v3501 = vpop.permute.xlu0 %3500
    %v3503 = vsel %vm2329, %v2698, 0
    %v3506 = vsel %vm2735, %v3501, 0
    %3508 = vmatprep.subr.bf16.mxu0 0
    %3509 = vmatpush1.bf16.msra.mxu0 0
    %3510 = vmatprep.subr.bf16.mxu0 0
    %3511 = vmatpush1.bf16.msra.mxu0 0
    %3512 = vmatprep.subr.bf16.mxu0 0
    %3513 = vmatpush1.bf16.msra.mxu0 0
    %3514 = vmatprep.subr.bf16.mxu0 0
    %3515 = vmatpush1.bf16.msra.mxu0 0
    %3516 = vmatprep.subr.bf16.mxu0 0
    %3517 = vmatpush1.bf16.msra.mxu0 0
    %3518 = vmatprep.subr.bf16.mxu0 0
    %3519 = vmatpush1.bf16.msra.mxu0 0
    %3520 = vmatprep.subr.bf16.mxu0 0
    %3521 = vmatpush1.bf16.msra.mxu0 0
    %3522 = vmatprep.subr.bf16.mxu0 0
    %3523 = vmatpush1.bf16.msra.mxu0 %v3506
    %3524 = vmatprep.subr.bf16.mxu0 0
    %3525 = vmatpush2.bf16.msra.mxu0 0
    %3526 = vmatprep.subr.bf16.mxu0 0
    %3527 = vmatpush2.bf16.msra.mxu0 0
    %3528 = vmatprep.subr.bf16.mxu0 0
    %3529 = vmatpush2.bf16.msra.mxu0 0
    %3530 = vmatprep.subr.bf16.mxu0 0
    %3531 = vmatpush2.bf16.msra.mxu0 0
    %3532 = vmatprep.subr.bf16.mxu0 0
    %3533 = vmatpush2.bf16.msra.mxu0 0
    %3534 = vmatprep.subr.bf16.mxu0 0
    %3535 = vmatpush2.bf16.msra.mxu0 0
    %3536 = vmatprep.subr.bf16.mxu0 0
    %3537 = vmatpush2.bf16.msra.mxu0 0
    %3538 = vmatprep.subr.bf16.mxu0 0
    %3539 = vmatpush2.bf16.msra.mxu0 0
    %3540 = vmatprep.mubr.bf16.mxu0 0
    %3541 = vmatmul.mubr.bf16.gmra.mxu0 %v3503
    %v3542 = vpop.f32.mrf.mxu0
    %v3543 = vadd.f32 0.0, %v3542
    %v3544 = vpop.f32.mrf.mxu0
    %v3545 = vpop.f32.mrf.mxu0
    %v3546 = vpop.f32.mrf.mxu0
    %3547 = vdwg.mxu0
    %3549 = vrot.lane.b32.xlu0 %v2715, 32
    %v3550 = vpop.permute.xlu0 %3549
    %v3552 = vsel %vm2329, %v2699, 0
    %v3555 = vsel %vm2735, %v3550, 0
    %3557 = vmatprep.subr.bf16.mxu0 0
    %3558 = vmatpush1.bf16.msra.mxu0 0
    %3559 = vmatprep.subr.bf16.mxu0 0
    %3560 = vmatpush1.bf16.msra.mxu0 0
    %3561 = vmatprep.subr.bf16.mxu0 0
    %3562 = vmatpush1.bf16.msra.mxu0 0
    %3563 = vmatprep.subr.bf16.mxu0 0
    %3564 = vmatpush1.bf16.msra.mxu0 0
    %3565 = vmatprep.subr.bf16.mxu0 0
    %3566 = vmatpush1.bf16.msra.mxu0 0
    %3567 = vmatprep.subr.bf16.mxu0 0
    %3568 = vmatpush1.bf16.msra.mxu0 0
    %3569 = vmatprep.subr.bf16.mxu0 0
    %3570 = vmatpush1.bf16.msra.mxu0 0
    %3571 = vmatprep.subr.bf16.mxu0 0
    %3572 = vmatpush1.bf16.msra.mxu0 %v3555
    %3573 = vmatprep.subr.bf16.mxu0 0
    %3574 = vmatpush2.bf16.msra.mxu0 0
    %3575 = vmatprep.subr.bf16.mxu0 0
    %3576 = vmatpush2.bf16.msra.mxu0 0
    %3577 = vmatprep.subr.bf16.mxu0 0
    %3578 = vmatpush2.bf16.msra.mxu0 0
    %3579 = vmatprep.subr.bf16.mxu0 0
    %3580 = vmatpush2.bf16.msra.mxu0 0
    %3581 = vmatprep.subr.bf16.mxu0 0
    %3582 = vmatpush2.bf16.msra.mxu0 0
    %3583 = vmatprep.subr.bf16.mxu0 0
    %3584 = vmatpush2.bf16.msra.mxu0 0
    %3585 = vmatprep.subr.bf16.mxu0 0
    %3586 = vmatpush2.bf16.msra.mxu0 0
    %3587 = vmatprep.subr.bf16.mxu0 0
    %3588 = vmatpush2.bf16.msra.mxu0 0
    %3589 = vmatprep.mubr.bf16.mxu0 0
    %3590 = vmatmul.mubr.bf16.gmra.mxu0 %v3552
    %v3591 = vpop.f32.mrf.mxu0
    %v3592 = vadd.f32 0.0, %v3591
    %v3593 = vpop.f32.mrf.mxu0
    %v3594 = vpop.f32.mrf.mxu0
    %v3595 = vpop.f32.mrf.mxu0
    %3596 = vdwg.mxu0
    %3598 = vrot.lane.b32.xlu0 %v2716, 32
    %v3599 = vpop.permute.xlu0 %3598
    %v3601 = vsel %vm2329, %v2700, 0
    %v3604 = vsel %vm2735, %v3599, 0
    %3606 = vmatprep.subr.bf16.mxu0 0
    %3607 = vmatpush1.bf16.msra.mxu0 0
    %3608 = vmatprep.subr.bf16.mxu0 0
    %3609 = vmatpush1.bf16.msra.mxu0 0
    %3610 = vmatprep.subr.bf16.mxu0 0
    %3611 = vmatpush1.bf16.msra.mxu0 0
    %3612 = vmatprep.subr.bf16.mxu0 0
    %3613 = vmatpush1.bf16.msra.mxu0 0
    %3614 = vmatprep.subr.bf16.mxu0 0
    %3615 = vmatpush1.bf16.msra.mxu0 0
    %3616 = vmatprep.subr.bf16.mxu0 0
    %3617 = vmatpush1.bf16.msra.mxu0 0
    %3618 = vmatprep.subr.bf16.mxu0 0
    %3619 = vmatpush1.bf16.msra.mxu0 0
    %3620 = vmatprep.subr.bf16.mxu0 0
    %3621 = vmatpush1.bf16.msra.mxu0 %v3604
    %3622 = vmatprep.subr.bf16.mxu0 0
    %3623 = vmatpush2.bf16.msra.mxu0 0
    %3624 = vmatprep.subr.bf16.mxu0 0
    %3625 = vmatpush2.bf16.msra.mxu0 0
    %3626 = vmatprep.subr.bf16.mxu0 0
    %3627 = vmatpush2.bf16.msra.mxu0 0
    %3628 = vmatprep.subr.bf16.mxu0 0
    %3629 = vmatpush2.bf16.msra.mxu0 0
    %3630 = vmatprep.subr.bf16.mxu0 0
    %3631 = vmatpush2.bf16.msra.mxu0 0
    %3632 = vmatprep.subr.bf16.mxu0 0
    %3633 = vmatpush2.bf16.msra.mxu0 0
    %3634 = vmatprep.subr.bf16.mxu0 0
    %3635 = vmatpush2.bf16.msra.mxu0 0
    %3636 = vmatprep.subr.bf16.mxu0 0
    %3637 = vmatpush2.bf16.msra.mxu0 0
    %3638 = vmatprep.mubr.bf16.mxu0 0
    %3639 = vmatmul.mubr.bf16.gmra.mxu0 %v3601
    %v3640 = vpop.f32.mrf.mxu0
    %v3641 = vadd.f32 0.0, %v3640
    %v3642 = vpop.f32.mrf.mxu0
    %v3643 = vpop.f32.mrf.mxu0
    %v3644 = vpop.f32.mrf.mxu0
    %3645 = vdwg.mxu0
    %3647 = vrot.lane.b32.xlu0 %v2717, 32
    %v3648 = vpop.permute.xlu0 %3647
    %v3650 = vsel %vm2329, %v2701, 0
    %v3653 = vsel %vm2735, %v3648, 0
    %3655 = vmatprep.subr.bf16.mxu0 0
    %3656 = vmatpush1.bf16.msra.mxu0 0
    %3657 = vmatprep.subr.bf16.mxu0 0
    %3658 = vmatpush1.bf16.msra.mxu0 0
    %3659 = vmatprep.subr.bf16.mxu0 0
    %3660 = vmatpush1.bf16.msra.mxu0 0
    %3661 = vmatprep.subr.bf16.mxu0 0
    %3662 = vmatpush1.bf16.msra.mxu0 0
    %3663 = vmatprep.subr.bf16.mxu0 0
    %3664 = vmatpush1.bf16.msra.mxu0 0
    %3665 = vmatprep.subr.bf16.mxu0 0
    %3666 = vmatpush1.bf16.msra.mxu0 0
    %3667 = vmatprep.subr.bf16.mxu0 0
    %3668 = vmatpush1.bf16.msra.mxu0 0
    %3669 = vmatprep.subr.bf16.mxu0 0
    %3670 = vmatpush1.bf16.msra.mxu0 %v3653
    %3671 = vmatprep.subr.bf16.mxu0 0
    %3672 = vmatpush2.bf16.msra.mxu0 0
    %3673 = vmatprep.subr.bf16.mxu0 0
    %3674 = vmatpush2.bf16.msra.mxu0 0
    %3675 = vmatprep.subr.bf16.mxu0 0
    %3676 = vmatpush2.bf16.msra.mxu0 0
    %3677 = vmatprep.subr.bf16.mxu0 0
    %3678 = vmatpush2.bf16.msra.mxu0 0
    %3679 = vmatprep.subr.bf16.mxu0 0
    %3680 = vmatpush2.bf16.msra.mxu0 0
    %3681 = vmatprep.subr.bf16.mxu0 0
    %3682 = vmatpush2.bf16.msra.mxu0 0
    %3683 = vmatprep.subr.bf16.mxu0 0
    %3684 = vmatpush2.bf16.msra.mxu0 0
    %3685 = vmatprep.subr.bf16.mxu0 0
    %3686 = vmatpush2.bf16.msra.mxu0 0
    %3687 = vmatprep.mubr.bf16.mxu0 0
    %3688 = vmatmul.mubr.bf16.gmra.mxu0 %v3650
    %v3689 = vpop.f32.mrf.mxu0
    %v3690 = vadd.f32 0.0, %v3689
    %v3691 = vpop.f32.mrf.mxu0
    %v3692 = vpop.f32.mrf.mxu0
    %v3693 = vpop.f32.mrf.mxu0
    %3694 = vdwg.mxu0
    %3696 = vrot.lane.b32.xlu0 %v2718, 32
    %v3697 = vpop.permute.xlu0 %3696
    %v3699 = vsel %vm2329, %v2702, 0
    %v3702 = vsel %vm2735, %v3697, 0
    %3704 = vmatprep.subr.bf16.mxu0 0
    %3705 = vmatpush1.bf16.msra.mxu0 0
    %3706 = vmatprep.subr.bf16.mxu0 0
    %3707 = vmatpush1.bf16.msra.mxu0 0
    %3708 = vmatprep.subr.bf16.mxu0 0
    %3709 = vmatpush1.bf16.msra.mxu0 0
    %3710 = vmatprep.subr.bf16.mxu0 0
    %3711 = vmatpush1.bf16.msra.mxu0 0
    %3712 = vmatprep.subr.bf16.mxu0 0
    %3713 = vmatpush1.bf16.msra.mxu0 0
    %3714 = vmatprep.subr.bf16.mxu0 0
    %3715 = vmatpush1.bf16.msra.mxu0 0
    %3716 = vmatprep.subr.bf16.mxu0 0
    %3717 = vmatpush1.bf16.msra.mxu0 0
    %3718 = vmatprep.subr.bf16.mxu0 0
    %3719 = vmatpush1.bf16.msra.mxu0 %v3702
    %3720 = vmatprep.subr.bf16.mxu0 0
    %3721 = vmatpush2.bf16.msra.mxu0 0
    %3722 = vmatprep.subr.bf16.mxu0 0
    %3723 = vmatpush2.bf16.msra.mxu0 0
    %3724 = vmatprep.subr.bf16.mxu0 0
    %3725 = vmatpush2.bf16.msra.mxu0 0
    %3726 = vmatprep.subr.bf16.mxu0 0
    %3727 = vmatpush2.bf16.msra.mxu0 0
    %3728 = vmatprep.subr.bf16.mxu0 0
    %3729 = vmatpush2.bf16.msra.mxu0 0
    %3730 = vmatprep.subr.bf16.mxu0 0
    %3731 = vmatpush2.bf16.msra.mxu0 0
    %3732 = vmatprep.subr.bf16.mxu0 0
    %3733 = vmatpush2.bf16.msra.mxu0 0
    %3734 = vmatprep.subr.bf16.mxu0 0
    %3735 = vmatpush2.bf16.msra.mxu0 0
    %3736 = vmatprep.mubr.bf16.mxu0 0
    %3737 = vmatmul.mubr.bf16.gmra.mxu0 %v3699
    %v3738 = vpop.f32.mrf.mxu0
    %v3739 = vadd.f32 0.0, %v3738
    %v3740 = vpop.f32.mrf.mxu0
    %v3741 = vpop.f32.mrf.mxu0
    %v3742 = vpop.f32.mrf.mxu0
    %3743 = vdwg.mxu0
    %3745 = vrot.lane.b32.xlu0 %v2719, 32
    %v3746 = vpop.permute.xlu0 %3745
    %v3748 = vsel %vm2329, %v2703, 0
    %v3751 = vsel %vm2735, %v3746, 0
    %3753 = vmatprep.subr.bf16.mxu0 0
    %3754 = vmatpush1.bf16.msra.mxu0 0
    %3755 = vmatprep.subr.bf16.mxu0 0
    %3756 = vmatpush1.bf16.msra.mxu0 0
    %3757 = vmatprep.subr.bf16.mxu0 0
    %3758 = vmatpush1.bf16.msra.mxu0 0
    %3759 = vmatprep.subr.bf16.mxu0 0
    %3760 = vmatpush1.bf16.msra.mxu0 0
    %3761 = vmatprep.subr.bf16.mxu0 0
    %3762 = vmatpush1.bf16.msra.mxu0 0
    %3763 = vmatprep.subr.bf16.mxu0 0
    %3764 = vmatpush1.bf16.msra.mxu0 0
    %3765 = vmatprep.subr.bf16.mxu0 0
    %3766 = vmatpush1.bf16.msra.mxu0 0
    %3767 = vmatprep.subr.bf16.mxu0 0
    %3768 = vmatpush1.bf16.msra.mxu0 %v3751
    %3769 = vmatprep.subr.bf16.mxu0 0
    %3770 = vmatpush2.bf16.msra.mxu0 0
    %3771 = vmatprep.subr.bf16.mxu0 0
    %3772 = vmatpush2.bf16.msra.mxu0 0
    %3773 = vmatprep.subr.bf16.mxu0 0
    %3774 = vmatpush2.bf16.msra.mxu0 0
    %3775 = vmatprep.subr.bf16.mxu0 0
    %3776 = vmatpush2.bf16.msra.mxu0 0
    %3777 = vmatprep.subr.bf16.mxu0 0
    %3778 = vmatpush2.bf16.msra.mxu0 0
    %3779 = vmatprep.subr.bf16.mxu0 0
    %3780 = vmatpush2.bf16.msra.mxu0 0
    %3781 = vmatprep.subr.bf16.mxu0 0
    %3782 = vmatpush2.bf16.msra.mxu0 0
    %3783 = vmatprep.subr.bf16.mxu0 0
    %3784 = vmatpush2.bf16.msra.mxu0 0
    %3785 = vmatprep.mubr.bf16.mxu0 0
    %3786 = vmatmul.mubr.bf16.gmra.mxu0 %v3748
    %v3787 = vpop.f32.mrf.mxu0
    %v3788 = vadd.f32 0.0, %v3787
    %v3789 = vpop.f32.mrf.mxu0
    %v3790 = vpop.f32.mrf.mxu0
    %v3791 = vpop.f32.mrf.mxu0
    %3792 = vdwg.mxu0
    %3794 = vrot.lane.b32.xlu0 %v2720, 32
    %v3795 = vpop.permute.xlu0 %3794
    %v3797 = vsel %vm2329, %v2704, 0
    %v3800 = vsel %vm2735, %v3795, 0
    %3802 = vmatprep.subr.bf16.mxu0 0
    %3803 = vmatpush1.bf16.msra.mxu0 0
    %3804 = vmatprep.subr.bf16.mxu0 0
    %3805 = vmatpush1.bf16.msra.mxu0 0
    %3806 = vmatprep.subr.bf16.mxu0 0
    %3807 = vmatpush1.bf16.msra.mxu0 0
    %3808 = vmatprep.subr.bf16.mxu0 0
    %3809 = vmatpush1.bf16.msra.mxu0 0
    %3810 = vmatprep.subr.bf16.mxu0 0
    %3811 = vmatpush1.bf16.msra.mxu0 0
    %3812 = vmatprep.subr.bf16.mxu0 0
    %3813 = vmatpush1.bf16.msra.mxu0 0
    %3814 = vmatprep.subr.bf16.mxu0 0
    %3815 = vmatpush1.bf16.msra.mxu0 0
    %3816 = vmatprep.subr.bf16.mxu0 0
    %3817 = vmatpush1.bf16.msra.mxu0 %v3800
    %3818 = vmatprep.subr.bf16.mxu0 0
    %3819 = vmatpush2.bf16.msra.mxu0 0
    %3820 = vmatprep.subr.bf16.mxu0 0
    %3821 = vmatpush2.bf16.msra.mxu0 0
    %3822 = vmatprep.subr.bf16.mxu0 0
    %3823 = vmatpush2.bf16.msra.mxu0 0
    %3824 = vmatprep.subr.bf16.mxu0 0
    %3825 = vmatpush2.bf16.msra.mxu0 0
    %3826 = vmatprep.subr.bf16.mxu0 0
    %3827 = vmatpush2.bf16.msra.mxu0 0
    %3828 = vmatprep.subr.bf16.mxu0 0
    %3829 = vmatpush2.bf16.msra.mxu0 0
    %3830 = vmatprep.subr.bf16.mxu0 0
    %3831 = vmatpush2.bf16.msra.mxu0 0
    %3832 = vmatprep.subr.bf16.mxu0 0
    %3833 = vmatpush2.bf16.msra.mxu0 0
    %3834 = vmatprep.mubr.bf16.mxu0 0
    %3835 = vmatmul.mubr.bf16.gmra.mxu0 %v3797
    %v3836 = vpop.f32.mrf.mxu0
    %v3837 = vadd.f32 0.0, %v3836
    %v3838 = vpop.f32.mrf.mxu0
    %v3839 = vpop.f32.mrf.mxu0
    %v3840 = vpop.f32.mrf.mxu0
    %3841 = vdwg.mxu0
    %3843 = vrot.lane.b32.xlu0 %v2721, 32
    %v3844 = vpop.permute.xlu0 %3843
    %v3846 = vsel %vm2329, %v2705, 0
    %v3849 = vsel %vm2735, %v3844, 0
    %3851 = vmatprep.subr.bf16.mxu0 0
    %3852 = vmatpush1.bf16.msra.mxu0 0
    %3853 = vmatprep.subr.bf16.mxu0 0
    %3854 = vmatpush1.bf16.msra.mxu0 0
    %3855 = vmatprep.subr.bf16.mxu0 0
    %3856 = vmatpush1.bf16.msra.mxu0 0
    %3857 = vmatprep.subr.bf16.mxu0 0
    %3858 = vmatpush1.bf16.msra.mxu0 0
    %3859 = vmatprep.subr.bf16.mxu0 0
    %3860 = vmatpush1.bf16.msra.mxu0 0
    %3861 = vmatprep.subr.bf16.mxu0 0
    %3862 = vmatpush1.bf16.msra.mxu0 0
    %3863 = vmatprep.subr.bf16.mxu0 0
    %3864 = vmatpush1.bf16.msra.mxu0 0
    %3865 = vmatprep.subr.bf16.mxu0 0
    %3866 = vmatpush1.bf16.msra.mxu0 %v3849
    %3867 = vmatprep.subr.bf16.mxu0 0
    %3868 = vmatpush2.bf16.msra.mxu0 0
    %3869 = vmatprep.subr.bf16.mxu0 0
    %3870 = vmatpush2.bf16.msra.mxu0 0
    %3871 = vmatprep.subr.bf16.mxu0 0
    %3872 = vmatpush2.bf16.msra.mxu0 0
    %3873 = vmatprep.subr.bf16.mxu0 0
    %3874 = vmatpush2.bf16.msra.mxu0 0
    %3875 = vmatprep.subr.bf16.mxu0 0
    %3876 = vmatpush2.bf16.msra.mxu0 0
    %3877 = vmatprep.subr.bf16.mxu0 0
    %3878 = vmatpush2.bf16.msra.mxu0 0
    %3879 = vmatprep.subr.bf16.mxu0 0
    %3880 = vmatpush2.bf16.msra.mxu0 0
    %3881 = vmatprep.subr.bf16.mxu0 0
    %3882 = vmatpush2.bf16.msra.mxu0 0
    %3883 = vmatprep.mubr.bf16.mxu0 0
    %3884 = vmatmul.mubr.bf16.gmra.mxu0 %v3846
    %v3885 = vpop.f32.mrf.mxu0
    %v3886 = vadd.f32 0.0, %v3885
    %v3887 = vpop.f32.mrf.mxu0
    %v3888 = vpop.f32.mrf.mxu0
    %v3889 = vpop.f32.mrf.mxu0
    %3890 = vdwg.mxu0
    %3892 = vrot.lane.b32.xlu0 %v2722, 32
    %v3893 = vpop.permute.xlu0 %3892
    %v3895 = vsel %vm2329, %v2706, 0
    %v3898 = vsel %vm2735, %v3893, 0
    %3900 = vmatprep.subr.bf16.mxu0 0
    %3901 = vmatpush1.bf16.msra.mxu0 0
    %3902 = vmatprep.subr.bf16.mxu0 0
    %3903 = vmatpush1.bf16.msra.mxu0 0
    %3904 = vmatprep.subr.bf16.mxu0 0
    %3905 = vmatpush1.bf16.msra.mxu0 0
    %3906 = vmatprep.subr.bf16.mxu0 0
    %3907 = vmatpush1.bf16.msra.mxu0 0
    %3908 = vmatprep.subr.bf16.mxu0 0
    %3909 = vmatpush1.bf16.msra.mxu0 0
    %3910 = vmatprep.subr.bf16.mxu0 0
    %3911 = vmatpush1.bf16.msra.mxu0 0
    %3912 = vmatprep.subr.bf16.mxu0 0
    %3913 = vmatpush1.bf16.msra.mxu0 0
    %3914 = vmatprep.subr.bf16.mxu0 0
    %3915 = vmatpush1.bf16.msra.mxu0 %v3898
    %3916 = vmatprep.subr.bf16.mxu0 0
    %3917 = vmatpush2.bf16.msra.mxu0 0
    %3918 = vmatprep.subr.bf16.mxu0 0
    %3919 = vmatpush2.bf16.msra.mxu0 0
    %3920 = vmatprep.subr.bf16.mxu0 0
    %3921 = vmatpush2.bf16.msra.mxu0 0
    %3922 = vmatprep.subr.bf16.mxu0 0
    %3923 = vmatpush2.bf16.msra.mxu0 0
    %3924 = vmatprep.subr.bf16.mxu0 0
    %3925 = vmatpush2.bf16.msra.mxu0 0
    %3926 = vmatprep.subr.bf16.mxu0 0
    %3927 = vmatpush2.bf16.msra.mxu0 0
    %3928 = vmatprep.subr.bf16.mxu0 0
    %3929 = vmatpush2.bf16.msra.mxu0 0
    %3930 = vmatprep.subr.bf16.mxu0 0
    %3931 = vmatpush2.bf16.msra.mxu0 0
    %3932 = vmatprep.mubr.bf16.mxu0 0
    %3933 = vmatmul.mubr.bf16.gmra.mxu0 %v3895
    %v3934 = vpop.f32.mrf.mxu0
    %v3935 = vadd.f32 0.0, %v3934
    %v3936 = vpop.f32.mrf.mxu0
    %v3937 = vpop.f32.mrf.mxu0
    %v3938 = vpop.f32.mrf.mxu0
    %3939 = vdwg.mxu0
    %3941 = vrot.lane.b32.xlu0 %v2723, 32
    %v3942 = vpop.permute.xlu0 %3941
    %v3944 = vsel %vm2329, %v2707, 0
    %v3947 = vsel %vm2735, %v3942, 0
    %3949 = vmatprep.subr.bf16.mxu0 0
    %3950 = vmatpush1.bf16.msra.mxu0 0
    %3951 = vmatprep.subr.bf16.mxu0 0
    %3952 = vmatpush1.bf16.msra.mxu0 0
    %3953 = vmatprep.subr.bf16.mxu0 0
    %3954 = vmatpush1.bf16.msra.mxu0 0
    %3955 = vmatprep.subr.bf16.mxu0 0
    %3956 = vmatpush1.bf16.msra.mxu0 0
    %3957 = vmatprep.subr.bf16.mxu0 0
    %3958 = vmatpush1.bf16.msra.mxu0 0
    %3959 = vmatprep.subr.bf16.mxu0 0
    %3960 = vmatpush1.bf16.msra.mxu0 0
    %3961 = vmatprep.subr.bf16.mxu0 0
    %3962 = vmatpush1.bf16.msra.mxu0 0
    %3963 = vmatprep.subr.bf16.mxu0 0
    %3964 = vmatpush1.bf16.msra.mxu0 %v3947
    %3965 = vmatprep.subr.bf16.mxu0 0
    %3966 = vmatpush2.bf16.msra.mxu0 0
    %3967 = vmatprep.subr.bf16.mxu0 0
    %3968 = vmatpush2.bf16.msra.mxu0 0
    %3969 = vmatprep.subr.bf16.mxu0 0
    %3970 = vmatpush2.bf16.msra.mxu0 0
    %3971 = vmatprep.subr.bf16.mxu0 0
    %3972 = vmatpush2.bf16.msra.mxu0 0
    %3973 = vmatprep.subr.bf16.mxu0 0
    %3974 = vmatpush2.bf16.msra.mxu0 0
    %3975 = vmatprep.subr.bf16.mxu0 0
    %3976 = vmatpush2.bf16.msra.mxu0 0
    %3977 = vmatprep.subr.bf16.mxu0 0
    %3978 = vmatpush2.bf16.msra.mxu0 0
    %3979 = vmatprep.subr.bf16.mxu0 0
    %3980 = vmatpush2.bf16.msra.mxu0 0
    %3981 = vmatprep.mubr.bf16.mxu0 0
    %3982 = vmatmul.mubr.bf16.gmra.mxu0 %v3944
    %v3983 = vpop.f32.mrf.mxu0
    %v3984 = vadd.f32 0.0, %v3983
    %v3985 = vpop.f32.mrf.mxu0
    %v3986 = vpop.f32.mrf.mxu0
    %v3987 = vpop.f32.mrf.mxu0
    %3988 = vdwg.mxu0
    %3990 = vrot.lane.b32.xlu0 %v2724, 32
    %v3991 = vpop.permute.xlu0 %3990
    %v3993 = vsel %vm2329, %v2708, 0
    %v3996 = vsel %vm2735, %v3991, 0
    %3998 = vmatprep.subr.bf16.mxu0 0
    %3999 = vmatpush1.bf16.msra.mxu0 0
    %4000 = vmatprep.subr.bf16.mxu0 0
    %4001 = vmatpush1.bf16.msra.mxu0 0
    %4002 = vmatprep.subr.bf16.mxu0 0
    %4003 = vmatpush1.bf16.msra.mxu0 0
    %4004 = vmatprep.subr.bf16.mxu0 0
    %4005 = vmatpush1.bf16.msra.mxu0 0
    %4006 = vmatprep.subr.bf16.mxu0 0
    %4007 = vmatpush1.bf16.msra.mxu0 0
    %4008 = vmatprep.subr.bf16.mxu0 0
    %4009 = vmatpush1.bf16.msra.mxu0 0
    %4010 = vmatprep.subr.bf16.mxu0 0
    %4011 = vmatpush1.bf16.msra.mxu0 0
    %4012 = vmatprep.subr.bf16.mxu0 0
    %4013 = vmatpush1.bf16.msra.mxu0 %v3996
    %4014 = vmatprep.subr.bf16.mxu0 0
    %4015 = vmatpush2.bf16.msra.mxu0 0
    %4016 = vmatprep.subr.bf16.mxu0 0
    %4017 = vmatpush2.bf16.msra.mxu0 0
    %4018 = vmatprep.subr.bf16.mxu0 0
    %4019 = vmatpush2.bf16.msra.mxu0 0
    %4020 = vmatprep.subr.bf16.mxu0 0
    %4021 = vmatpush2.bf16.msra.mxu0 0
    %4022 = vmatprep.subr.bf16.mxu0 0
    %4023 = vmatpush2.bf16.msra.mxu0 0
    %4024 = vmatprep.subr.bf16.mxu0 0
    %4025 = vmatpush2.bf16.msra.mxu0 0
    %4026 = vmatprep.subr.bf16.mxu0 0
    %4027 = vmatpush2.bf16.msra.mxu0 0
    %4028 = vmatprep.subr.bf16.mxu0 0
    %4029 = vmatpush2.bf16.msra.mxu0 0
    %4030 = vmatprep.mubr.bf16.mxu0 0
    %4031 = vmatmul.mubr.bf16.gmra.mxu0 %v3993
    %v4032 = vpop.f32.mrf.mxu0
    %v4033 = vadd.f32 0.0, %v4032
    %v4034 = vpop.f32.mrf.mxu0
    %v4035 = vpop.f32.mrf.mxu0
    %v4036 = vpop.f32.mrf.mxu0
    %4037 = vdwg.mxu0
    %4039 = vrot.lane.b32.xlu0 %v2725, 32
    %v4040 = vpop.permute.xlu0 %4039
    %v4042 = vsel %vm2329, %v2709, 0
    %v4045 = vsel %vm2735, %v4040, 0
    %4047 = vmatprep.subr.bf16.mxu0 0
    %4048 = vmatpush1.bf16.msra.mxu0 0
    %4049 = vmatprep.subr.bf16.mxu0 0
    %4050 = vmatpush1.bf16.msra.mxu0 0
    %4051 = vmatprep.subr.bf16.mxu0 0
    %4052 = vmatpush1.bf16.msra.mxu0 0
    %4053 = vmatprep.subr.bf16.mxu0 0
    %4054 = vmatpush1.bf16.msra.mxu0 0
    %4055 = vmatprep.subr.bf16.mxu0 0
    %4056 = vmatpush1.bf16.msra.mxu0 0
    %4057 = vmatprep.subr.bf16.mxu0 0
    %4058 = vmatpush1.bf16.msra.mxu0 0
    %4059 = vmatprep.subr.bf16.mxu0 0
    %4060 = vmatpush1.bf16.msra.mxu0 0
    %4061 = vmatprep.subr.bf16.mxu0 0
    %4062 = vmatpush1.bf16.msra.mxu0 %v4045
    %4063 = vmatprep.subr.bf16.mxu0 0
    %4064 = vmatpush2.bf16.msra.mxu0 0
    %4065 = vmatprep.subr.bf16.mxu0 0
    %4066 = vmatpush2.bf16.msra.mxu0 0
    %4067 = vmatprep.subr.bf16.mxu0 0
    %4068 = vmatpush2.bf16.msra.mxu0 0
    %4069 = vmatprep.subr.bf16.mxu0 0
    %4070 = vmatpush2.bf16.msra.mxu0 0
    %4071 = vmatprep.subr.bf16.mxu0 0
    %4072 = vmatpush2.bf16.msra.mxu0 0
    %4073 = vmatprep.subr.bf16.mxu0 0
    %4074 = vmatpush2.bf16.msra.mxu0 0
    %4075 = vmatprep.subr.bf16.mxu0 0
    %4076 = vmatpush2.bf16.msra.mxu0 0
    %4077 = vmatprep.subr.bf16.mxu0 0
    %4078 = vmatpush2.bf16.msra.mxu0 0
    %4079 = vmatprep.mubr.bf16.mxu0 0
    %4080 = vmatmul.mubr.bf16.gmra.mxu0 %v4042
    %v4081 = vpop.f32.mrf.mxu0
    %v4082 = vadd.f32 0.0, %v4081
    %v4083 = vpop.f32.mrf.mxu0
    %v4084 = vpop.f32.mrf.mxu0
    %v4085 = vpop.f32.mrf.mxu0
    %4086 = vdwg.mxu0
    %4088 = vrot.lane.b32.xlu0 %v2726, 32
    %v4089 = vpop.permute.xlu0 %4088
    %v4091 = vsel %vm2329, %v2710, 0
    %v4094 = vsel %vm2735, %v4089, 0
    %4096 = vmatprep.subr.bf16.mxu0 0
    %4097 = vmatpush1.bf16.msra.mxu0 0
    %4098 = vmatprep.subr.bf16.mxu0 0
    %4099 = vmatpush1.bf16.msra.mxu0 0
    %4100 = vmatprep.subr.bf16.mxu0 0
    %4101 = vmatpush1.bf16.msra.mxu0 0
    %4102 = vmatprep.subr.bf16.mxu0 0
    %4103 = vmatpush1.bf16.msra.mxu0 0
    %4104 = vmatprep.subr.bf16.mxu0 0
    %4105 = vmatpush1.bf16.msra.mxu0 0
    %4106 = vmatprep.subr.bf16.mxu0 0
    %4107 = vmatpush1.bf16.msra.mxu0 0
    %4108 = vmatprep.subr.bf16.mxu0 0
    %4109 = vmatpush1.bf16.msra.mxu0 0
    %4110 = vmatprep.subr.bf16.mxu0 0
    %4111 = vmatpush1.bf16.msra.mxu0 %v4094
    %4112 = vmatprep.subr.bf16.mxu0 0
    %4113 = vmatpush2.bf16.msra.mxu0 0
    %4114 = vmatprep.subr.bf16.mxu0 0
    %4115 = vmatpush2.bf16.msra.mxu0 0
    %4116 = vmatprep.subr.bf16.mxu0 0
    %4117 = vmatpush2.bf16.msra.mxu0 0
    %4118 = vmatprep.subr.bf16.mxu0 0
    %4119 = vmatpush2.bf16.msra.mxu0 0
    %4120 = vmatprep.subr.bf16.mxu0 0
    %4121 = vmatpush2.bf16.msra.mxu0 0
    %4122 = vmatprep.subr.bf16.mxu0 0
    %4123 = vmatpush2.bf16.msra.mxu0 0
    %4124 = vmatprep.subr.bf16.mxu0 0
    %4125 = vmatpush2.bf16.msra.mxu0 0
    %4126 = vmatprep.subr.bf16.mxu0 0
    %4127 = vmatpush2.bf16.msra.mxu0 0
    %4128 = vmatprep.mubr.bf16.mxu0 0
    %4129 = vmatmul.mubr.bf16.gmra.mxu0 %v4091
    %v4130 = vpop.f32.mrf.mxu0
    %v4131 = vadd.f32 0.0, %v4130
    %v4132 = vpop.f32.mrf.mxu0
    %v4133 = vpop.f32.mrf.mxu0
    %v4134 = vpop.f32.mrf.mxu0
    %4135 = vdwg.mxu0
    %4137 = vrot.lane.b32.xlu0 %v2727, 32
    %v4138 = vpop.permute.xlu0 %4137
    %v4140 = vsel %vm2329, %v2711, 0
    %v4143 = vsel %vm2735, %v4138, 0
    %4145 = vmatprep.subr.bf16.mxu0 0
    %4146 = vmatpush1.bf16.msra.mxu0 0
    %4147 = vmatprep.subr.bf16.mxu0 0
    %4148 = vmatpush1.bf16.msra.mxu0 0
    %4149 = vmatprep.subr.bf16.mxu0 0
    %4150 = vmatpush1.bf16.msra.mxu0 0
    %4151 = vmatprep.subr.bf16.mxu0 0
    %4152 = vmatpush1.bf16.msra.mxu0 0
    %4153 = vmatprep.subr.bf16.mxu0 0
    %4154 = vmatpush1.bf16.msra.mxu0 0
    %4155 = vmatprep.subr.bf16.mxu0 0
    %4156 = vmatpush1.bf16.msra.mxu0 0
    %4157 = vmatprep.subr.bf16.mxu0 0
    %4158 = vmatpush1.bf16.msra.mxu0 0
    %4159 = vmatprep.subr.bf16.mxu0 0
    %4160 = vmatpush1.bf16.msra.mxu0 %v4143
    %4161 = vmatprep.subr.bf16.mxu0 0
    %4162 = vmatpush2.bf16.msra.mxu0 0
    %4163 = vmatprep.subr.bf16.mxu0 0
    %4164 = vmatpush2.bf16.msra.mxu0 0
    %4165 = vmatprep.subr.bf16.mxu0 0
    %4166 = vmatpush2.bf16.msra.mxu0 0
    %4167 = vmatprep.subr.bf16.mxu0 0
    %4168 = vmatpush2.bf16.msra.mxu0 0
    %4169 = vmatprep.subr.bf16.mxu0 0
    %4170 = vmatpush2.bf16.msra.mxu0 0
    %4171 = vmatprep.subr.bf16.mxu0 0
    %4172 = vmatpush2.bf16.msra.mxu0 0
    %4173 = vmatprep.subr.bf16.mxu0 0
    %4174 = vmatpush2.bf16.msra.mxu0 0
    %4175 = vmatprep.subr.bf16.mxu0 0
    %4176 = vmatpush2.bf16.msra.mxu0 0
    %4177 = vmatprep.mubr.bf16.mxu0 0
    %4178 = vmatmul.mubr.bf16.gmra.mxu0 %v4140
    %v4179 = vpop.f32.mrf.mxu0
    %v4180 = vadd.f32 0.0, %v4179
    %v4181 = vpop.f32.mrf.mxu0
    %v4182 = vpop.f32.mrf.mxu0
    %v4183 = vpop.f32.mrf.mxu0
    %4184 = vdwg.mxu0
    %4186 = vrot.lane.b32.xlu0 %v2728, 32
    %v4187 = vpop.permute.xlu0 %4186
    %v4189 = vsel %vm2329, %v2712, 0
    %v4192 = vsel %vm2735, %v4187, 0
    %4194 = vmatprep.subr.bf16.mxu0 0
    %4195 = vmatpush1.bf16.msra.mxu0 0
    %4196 = vmatprep.subr.bf16.mxu0 0
    %4197 = vmatpush1.bf16.msra.mxu0 0
    %4198 = vmatprep.subr.bf16.mxu0 0
    %4199 = vmatpush1.bf16.msra.mxu0 0
    %4200 = vmatprep.subr.bf16.mxu0 0
    %4201 = vmatpush1.bf16.msra.mxu0 0
    %4202 = vmatprep.subr.bf16.mxu0 0
    %4203 = vmatpush1.bf16.msra.mxu0 0
    %4204 = vmatprep.subr.bf16.mxu0 0
    %4205 = vmatpush1.bf16.msra.mxu0 0
    %4206 = vmatprep.subr.bf16.mxu0 0
    %4207 = vmatpush1.bf16.msra.mxu0 0
    %4208 = vmatprep.subr.bf16.mxu0 0
    %4209 = vmatpush1.bf16.msra.mxu0 %v4192
    %4210 = vmatprep.subr.bf16.mxu0 0
    %4211 = vmatpush2.bf16.msra.mxu0 0
    %4212 = vmatprep.subr.bf16.mxu0 0
    %4213 = vmatpush2.bf16.msra.mxu0 0
    %4214 = vmatprep.subr.bf16.mxu0 0
    %4215 = vmatpush2.bf16.msra.mxu0 0
    %4216 = vmatprep.subr.bf16.mxu0 0
    %4217 = vmatpush2.bf16.msra.mxu0 0
    %4218 = vmatprep.subr.bf16.mxu0 0
    %4219 = vmatpush2.bf16.msra.mxu0 0
    %4220 = vmatprep.subr.bf16.mxu0 0
    %4221 = vmatpush2.bf16.msra.mxu0 0
    %4222 = vmatprep.subr.bf16.mxu0 0
    %4223 = vmatpush2.bf16.msra.mxu0 0
    %4224 = vmatprep.subr.bf16.mxu0 0
    %4225 = vmatpush2.bf16.msra.mxu0 0
    %4226 = vmatprep.mubr.bf16.mxu0 0
    %4227 = vmatmul.mubr.bf16.gmra.mxu0 %v4189
    %v4228 = vpop.f32.mrf.mxu0
    %v4229 = vadd.f32 0.0, %v4228
    %v4230 = vpop.f32.mrf.mxu0
    %v4231 = vpop.f32.mrf.mxu0
    %v4232 = vpop.f32.mrf.mxu0
    %4233 = vdwg.mxu0
    %4235 = vrot.lane.b32.xlu0 %v2729, 32
    %v4236 = vpop.permute.xlu0 %4235
    %v4238 = vsel %vm2329, %v2713, 0
    %v4241 = vsel %vm2735, %v4236, 0
    %4243 = vmatprep.subr.bf16.mxu0 0
    %4244 = vmatpush1.bf16.msra.mxu0 0
    %4245 = vmatprep.subr.bf16.mxu0 0
    %4246 = vmatpush1.bf16.msra.mxu0 0
    %4247 = vmatprep.subr.bf16.mxu0 0
    %4248 = vmatpush1.bf16.msra.mxu0 0
    %4249 = vmatprep.subr.bf16.mxu0 0
    %4250 = vmatpush1.bf16.msra.mxu0 0
    %4251 = vmatprep.subr.bf16.mxu0 0
    %4252 = vmatpush1.bf16.msra.mxu0 0
    %4253 = vmatprep.subr.bf16.mxu0 0
    %4254 = vmatpush1.bf16.msra.mxu0 0
    %4255 = vmatprep.subr.bf16.mxu0 0
    %4256 = vmatpush1.bf16.msra.mxu0 0
    %4257 = vmatprep.subr.bf16.mxu0 0
    %4258 = vmatpush1.bf16.msra.mxu0 %v4241
    %4259 = vmatprep.subr.bf16.mxu0 0
    %4260 = vmatpush2.bf16.msra.mxu0 0
    %4261 = vmatprep.subr.bf16.mxu0 0
    %4262 = vmatpush2.bf16.msra.mxu0 0
    %4263 = vmatprep.subr.bf16.mxu0 0
    %4264 = vmatpush2.bf16.msra.mxu0 0
    %4265 = vmatprep.subr.bf16.mxu0 0
    %4266 = vmatpush2.bf16.msra.mxu0 0
    %4267 = vmatprep.subr.bf16.mxu0 0
    %4268 = vmatpush2.bf16.msra.mxu0 0
    %4269 = vmatprep.subr.bf16.mxu0 0
    %4270 = vmatpush2.bf16.msra.mxu0 0
    %4271 = vmatprep.subr.bf16.mxu0 0
    %4272 = vmatpush2.bf16.msra.mxu0 0
    %4273 = vmatprep.subr.bf16.mxu0 0
    %4274 = vmatpush2.bf16.msra.mxu0 0
    %4275 = vmatprep.mubr.bf16.mxu0 0
    %4276 = vmatmul.mubr.bf16.gmra.mxu0 %v4238
    %v4277 = vpop.f32.mrf.mxu0
    %v4278 = vadd.f32 0.0, %v4277
    %v4279 = vpop.f32.mrf.mxu0
    %v4280 = vpop.f32.mrf.mxu0
    %v4281 = vpop.f32.mrf.mxu0
    %4282 = vdwg.mxu0
    %4299 = vrot.lane.b32.xlu0 %v3543, 24
    %v4300 = vpop.permute.xlu0 %4299
    %4301 = vrot.lane.b32.xlu0 %v3592, 24
    %v4302 = vpop.permute.xlu0 %4301
    %4303 = vrot.lane.b32.xlu0 %v3641, 24
    %v4304 = vpop.permute.xlu0 %4303
    %4305 = vrot.lane.b32.xlu0 %v3690, 24
    %v4306 = vpop.permute.xlu0 %4305
    %4307 = vrot.lane.b32.xlu0 %v3739, 24
    %v4308 = vpop.permute.xlu0 %4307
    %4309 = vrot.lane.b32.xlu0 %v3788, 24
    %v4310 = vpop.permute.xlu0 %4309
    %4311 = vrot.lane.b32.xlu0 %v3837, 24
    %v4312 = vpop.permute.xlu0 %4311
    %4313 = vrot.lane.b32.xlu0 %v3886, 24
    %v4314 = vpop.permute.xlu0 %4313
    %4315 = vrot.lane.b32.xlu0 %v3935, 24
    %v4316 = vpop.permute.xlu0 %4315
    %4317 = vrot.lane.b32.xlu0 %v3984, 24
    %v4318 = vpop.permute.xlu0 %4317
    %4319 = vrot.lane.b32.xlu0 %v4033, 24
    %v4320 = vpop.permute.xlu0 %4319
    %4321 = vrot.lane.b32.xlu0 %v4082, 24
    %v4322 = vpop.permute.xlu0 %4321
    %4323 = vrot.lane.b32.xlu0 %v4131, 24
    %v4324 = vpop.permute.xlu0 %4323
    %4325 = vrot.lane.b32.xlu0 %v4180, 24
    %v4326 = vpop.permute.xlu0 %4325
    %4327 = vrot.lane.b32.xlu0 %v4229, 24
    %v4328 = vpop.permute.xlu0 %4327
    %4329 = vrot.lane.b32.xlu0 %v4278, 24
    %v4330 = vpop.permute.xlu0 %4329
    %v4347 = vsel %vm763, %v2774, %v4300
    %v4348 = vsel %vm763, %v2822, %v4302
    %v4349 = vsel %vm763, %v2870, %v4304
    %v4350 = vsel %vm763, %v2918, %v4306
    %v4351 = vsel %vm763, %v2966, %v4308
    %v4352 = vsel %vm763, %v3014, %v4310
    %v4353 = vsel %vm763, %v3062, %v4312
    %v4354 = vsel %vm763, %v3110, %v4314
    %v4355 = vsel %vm763, %v3158, %v4316
    %v4356 = vsel %vm763, %v3206, %v4318
    %v4357 = vsel %vm763, %v3254, %v4320
    %v4358 = vsel %vm763, %v3302, %v4322
    %v4359 = vsel %vm763, %v3350, %v4324
    %v4360 = vsel %vm763, %v3398, %v4326
    %v4361 = vsel %vm763, %v3446, %v4328
    %v4362 = vsel %vm763, %v3494, %v4330
    %v4363 = vpack.c.bf16 %v4348, %v4347
    %v4364 = vpack.c.bf16 %v4350, %v4349
    %v4365 = vpack.c.bf16 %v4352, %v4351
    %v4366 = vpack.c.bf16 %v4354, %v4353
    %v4367 = vpack.c.bf16 %v4356, %v4355
    %v4368 = vpack.c.bf16 %v4358, %v4357
    %v4369 = vpack.c.bf16 %v4360, %v4359
    %v4370 = vpack.c.bf16 %v4362, %v4361
    %v4371 = vld [vmem:[#allocation5] sm:$0xff]
    %v4372 = vld [vmem:[#allocation5 + $0x8] sm:$0xff]
    %v4373 = vld [vmem:[#allocation5 + $0x10] sm:$0xff]
    %v4374 = vld [vmem:[#allocation5 + $0x18] sm:$0xff]
    %v4375 = vld [vmem:[#allocation5 + $0x20] sm:$0xff]
    %v4376 = vld [vmem:[#allocation5 + $0x28] sm:$0xff]
    %v4377 = vpack.c.bf16 %v4372, %v4371
    %v4378 = vpack.c.bf16 %v4374, %v4373
    %v4379 = vpack.c.bf16 %v4376, %v4375
    %v4380 = vld [vmem:[#allocation2 + $0x3] ss:$0 sm:$0xff]
    %v4382 = vsel %vm381, %v4363, 0
    %v4385 = vsel %vm381, %v4364, 0
    %v4388 = vsel %vm381, %v4365, 0
    %v4391 = vsel %vm381, %v4366, 0
    %v4394 = vsel %vm381, %v4367, 0
    %v4397 = vsel %vm381, %v4368, 0
    %v4400 = vsel %vm381, %v4369, 0
    %v4403 = vsel %vm381, %v4370, 0
    %4405 = vmatprep.subr.bf16.mxu0 0
    %4406 = vmatpush1.bf16.msra.mxu0 0
    %4407 = vmatprep.subr.bf16.mxu0 0
    %4408 = vmatpush1.bf16.msra.mxu0 0
    %4409 = vmatprep.subr.bf16.mxu0 0
    %4410 = vmatpush1.bf16.msra.mxu0 0
    %4411 = vmatprep.subr.bf16.mxu0 0
    %4412 = vmatpush1.bf16.msra.mxu0 0
    %4413 = vmatprep.subr.bf16.mxu0 0
    %4414 = vmatpush1.bf16.msra.mxu0 0
    %4415 = vmatprep.subr.bf16.mxu0 0
    %4416 = vmatpush1.bf16.msra.mxu0 %v4379
    %4417 = vmatprep.subr.bf16.mxu0 0
    %4418 = vmatpush1.bf16.msra.mxu0 %v4378
    %4419 = vmatprep.subr.bf16.mxu0 0
    %4420 = vmatpush1.bf16.msra.mxu0 %v4377
    %4421 = vmatprep.subr.bf16.mxu0 0
    %4422 = vmatpush2.bf16.msra.mxu0 0
    %4423 = vmatprep.subr.bf16.mxu0 0
    %4424 = vmatpush2.bf16.msra.mxu0 0
    %4425 = vmatprep.subr.bf16.mxu0 0
    %4426 = vmatpush2.bf16.msra.mxu0 0
    %4427 = vmatprep.subr.bf16.mxu0 0
    %4428 = vmatpush2.bf16.msra.mxu0 0
    %4429 = vmatprep.subr.bf16.mxu0 0
    %4430 = vmatpush2.bf16.msra.mxu0 0
    %4431 = vmatprep.subr.bf16.mxu0 0
    %4432 = vmatpush2.bf16.msra.mxu0 0
    %4433 = vmatprep.subr.bf16.mxu0 0
    %4434 = vmatpush2.bf16.msra.mxu0 0
    %4435 = vmatprep.subr.bf16.mxu0 0
    %4436 = vmatpush2.bf16.msra.mxu0 0
    %4437 = vmatprep.mubr.bf16.mxu0 0
    %4438 = vmatmul.mubr.bf16.gmra.mxu0 %v4382
    %v4439 = vpop.f32.mrf.mxu0
    %v4440 = vadd.f32 %v4380, %v4439
    %v4441 = vpop.f32.mrf.mxu0
    %v4442 = vpop.f32.mrf.mxu0
    %v4443 = vadd.f32 %v4380, %v4442
    %v4444 = vpop.f32.mrf.mxu0
    %4445 = vmatprep.mubr.bf16.mxu0 0
    %4446 = vmatmul.mubr.bf16.gmra.mxu0 %v4385
    %v4447 = vpop.f32.mrf.mxu0
    %v4448 = vadd.f32 %v4380, %v4447
    %v4449 = vpop.f32.mrf.mxu0
    %v4450 = vpop.f32.mrf.mxu0
    %v4451 = vadd.f32 %v4380, %v4450
    %v4452 = vpop.f32.mrf.mxu0
    %4453 = vmatprep.mubr.bf16.mxu0 0
    %4454 = vmatmul.mubr.bf16.gmra.mxu0 %v4388
    %v4455 = vpop.f32.mrf.mxu0
    %v4456 = vadd.f32 %v4380, %v4455
    %v4457 = vpop.f32.mrf.mxu0
    %v4458 = vpop.f32.mrf.mxu0
    %v4459 = vadd.f32 %v4380, %v4458
    %v4460 = vpop.f32.mrf.mxu0
    %4461 = vmatprep.mubr.bf16.mxu0 0
    %4462 = vmatmul.mubr.bf16.gmra.mxu0 %v4391
    %v4463 = vpop.f32.mrf.mxu0
    %v4464 = vadd.f32 %v4380, %v4463
    %v4465 = vpop.f32.mrf.mxu0
    %v4466 = vpop.f32.mrf.mxu0
    %v4467 = vadd.f32 %v4380, %v4466
    %v4468 = vpop.f32.mrf.mxu0
    %4469 = vmatprep.mubr.bf16.mxu0 0
    %4470 = vmatmul.mubr.bf16.gmra.mxu0 %v4394
    %v4471 = vpop.f32.mrf.mxu0
    %v4472 = vadd.f32 %v4380, %v4471
    %v4473 = vpop.f32.mrf.mxu0
    %v4474 = vpop.f32.mrf.mxu0
    %v4475 = vadd.f32 %v4380, %v4474
    %v4476 = vpop.f32.mrf.mxu0
    %4477 = vmatprep.mubr.bf16.mxu0 0
    %4478 = vmatmul.mubr.bf16.gmra.mxu0 %v4397
    %v4479 = vpop.f32.mrf.mxu0
    %v4480 = vadd.f32 %v4380, %v4479
    %v4481 = vpop.f32.mrf.mxu0
    %v4482 = vpop.f32.mrf.mxu0
    %v4483 = vadd.f32 %v4380, %v4482
    %v4484 = vpop.f32.mrf.mxu0
    %4485 = vmatprep.mubr.bf16.mxu0 0
    %4486 = vmatmul.mubr.bf16.gmra.mxu0 %v4400
    %v4487 = vpop.f32.mrf.mxu0
    %v4488 = vadd.f32 %v4380, %v4487
    %v4489 = vpop.f32.mrf.mxu0
    %v4490 = vpop.f32.mrf.mxu0
    %v4491 = vadd.f32 %v4380, %v4490
    %v4492 = vpop.f32.mrf.mxu0
    %4493 = vmatprep.mubr.bf16.mxu0 0
    %4494 = vmatmul.mubr.bf16.gmra.mxu0 %v4403
    %v4495 = vpop.f32.mrf.mxu0
    %v4496 = vadd.f32 %v4380, %v4495
    %v4497 = vpop.f32.mrf.mxu0
    %v4498 = vpop.f32.mrf.mxu0
    %v4499 = vadd.f32 %v4380, %v4498
    %v4500 = vpop.f32.mrf.mxu0
    %4501 = vdwg.mxu0
    %v4502 = vadd.f32 %v311, %v4440
    %v4503 = vadd.f32 %v313, %v4443
    %v4504 = vadd.f32 %v315, %v4448
    %v4505 = vadd.f32 %v317, %v4451
    %v4506 = vadd.f32 %v319, %v4456
    %v4507 = vadd.f32 %v321, %v4459
    %v4508 = vadd.f32 %v323, %v4464
    %v4509 = vadd.f32 %v325, %v4467
    %v4510 = vadd.f32 %v327, %v4472
    %v4511 = vadd.f32 %v329, %v4475
    %v4512 = vadd.f32 %v331, %v4480
    %v4513 = vadd.f32 %v333, %v4483
    %v4514 = vadd.f32 %v335, %v4488
    %v4515 = vadd.f32 %v337, %v4491
    %v4516 = vadd.f32 %v339, %v4496
    %v4517 = vadd.f32 %v341, %v4499
    %v4518 = vsel %vm381, %v4502, 0.0
    %4519 = vadd.xlane.f32.xlu0 %v4518
    %v4520 = vpop.xlane.xlu0 %4519
    %v4521 = vsel %vm381, %v4503, 0.0
    %4522 = vadd.xlane.f32.xlu0 %v4521
    %v4523 = vpop.xlane.xlu0 %4522
    %v4524 = vsel %vm381, %v4504, 0.0
    %4525 = vadd.xlane.f32.xlu0 %v4524
    %v4526 = vpop.xlane.xlu0 %4525
    %v4527 = vsel %vm381, %v4505, 0.0
    %4528 = vadd.xlane.f32.xlu0 %v4527
    %v4529 = vpop.xlane.xlu0 %4528
    %v4530 = vsel %vm381, %v4506, 0.0
    %4531 = vadd.xlane.f32.xlu0 %v4530
    %v4532 = vpop.xlane.xlu0 %4531
    %v4533 = vsel %vm381, %v4507, 0.0
    %4534 = vadd.xlane.f32.xlu0 %v4533
    %v4535 = vpop.xlane.xlu0 %4534
    %v4536 = vsel %vm381, %v4508, 0.0
    %4537 = vadd.xlane.f32.xlu0 %v4536
    %v4538 = vpop.xlane.xlu0 %4537
    %v4539 = vsel %vm381, %v4509, 0.0
    %4540 = vadd.xlane.f32.xlu0 %v4539
    %v4541 = vpop.xlane.xlu0 %4540
    %v4542 = vsel %vm381, %v4510, 0.0
    %4543 = vadd.xlane.f32.xlu0 %v4542
    %v4544 = vpop.xlane.xlu0 %4543
    %v4545 = vsel %vm381, %v4511, 0.0
    %4546 = vadd.xlane.f32.xlu0 %v4545
    %v4547 = vpop.xlane.xlu0 %4546
    %v4548 = vsel %vm381, %v4512, 0.0
    %4549 = vadd.xlane.f32.xlu0 %v4548
    %v4550 = vpop.xlane.xlu0 %4549
    %v4551 = vsel %vm381, %v4513, 0.0
    %4552 = vadd.xlane.f32.xlu0 %v4551
    %v4553 = vpop.xlane.xlu0 %4552
    %v4554 = vsel %vm381, %v4514, 0.0
    %4555 = vadd.xlane.f32.xlu0 %v4554
    %v4556 = vpop.xlane.xlu0 %4555
    %v4557 = vsel %vm381, %v4515, 0.0
    %4558 = vadd.xlane.f32.xlu0 %v4557
    %v4559 = vpop.xlane.xlu0 %4558
    %v4560 = vsel %vm381, %v4516, 0.0
    %4561 = vadd.xlane.f32.xlu0 %v4560
    %v4562 = vpop.xlane.xlu0 %4561
    %v4563 = vsel %vm381, %v4517, 0.0
    %4564 = vadd.xlane.f32.xlu0 %v4563
    %v4565 = vpop.xlane.xlu0 %4564
    %v4566 = vrcp.pop 48.0
    %v4567 = vmul.f32 %v4520, %v4566
    %v4568 = vmul.f32 %v4523, %v4566
    %v4569 = vmul.f32 %v4526, %v4566
    %v4570 = vmul.f32 %v4529, %v4566
    %v4571 = vmul.f32 %v4532, %v4566
    %v4572 = vmul.f32 %v4535, %v4566
    %v4573 = vmul.f32 %v4538, %v4566
    %v4574 = vmul.f32 %v4541, %v4566
    %v4575 = vmul.f32 %v4544, %v4566
    %v4576 = vmul.f32 %v4547, %v4566
    %v4577 = vmul.f32 %v4550, %v4566
    %v4578 = vmul.f32 %v4553, %v4566
    %v4579 = vmul.f32 %v4556, %v4566
    %v4580 = vmul.f32 %v4559, %v4566
    %v4581 = vmul.f32 %v4562, %v4566
    %v4582 = vmul.f32 %v4565, %v4566
    %v4583 = vsub.f32 %v4502, %v4567
    %v4584 = vsub.f32 %v4503, %v4568
    %v4585 = vsub.f32 %v4504, %v4569
    %v4586 = vsub.f32 %v4505, %v4570
    %v4587 = vsub.f32 %v4506, %v4571
    %v4588 = vsub.f32 %v4507, %v4572
    %v4589 = vsub.f32 %v4508, %v4573
    %v4590 = vsub.f32 %v4509, %v4574
    %v4591 = vsub.f32 %v4510, %v4575
    %v4592 = vsub.f32 %v4511, %v4576
    %v4593 = vsub.f32 %v4512, %v4577
    %v4594 = vsub.f32 %v4513, %v4578
    %v4595 = vsub.f32 %v4514, %v4579
    %v4596 = vsub.f32 %v4515, %v4580
    %v4597 = vsub.f32 %v4516, %v4581
    %v4598 = vsub.f32 %v4517, %v4582
    %v4599 = vmul.f32 %v4583, %v4583
    %v4600 = vmul.f32 %v4584, %v4584
    %v4601 = vmul.f32 %v4585, %v4585
    %v4602 = vmul.f32 %v4586, %v4586
    %v4603 = vmul.f32 %v4587, %v4587
    %v4604 = vmul.f32 %v4588, %v4588
    %v4605 = vmul.f32 %v4589, %v4589
    %v4606 = vmul.f32 %v4590, %v4590
    %v4607 = vmul.f32 %v4591, %v4591
    %v4608 = vmul.f32 %v4592, %v4592
    %v4609 = vmul.f32 %v4593, %v4593
    %v4610 = vmul.f32 %v4594, %v4594
    %v4611 = vmul.f32 %v4595, %v4595
    %v4612 = vmul.f32 %v4596, %v4596
    %v4613 = vmul.f32 %v4597, %v4597
    %v4614 = vmul.f32 %v4598, %v4598
    %v4615 = vsel %vm381, %v4599, 0.0
    %4616 = vadd.xlane.f32.xlu0 %v4615
    %v4617 = vpop.xlane.xlu0 %4616
    %v4618 = vsel %vm381, %v4600, 0.0
    %4619 = vadd.xlane.f32.xlu0 %v4618
    %v4620 = vpop.xlane.xlu0 %4619
    %v4621 = vsel %vm381, %v4601, 0.0
    %4622 = vadd.xlane.f32.xlu0 %v4621
    %v4623 = vpop.xlane.xlu0 %4622
    %v4624 = vsel %vm381, %v4602, 0.0
    %4625 = vadd.xlane.f32.xlu0 %v4624
    %v4626 = vpop.xlane.xlu0 %4625
    %v4627 = vsel %vm381, %v4603, 0.0
    %4628 = vadd.xlane.f32.xlu0 %v4627
    %v4629 = vpop.xlane.xlu0 %4628
    %v4630 = vsel %vm381, %v4604, 0.0
    %4631 = vadd.xlane.f32.xlu0 %v4630
    %v4632 = vpop.xlane.xlu0 %4631
    %v4633 = vsel %vm381, %v4605, 0.0
    %4634 = vadd.xlane.f32.xlu0 %v4633
    %v4635 = vpop.xlane.xlu0 %4634
    %v4636 = vsel %vm381, %v4606, 0.0
    %4637 = vadd.xlane.f32.xlu0 %v4636
    %v4638 = vpop.xlane.xlu0 %4637
    %v4639 = vsel %vm381, %v4607, 0.0
    %4640 = vadd.xlane.f32.xlu0 %v4639
    %v4641 = vpop.xlane.xlu0 %4640
    %v4642 = vsel %vm381, %v4608, 0.0
    %4643 = vadd.xlane.f32.xlu0 %v4642
    %v4644 = vpop.xlane.xlu0 %4643
    %v4645 = vsel %vm381, %v4609, 0.0
    %4646 = vadd.xlane.f32.xlu0 %v4645
    %v4647 = vpop.xlane.xlu0 %4646
    %v4648 = vsel %vm381, %v4610, 0.0
    %4649 = vadd.xlane.f32.xlu0 %v4648
    %v4650 = vpop.xlane.xlu0 %4649
    %v4651 = vsel %vm381, %v4611, 0.0
    %4652 = vadd.xlane.f32.xlu0 %v4651
    %v4653 = vpop.xlane.xlu0 %4652
    %v4654 = vsel %vm381, %v4612, 0.0
    %4655 = vadd.xlane.f32.xlu0 %v4654
    %v4656 = vpop.xlane.xlu0 %4655
    %v4657 = vsel %vm381, %v4613, 0.0
    %4658 = vadd.xlane.f32.xlu0 %v4657
    %v4659 = vpop.xlane.xlu0 %4658
    %v4660 = vsel %vm381, %v4614, 0.0
    %4661 = vadd.xlane.f32.xlu0 %v4660
    %v4662 = vpop.xlane.xlu0 %4661
    %v4663 = vmul.f32 %v4617, %v4566
    %v4664 = vmul.f32 %v4620, %v4566
    %v4665 = vmul.f32 %v4623, %v4566
    %v4666 = vmul.f32 %v4626, %v4566
    %v4667 = vmul.f32 %v4629, %v4566
    %v4668 = vmul.f32 %v4632, %v4566
    %v4669 = vmul.f32 %v4635, %v4566
    %v4670 = vmul.f32 %v4638, %v4566
    %v4671 = vmul.f32 %v4641, %v4566
    %v4672 = vmul.f32 %v4644, %v4566
    %v4673 = vmul.f32 %v4647, %v4566
    %v4674 = vmul.f32 %v4650, %v4566
    %v4675 = vmul.f32 %v4653, %v4566
    %v4676 = vmul.f32 %v4656, %v4566
    %v4677 = vmul.f32 %v4659, %v4566
    %v4678 = vmul.f32 %v4662, %v4566
    %v4679 = vadd.f32 %v4663, 1e-05
    %v4680 = vadd.f32 %v4664, 1e-05
    %v4681 = vadd.f32 %v4665, 1e-05
    %v4682 = vadd.f32 %v4666, 1e-05
    %v4683 = vadd.f32 %v4667, 1e-05
    %v4684 = vadd.f32 %v4668, 1e-05
    %v4685 = vadd.f32 %v4669, 1e-05
    %v4686 = vadd.f32 %v4670, 1e-05
    %v4687 = vadd.f32 %v4671, 1e-05
    %v4688 = vadd.f32 %v4672, 1e-05
    %v4689 = vadd.f32 %v4673, 1e-05
    %v4690 = vadd.f32 %v4674, 1e-05
    %v4691 = vadd.f32 %v4675, 1e-05
    %v4692 = vadd.f32 %v4676, 1e-05
    %v4693 = vadd.f32 %v4677, 1e-05
    %v4694 = vadd.f32 %v4678, 1e-05
    %v4695 = vrsqrt.pop %v4679
    %v4696 = vrsqrt.pop %v4680
    %v4697 = vrsqrt.pop %v4681
    %v4698 = vrsqrt.pop %v4682
    %v4699 = vrsqrt.pop %v4683
    %v4700 = vrsqrt.pop %v4684
    %v4701 = vrsqrt.pop %v4685
    %v4702 = vrsqrt.pop %v4686
    %v4703 = vrsqrt.pop %v4687
    %v4704 = vrsqrt.pop %v4688
    %v4705 = vrsqrt.pop %v4689
    %v4706 = vrsqrt.pop %v4690
    %v4707 = vrsqrt.pop %v4691
    %v4708 = vrsqrt.pop %v4692
    %v4709 = vrsqrt.pop %v4693
    %v4710 = vrsqrt.pop %v4694
    %v4711 = vmul.f32 %v4583, %v4695
    %v4712 = vmul.f32 %v4584, %v4696
    %v4713 = vmul.f32 %v4585, %v4697
    %v4714 = vmul.f32 %v4586, %v4698
    %v4715 = vmul.f32 %v4587, %v4699
    %v4716 = vmul.f32 %v4588, %v4700
    %v4717 = vmul.f32 %v4589, %v4701
    %v4718 = vmul.f32 %v4590, %v4702
    %v4719 = vmul.f32 %v4591, %v4703
    %v4720 = vmul.f32 %v4592, %v4704
    %v4721 = vmul.f32 %v4593, %v4705
    %v4722 = vmul.f32 %v4594, %v4706
    %v4723 = vmul.f32 %v4595, %v4707
    %v4724 = vmul.f32 %v4596, %v4708
    %v4725 = vmul.f32 %v4597, %v4709
    %v4726 = vmul.f32 %v4598, %v4710
    %v4727 = vld [vmem:[#allocation2 + $0x4] ss:$0 sm:$0xff]
    %v4728 = vmul.f32 %v4711, %v4727
    %v4729 = vmul.f32 %v4712, %v4727
    %v4730 = vmul.f32 %v4713, %v4727
    %v4731 = vmul.f32 %v4714, %v4727
    %v4732 = vmul.f32 %v4715, %v4727
    %v4733 = vmul.f32 %v4716, %v4727
    %v4734 = vmul.f32 %v4717, %v4727
    %v4735 = vmul.f32 %v4718, %v4727
    %v4736 = vmul.f32 %v4719, %v4727
    %v4737 = vmul.f32 %v4720, %v4727
    %v4738 = vmul.f32 %v4721, %v4727
    %v4739 = vmul.f32 %v4722, %v4727
    %v4740 = vmul.f32 %v4723, %v4727
    %v4741 = vmul.f32 %v4724, %v4727
    %v4742 = vmul.f32 %v4725, %v4727
    %v4743 = vmul.f32 %v4726, %v4727
    %v4744 = vld [vmem:[#allocation2 + $0x5] ss:$0 sm:$0xff]
    %v4745 = vadd.f32 %v4728, %v4744
    %v4746 = vadd.f32 %v4729, %v4744
    %v4747 = vadd.f32 %v4730, %v4744
    %v4748 = vadd.f32 %v4731, %v4744
    %v4749 = vadd.f32 %v4732, %v4744
    %v4750 = vadd.f32 %v4733, %v4744
    %v4751 = vadd.f32 %v4734, %v4744
    %v4752 = vadd.f32 %v4735, %v4744
    %v4753 = vadd.f32 %v4736, %v4744
    %v4754 = vadd.f32 %v4737, %v4744
    %v4755 = vadd.f32 %v4738, %v4744
    %v4756 = vadd.f32 %v4739, %v4744
    %v4757 = vadd.f32 %v4740, %v4744
    %v4758 = vadd.f32 %v4741, %v4744
    %v4759 = vadd.f32 %v4742, %v4744
    %v4760 = vadd.f32 %v4743, %v4744
    %v4761 = vpack.c.bf16 %v4746, %v4745
    %v4762 = vpack.c.bf16 %v4748, %v4747
    %v4763 = vpack.c.bf16 %v4750, %v4749
    %v4764 = vpack.c.bf16 %v4752, %v4751
    %v4765 = vpack.c.bf16 %v4754, %v4753
    %v4766 = vpack.c.bf16 %v4756, %v4755
    %v4767 = vpack.c.bf16 %v4758, %v4757
    %v4768 = vpack.c.bf16 %v4760, %v4759
    %v4769 = vld [vmem:[#allocation7] sm:$0xff]
    %v4770 = vld [vmem:[#allocation7 + $0x8] sm:$0xff]
    %v4771 = vld [vmem:[#allocation7 + $0x10] sm:$0xff]
    %v4772 = vld [vmem:[#allocation7 + $0x18] sm:$0xff]
    %v4773 = vld [vmem:[#allocation7 + $0x20] sm:$0xff]
    %v4774 = vld [vmem:[#allocation7 + $0x28] sm:$0xff]
    %v4775 = vpack.c.bf16 %v4770, %v4769
    %v4776 = vpack.c.bf16 %v4772, %v4771
    %v4777 = vpack.c.bf16 %v4774, %v4773
    %v4778 = vld [vmem:[#allocation2 + $0x6] ss:$0 sm:$0xff]
    %v4780 = vsel %vm381, %v4761, 0
    %v4783 = vsel %vm381, %v4762, 0
    %v4786 = vsel %vm381, %v4763, 0
    %v4789 = vsel %vm381, %v4764, 0
    %v4792 = vsel %vm381, %v4765, 0
    %v4795 = vsel %vm381, %v4766, 0
    %v4798 = vsel %vm381, %v4767, 0
    %v4801 = vsel %vm381, %v4768, 0
    %4803 = vmatprep.subr.bf16.mxu0 0
    %4804 = vmatpush1.bf16.msra.mxu0 0
    %4805 = vmatprep.subr.bf16.mxu0 0
    %4806 = vmatpush1.bf16.msra.mxu0 0
    %4807 = vmatprep.subr.bf16.mxu0 0
    %4808 = vmatpush1.bf16.msra.mxu0 0
    %4809 = vmatprep.subr.bf16.mxu0 0
    %4810 = vmatpush1.bf16.msra.mxu0 0
    %4811 = vmatprep.subr.bf16.mxu0 0
    %4812 = vmatpush1.bf16.msra.mxu0 0
    %4813 = vmatprep.subr.bf16.mxu0 0
    %4814 = vmatpush1.bf16.msra.mxu0 %v4777
    %4815 = vmatprep.subr.bf16.mxu0 0
    %4816 = vmatpush1.bf16.msra.mxu0 %v4776
    %4817 = vmatprep.subr.bf16.mxu0 0
    %4818 = vmatpush1.bf16.msra.mxu0 %v4775
    %4819 = vmatprep.subr.bf16.mxu0 0
    %4820 = vmatpush2.bf16.msra.mxu0 0
    %4821 = vmatprep.subr.bf16.mxu0 0
    %4822 = vmatpush2.bf16.msra.mxu0 0
    %4823 = vmatprep.subr.bf16.mxu0 0
    %4824 = vmatpush2.bf16.msra.mxu0 0
    %4825 = vmatprep.subr.bf16.mxu0 0
    %4826 = vmatpush2.bf16.msra.mxu0 0
    %4827 = vmatprep.subr.bf16.mxu0 0
    %4828 = vmatpush2.bf16.msra.mxu0 0
    %4829 = vmatprep.subr.bf16.mxu0 0
    %4830 = vmatpush2.bf16.msra.mxu0 0
    %4831 = vmatprep.subr.bf16.mxu0 0
    %4832 = vmatpush2.bf16.msra.mxu0 0
    %4833 = vmatprep.subr.bf16.mxu0 0
    %4834 = vmatpush2.bf16.msra.mxu0 0
    %4835 = vmatprep.mubr.bf16.mxu0 0
    %4836 = vmatmul.mubr.bf16.gmra.mxu0 %v4780
    %v4837 = vpop.f32.mrf.mxu0
    %v4838 = vadd.f32 %v4778, %v4837
    %v4839 = vpop.f32.mrf.mxu0
    %v4840 = vpop.f32.mrf.mxu0
    %v4841 = vadd.f32 %v4778, %v4840
    %v4842 = vpop.f32.mrf.mxu0
    %4843 = vmatprep.mubr.bf16.mxu0 0
    %4844 = vmatmul.mubr.bf16.gmra.mxu0 %v4783
    %v4845 = vpop.f32.mrf.mxu0
    %v4846 = vadd.f32 %v4778, %v4845
    %v4847 = vpop.f32.mrf.mxu0
    %v4848 = vpop.f32.mrf.mxu0
    %v4849 = vadd.f32 %v4778, %v4848
    %v4850 = vpop.f32.mrf.mxu0
    %4851 = vmatprep.mubr.bf16.mxu0 0
    %4852 = vmatmul.mubr.bf16.gmra.mxu0 %v4786
    %v4853 = vpop.f32.mrf.mxu0
    %v4854 = vadd.f32 %v4778, %v4853
    %v4855 = vpop.f32.mrf.mxu0
    %v4856 = vpop.f32.mrf.mxu0
    %v4857 = vadd.f32 %v4778, %v4856
    %v4858 = vpop.f32.mrf.mxu0
    %4859 = vmatprep.mubr.bf16.mxu0 0
    %4860 = vmatmul.mubr.bf16.gmra.mxu0 %v4789
    %v4861 = vpop.f32.mrf.mxu0
    %v4862 = vadd.f32 %v4778, %v4861
    %v4863 = vpop.f32.mrf.mxu0
    %v4864 = vpop.f32.mrf.mxu0
    %v4865 = vadd.f32 %v4778, %v4864
    %v4866 = vpop.f32.mrf.mxu0
    %4867 = vmatprep.mubr.bf16.mxu0 0
    %4868 = vmatmul.mubr.bf16.gmra.mxu0 %v4792
    %v4869 = vpop.f32.mrf.mxu0
    %v4870 = vadd.f32 %v4778, %v4869
    %v4871 = vpop.f32.mrf.mxu0
    %v4872 = vpop.f32.mrf.mxu0
    %v4873 = vadd.f32 %v4778, %v4872
    %v4874 = vpop.f32.mrf.mxu0
    %4875 = vmatprep.mubr.bf16.mxu0 0
    %4876 = vmatmul.mubr.bf16.gmra.mxu0 %v4795
    %v4877 = vpop.f32.mrf.mxu0
    %v4878 = vadd.f32 %v4778, %v4877
    %v4879 = vpop.f32.mrf.mxu0
    %v4880 = vpop.f32.mrf.mxu0
    %v4881 = vadd.f32 %v4778, %v4880
    %v4882 = vpop.f32.mrf.mxu0
    %4883 = vmatprep.mubr.bf16.mxu0 0
    %4884 = vmatmul.mubr.bf16.gmra.mxu0 %v4798
    %v4885 = vpop.f32.mrf.mxu0
    %v4886 = vadd.f32 %v4778, %v4885
    %v4887 = vpop.f32.mrf.mxu0
    %v4888 = vpop.f32.mrf.mxu0
    %v4889 = vadd.f32 %v4778, %v4888
    %v4890 = vpop.f32.mrf.mxu0
    %4891 = vmatprep.mubr.bf16.mxu0 0
    %4892 = vmatmul.mubr.bf16.gmra.mxu0 %v4801
    %v4893 = vpop.f32.mrf.mxu0
    %v4894 = vadd.f32 %v4778, %v4893
    %v4895 = vpop.f32.mrf.mxu0
    %v4896 = vpop.f32.mrf.mxu0
    %v4897 = vadd.f32 %v4778, %v4896
    %v4898 = vpop.f32.mrf.mxu0
    %4899 = vdwg.mxu0
    %v4900 = vmax.f32 %v4838, 0.0
    %v4901 = vmax.f32 %v4841, 0.0
    %v4902 = vmax.f32 %v4846, 0.0
    %v4903 = vmax.f32 %v4849, 0.0
    %v4904 = vmax.f32 %v4854, 0.0
    %v4905 = vmax.f32 %v4857, 0.0
    %v4906 = vmax.f32 %v4862, 0.0
    %v4907 = vmax.f32 %v4865, 0.0
    %v4908 = vmax.f32 %v4870, 0.0
    %v4909 = vmax.f32 %v4873, 0.0
    %v4910 = vmax.f32 %v4878, 0.0
    %v4911 = vmax.f32 %v4881, 0.0
    %v4912 = vmax.f32 %v4886, 0.0
    %v4913 = vmax.f32 %v4889, 0.0
    %v4914 = vmax.f32 %v4894, 0.0
    %v4915 = vmax.f32 %v4897, 0.0
    %v4916 = vpack.c.bf16 %v4901, %v4900
    %v4917 = vpack.c.bf16 %v4903, %v4902
    %v4918 = vpack.c.bf16 %v4905, %v4904
    %v4919 = vpack.c.bf16 %v4907, %v4906
    %v4920 = vpack.c.bf16 %v4909, %v4908
    %v4921 = vpack.c.bf16 %v4911, %v4910
    %v4922 = vpack.c.bf16 %v4913, %v4912
    %v4923 = vpack.c.bf16 %v4915, %v4914
    %v4924 = vld [vmem:[%s5] sm:$0xff]
    %v4925 = vld [vmem:[%s5 + $0x8] sm:$0xff]
    %v4926 = vld [vmem:[%s5 + $0x10] sm:$0xff]
    %v4927 = vld [vmem:[%s5 + $0x18] sm:$0xff]
    %v4928 = vld [vmem:[%s5 + $0x20] sm:$0xff]
    %v4929 = vld [vmem:[%s5 + $0x28] sm:$0xff]
    %v4930 = vld [vmem:[%s5 + $0x30] sm:$0xff]
    %v4931 = vld [vmem:[%s5 + $0x38] sm:$0xff]
    %v4932 = vld [vmem:[%s5 + $0x40] sm:$0xff]
    %v4933 = vld [vmem:[%s5 + $0x48] sm:$0xff]
    %v4934 = vld [vmem:[%s5 + $0x50] sm:$0xff]
    %v4935 = vld [vmem:[%s5 + $0x58] sm:$0xff]
    %v4936 = vld [vmem:[%s5 + $0x60] sm:$0xff]
    %v4937 = vld [vmem:[%s5 + $0x68] sm:$0xff]
    %v4938 = vld [vmem:[%s5 + $0x70] sm:$0xff]
    %v4939 = vld [vmem:[%s5 + $0x78] sm:$0xff]
    %v4940 = vpack.c.bf16 %v4925, %v4924
    %v4941 = vpack.c.bf16 %v4927, %v4926
    %v4942 = vpack.c.bf16 %v4929, %v4928
    %v4943 = vpack.c.bf16 %v4931, %v4930
    %v4944 = vpack.c.bf16 %v4933, %v4932
    %v4945 = vpack.c.bf16 %v4935, %v4934
    %v4946 = vpack.c.bf16 %v4937, %v4936
    %v4947 = vpack.c.bf16 %v4939, %v4938
    %v4948 = vld [vmem:[#allocation2 + $0x7] ss:$0 sm:$0xff]
    %4949 = vmatprep.subr.bf16.mxu0 0
    %4950 = vmatpush1.bf16.msra.mxu0 %v4947
    %4951 = vmatprep.subr.bf16.mxu0 0
    %4952 = vmatpush1.bf16.msra.mxu0 %v4946
    %4953 = vmatprep.subr.bf16.mxu0 0
    %4954 = vmatpush1.bf16.msra.mxu0 %v4945
    %4955 = vmatprep.subr.bf16.mxu0 0
    %4956 = vmatpush1.bf16.msra.mxu0 %v4944
    %4957 = vmatprep.subr.bf16.mxu0 0
    %4958 = vmatpush1.bf16.msra.mxu0 %v4943
    %4959 = vmatprep.subr.bf16.mxu0 0
    %4960 = vmatpush1.bf16.msra.mxu0 %v4942
    %4961 = vmatprep.subr.bf16.mxu0 0
    %4962 = vmatpush1.bf16.msra.mxu0 %v4941
    %4963 = vmatprep.subr.bf16.mxu0 0
    %4964 = vmatpush1.bf16.msra.mxu0 %v4940
    %4965 = vmatprep.subr.bf16.mxu0 0
    %4966 = vmatpush2.bf16.msra.mxu0 0
    %4967 = vmatprep.subr.bf16.mxu0 0
    %4968 = vmatpush2.bf16.msra.mxu0 0
    %4969 = vmatprep.subr.bf16.mxu0 0
    %4970 = vmatpush2.bf16.msra.mxu0 0
    %4971 = vmatprep.subr.bf16.mxu0 0
    %4972 = vmatpush2.bf16.msra.mxu0 0
    %4973 = vmatprep.subr.bf16.mxu0 0
    %4974 = vmatpush2.bf16.msra.mxu0 0
    %4975 = vmatprep.subr.bf16.mxu0 0
    %4976 = vmatpush2.bf16.msra.mxu0 0
    %4977 = vmatprep.subr.bf16.mxu0 0
    %4978 = vmatpush2.bf16.msra.mxu0 0
    %4979 = vmatprep.subr.bf16.mxu0 0
    %4980 = vmatpush2.bf16.msra.mxu0 0
    %4981 = vmatprep.mubr.bf16.mxu0 0
    %4982 = vmatmul.mubr.bf16.gmra.mxu0 %v4916
    %v4983 = vpop.f32.mrf.mxu0
    %v4984 = vadd.f32 %v4948, %v4983
    %v4985 = vpop.f32.mrf.mxu0
    %v4986 = vpop.f32.mrf.mxu0
    %v4987 = vadd.f32 %v4948, %v4986
    %v4988 = vpop.f32.mrf.mxu0
    %4989 = vmatprep.mubr.bf16.mxu0 0
    %4990 = vmatmul.mubr.bf16.gmra.mxu0 %v4917
    %v4991 = vpop.f32.mrf.mxu0
    %v4992 = vadd.f32 %v4948, %v4991
    %v4993 = vpop.f32.mrf.mxu0
    %v4994 = vpop.f32.mrf.mxu0
    %v4995 = vadd.f32 %v4948, %v4994
    %v4996 = vpop.f32.mrf.mxu0
    %4997 = vmatprep.mubr.bf16.mxu0 0
    %4998 = vmatmul.mubr.bf16.gmra.mxu0 %v4918
    %v4999 = vpop.f32.mrf.mxu0
    %v5000 = vadd.f32 %v4948, %v4999
    %v5001 = vpop.f32.mrf.mxu0
    %v5002 = vpop.f32.mrf.mxu0
    %v5003 = vadd.f32 %v4948, %v5002
    %v5004 = vpop.f32.mrf.mxu0
    %5005 = vmatprep.mubr.bf16.mxu0 0
    %5006 = vmatmul.mubr.bf16.gmra.mxu0 %v4919
    %v5007 = vpop.f32.mrf.mxu0
    %v5008 = vadd.f32 %v4948, %v5007
    %v5009 = vpop.f32.mrf.mxu0
    %v5010 = vpop.f32.mrf.mxu0
    %v5011 = vadd.f32 %v4948, %v5010
    %v5012 = vpop.f32.mrf.mxu0
    %5013 = vmatprep.mubr.bf16.mxu0 0
    %5014 = vmatmul.mubr.bf16.gmra.mxu0 %v4920
    %v5015 = vpop.f32.mrf.mxu0
    %v5016 = vadd.f32 %v4948, %v5015
    %v5017 = vpop.f32.mrf.mxu0
    %v5018 = vpop.f32.mrf.mxu0
    %v5019 = vadd.f32 %v4948, %v5018
    %v5020 = vpop.f32.mrf.mxu0
    %5021 = vmatprep.mubr.bf16.mxu0 0
    %5022 = vmatmul.mubr.bf16.gmra.mxu0 %v4921
    %v5023 = vpop.f32.mrf.mxu0
    %v5024 = vadd.f32 %v4948, %v5023
    %v5025 = vpop.f32.mrf.mxu0
    %v5026 = vpop.f32.mrf.mxu0
    %v5027 = vadd.f32 %v4948, %v5026
    %v5028 = vpop.f32.mrf.mxu0
    %5029 = vmatprep.mubr.bf16.mxu0 0
    %5030 = vmatmul.mubr.bf16.gmra.mxu0 %v4922
    %v5031 = vpop.f32.mrf.mxu0
    %v5032 = vadd.f32 %v4948, %v5031
    %v5033 = vpop.f32.mrf.mxu0
    %v5034 = vpop.f32.mrf.mxu0
    %v5035 = vadd.f32 %v4948, %v5034
    %v5036 = vpop.f32.mrf.mxu0
    %5037 = vmatprep.mubr.bf16.mxu0 0
    %5038 = vmatmul.mubr.bf16.gmra.mxu0 %v4923
    %v5039 = vpop.f32.mrf.mxu0
    %v5040 = vadd.f32 %v4948, %v5039
    %v5041 = vpop.f32.mrf.mxu0
    %v5042 = vpop.f32.mrf.mxu0
    %v5043 = vadd.f32 %v4948, %v5042
    %v5044 = vpop.f32.mrf.mxu0
    %5045 = vdwg.mxu0
    %v5046 = vadd.f32 %v4745, %v4984
    %v5047 = vadd.f32 %v4746, %v4987
    %v5048 = vadd.f32 %v4747, %v4992
    %v5049 = vadd.f32 %v4748, %v4995
    %v5050 = vadd.f32 %v4749, %v5000
    %v5051 = vadd.f32 %v4750, %v5003
    %v5052 = vadd.f32 %v4751, %v5008
    %v5053 = vadd.f32 %v4752, %v5011
    %v5054 = vadd.f32 %v4753, %v5016
    %v5055 = vadd.f32 %v4754, %v5019
    %v5056 = vadd.f32 %v4755, %v5024
    %v5057 = vadd.f32 %v4756, %v5027
    %v5058 = vadd.f32 %v4757, %v5032
    %v5059 = vadd.f32 %v4758, %v5035
    %v5060 = vadd.f32 %v4759, %v5040
    %v5061 = vadd.f32 %v4760, %v5043
    %v5062 = vsel %vm381, %v5046, 0.0
    %5063 = vadd.xlane.f32.xlu0 %v5062
    %v5064 = vpop.xlane.xlu0 %5063
    %v5065 = vsel %vm381, %v5047, 0.0
    %5066 = vadd.xlane.f32.xlu0 %v5065
    %v5067 = vpop.xlane.xlu0 %5066
    %v5068 = vsel %vm381, %v5048, 0.0
    %5069 = vadd.xlane.f32.xlu0 %v5068
    %v5070 = vpop.xlane.xlu0 %5069
    %v5071 = vsel %vm381, %v5049, 0.0
    %5072 = vadd.xlane.f32.xlu0 %v5071
    %v5073 = vpop.xlane.xlu0 %5072
    %v5074 = vsel %vm381, %v5050, 0.0
    %5075 = vadd.xlane.f32.xlu0 %v5074
    %v5076 = vpop.xlane.xlu0 %5075
    %v5077 = vsel %vm381, %v5051, 0.0
    %5078 = vadd.xlane.f32.xlu0 %v5077
    %v5079 = vpop.xlane.xlu0 %5078
    %v5080 = vsel %vm381, %v5052, 0.0
    %5081 = vadd.xlane.f32.xlu0 %v5080
    %v5082 = vpop.xlane.xlu0 %5081
    %v5083 = vsel %vm381, %v5053, 0.0
    %5084 = vadd.xlane.f32.xlu0 %v5083
    %v5085 = vpop.xlane.xlu0 %5084
    %v5086 = vsel %vm381, %v5054, 0.0
    %5087 = vadd.xlane.f32.xlu0 %v5086
    %v5088 = vpop.xlane.xlu0 %5087
    %v5089 = vsel %vm381, %v5055, 0.0
    %5090 = vadd.xlane.f32.xlu0 %v5089
    %v5091 = vpop.xlane.xlu0 %5090
    %v5092 = vsel %vm381, %v5056, 0.0
    %5093 = vadd.xlane.f32.xlu0 %v5092
    %v5094 = vpop.xlane.xlu0 %5093
    %v5095 = vsel %vm381, %v5057, 0.0
    %5096 = vadd.xlane.f32.xlu0 %v5095
    %v5097 = vpop.xlane.xlu0 %5096
    %v5098 = vsel %vm381, %v5058, 0.0
    %5099 = vadd.xlane.f32.xlu0 %v5098
    %v5100 = vpop.xlane.xlu0 %5099
    %v5101 = vsel %vm381, %v5059, 0.0
    %5102 = vadd.xlane.f32.xlu0 %v5101
    %v5103 = vpop.xlane.xlu0 %5102
    %v5104 = vsel %vm381, %v5060, 0.0
    %5105 = vadd.xlane.f32.xlu0 %v5104
    %v5106 = vpop.xlane.xlu0 %5105
    %v5107 = vsel %vm381, %v5061, 0.0
    %5108 = vadd.xlane.f32.xlu0 %v5107
    %v5109 = vpop.xlane.xlu0 %5108
    %v5110 = vmul.f32 %v5064, %v4566
    %v5111 = vmul.f32 %v5067, %v4566
    %v5112 = vmul.f32 %v5070, %v4566
    %v5113 = vmul.f32 %v5073, %v4566
    %v5114 = vmul.f32 %v5076, %v4566
    %v5115 = vmul.f32 %v5079, %v4566
    %v5116 = vmul.f32 %v5082, %v4566
    %v5117 = vmul.f32 %v5085, %v4566
    %v5118 = vmul.f32 %v5088, %v4566
    %v5119 = vmul.f32 %v5091, %v4566
    %v5120 = vmul.f32 %v5094, %v4566
    %v5121 = vmul.f32 %v5097, %v4566
    %v5122 = vmul.f32 %v5100, %v4566
    %v5123 = vmul.f32 %v5103, %v4566
    %v5124 = vmul.f32 %v5106, %v4566
    %v5125 = vmul.f32 %v5109, %v4566
    %v5126 = vsub.f32 %v5046, %v5110
    %v5127 = vsub.f32 %v5047, %v5111
    %v5128 = vsub.f32 %v5048, %v5112
    %v5129 = vsub.f32 %v5049, %v5113
    %v5130 = vsub.f32 %v5050, %v5114
    %v5131 = vsub.f32 %v5051, %v5115
    %v5132 = vsub.f32 %v5052, %v5116
    %v5133 = vsub.f32 %v5053, %v5117
    %v5134 = vsub.f32 %v5054, %v5118
    %v5135 = vsub.f32 %v5055, %v5119
    %v5136 = vsub.f32 %v5056, %v5120
    %v5137 = vsub.f32 %v5057, %v5121
    %v5138 = vsub.f32 %v5058, %v5122
    %v5139 = vsub.f32 %v5059, %v5123
    %v5140 = vsub.f32 %v5060, %v5124
    %v5141 = vsub.f32 %v5061, %v5125
    %v5142 = vmul.f32 %v5126, %v5126
    %v5143 = vmul.f32 %v5127, %v5127
    %v5144 = vmul.f32 %v5128, %v5128
    %v5145 = vmul.f32 %v5129, %v5129
    %v5146 = vmul.f32 %v5130, %v5130
    %v5147 = vmul.f32 %v5131, %v5131
    %v5148 = vmul.f32 %v5132, %v5132
    %v5149 = vmul.f32 %v5133, %v5133
    %v5150 = vmul.f32 %v5134, %v5134
    %v5151 = vmul.f32 %v5135, %v5135
    %v5152 = vmul.f32 %v5136, %v5136
    %v5153 = vmul.f32 %v5137, %v5137
    %v5154 = vmul.f32 %v5138, %v5138
    %v5155 = vmul.f32 %v5139, %v5139
    %v5156 = vmul.f32 %v5140, %v5140
    %v5157 = vmul.f32 %v5141, %v5141
    %v5158 = vsel %vm381, %v5142, 0.0
    %5159 = vadd.xlane.f32.xlu0 %v5158
    %v5160 = vpop.xlane.xlu0 %5159
    %v5161 = vsel %vm381, %v5143, 0.0
    %5162 = vadd.xlane.f32.xlu0 %v5161
    %v5163 = vpop.xlane.xlu0 %5162
    %v5164 = vsel %vm381, %v5144, 0.0
    %5165 = vadd.xlane.f32.xlu0 %v5164
    %v5166 = vpop.xlane.xlu0 %5165
    %v5167 = vsel %vm381, %v5145, 0.0
    %5168 = vadd.xlane.f32.xlu0 %v5167
    %v5169 = vpop.xlane.xlu0 %5168
    %v5170 = vsel %vm381, %v5146, 0.0
    %5171 = vadd.xlane.f32.xlu0 %v5170
    %v5172 = vpop.xlane.xlu0 %5171
    %v5173 = vsel %vm381, %v5147, 0.0
    %5174 = vadd.xlane.f32.xlu0 %v5173
    %v5175 = vpop.xlane.xlu0 %5174
    %v5176 = vsel %vm381, %v5148, 0.0
    %5177 = vadd.xlane.f32.xlu0 %v5176
    %v5178 = vpop.xlane.xlu0 %5177
    %v5179 = vsel %vm381, %v5149, 0.0
    %5180 = vadd.xlane.f32.xlu0 %v5179
    %v5181 = vpop.xlane.xlu0 %5180
    %v5182 = vsel %vm381, %v5150, 0.0
    %5183 = vadd.xlane.f32.xlu0 %v5182
    %v5184 = vpop.xlane.xlu0 %5183
    %v5185 = vsel %vm381, %v5151, 0.0
    %5186 = vadd.xlane.f32.xlu0 %v5185
    %v5187 = vpop.xlane.xlu0 %5186
    %v5188 = vsel %vm381, %v5152, 0.0
    %5189 = vadd.xlane.f32.xlu0 %v5188
    %v5190 = vpop.xlane.xlu0 %5189
    %v5191 = vsel %vm381, %v5153, 0.0
    %5192 = vadd.xlane.f32.xlu0 %v5191
    %v5193 = vpop.xlane.xlu0 %5192
    %v5194 = vsel %vm381, %v5154, 0.0
    %5195 = vadd.xlane.f32.xlu0 %v5194
    %v5196 = vpop.xlane.xlu0 %5195
    %v5197 = vsel %vm381, %v5155, 0.0
    %5198 = vadd.xlane.f32.xlu0 %v5197
    %v5199 = vpop.xlane.xlu0 %5198
    %v5200 = vsel %vm381, %v5156, 0.0
    %5201 = vadd.xlane.f32.xlu0 %v5200
    %v5202 = vpop.xlane.xlu0 %5201
    %v5203 = vsel %vm381, %v5157, 0.0
    %5204 = vadd.xlane.f32.xlu0 %v5203
    %v5205 = vpop.xlane.xlu0 %5204
    %v5206 = vmul.f32 %v5160, %v4566
    %v5207 = vmul.f32 %v5163, %v4566
    %v5208 = vmul.f32 %v5166, %v4566
    %v5209 = vmul.f32 %v5169, %v4566
    %v5210 = vmul.f32 %v5172, %v4566
    %v5211 = vmul.f32 %v5175, %v4566
    %v5212 = vmul.f32 %v5178, %v4566
    %v5213 = vmul.f32 %v5181, %v4566
    %v5214 = vmul.f32 %v5184, %v4566
    %v5215 = vmul.f32 %v5187, %v4566
    %v5216 = vmul.f32 %v5190, %v4566
    %v5217 = vmul.f32 %v5193, %v4566
    %v5218 = vmul.f32 %v5196, %v4566
    %v5219 = vmul.f32 %v5199, %v4566
    %v5220 = vmul.f32 %v5202, %v4566
    %v5221 = vmul.f32 %v5205, %v4566
    %v5222 = vadd.f32 %v5206, 1e-05
    %v5223 = vadd.f32 %v5207, 1e-05
    %v5224 = vadd.f32 %v5208, 1e-05
    %v5225 = vadd.f32 %v5209, 1e-05
    %v5226 = vadd.f32 %v5210, 1e-05
    %v5227 = vadd.f32 %v5211, 1e-05
    %v5228 = vadd.f32 %v5212, 1e-05
    %v5229 = vadd.f32 %v5213, 1e-05
    %v5230 = vadd.f32 %v5214, 1e-05
    %v5231 = vadd.f32 %v5215, 1e-05
    %v5232 = vadd.f32 %v5216, 1e-05
    %v5233 = vadd.f32 %v5217, 1e-05
    %v5234 = vadd.f32 %v5218, 1e-05
    %v5235 = vadd.f32 %v5219, 1e-05
    %v5236 = vadd.f32 %v5220, 1e-05
    %v5237 = vadd.f32 %v5221, 1e-05
    %v5238 = vrsqrt.pop %v5222
    %v5239 = vrsqrt.pop %v5223
    %v5240 = vrsqrt.pop %v5224
    %v5241 = vrsqrt.pop %v5225
    %v5242 = vrsqrt.pop %v5226
    %v5243 = vrsqrt.pop %v5227
    %v5244 = vrsqrt.pop %v5228
    %v5245 = vrsqrt.pop %v5229
    %v5246 = vrsqrt.pop %v5230
    %v5247 = vrsqrt.pop %v5231
    %v5248 = vrsqrt.pop %v5232
    %v5249 = vrsqrt.pop %v5233
    %v5250 = vrsqrt.pop %v5234
    %v5251 = vrsqrt.pop %v5235
    %v5252 = vrsqrt.pop %v5236
    %v5253 = vrsqrt.pop %v5237
    %v5254 = vmul.f32 %v5126, %v5238
    %v5255 = vmul.f32 %v5127, %v5239
    %v5256 = vmul.f32 %v5128, %v5240
    %v5257 = vmul.f32 %v5129, %v5241
    %v5258 = vmul.f32 %v5130, %v5242
    %v5259 = vmul.f32 %v5131, %v5243
    %v5260 = vmul.f32 %v5132, %v5244
    %v5261 = vmul.f32 %v5133, %v5245
    %v5262 = vmul.f32 %v5134, %v5246
    %v5263 = vmul.f32 %v5135, %v5247
    %v5264 = vmul.f32 %v5136, %v5248
    %v5265 = vmul.f32 %v5137, %v5249
    %v5266 = vmul.f32 %v5138, %v5250
    %v5267 = vmul.f32 %v5139, %v5251
    %v5268 = vmul.f32 %v5140, %v5252
    %v5269 = vmul.f32 %v5141, %v5253
    %v5270 = vld [vmem:[#allocation2 + $0x10] ss:$0 sm:$0xff]
    %v5271 = vmul.f32 %v5254, %v5270
    %v5272 = vmul.f32 %v5255, %v5270
    %v5273 = vmul.f32 %v5256, %v5270
    %v5274 = vmul.f32 %v5257, %v5270
    %v5275 = vmul.f32 %v5258, %v5270
    %v5276 = vmul.f32 %v5259, %v5270
    %v5277 = vmul.f32 %v5260, %v5270
    %v5278 = vmul.f32 %v5261, %v5270
    %v5279 = vmul.f32 %v5262, %v5270
    %v5280 = vmul.f32 %v5263, %v5270
    %v5281 = vmul.f32 %v5264, %v5270
    %v5282 = vmul.f32 %v5265, %v5270
    %v5283 = vmul.f32 %v5266, %v5270
    %v5284 = vmul.f32 %v5267, %v5270
    %v5285 = vmul.f32 %v5268, %v5270
    %v5286 = vmul.f32 %v5269, %v5270
    %v5287 = vld [vmem:[#allocation2 + $0x11] ss:$0 sm:$0xff]
    %v5288 = vadd.f32 %v5271, %v5287
    %v5289 = vadd.f32 %v5272, %v5287
    %v5290 = vadd.f32 %v5273, %v5287
    %v5291 = vadd.f32 %v5274, %v5287
    %v5292 = vadd.f32 %v5275, %v5287
    %v5293 = vadd.f32 %v5276, %v5287
    %v5294 = vadd.f32 %v5277, %v5287
    %v5295 = vadd.f32 %v5278, %v5287
    %v5296 = vadd.f32 %v5279, %v5287
    %v5297 = vadd.f32 %v5280, %v5287
    %v5298 = vadd.f32 %v5281, %v5287
    %v5299 = vadd.f32 %v5282, %v5287
    %v5300 = vadd.f32 %v5283, %v5287
    %v5301 = vadd.f32 %v5284, %v5287
    %v5302 = vadd.f32 %v5285, %v5287
    %v5303 = vadd.f32 %v5286, %v5287
    %v5304 = vpack.c.bf16 %v5289, %v5288
    %v5305 = vpack.c.bf16 %v5291, %v5290
    %v5306 = vpack.c.bf16 %v5293, %v5292
    %v5307 = vpack.c.bf16 %v5295, %v5294
    %v5308 = vpack.c.bf16 %v5297, %v5296
    %v5309 = vpack.c.bf16 %v5299, %v5298
    %v5310 = vpack.c.bf16 %v5301, %v5300
    %v5311 = vpack.c.bf16 %v5303, %v5302
    %v5312 = vld [vmem:[#allocation8] sm:$0xff]
    %v5313 = vld [vmem:[#allocation8 + $0x8] sm:$0xff]
    %v5314 = vld [vmem:[#allocation8 + $0x10] sm:$0xff]
    %v5315 = vld [vmem:[#allocation8 + $0x18] sm:$0xff]
    %v5316 = vld [vmem:[#allocation8 + $0x20] sm:$0xff]
    %v5317 = vld [vmem:[#allocation8 + $0x28] sm:$0xff]
    %v5318 = vpack.c.bf16 %v5313, %v5312
    %v5319 = vpack.c.bf16 %v5315, %v5314
    %v5320 = vpack.c.bf16 %v5317, %v5316
    %v5321 = vld [vmem:[#allocation2 + $0x12] ss:$0 sm:$0xff]
    %v5323 = vsel %vm381, %v5304, 0
    %v5326 = vsel %vm381, %v5305, 0
    %v5329 = vsel %vm381, %v5306, 0
    %v5332 = vsel %vm381, %v5307, 0
    %v5335 = vsel %vm381, %v5308, 0
    %v5338 = vsel %vm381, %v5309, 0
    %v5341 = vsel %vm381, %v5310, 0
    %v5344 = vsel %vm381, %v5311, 0
    %5346 = vmatprep.subr.bf16.mxu0 0
    %5347 = vmatpush1.bf16.msra.mxu0 0
    %5348 = vmatprep.subr.bf16.mxu0 0
    %5349 = vmatpush1.bf16.msra.mxu0 0
    %5350 = vmatprep.subr.bf16.mxu0 0
    %5351 = vmatpush1.bf16.msra.mxu0 0
    %5352 = vmatprep.subr.bf16.mxu0 0
    %5353 = vmatpush1.bf16.msra.mxu0 0
    %5354 = vmatprep.subr.bf16.mxu0 0
    %5355 = vmatpush1.bf16.msra.mxu0 0
    %5356 = vmatprep.subr.bf16.mxu0 0
    %5357 = vmatpush1.bf16.msra.mxu0 %v5320
    %5358 = vmatprep.subr.bf16.mxu0 0
    %5359 = vmatpush1.bf16.msra.mxu0 %v5319
    %5360 = vmatprep.subr.bf16.mxu0 0
    %5361 = vmatpush1.bf16.msra.mxu0 %v5318
    %5362 = vmatprep.subr.bf16.mxu0 0
    %5363 = vmatpush2.bf16.msra.mxu0 0
    %5364 = vmatprep.subr.bf16.mxu0 0
    %5365 = vmatpush2.bf16.msra.mxu0 0
    %5366 = vmatprep.subr.bf16.mxu0 0
    %5367 = vmatpush2.bf16.msra.mxu0 0
    %5368 = vmatprep.subr.bf16.mxu0 0
    %5369 = vmatpush2.bf16.msra.mxu0 0
    %5370 = vmatprep.subr.bf16.mxu0 0
    %5371 = vmatpush2.bf16.msra.mxu0 0
    %5372 = vmatprep.subr.bf16.mxu0 0
    %5373 = vmatpush2.bf16.msra.mxu0 0
    %5374 = vmatprep.subr.bf16.mxu0 0
    %5375 = vmatpush2.bf16.msra.mxu0 0
    %5376 = vmatprep.subr.bf16.mxu0 0
    %5377 = vmatpush2.bf16.msra.mxu0 0
    %5378 = vmatprep.mubr.bf16.mxu0 0
    %5379 = vmatmul.mubr.bf16.gmra.mxu0 %v5323
    %v5380 = vpop.f32.mrf.mxu0
    %v5381 = vadd.f32 %v5321, %v5380
    %v5382 = vpop.f32.mrf.mxu0
    %v5383 = vpop.f32.mrf.mxu0
    %v5384 = vadd.f32 %v5321, %v5383
    %v5385 = vpop.f32.mrf.mxu0
    %5386 = vmatprep.mubr.bf16.mxu0 0
    %5387 = vmatmul.mubr.bf16.gmra.mxu0 %v5326
    %v5388 = vpop.f32.mrf.mxu0
    %v5389 = vadd.f32 %v5321, %v5388
    %v5390 = vpop.f32.mrf.mxu0
    %v5391 = vpop.f32.mrf.mxu0
    %v5392 = vadd.f32 %v5321, %v5391
    %v5393 = vpop.f32.mrf.mxu0
    %5394 = vmatprep.mubr.bf16.mxu0 0
    %5395 = vmatmul.mubr.bf16.gmra.mxu0 %v5329
    %v5396 = vpop.f32.mrf.mxu0
    %v5397 = vadd.f32 %v5321, %v5396
    %v5398 = vpop.f32.mrf.mxu0
    %v5399 = vpop.f32.mrf.mxu0
    %v5400 = vadd.f32 %v5321, %v5399
    %v5401 = vpop.f32.mrf.mxu0
    %5402 = vmatprep.mubr.bf16.mxu0 0
    %5403 = vmatmul.mubr.bf16.gmra.mxu0 %v5332
    %v5404 = vpop.f32.mrf.mxu0
    %v5405 = vadd.f32 %v5321, %v5404
    %v5406 = vpop.f32.mrf.mxu0
    %v5407 = vpop.f32.mrf.mxu0
    %v5408 = vadd.f32 %v5321, %v5407
    %v5409 = vpop.f32.mrf.mxu0
    %5410 = vmatprep.mubr.bf16.mxu0 0
    %5411 = vmatmul.mubr.bf16.gmra.mxu0 %v5335
    %v5412 = vpop.f32.mrf.mxu0
    %v5413 = vadd.f32 %v5321, %v5412
    %v5414 = vpop.f32.mrf.mxu0
    %v5415 = vpop.f32.mrf.mxu0
    %v5416 = vadd.f32 %v5321, %v5415
    %v5417 = vpop.f32.mrf.mxu0
    %5418 = vmatprep.mubr.bf16.mxu0 0
    %5419 = vmatmul.mubr.bf16.gmra.mxu0 %v5338
    %v5420 = vpop.f32.mrf.mxu0
    %v5421 = vadd.f32 %v5321, %v5420
    %v5422 = vpop.f32.mrf.mxu0
    %v5423 = vpop.f32.mrf.mxu0
    %v5424 = vadd.f32 %v5321, %v5423
    %v5425 = vpop.f32.mrf.mxu0
    %5426 = vmatprep.mubr.bf16.mxu0 0
    %5427 = vmatmul.mubr.bf16.gmra.mxu0 %v5341
    %v5428 = vpop.f32.mrf.mxu0
    %v5429 = vadd.f32 %v5321, %v5428
    %v5430 = vpop.f32.mrf.mxu0
    %v5431 = vpop.f32.mrf.mxu0
    %v5432 = vadd.f32 %v5321, %v5431
    %v5433 = vpop.f32.mrf.mxu0
    %5434 = vmatprep.mubr.bf16.mxu0 0
    %5435 = vmatmul.mubr.bf16.gmra.mxu0 %v5344
    %v5436 = vpop.f32.mrf.mxu0
    %v5437 = vadd.f32 %v5321, %v5436
    %v5438 = vpop.f32.mrf.mxu0
    %v5439 = vpop.f32.mrf.mxu0
    %v5440 = vadd.f32 %v5321, %v5439
    %v5441 = vpop.f32.mrf.mxu0
    %5442 = vdwg.mxu0
    %v5443 = vld [vmem:[%s8] sm:$0xff]
    %v5445 = vcombine.high %v5443, %v5443
    %v5447 = vunpack.c.l.s4 1966171168
    %v5448 = vunpack.c.0.s8 %v5447
    %v5449 = vlaneseq
    %v5450 = vshrl.u32 %v5449, 7
    %v5451 = vsub.s32 %v5448, %v5450
    %v5452 = vrot.slane %v5443, %v5451
    %v5454 = vunpack.c.l.s4 1966171168
    %v5455 = vunpack.c.0.s8 %v5454
    %v5456 = vlaneseq
    %v5457 = vshrl.u32 %v5456, 7
    %v5458 = vsub.s32 %v5455, %v5457
    %v5459 = vrot.slane %v5445, %v5458
    %v5460 = vcombine.high %v5452, %v5452
    %v5461 = vcombine.high %v5459, %v5459
    %v5463 = vunpack.c.l.s4 1966171168
    %v5464 = vunpack.c.0.s8 %v5463
    %v5465 = vlaneseq
    %v5466 = vshrl.u32 %v5465, 7
    %v5467 = vsub.s32 %v5464, %v5466
    %v5468 = vrot.slane %v5452, %v5467
    %v5470 = vunpack.c.l.s4 1966171168
    %v5471 = vunpack.c.0.s8 %v5470
    %v5472 = vlaneseq
    %v5473 = vshrl.u32 %v5472, 7
    %v5474 = vsub.s32 %v5471, %v5473
    %v5475 = vrot.slane %v5459, %v5474
    %v5477 = vunpack.c.l.s4 1966171168
    %v5478 = vunpack.c.0.s8 %v5477
    %v5479 = vlaneseq
    %v5480 = vshrl.u32 %v5479, 7
    %v5481 = vsub.s32 %v5478, %v5480
    %v5482 = vrot.slane %v5460, %v5481
    %v5484 = vunpack.c.l.s4 1966171168
    %v5485 = vunpack.c.0.s8 %v5484
    %v5486 = vlaneseq
    %v5487 = vshrl.u32 %v5486, 7
    %v5488 = vsub.s32 %v5485, %v5487
    %v5489 = vrot.slane %v5461, %v5488
    %v5490 = vcombine.high %v5468, %v5468
    %v5491 = vcombine.high %v5475, %v5475
    %v5492 = vcombine.high %v5482, %v5482
    %v5493 = vcombine.high %v5489, %v5489
    %v5494 = vlaneseq
    %v5495 = vshrl.u32 %v5494, 7
    %v5496 = vsub.s32 0, %v5495
    %v5497 = vrot.slane %v5468, %v5496
    %v5498 = vlaneseq
    %v5499 = vshrl.u32 %v5498, 7
    %v5500 = vsub.s32 0, %v5499
    %v5501 = vrot.slane %v5482, %v5500
    %v5502 = vlaneseq
    %v5503 = vshrl.u32 %v5502, 7
    %v5504 = vsub.s32 0, %v5503
    %v5505 = vrot.slane %v5490, %v5504
    %v5506 = vlaneseq
    %v5507 = vshrl.u32 %v5506, 7
    %v5508 = vsub.s32 0, %v5507
    %v5509 = vrot.slane %v5492, %v5508
    %v5510 = vlaneseq
    %v5511 = vshrl.u32 %v5510, 7
    %v5512 = vsub.s32 0, %v5511
    %v5513 = vrot.slane %v5475, %v5512
    %v5514 = vlaneseq
    %v5515 = vshrl.u32 %v5514, 7
    %v5516 = vsub.s32 0, %v5515
    %v5517 = vrot.slane %v5489, %v5516
    %v5518 = vlaneseq
    %v5519 = vshrl.u32 %v5518, 7
    %v5520 = vsub.s32 0, %v5519
    %v5521 = vrot.slane %v5491, %v5520
    %v5522 = vlaneseq
    %v5523 = vshrl.u32 %v5522, 7
    %v5524 = vsub.s32 0, %v5523
    %v5525 = vrot.slane %v5493, %v5524
    %v5534 = vadd.f32 %v5381, %v5497
    %v5535 = vadd.f32 %v5384, %v5501
    %v5536 = vadd.f32 %v5389, %v5505
    %v5537 = vadd.f32 %v5392, %v5509
    %v5538 = vadd.f32 %v5397, %v5513
    %v5539 = vadd.f32 %v5400, %v5517
    %v5540 = vadd.f32 %v5405, %v5521
    %v5541 = vadd.f32 %v5408, %v5525
    %v5542 = vadd.f32 %v5413, %v5497
    %v5543 = vadd.f32 %v5416, %v5501
    %v5544 = vadd.f32 %v5421, %v5505
    %v5545 = vadd.f32 %v5424, %v5509
    %v5546 = vadd.f32 %v5429, %v5513
    %v5547 = vadd.f32 %v5432, %v5517
    %v5548 = vadd.f32 %v5437, %v5521
    %v5549 = vadd.f32 %v5440, %v5525
    %v5550 = vpack.c.bf16 %v5535, %v5534
    %v5551 = vpack.c.bf16 %v5537, %v5536
    %v5552 = vpack.c.bf16 %v5539, %v5538
    %v5553 = vpack.c.bf16 %v5541, %v5540
    %v5554 = vpack.c.bf16 %v5543, %v5542
    %v5555 = vpack.c.bf16 %v5545, %v5544
    %v5556 = vpack.c.bf16 %v5547, %v5546
    %v5557 = vpack.c.bf16 %v5549, %v5548
    %v5558 = vld [vmem:[%s7] sm:$0xff]
    %v5559 = vld [vmem:[%s7 + $0x8] sm:$0xff]
    %v5560 = vld [vmem:[%s7 + $0x10] sm:$0xff]
    %v5561 = vld [vmem:[%s7 + $0x18] sm:$0xff]
    %v5562 = vld [vmem:[%s7 + $0x20] sm:$0xff]
    %v5563 = vld [vmem:[%s7 + $0x28] sm:$0xff]
    %v5564 = vld [vmem:[%s7 + $0x30] sm:$0xff]
    %v5565 = vld [vmem:[%s7 + $0x38] sm:$0xff]
    %v5566 = vld [vmem:[%s7 + $0x40] sm:$0xff]
    %v5567 = vld [vmem:[%s7 + $0x48] sm:$0xff]
    %v5568 = vld [vmem:[%s7 + $0x50] sm:$0xff]
    %v5569 = vld [vmem:[%s7 + $0x58] sm:$0xff]
    %v5570 = vld [vmem:[%s7 + $0x60] sm:$0xff]
    %v5571 = vld [vmem:[%s7 + $0x68] sm:$0xff]
    %v5572 = vld [vmem:[%s7 + $0x70] sm:$0xff]
    %v5573 = vld [vmem:[%s7 + $0x78] sm:$0xff]
    %v5574 = vld [vmem:[%s7 + $0x80] sm:$0xff]
    %v5575 = vld [vmem:[%s7 + $0x88] sm:$0xff]
    %v5576 = vld [vmem:[%s7 + $0x90] sm:$0xff]
    %v5577 = vld [vmem:[%s7 + $0x98] sm:$0xff]
    %v5578 = vld [vmem:[%s7 + $0xa0] sm:$0xff]
    %v5579 = vld [vmem:[%s7 + $0xa8] sm:$0xff]
    %v5580 = vld [vmem:[%s7 + $0xb0] sm:$0xff]
    %v5581 = vld [vmem:[%s7 + $0xb8] sm:$0xff]
    %v5582 = vpack.c.bf16 %v5560, %v5558
    %v5583 = vpack.c.bf16 %v5561, %v5559
    %v5584 = vpack.c.bf16 %v5564, %v5562
    %v5585 = vpack.c.bf16 %v5565, %v5563
    %v5586 = vpack.c.bf16 %v5568, %v5566
    %v5587 = vpack.c.bf16 %v5569, %v5567
    %v5588 = vpack.c.bf16 %v5572, %v5570
    %v5589 = vpack.c.bf16 %v5573, %v5571
    %v5590 = vpack.c.bf16 %v5576, %v5574
    %v5591 = vpack.c.bf16 %v5577, %v5575
    %v5592 = vpack.c.bf16 %v5580, %v5578
    %v5593 = vpack.c.bf16 %v5581, %v5579
    %s5594 = scalar_lea.vmem [#allocation2], 19
    %v5595 = vld [vmem:[%s5594] ss:$8 sm:$0x3]
    %v5597 = vlaneseq
    %v5598 = vshrl.u32 %v5597, 7
    %v5599 = vsub.s32 0, %v5598
    %v5600 = vrot.slane %v5595, %v5599
    %v5601 = vlaneseq
    %v5602 = vshrl.u32 %v5601, 7
    %v5603 = vsub.s32 1, %v5602
    %v5604 = vrot.slane %v5595, %v5603
    %vm5607 = vcmask 785408
    %v5609 = vsel %vm5607, %v5550, 0
    %v5612 = vsel %vm5607, %v5551, 0
    %v5615 = vsel %vm5607, %v5552, 0
    %v5618 = vsel %vm5607, %v5553, 0
    %v5621 = vsel %vm5607, %v5554, 0
    %v5624 = vsel %vm5607, %v5555, 0
    %v5627 = vsel %vm5607, %v5556, 0
    %v5630 = vsel %vm5607, %v5557, 0
    %5632 = vmatprep.subr.bf16.mxu0 0
    %5633 = vmatpush1.bf16.msra.mxu0 0
    %5634 = vmatprep.subr.bf16.mxu0 0
    %5635 = vmatpush1.bf16.msra.mxu0 0
    %5636 = vmatprep.subr.bf16.mxu0 %v5593
    %5637 = vmatpush1.bf16.msra.mxu0 %v5592
    %5638 = vmatprep.subr.bf16.mxu0 %v5591
    %5639 = vmatpush1.bf16.msra.mxu0 %v5590
    %5640 = vmatprep.subr.bf16.mxu0 %v5589
    %5641 = vmatpush1.bf16.msra.mxu0 %v5588
    %5642 = vmatprep.subr.bf16.mxu0 %v5587
    %5643 = vmatpush1.bf16.msra.mxu0 %v5586
    %5644 = vmatprep.subr.bf16.mxu0 %v5585
    %5645 = vmatpush1.bf16.msra.mxu0 %v5584
    %5646 = vmatprep.subr.bf16.mxu0 %v5583
    %5647 = vmatpush1.bf16.msra.mxu0 %v5582
    %5648 = vmatprep.subr.bf16.mxu0 0
    %5649 = vmatpush2.bf16.msra.mxu0 0
    %5650 = vmatprep.subr.bf16.mxu0 0
    %5651 = vmatpush2.bf16.msra.mxu0 0
    %5652 = vmatprep.subr.bf16.mxu0 0
    %5653 = vmatpush2.bf16.msra.mxu0 0
    %5654 = vmatprep.subr.bf16.mxu0 0
    %5655 = vmatpush2.bf16.msra.mxu0 0
    %5656 = vmatprep.subr.bf16.mxu0 0
    %5657 = vmatpush2.bf16.msra.mxu0 0
    %5658 = vmatprep.subr.bf16.mxu0 0
    %5659 = vmatpush2.bf16.msra.mxu0 0
    %5660 = vmatprep.subr.bf16.mxu0 0
    %5661 = vmatpush2.bf16.msra.mxu0 0
    %5662 = vmatprep.subr.bf16.mxu0 0
    %5663 = vmatpush2.bf16.msra.mxu0 0
    %5664 = vmatprep.mubr.bf16.mxu0 0
    %5665 = vmatmul.mubr.bf16.gmra.mxu0 %v5609
    %v5666 = vpop.f32.mrf.mxu0
    %v5667 = vadd.f32 %v5600, %v5666
    %v5668 = vpop.f32.mrf.mxu0
    %v5669 = vadd.f32 %v5604, %v5668
    %v5670 = vpop.f32.mrf.mxu0
    %v5671 = vadd.f32 %v5600, %v5670
    %v5672 = vpop.f32.mrf.mxu0
    %v5673 = vadd.f32 %v5604, %v5672
    %5674 = vmatprep.mubr.bf16.mxu0 0
    %5675 = vmatmul.mubr.bf16.gmra.mxu0 %v5612
    %v5676 = vpop.f32.mrf.mxu0
    %v5677 = vadd.f32 %v5600, %v5676
    %v5678 = vpop.f32.mrf.mxu0
    %v5679 = vadd.f32 %v5604, %v5678
    %v5680 = vpop.f32.mrf.mxu0
    %v5681 = vadd.f32 %v5600, %v5680
    %v5682 = vpop.f32.mrf.mxu0
    %v5683 = vadd.f32 %v5604, %v5682
    %5684 = vmatprep.mubr.bf16.mxu0 0
    %5685 = vmatmul.mubr.bf16.gmra.mxu0 %v5615
    %v5686 = vpop.f32.mrf.mxu0
    %v5687 = vadd.f32 %v5600, %v5686
    %v5688 = vpop.f32.mrf.mxu0
    %v5689 = vadd.f32 %v5604, %v5688
    %v5690 = vpop.f32.mrf.mxu0
    %v5691 = vadd.f32 %v5600, %v5690
    %v5692 = vpop.f32.mrf.mxu0
    %v5693 = vadd.f32 %v5604, %v5692
    %5694 = vmatprep.mubr.bf16.mxu0 0
    %5695 = vmatmul.mubr.bf16.gmra.mxu0 %v5618
    %v5696 = vpop.f32.mrf.mxu0
    %v5697 = vadd.f32 %v5600, %v5696
    %v5698 = vpop.f32.mrf.mxu0
    %v5699 = vadd.f32 %v5604, %v5698
    %v5700 = vpop.f32.mrf.mxu0
    %v5701 = vadd.f32 %v5600, %v5700
    %v5702 = vpop.f32.mrf.mxu0
    %v5703 = vadd.f32 %v5604, %v5702
    %5704 = vmatprep.mubr.bf16.mxu0 0
    %5705 = vmatmul.mubr.bf16.gmra.mxu0 %v5621
    %v5706 = vpop.f32.mrf.mxu0
    %v5707 = vadd.f32 %v5600, %v5706
    %v5708 = vpop.f32.mrf.mxu0
    %v5709 = vadd.f32 %v5604, %v5708
    %v5710 = vpop.f32.mrf.mxu0
    %v5711 = vadd.f32 %v5600, %v5710
    %v5712 = vpop.f32.mrf.mxu0
    %v5713 = vadd.f32 %v5604, %v5712
    %5714 = vmatprep.mubr.bf16.mxu0 0
    %5715 = vmatmul.mubr.bf16.gmra.mxu0 %v5624
    %v5716 = vpop.f32.mrf.mxu0
    %v5717 = vadd.f32 %v5600, %v5716
    %v5718 = vpop.f32.mrf.mxu0
    %v5719 = vadd.f32 %v5604, %v5718
    %v5720 = vpop.f32.mrf.mxu0
    %v5721 = vadd.f32 %v5600, %v5720
    %v5722 = vpop.f32.mrf.mxu0
    %v5723 = vadd.f32 %v5604, %v5722
    %5724 = vmatprep.mubr.bf16.mxu0 0
    %5725 = vmatmul.mubr.bf16.gmra.mxu0 %v5627
    %v5726 = vpop.f32.mrf.mxu0
    %v5727 = vadd.f32 %v5600, %v5726
    %v5728 = vpop.f32.mrf.mxu0
    %v5729 = vadd.f32 %v5604, %v5728
    %v5730 = vpop.f32.mrf.mxu0
    %v5731 = vadd.f32 %v5600, %v5730
    %v5732 = vpop.f32.mrf.mxu0
    %v5733 = vadd.f32 %v5604, %v5732
    %5734 = vmatprep.mubr.bf16.mxu0 0
    %5735 = vmatmul.mubr.bf16.gmra.mxu0 %v5630
    %v5736 = vpop.f32.mrf.mxu0
    %v5737 = vadd.f32 %v5600, %v5736
    %v5738 = vpop.f32.mrf.mxu0
    %v5739 = vadd.f32 %v5604, %v5738
    %v5740 = vpop.f32.mrf.mxu0
    %v5741 = vadd.f32 %v5600, %v5740
    %v5742 = vpop.f32.mrf.mxu0
    %v5743 = vadd.f32 %v5604, %v5742
    %5744 = vdwg.mxu0
    %v5745 = vcombine.low %v5667, %v5677
    %v5746 = vcombine.high %v5667, %v5677
    %v5748 = vunpack.c.l.s4 1983009808
    %v5749 = vunpack.c.0.s8 %v5748
    %v5750 = vlaneseq
    %v5751 = vshrl.u32 %v5750, 7
    %v5752 = vsub.s32 %v5749, %v5751
    %v5753 = vrot.slane %v5745, %v5752
    %v5755 = vunpack.c.l.s4 1983009808
    %v5756 = vunpack.c.0.s8 %v5755
    %v5757 = vlaneseq
    %v5758 = vshrl.u32 %v5757, 7
    %v5759 = vsub.s32 %v5756, %v5758
    %v5760 = vrot.slane %v5746, %v5759
    %v5761 = vcombine.low %v5671, %v5681
    %v5762 = vcombine.high %v5671, %v5681
    %v5764 = vunpack.c.l.s4 1983009808
    %v5765 = vunpack.c.0.s8 %v5764
    %v5766 = vlaneseq
    %v5767 = vshrl.u32 %v5766, 7
    %v5768 = vsub.s32 %v5765, %v5767
    %v5769 = vrot.slane %v5761, %v5768
    %v5771 = vunpack.c.l.s4 1983009808
    %v5772 = vunpack.c.0.s8 %v5771
    %v5773 = vlaneseq
    %v5774 = vshrl.u32 %v5773, 7
    %v5775 = vsub.s32 %v5772, %v5774
    %v5776 = vrot.slane %v5762, %v5775
    %v5777 = vcombine.low %v5687, %v5697
    %v5778 = vcombine.high %v5687, %v5697
    %v5780 = vunpack.c.l.s4 1983009808
    %v5781 = vunpack.c.0.s8 %v5780
    %v5782 = vlaneseq
    %v5783 = vshrl.u32 %v5782, 7
    %v5784 = vsub.s32 %v5781, %v5783
    %v5785 = vrot.slane %v5777, %v5784
    %v5787 = vunpack.c.l.s4 1983009808
    %v5788 = vunpack.c.0.s8 %v5787
    %v5789 = vlaneseq
    %v5790 = vshrl.u32 %v5789, 7
    %v5791 = vsub.s32 %v5788, %v5790
    %v5792 = vrot.slane %v5778, %v5791
    %v5793 = vcombine.low %v5691, %v5701
    %v5794 = vcombine.high %v5691, %v5701
    %v5796 = vunpack.c.l.s4 1983009808
    %v5797 = vunpack.c.0.s8 %v5796
    %v5798 = vlaneseq
    %v5799 = vshrl.u32 %v5798, 7
    %v5800 = vsub.s32 %v5797, %v5799
    %v5801 = vrot.slane %v5793, %v5800
    %v5803 = vunpack.c.l.s4 1983009808
    %v5804 = vunpack.c.0.s8 %v5803
    %v5805 = vlaneseq
    %v5806 = vshrl.u32 %v5805, 7
    %v5807 = vsub.s32 %v5804, %v5806
    %v5808 = vrot.slane %v5794, %v5807
    %v5809 = vcombine.low %v5753, %v5769
    %v5810 = vcombine.high %v5753, %v5769
    %v5812 = vunpack.c.l.s4 1934713408
    %v5813 = vunpack.c.0.s8 %v5812
    %v5814 = vlaneseq
    %v5815 = vshrl.u32 %v5814, 7
    %v5816 = vsub.s32 %v5813, %v5815
    %v5817 = vrot.slane %v5809, %v5816
    %v5819 = vunpack.c.l.s4 1934713408
    %v5820 = vunpack.c.0.s8 %v5819
    %v5821 = vlaneseq
    %v5822 = vshrl.u32 %v5821, 7
    %v5823 = vsub.s32 %v5820, %v5822
    %v5824 = vrot.slane %v5810, %v5823
    %v5825 = vcombine.low %v5760, %v5776
    %v5826 = vcombine.high %v5760, %v5776
    %v5828 = vunpack.c.l.s4 1934713408
    %v5829 = vunpack.c.0.s8 %v5828
    %v5830 = vlaneseq
    %v5831 = vshrl.u32 %v5830, 7
    %v5832 = vsub.s32 %v5829, %v5831
    %v5833 = vrot.slane %v5825, %v5832
    %v5835 = vunpack.c.l.s4 1934713408
    %v5836 = vunpack.c.0.s8 %v5835
    %v5837 = vlaneseq
    %v5838 = vshrl.u32 %v5837, 7
    %v5839 = vsub.s32 %v5836, %v5838
    %v5840 = vrot.slane %v5826, %v5839
    %v5841 = vcombine.low %v5785, %v5801
    %v5842 = vcombine.high %v5785, %v5801
    %v5844 = vunpack.c.l.s4 1934713408
    %v5845 = vunpack.c.0.s8 %v5844
    %v5846 = vlaneseq
    %v5847 = vshrl.u32 %v5846, 7
    %v5848 = vsub.s32 %v5845, %v5847
    %v5849 = vrot.slane %v5841, %v5848
    %v5851 = vunpack.c.l.s4 1934713408
    %v5852 = vunpack.c.0.s8 %v5851
    %v5853 = vlaneseq
    %v5854 = vshrl.u32 %v5853, 7
    %v5855 = vsub.s32 %v5852, %v5854
    %v5856 = vrot.slane %v5842, %v5855
    %v5857 = vcombine.low %v5792, %v5808
    %v5858 = vcombine.high %v5792, %v5808
    %v5860 = vunpack.c.l.s4 1934713408
    %v5861 = vunpack.c.0.s8 %v5860
    %v5862 = vlaneseq
    %v5863 = vshrl.u32 %v5862, 7
    %v5864 = vsub.s32 %v5861, %v5863
    %v5865 = vrot.slane %v5857, %v5864
    %v5867 = vunpack.c.l.s4 1934713408
    %v5868 = vunpack.c.0.s8 %v5867
    %v5869 = vlaneseq
    %v5870 = vshrl.u32 %v5869, 7
    %v5871 = vsub.s32 %v5868, %v5870
    %v5872 = vrot.slane %v5858, %v5871
    %v5873 = vcombine.low %v5817, %v5849
    %v5874 = vcombine.high %v5817, %v5849
    %v5875 = vcombine.low %v5824, %v5856
    %v5876 = vcombine.high %v5824, %v5856
    %v5877 = vcombine.low %v5833, %v5865
    %v5878 = vcombine.high %v5833, %v5865
    %v5879 = vcombine.low %v5840, %v5872
    %v5880 = vcombine.high %v5840, %v5872
    %v5881 = vcombine.low %v5707, %v5717
    %v5882 = vcombine.high %v5707, %v5717
    %v5884 = vunpack.c.l.s4 1983009808
    %v5885 = vunpack.c.0.s8 %v5884
    %v5886 = vlaneseq
    %v5887 = vshrl.u32 %v5886, 7
    %v5888 = vsub.s32 %v5885, %v5887
    %v5889 = vrot.slane %v5881, %v5888
    %v5891 = vunpack.c.l.s4 1983009808
    %v5892 = vunpack.c.0.s8 %v5891
    %v5893 = vlaneseq
    %v5894 = vshrl.u32 %v5893, 7
    %v5895 = vsub.s32 %v5892, %v5894
    %v5896 = vrot.slane %v5882, %v5895
    %v5897 = vcombine.low %v5711, %v5721
    %v5898 = vcombine.high %v5711, %v5721
    %v5900 = vunpack.c.l.s4 1983009808
    %v5901 = vunpack.c.0.s8 %v5900
    %v5902 = vlaneseq
    %v5903 = vshrl.u32 %v5902, 7
    %v5904 = vsub.s32 %v5901, %v5903
    %v5905 = vrot.slane %v5897, %v5904
    %v5907 = vunpack.c.l.s4 1983009808
    %v5908 = vunpack.c.0.s8 %v5907
    %v5909 = vlaneseq
    %v5910 = vshrl.u32 %v5909, 7
    %v5911 = vsub.s32 %v5908, %v5910
    %v5912 = vrot.slane %v5898, %v5911
    %v5913 = vcombine.low %v5727, %v5737
    %v5914 = vcombine.high %v5727, %v5737
    %v5916 = vunpack.c.l.s4 1983009808
    %v5917 = vunpack.c.0.s8 %v5916
    %v5918 = vlaneseq
    %v5919 = vshrl.u32 %v5918, 7
    %v5920 = vsub.s32 %v5917, %v5919
    %v5921 = vrot.slane %v5913, %v5920
    %v5923 = vunpack.c.l.s4 1983009808
    %v5924 = vunpack.c.0.s8 %v5923
    %v5925 = vlaneseq
    %v5926 = vshrl.u32 %v5925, 7
    %v5927 = vsub.s32 %v5924, %v5926
    %v5928 = vrot.slane %v5914, %v5927
    %v5929 = vcombine.low %v5731, %v5741
    %v5930 = vcombine.high %v5731, %v5741
    %v5932 = vunpack.c.l.s4 1983009808
    %v5933 = vunpack.c.0.s8 %v5932
    %v5934 = vlaneseq
    %v5935 = vshrl.u32 %v5934, 7
    %v5936 = vsub.s32 %v5933, %v5935
    %v5937 = vrot.slane %v5929, %v5936
    %v5939 = vunpack.c.l.s4 1983009808
    %v5940 = vunpack.c.0.s8 %v5939
    %v5941 = vlaneseq
    %v5942 = vshrl.u32 %v5941, 7
    %v5943 = vsub.s32 %v5940, %v5942
    %v5944 = vrot.slane %v5930, %v5943
    %v5945 = vcombine.low %v5889, %v5905
    %v5946 = vcombine.high %v5889, %v5905
    %v5948 = vunpack.c.l.s4 1934713408
    %v5949 = vunpack.c.0.s8 %v5948
    %v5950 = vlaneseq
    %v5951 = vshrl.u32 %v5950, 7
    %v5952 = vsub.s32 %v5949, %v5951
    %v5953 = vrot.slane %v5945, %v5952
    %v5955 = vunpack.c.l.s4 1934713408
    %v5956 = vunpack.c.0.s8 %v5955
    %v5957 = vlaneseq
    %v5958 = vshrl.u32 %v5957, 7
    %v5959 = vsub.s32 %v5956, %v5958
    %v5960 = vrot.slane %v5946, %v5959
    %v5961 = vcombine.low %v5896, %v5912
    %v5962 = vcombine.high %v5896, %v5912
    %v5964 = vunpack.c.l.s4 1934713408
    %v5965 = vunpack.c.0.s8 %v5964
    %v5966 = vlaneseq
    %v5967 = vshrl.u32 %v5966, 7
    %v5968 = vsub.s32 %v5965, %v5967
    %v5969 = vrot.slane %v5961, %v5968
    %v5971 = vunpack.c.l.s4 1934713408
    %v5972 = vunpack.c.0.s8 %v5971
    %v5973 = vlaneseq
    %v5974 = vshrl.u32 %v5973, 7
    %v5975 = vsub.s32 %v5972, %v5974
    %v5976 = vrot.slane %v5962, %v5975
    %v5977 = vcombine.low %v5921, %v5937
    %v5978 = vcombine.high %v5921, %v5937
    %v5980 = vunpack.c.l.s4 1934713408
    %v5981 = vunpack.c.0.s8 %v5980
    %v5982 = vlaneseq
    %v5983 = vshrl.u32 %v5982, 7
    %v5984 = vsub.s32 %v5981, %v5983
    %v5985 = vrot.slane %v5977, %v5984
    %v5987 = vunpack.c.l.s4 1934713408
    %v5988 = vunpack.c.0.s8 %v5987
    %v5989 = vlaneseq
    %v5990 = vshrl.u32 %v5989, 7
    %v5991 = vsub.s32 %v5988, %v5990
    %v5992 = vrot.slane %v5978, %v5991
    %v5993 = vcombine.low %v5928, %v5944
    %v5994 = vcombine.high %v5928, %v5944
    %v5996 = vunpack.c.l.s4 1934713408
    %v5997 = vunpack.c.0.s8 %v5996
    %v5998 = vlaneseq
    %v5999 = vshrl.u32 %v5998, 7
    %v6000 = vsub.s32 %v5997, %v5999
    %v6001 = vrot.slane %v5993, %v6000
    %v6003 = vunpack.c.l.s4 1934713408
    %v6004 = vunpack.c.0.s8 %v6003
    %v6005 = vlaneseq
    %v6006 = vshrl.u32 %v6005, 7
    %v6007 = vsub.s32 %v6004, %v6006
    %v6008 = vrot.slane %v5994, %v6007
    %v6009 = vcombine.low %v5953, %v5985
    %v6010 = vcombine.high %v5953, %v5985
    %v6011 = vcombine.low %v5960, %v5992
    %v6012 = vcombine.high %v5960, %v5992
    %v6013 = vcombine.low %v5969, %v6001
    %v6014 = vcombine.high %v5969, %v6001
    %v6015 = vcombine.low %v5976, %v6008
    %v6016 = vcombine.high %v5976, %v6008
    %6033 = vrot.lane.b32.xlu0 %v5873, 80
    %v6034 = vpop.permute.xlu0 %6033
    %6035 = vrot.lane.b32.xlu0 %v5874, 80
    %v6036 = vpop.permute.xlu0 %6035
    %6037 = vrot.lane.b32.xlu0 %v5875, 80
    %v6038 = vpop.permute.xlu0 %6037
    %6039 = vrot.lane.b32.xlu0 %v5876, 80
    %v6040 = vpop.permute.xlu0 %6039
    %6041 = vrot.lane.b32.xlu0 %v5877, 80
    %v6042 = vpop.permute.xlu0 %6041
    %6043 = vrot.lane.b32.xlu0 %v5878, 80
    %v6044 = vpop.permute.xlu0 %6043
    %6045 = vrot.lane.b32.xlu0 %v5879, 80
    %v6046 = vpop.permute.xlu0 %6045
    %6047 = vrot.lane.b32.xlu0 %v5880, 80
    %v6048 = vpop.permute.xlu0 %6047
    %6049 = vrot.lane.b32.xlu0 %v6009, 80
    %v6050 = vpop.permute.xlu0 %6049
    %6051 = vrot.lane.b32.xlu0 %v6010, 80
    %v6052 = vpop.permute.xlu0 %6051
    %6053 = vrot.lane.b32.xlu0 %v6011, 80
    %v6054 = vpop.permute.xlu0 %6053
    %6055 = vrot.lane.b32.xlu0 %v6012, 80
    %v6056 = vpop.permute.xlu0 %6055
    %6057 = vrot.lane.b32.xlu0 %v6013, 80
    %v6058 = vpop.permute.xlu0 %6057
    %6059 = vrot.lane.b32.xlu0 %v6014, 80
    %v6060 = vpop.permute.xlu0 %6059
    %6061 = vrot.lane.b32.xlu0 %v6015, 80
    %v6062 = vpop.permute.xlu0 %6061
    %6063 = vrot.lane.b32.xlu0 %v6016, 80
    %v6064 = vpop.permute.xlu0 %6063
    %v6081 = vmul.f32 %v5873, 0.14433756
    %v6082 = vmul.f32 %v5874, 0.14433756
    %v6083 = vmul.f32 %v5875, 0.14433756
    %v6084 = vmul.f32 %v5876, 0.14433756
    %v6085 = vmul.f32 %v5877, 0.14433756
    %v6086 = vmul.f32 %v5878, 0.14433756
    %v6087 = vmul.f32 %v5879, 0.14433756
    %v6088 = vmul.f32 %v5880, 0.14433756
    %v6089 = vmul.f32 %v6009, 0.14433756
    %v6090 = vmul.f32 %v6010, 0.14433756
    %v6091 = vmul.f32 %v6011, 0.14433756
    %v6092 = vmul.f32 %v6012, 0.14433756
    %v6093 = vmul.f32 %v6013, 0.14433756
    %v6094 = vmul.f32 %v6014, 0.14433756
    %v6095 = vmul.f32 %v6015, 0.14433756
    %v6096 = vmul.f32 %v6016, 0.14433756
    %v6097 = vmul.f32 %v6034, 0.14433756
    %v6098 = vmul.f32 %v6036, 0.14433756
    %v6099 = vmul.f32 %v6038, 0.14433756
    %v6100 = vmul.f32 %v6040, 0.14433756
    %v6101 = vmul.f32 %v6042, 0.14433756
    %v6102 = vmul.f32 %v6044, 0.14433756
    %v6103 = vmul.f32 %v6046, 0.14433756
    %v6104 = vmul.f32 %v6048, 0.14433756
    %v6105 = vmul.f32 %v6050, 0.14433756
    %v6106 = vmul.f32 %v6052, 0.14433756
    %v6107 = vmul.f32 %v6054, 0.14433756
    %v6108 = vmul.f32 %v6056, 0.14433756
    %v6109 = vmul.f32 %v6058, 0.14433756
    %v6110 = vmul.f32 %v6060, 0.14433756
    %v6111 = vmul.f32 %v6062, 0.14433756
    %v6112 = vmul.f32 %v6064, 0.14433756
    %6145 = vrot.lane.b32.xlu0 %v5667, 32
    %v6146 = vpop.permute.xlu0 %6145
    %6147 = vrot.lane.b32.xlu0 %v5669, 32
    %v6148 = vpop.permute.xlu0 %6147
    %6149 = vrot.lane.b32.xlu0 %v5671, 32
    %v6150 = vpop.permute.xlu0 %6149
    %6151 = vrot.lane.b32.xlu0 %v5673, 32
    %v6152 = vpop.permute.xlu0 %6151
    %6153 = vrot.lane.b32.xlu0 %v5677, 32
    %v6154 = vpop.permute.xlu0 %6153
    %6155 = vrot.lane.b32.xlu0 %v5679, 32
    %v6156 = vpop.permute.xlu0 %6155
    %6157 = vrot.lane.b32.xlu0 %v5681, 32
    %v6158 = vpop.permute.xlu0 %6157
    %6159 = vrot.lane.b32.xlu0 %v5683, 32
    %v6160 = vpop.permute.xlu0 %6159
    %6161 = vrot.lane.b32.xlu0 %v5687, 32
    %v6162 = vpop.permute.xlu0 %6161
    %6163 = vrot.lane.b32.xlu0 %v5689, 32
    %v6164 = vpop.permute.xlu0 %6163
    %6165 = vrot.lane.b32.xlu0 %v5691, 32
    %v6166 = vpop.permute.xlu0 %6165
    %6167 = vrot.lane.b32.xlu0 %v5693, 32
    %v6168 = vpop.permute.xlu0 %6167
    %6169 = vrot.lane.b32.xlu0 %v5697, 32
    %v6170 = vpop.permute.xlu0 %6169
    %6171 = vrot.lane.b32.xlu0 %v5699, 32
    %v6172 = vpop.permute.xlu0 %6171
    %6173 = vrot.lane.b32.xlu0 %v5701, 32
    %v6174 = vpop.permute.xlu0 %6173
    %6175 = vrot.lane.b32.xlu0 %v5703, 32
    %v6176 = vpop.permute.xlu0 %6175
    %6177 = vrot.lane.b32.xlu0 %v5707, 32
    %v6178 = vpop.permute.xlu0 %6177
    %6179 = vrot.lane.b32.xlu0 %v5709, 32
    %v6180 = vpop.permute.xlu0 %6179
    %6181 = vrot.lane.b32.xlu0 %v5711, 32
    %v6182 = vpop.permute.xlu0 %6181
    %6183 = vrot.lane.b32.xlu0 %v5713, 32
    %v6184 = vpop.permute.xlu0 %6183
    %6185 = vrot.lane.b32.xlu0 %v5717, 32
    %v6186 = vpop.permute.xlu0 %6185
    %6187 = vrot.lane.b32.xlu0 %v5719, 32
    %v6188 = vpop.permute.xlu0 %6187
    %6189 = vrot.lane.b32.xlu0 %v5721, 32
    %v6190 = vpop.permute.xlu0 %6189
    %6191 = vrot.lane.b32.xlu0 %v5723, 32
    %v6192 = vpop.permute.xlu0 %6191
    %6193 = vrot.lane.b32.xlu0 %v5727, 32
    %v6194 = vpop.permute.xlu0 %6193
    %6195 = vrot.lane.b32.xlu0 %v5729, 32
    %v6196 = vpop.permute.xlu0 %6195
    %6197 = vrot.lane.b32.xlu0 %v5731, 32
    %v6198 = vpop.permute.xlu0 %6197
    %6199 = vrot.lane.b32.xlu0 %v5733, 32
    %v6200 = vpop.permute.xlu0 %6199
    %6201 = vrot.lane.b32.xlu0 %v5737, 32
    %v6202 = vpop.permute.xlu0 %6201
    %6203 = vrot.lane.b32.xlu0 %v5739, 32
    %v6204 = vpop.permute.xlu0 %6203
    %6205 = vrot.lane.b32.xlu0 %v5741, 32
    %v6206 = vpop.permute.xlu0 %6205
    %6207 = vrot.lane.b32.xlu0 %v5743, 32
    %v6208 = vpop.permute.xlu0 %6207
    %vm6209 = vcmask 261120
    %v6210 = vsel %vm6209, %v6146, %v6148
    %v6211 = vsel %vm6209, %v6150, %v6152
    %v6212 = vsel %vm6209, %v6154, %v6156
    %v6213 = vsel %vm6209, %v6158, %v6160
    %v6214 = vsel %vm6209, %v6162, %v6164
    %v6215 = vsel %vm6209, %v6166, %v6168
    %v6216 = vsel %vm6209, %v6170, %v6172
    %v6217 = vsel %vm6209, %v6174, %v6176
    %v6218 = vsel %vm6209, %v6178, %v6180
    %v6219 = vsel %vm6209, %v6182, %v6184
    %v6220 = vsel %vm6209, %v6186, %v6188
    %v6221 = vsel %vm6209, %v6190, %v6192
    %v6222 = vsel %vm6209, %v6194, %v6196
    %v6223 = vsel %vm6209, %v6198, %v6200
    %v6224 = vsel %vm6209, %v6202, %v6204
    %v6225 = vsel %vm6209, %v6206, %v6208
    %v6242 = vcombine.low %v6210, %v6212
    %v6243 = vcombine.high %v6210, %v6212
    %v6245 = vunpack.c.l.s4 1983009808
    %v6246 = vunpack.c.0.s8 %v6245
    %v6247 = vlaneseq
    %v6248 = vshrl.u32 %v6247, 7
    %v6249 = vsub.s32 %v6246, %v6248
    %v6250 = vrot.slane %v6242, %v6249
    %v6252 = vunpack.c.l.s4 1983009808
    %v6253 = vunpack.c.0.s8 %v6252
    %v6254 = vlaneseq
    %v6255 = vshrl.u32 %v6254, 7
    %v6256 = vsub.s32 %v6253, %v6255
    %v6257 = vrot.slane %v6243, %v6256
    %v6258 = vcombine.low %v6211, %v6213
    %v6259 = vcombine.high %v6211, %v6213
    %v6261 = vunpack.c.l.s4 1983009808
    %v6262 = vunpack.c.0.s8 %v6261
    %v6263 = vlaneseq
    %v6264 = vshrl.u32 %v6263, 7
    %v6265 = vsub.s32 %v6262, %v6264
    %v6266 = vrot.slane %v6258, %v6265
    %v6268 = vunpack.c.l.s4 1983009808
    %v6269 = vunpack.c.0.s8 %v6268
    %v6270 = vlaneseq
    %v6271 = vshrl.u32 %v6270, 7
    %v6272 = vsub.s32 %v6269, %v6271
    %v6273 = vrot.slane %v6259, %v6272
    %v6274 = vcombine.low %v6214, %v6216
    %v6275 = vcombine.high %v6214, %v6216
    %v6277 = vunpack.c.l.s4 1983009808
    %v6278 = vunpack.c.0.s8 %v6277
    %v6279 = vlaneseq
    %v6280 = vshrl.u32 %v6279, 7
    %v6281 = vsub.s32 %v6278, %v6280
    %v6282 = vrot.slane %v6274, %v6281
    %v6284 = vunpack.c.l.s4 1983009808
    %v6285 = vunpack.c.0.s8 %v6284
    %v6286 = vlaneseq
    %v6287 = vshrl.u32 %v6286, 7
    %v6288 = vsub.s32 %v6285, %v6287
    %v6289 = vrot.slane %v6275, %v6288
    %v6290 = vcombine.low %v6215, %v6217
    %v6291 = vcombine.high %v6215, %v6217
    %v6293 = vunpack.c.l.s4 1983009808
    %v6294 = vunpack.c.0.s8 %v6293
    %v6295 = vlaneseq
    %v6296 = vshrl.u32 %v6295, 7
    %v6297 = vsub.s32 %v6294, %v6296
    %v6298 = vrot.slane %v6290, %v6297
    %v6300 = vunpack.c.l.s4 1983009808
    %v6301 = vunpack.c.0.s8 %v6300
    %v6302 = vlaneseq
    %v6303 = vshrl.u32 %v6302, 7
    %v6304 = vsub.s32 %v6301, %v6303
    %v6305 = vrot.slane %v6291, %v6304
    %v6306 = vcombine.low %v6250, %v6266
    %v6307 = vcombine.high %v6250, %v6266
    %v6309 = vunpack.c.l.s4 1934713408
    %v6310 = vunpack.c.0.s8 %v6309
    %v6311 = vlaneseq
    %v6312 = vshrl.u32 %v6311, 7
    %v6313 = vsub.s32 %v6310, %v6312
    %v6314 = vrot.slane %v6306, %v6313
    %v6316 = vunpack.c.l.s4 1934713408
    %v6317 = vunpack.c.0.s8 %v6316
    %v6318 = vlaneseq
    %v6319 = vshrl.u32 %v6318, 7
    %v6320 = vsub.s32 %v6317, %v6319
    %v6321 = vrot.slane %v6307, %v6320
    %v6322 = vcombine.low %v6257, %v6273
    %v6323 = vcombine.high %v6257, %v6273
    %v6325 = vunpack.c.l.s4 1934713408
    %v6326 = vunpack.c.0.s8 %v6325
    %v6327 = vlaneseq
    %v6328 = vshrl.u32 %v6327, 7
    %v6329 = vsub.s32 %v6326, %v6328
    %v6330 = vrot.slane %v6322, %v6329
    %v6332 = vunpack.c.l.s4 1934713408
    %v6333 = vunpack.c.0.s8 %v6332
    %v6334 = vlaneseq
    %v6335 = vshrl.u32 %v6334, 7
    %v6336 = vsub.s32 %v6333, %v6335
    %v6337 = vrot.slane %v6323, %v6336
    %v6338 = vcombine.low %v6282, %v6298
    %v6339 = vcombine.high %v6282, %v6298
    %v6341 = vunpack.c.l.s4 1934713408
    %v6342 = vunpack.c.0.s8 %v6341
    %v6343 = vlaneseq
    %v6344 = vshrl.u32 %v6343, 7
    %v6345 = vsub.s32 %v6342, %v6344
    %v6346 = vrot.slane %v6338, %v6345
    %v6348 = vunpack.c.l.s4 1934713408
    %v6349 = vunpack.c.0.s8 %v6348
    %v6350 = vlaneseq
    %v6351 = vshrl.u32 %v6350, 7
    %v6352 = vsub.s32 %v6349, %v6351
    %v6353 = vrot.slane %v6339, %v6352
    %v6354 = vcombine.low %v6289, %v6305
    %v6355 = vcombine.high %v6289, %v6305
    %v6357 = vunpack.c.l.s4 1934713408
    %v6358 = vunpack.c.0.s8 %v6357
    %v6359 = vlaneseq
    %v6360 = vshrl.u32 %v6359, 7
    %v6361 = vsub.s32 %v6358, %v6360
    %v6362 = vrot.slane %v6354, %v6361
    %v6364 = vunpack.c.l.s4 1934713408
    %v6365 = vunpack.c.0.s8 %v6364
    %v6366 = vlaneseq
    %v6367 = vshrl.u32 %v6366, 7
    %v6368 = vsub.s32 %v6365, %v6367
    %v6369 = vrot.slane %v6355, %v6368
    %v6370 = vcombine.low %v6314, %v6346
    %v6371 = vcombine.high %v6314, %v6346
    %v6372 = vcombine.low %v6321, %v6353
    %v6373 = vcombine.high %v6321, %v6353
    %v6374 = vcombine.low %v6330, %v6362
    %v6375 = vcombine.high %v6330, %v6362
    %v6376 = vcombine.low %v6337, %v6369
    %v6377 = vcombine.high %v6337, %v6369
    %v6378 = vcombine.low %v6218, %v6220
    %v6379 = vcombine.high %v6218, %v6220
    %v6381 = vunpack.c.l.s4 1983009808
    %v6382 = vunpack.c.0.s8 %v6381
    %v6383 = vlaneseq
    %v6384 = vshrl.u32 %v6383, 7
    %v6385 = vsub.s32 %v6382, %v6384
    %v6386 = vrot.slane %v6378, %v6385
    %v6388 = vunpack.c.l.s4 1983009808
    %v6389 = vunpack.c.0.s8 %v6388
    %v6390 = vlaneseq
    %v6391 = vshrl.u32 %v6390, 7
    %v6392 = vsub.s32 %v6389, %v6391
    %v6393 = vrot.slane %v6379, %v6392
    %v6394 = vcombine.low %v6219, %v6221
    %v6395 = vcombine.high %v6219, %v6221
    %v6397 = vunpack.c.l.s4 1983009808
    %v6398 = vunpack.c.0.s8 %v6397
    %v6399 = vlaneseq
    %v6400 = vshrl.u32 %v6399, 7
    %v6401 = vsub.s32 %v6398, %v6400
    %v6402 = vrot.slane %v6394, %v6401
    %v6404 = vunpack.c.l.s4 1983009808
    %v6405 = vunpack.c.0.s8 %v6404
    %v6406 = vlaneseq
    %v6407 = vshrl.u32 %v6406, 7
    %v6408 = vsub.s32 %v6405, %v6407
    %v6409 = vrot.slane %v6395, %v6408
    %v6410 = vcombine.low %v6222, %v6224
    %v6411 = vcombine.high %v6222, %v6224
    %v6413 = vunpack.c.l.s4 1983009808
    %v6414 = vunpack.c.0.s8 %v6413
    %v6415 = vlaneseq
    %v6416 = vshrl.u32 %v6415, 7
    %v6417 = vsub.s32 %v6414, %v6416
    %v6418 = vrot.slane %v6410, %v6417
    %v6420 = vunpack.c.l.s4 1983009808
    %v6421 = vunpack.c.0.s8 %v6420
    %v6422 = vlaneseq
    %v6423 = vshrl.u32 %v6422, 7
    %v6424 = vsub.s32 %v6421, %v6423
    %v6425 = vrot.slane %v6411, %v6424
    %v6426 = vcombine.low %v6223, %v6225
    %v6427 = vcombine.high %v6223, %v6225
    %v6429 = vunpack.c.l.s4 1983009808
    %v6430 = vunpack.c.0.s8 %v6429
    %v6431 = vlaneseq
    %v6432 = vshrl.u32 %v6431, 7
    %v6433 = vsub.s32 %v6430, %v6432
    %v6434 = vrot.slane %v6426, %v6433
    %v6436 = vunpack.c.l.s4 1983009808
    %v6437 = vunpack.c.0.s8 %v6436
    %v6438 = vlaneseq
    %v6439 = vshrl.u32 %v6438, 7
    %v6440 = vsub.s32 %v6437, %v6439
    %v6441 = vrot.slane %v6427, %v6440
    %v6442 = vcombine.low %v6386, %v6402
    %v6443 = vcombine.high %v6386, %v6402
    %v6445 = vunpack.c.l.s4 1934713408
    %v6446 = vunpack.c.0.s8 %v6445
    %v6447 = vlaneseq
    %v6448 = vshrl.u32 %v6447, 7
    %v6449 = vsub.s32 %v6446, %v6448
    %v6450 = vrot.slane %v6442, %v6449
    %v6452 = vunpack.c.l.s4 1934713408
    %v6453 = vunpack.c.0.s8 %v6452
    %v6454 = vlaneseq
    %v6455 = vshrl.u32 %v6454, 7
    %v6456 = vsub.s32 %v6453, %v6455
    %v6457 = vrot.slane %v6443, %v6456
    %v6458 = vcombine.low %v6393, %v6409
    %v6459 = vcombine.high %v6393, %v6409
    %v6461 = vunpack.c.l.s4 1934713408
    %v6462 = vunpack.c.0.s8 %v6461
    %v6463 = vlaneseq
    %v6464 = vshrl.u32 %v6463, 7
    %v6465 = vsub.s32 %v6462, %v6464
    %v6466 = vrot.slane %v6458, %v6465
    %v6468 = vunpack.c.l.s4 1934713408
    %v6469 = vunpack.c.0.s8 %v6468
    %v6470 = vlaneseq
    %v6471 = vshrl.u32 %v6470, 7
    %v6472 = vsub.s32 %v6469, %v6471
    %v6473 = vrot.slane %v6459, %v6472
    %v6474 = vcombine.low %v6418, %v6434
    %v6475 = vcombine.high %v6418, %v6434
    %v6477 = vunpack.c.l.s4 1934713408
    %v6478 = vunpack.c.0.s8 %v6477
    %v6479 = vlaneseq
    %v6480 = vshrl.u32 %v6479, 7
    %v6481 = vsub.s32 %v6478, %v6480
    %v6482 = vrot.slane %v6474, %v6481
    %v6484 = vunpack.c.l.s4 1934713408
    %v6485 = vunpack.c.0.s8 %v6484
    %v6486 = vlaneseq
    %v6487 = vshrl.u32 %v6486, 7
    %v6488 = vsub.s32 %v6485, %v6487
    %v6489 = vrot.slane %v6475, %v6488
    %v6490 = vcombine.low %v6425, %v6441
    %v6491 = vcombine.high %v6425, %v6441
    %v6493 = vunpack.c.l.s4 1934713408
    %v6494 = vunpack.c.0.s8 %v6493
    %v6495 = vlaneseq
    %v6496 = vshrl.u32 %v6495, 7
    %v6497 = vsub.s32 %v6494, %v6496
    %v6498 = vrot.slane %v6490, %v6497
    %v6500 = vunpack.c.l.s4 1934713408
    %v6501 = vunpack.c.0.s8 %v6500
    %v6502 = vlaneseq
    %v6503 = vshrl.u32 %v6502, 7
    %v6504 = vsub.s32 %v6501, %v6503
    %v6505 = vrot.slane %v6491, %v6504
    %v6506 = vcombine.low %v6450, %v6482
    %v6507 = vcombine.high %v6450, %v6482
    %v6508 = vcombine.low %v6457, %v6489
    %v6509 = vcombine.high %v6457, %v6489
    %v6510 = vcombine.low %v6466, %v6498
    %v6511 = vcombine.high %v6466, %v6498
    %v6512 = vcombine.low %v6473, %v6505
    %v6513 = vcombine.high %v6473, %v6505
    %6530 = vrot.lane.b32.xlu0 %v6370, 80
    %v6531 = vpop.permute.xlu0 %6530
    %6532 = vrot.lane.b32.xlu0 %v6371, 80
    %v6533 = vpop.permute.xlu0 %6532
    %6534 = vrot.lane.b32.xlu0 %v6372, 80
    %v6535 = vpop.permute.xlu0 %6534
    %6536 = vrot.lane.b32.xlu0 %v6373, 80
    %v6537 = vpop.permute.xlu0 %6536
    %6538 = vrot.lane.b32.xlu0 %v6374, 80
    %v6539 = vpop.permute.xlu0 %6538
    %6540 = vrot.lane.b32.xlu0 %v6375, 80
    %v6541 = vpop.permute.xlu0 %6540
    %6542 = vrot.lane.b32.xlu0 %v6376, 80
    %v6543 = vpop.permute.xlu0 %6542
    %6544 = vrot.lane.b32.xlu0 %v6377, 80
    %v6545 = vpop.permute.xlu0 %6544
    %6546 = vrot.lane.b32.xlu0 %v6506, 80
    %v6547 = vpop.permute.xlu0 %6546
    %6548 = vrot.lane.b32.xlu0 %v6507, 80
    %v6549 = vpop.permute.xlu0 %6548
    %6550 = vrot.lane.b32.xlu0 %v6508, 80
    %v6551 = vpop.permute.xlu0 %6550
    %6552 = vrot.lane.b32.xlu0 %v6509, 80
    %v6553 = vpop.permute.xlu0 %6552
    %6554 = vrot.lane.b32.xlu0 %v6510, 80
    %v6555 = vpop.permute.xlu0 %6554
    %6556 = vrot.lane.b32.xlu0 %v6511, 80
    %v6557 = vpop.permute.xlu0 %6556
    %6558 = vrot.lane.b32.xlu0 %v6512, 80
    %v6559 = vpop.permute.xlu0 %6558
    %6560 = vrot.lane.b32.xlu0 %v6513, 80
    %v6561 = vpop.permute.xlu0 %6560
    %v6578 = vpack.c.bf16 %v6081, %v6081
    %v6579 = vpack.c.bf16 %v6082, %v6082
    %v6580 = vpack.c.bf16 %v6083, %v6083
    %v6581 = vpack.c.bf16 %v6084, %v6084
    %v6582 = vpack.c.bf16 %v6085, %v6085
    %v6583 = vpack.c.bf16 %v6086, %v6086
    %v6584 = vpack.c.bf16 %v6087, %v6087
    %v6585 = vpack.c.bf16 %v6088, %v6088
    %v6586 = vpack.c.bf16 %v6089, %v6089
    %v6587 = vpack.c.bf16 %v6090, %v6090
    %v6588 = vpack.c.bf16 %v6091, %v6091
    %v6589 = vpack.c.bf16 %v6092, %v6092
    %v6590 = vpack.c.bf16 %v6093, %v6093
    %v6591 = vpack.c.bf16 %v6094, %v6094
    %v6592 = vpack.c.bf16 %v6095, %v6095
    %v6593 = vpack.c.bf16 %v6096, %v6096
    %v6594 = vpack.c.bf16 %v6097, %v6097
    %v6595 = vpack.c.bf16 %v6098, %v6098
    %v6596 = vpack.c.bf16 %v6099, %v6099
    %v6597 = vpack.c.bf16 %v6100, %v6100
    %v6598 = vpack.c.bf16 %v6101, %v6101
    %v6599 = vpack.c.bf16 %v6102, %v6102
    %v6600 = vpack.c.bf16 %v6103, %v6103
    %v6601 = vpack.c.bf16 %v6104, %v6104
    %v6602 = vpack.c.bf16 %v6105, %v6105
    %v6603 = vpack.c.bf16 %v6106, %v6106
    %v6604 = vpack.c.bf16 %v6107, %v6107
    %v6605 = vpack.c.bf16 %v6108, %v6108
    %v6606 = vpack.c.bf16 %v6109, %v6109
    %v6607 = vpack.c.bf16 %v6110, %v6110
    %v6608 = vpack.c.bf16 %v6111, %v6111
    %v6609 = vpack.c.bf16 %v6112, %v6112
    %v6610 = vpack.c.bf16 %v6370, %v6370
    %v6611 = vpack.c.bf16 %v6371, %v6371
    %v6612 = vpack.c.bf16 %v6372, %v6372
    %v6613 = vpack.c.bf16 %v6373, %v6373
    %v6614 = vpack.c.bf16 %v6374, %v6374
    %v6615 = vpack.c.bf16 %v6375, %v6375
    %v6616 = vpack.c.bf16 %v6376, %v6376
    %v6617 = vpack.c.bf16 %v6377, %v6377
    %v6618 = vpack.c.bf16 %v6506, %v6506
    %v6619 = vpack.c.bf16 %v6507, %v6507
    %v6620 = vpack.c.bf16 %v6508, %v6508
    %v6621 = vpack.c.bf16 %v6509, %v6509
    %v6622 = vpack.c.bf16 %v6510, %v6510
    %v6623 = vpack.c.bf16 %v6511, %v6511
    %v6624 = vpack.c.bf16 %v6512, %v6512
    %v6625 = vpack.c.bf16 %v6513, %v6513
    %v6626 = vpack.c.bf16 %v6531, %v6531
    %v6627 = vpack.c.bf16 %v6533, %v6533
    %v6628 = vpack.c.bf16 %v6535, %v6535
    %v6629 = vpack.c.bf16 %v6537, %v6537
    %v6630 = vpack.c.bf16 %v6539, %v6539
    %v6631 = vpack.c.bf16 %v6541, %v6541
    %v6632 = vpack.c.bf16 %v6543, %v6543
    %v6633 = vpack.c.bf16 %v6545, %v6545
    %v6634 = vpack.c.bf16 %v6547, %v6547
    %v6635 = vpack.c.bf16 %v6549, %v6549
    %v6636 = vpack.c.bf16 %v6551, %v6551
    %v6637 = vpack.c.bf16 %v6553, %v6553
    %v6638 = vpack.c.bf16 %v6555, %v6555
    %v6639 = vpack.c.bf16 %v6557, %v6557
    %v6640 = vpack.c.bf16 %v6559, %v6559
    %v6641 = vpack.c.bf16 %v6561, %v6561
    %v6643 = vsel %vm381, %v6578, 0
    %v6646 = vsel %vm381, %v6610, 0
    %6648 = vmatprep.subr.bf16.mxu0 0
    %6649 = vmatpush1.bf16.xpose.msra.mxu0 0
    %6650 = vmatprep.subr.bf16.mxu0 0
    %6651 = vmatpush1.bf16.xpose.msra.mxu0 0
    %6652 = vmatprep.subr.bf16.mxu0 0
    %6653 = vmatpush1.bf16.xpose.msra.mxu0 0
    %6654 = vmatprep.subr.bf16.mxu0 0
    %6655 = vmatpush1.bf16.xpose.msra.mxu0 0
    %6656 = vmatprep.subr.bf16.mxu0 0
    %6657 = vmatpush1.bf16.xpose.msra.mxu0 0
    %6658 = vmatprep.subr.bf16.mxu0 0
    %6659 = vmatpush1.bf16.xpose.msra.mxu0 0
    %6660 = vmatprep.subr.bf16.mxu0 0
    %6661 = vmatpush1.bf16.xpose.msra.mxu0 0
    %6662 = vmatprep.subr.bf16.mxu0 0
    %6663 = vmatpush1.bf16.xpose.msra.mxu0 %v6646
    %6664 = vmatprep.subr.bf16.mxu0 0
    %6665 = vmatpush2.bf16.xpose.msra.mxu0 0
    %6666 = vmatprep.subr.bf16.mxu0 0
    %6667 = vmatpush2.bf16.xpose.msra.mxu0 0
    %6668 = vmatprep.subr.bf16.mxu0 0
    %6669 = vmatpush2.bf16.xpose.msra.mxu0 0
    %6670 = vmatprep.subr.bf16.mxu0 0
    %6671 = vmatpush2.bf16.xpose.msra.mxu0 0
    %6672 = vmatprep.subr.bf16.mxu0 0
    %6673 = vmatpush2.bf16.xpose.msra.mxu0 0
    %6674 = vmatprep.subr.bf16.mxu0 0
    %6675 = vmatpush2.bf16.xpose.msra.mxu0 0
    %6676 = vmatprep.subr.bf16.mxu0 0
    %6677 = vmatpush2.bf16.xpose.msra.mxu0 0
    %6678 = vmatprep.subr.bf16.mxu0 0
    %6679 = vmatpush2.bf16.xpose.msra.mxu0 0
    %6680 = vmatprep.mubr.bf16.mxu0 0
    %6681 = vmatmul.mubr.bf16.gmra.mxu0 %v6643
    %v6682 = vpop.f32.mrf.mxu0
    %v6683 = vadd.f32 0.0, %v6682
    %v6684 = vpop.f32.mrf.mxu0
    %v6685 = vpop.f32.mrf.mxu0
    %v6686 = vpop.f32.mrf.mxu0
    %6687 = vdwg.mxu0
    %v6689 = vsel %vm381, %v6579, 0
    %v6692 = vsel %vm381, %v6611, 0
    %6694 = vmatprep.subr.bf16.mxu0 0
    %6695 = vmatpush1.bf16.xpose.msra.mxu0 0
    %6696 = vmatprep.subr.bf16.mxu0 0
    %6697 = vmatpush1.bf16.xpose.msra.mxu0 0
    %6698 = vmatprep.subr.bf16.mxu0 0
    %6699 = vmatpush1.bf16.xpose.msra.mxu0 0
    %6700 = vmatprep.subr.bf16.mxu0 0
    %6701 = vmatpush1.bf16.xpose.msra.mxu0 0
    %6702 = vmatprep.subr.bf16.mxu0 0
    %6703 = vmatpush1.bf16.xpose.msra.mxu0 0
    %6704 = vmatprep.subr.bf16.mxu0 0
    %6705 = vmatpush1.bf16.xpose.msra.mxu0 0
    %6706 = vmatprep.subr.bf16.mxu0 0
    %6707 = vmatpush1.bf16.xpose.msra.mxu0 0
    %6708 = vmatprep.subr.bf16.mxu0 0
    %6709 = vmatpush1.bf16.xpose.msra.mxu0 %v6692
    %6710 = vmatprep.subr.bf16.mxu0 0
    %6711 = vmatpush2.bf16.xpose.msra.mxu0 0
    %6712 = vmatprep.subr.bf16.mxu0 0
    %6713 = vmatpush2.bf16.xpose.msra.mxu0 0
    %6714 = vmatprep.subr.bf16.mxu0 0
    %6715 = vmatpush2.bf16.xpose.msra.mxu0 0
    %6716 = vmatprep.subr.bf16.mxu0 0
    %6717 = vmatpush2.bf16.xpose.msra.mxu0 0
    %6718 = vmatprep.subr.bf16.mxu0 0
    %6719 = vmatpush2.bf16.xpose.msra.mxu0 0
    %6720 = vmatprep.subr.bf16.mxu0 0
    %6721 = vmatpush2.bf16.xpose.msra.mxu0 0
    %6722 = vmatprep.subr.bf16.mxu0 0
    %6723 = vmatpush2.bf16.xpose.msra.mxu0 0
    %6724 = vmatprep.subr.bf16.mxu0 0
    %6725 = vmatpush2.bf16.xpose.msra.mxu0 0
    %6726 = vmatprep.mubr.bf16.mxu0 0
    %6727 = vmatmul.mubr.bf16.gmra.mxu0 %v6689
    %v6728 = vpop.f32.mrf.mxu0
    %v6729 = vadd.f32 0.0, %v6728
    %v6730 = vpop.f32.mrf.mxu0
    %v6731 = vpop.f32.mrf.mxu0
    %v6732 = vpop.f32.mrf.mxu0
    %6733 = vdwg.mxu0
    %v6735 = vsel %vm381, %v6580, 0
    %v6738 = vsel %vm381, %v6612, 0
    %6740 = vmatprep.subr.bf16.mxu0 0
    %6741 = vmatpush1.bf16.xpose.msra.mxu0 0
    %6742 = vmatprep.subr.bf16.mxu0 0
    %6743 = vmatpush1.bf16.xpose.msra.mxu0 0
    %6744 = vmatprep.subr.bf16.mxu0 0
    %6745 = vmatpush1.bf16.xpose.msra.mxu0 0
    %6746 = vmatprep.subr.bf16.mxu0 0
    %6747 = vmatpush1.bf16.xpose.msra.mxu0 0
    %6748 = vmatprep.subr.bf16.mxu0 0
    %6749 = vmatpush1.bf16.xpose.msra.mxu0 0
    %6750 = vmatprep.subr.bf16.mxu0 0
    %6751 = vmatpush1.bf16.xpose.msra.mxu0 0
    %6752 = vmatprep.subr.bf16.mxu0 0
    %6753 = vmatpush1.bf16.xpose.msra.mxu0 0
    %6754 = vmatprep.subr.bf16.mxu0 0
    %6755 = vmatpush1.bf16.xpose.msra.mxu0 %v6738
    %6756 = vmatprep.subr.bf16.mxu0 0
    %6757 = vmatpush2.bf16.xpose.msra.mxu0 0
    %6758 = vmatprep.subr.bf16.mxu0 0
    %6759 = vmatpush2.bf16.xpose.msra.mxu0 0
    %6760 = vmatprep.subr.bf16.mxu0 0
    %6761 = vmatpush2.bf16.xpose.msra.mxu0 0
    %6762 = vmatprep.subr.bf16.mxu0 0
    %6763 = vmatpush2.bf16.xpose.msra.mxu0 0
    %6764 = vmatprep.subr.bf16.mxu0 0
    %6765 = vmatpush2.bf16.xpose.msra.mxu0 0
    %6766 = vmatprep.subr.bf16.mxu0 0
    %6767 = vmatpush2.bf16.xpose.msra.mxu0 0
    %6768 = vmatprep.subr.bf16.mxu0 0
    %6769 = vmatpush2.bf16.xpose.msra.mxu0 0
    %6770 = vmatprep.subr.bf16.mxu0 0
    %6771 = vmatpush2.bf16.xpose.msra.mxu0 0
    %6772 = vmatprep.mubr.bf16.mxu0 0
    %6773 = vmatmul.mubr.bf16.gmra.mxu0 %v6735
    %v6774 = vpop.f32.mrf.mxu0
    %v6775 = vadd.f32 0.0, %v6774
    %v6776 = vpop.f32.mrf.mxu0
    %v6777 = vpop.f32.mrf.mxu0
    %v6778 = vpop.f32.mrf.mxu0
    %6779 = vdwg.mxu0
    %v6781 = vsel %vm381, %v6581, 0
    %v6784 = vsel %vm381, %v6613, 0
    %6786 = vmatprep.subr.bf16.mxu0 0
    %6787 = vmatpush1.bf16.xpose.msra.mxu0 0
    %6788 = vmatprep.subr.bf16.mxu0 0
    %6789 = vmatpush1.bf16.xpose.msra.mxu0 0
    %6790 = vmatprep.subr.bf16.mxu0 0
    %6791 = vmatpush1.bf16.xpose.msra.mxu0 0
    %6792 = vmatprep.subr.bf16.mxu0 0
    %6793 = vmatpush1.bf16.xpose.msra.mxu0 0
    %6794 = vmatprep.subr.bf16.mxu0 0
    %6795 = vmatpush1.bf16.xpose.msra.mxu0 0
    %6796 = vmatprep.subr.bf16.mxu0 0
    %6797 = vmatpush1.bf16.xpose.msra.mxu0 0
    %6798 = vmatprep.subr.bf16.mxu0 0
    %6799 = vmatpush1.bf16.xpose.msra.mxu0 0
    %6800 = vmatprep.subr.bf16.mxu0 0
    %6801 = vmatpush1.bf16.xpose.msra.mxu0 %v6784
    %6802 = vmatprep.subr.bf16.mxu0 0
    %6803 = vmatpush2.bf16.xpose.msra.mxu0 0
    %6804 = vmatprep.subr.bf16.mxu0 0
    %6805 = vmatpush2.bf16.xpose.msra.mxu0 0
    %6806 = vmatprep.subr.bf16.mxu0 0
    %6807 = vmatpush2.bf16.xpose.msra.mxu0 0
    %6808 = vmatprep.subr.bf16.mxu0 0
    %6809 = vmatpush2.bf16.xpose.msra.mxu0 0
    %6810 = vmatprep.subr.bf16.mxu0 0
    %6811 = vmatpush2.bf16.xpose.msra.mxu0 0
    %6812 = vmatprep.subr.bf16.mxu0 0
    %6813 = vmatpush2.bf16.xpose.msra.mxu0 0
    %6814 = vmatprep.subr.bf16.mxu0 0
    %6815 = vmatpush2.bf16.xpose.msra.mxu0 0
    %6816 = vmatprep.subr.bf16.mxu0 0
    %6817 = vmatpush2.bf16.xpose.msra.mxu0 0
    %6818 = vmatprep.mubr.bf16.mxu0 0
    %6819 = vmatmul.mubr.bf16.gmra.mxu0 %v6781
    %v6820 = vpop.f32.mrf.mxu0
    %v6821 = vadd.f32 0.0, %v6820
    %v6822 = vpop.f32.mrf.mxu0
    %v6823 = vpop.f32.mrf.mxu0
    %v6824 = vpop.f32.mrf.mxu0
    %6825 = vdwg.mxu0
    %v6827 = vsel %vm381, %v6582, 0
    %v6830 = vsel %vm381, %v6614, 0
    %6832 = vmatprep.subr.bf16.mxu0 0
    %6833 = vmatpush1.bf16.xpose.msra.mxu0 0
    %6834 = vmatprep.subr.bf16.mxu0 0
    %6835 = vmatpush1.bf16.xpose.msra.mxu0 0
    %6836 = vmatprep.subr.bf16.mxu0 0
    %6837 = vmatpush1.bf16.xpose.msra.mxu0 0
    %6838 = vmatprep.subr.bf16.mxu0 0
    %6839 = vmatpush1.bf16.xpose.msra.mxu0 0
    %6840 = vmatprep.subr.bf16.mxu0 0
    %6841 = vmatpush1.bf16.xpose.msra.mxu0 0
    %6842 = vmatprep.subr.bf16.mxu0 0
    %6843 = vmatpush1.bf16.xpose.msra.mxu0 0
    %6844 = vmatprep.subr.bf16.mxu0 0
    %6845 = vmatpush1.bf16.xpose.msra.mxu0 0
    %6846 = vmatprep.subr.bf16.mxu0 0
    %6847 = vmatpush1.bf16.xpose.msra.mxu0 %v6830
    %6848 = vmatprep.subr.bf16.mxu0 0
    %6849 = vmatpush2.bf16.xpose.msra.mxu0 0
    %6850 = vmatprep.subr.bf16.mxu0 0
    %6851 = vmatpush2.bf16.xpose.msra.mxu0 0
    %6852 = vmatprep.subr.bf16.mxu0 0
    %6853 = vmatpush2.bf16.xpose.msra.mxu0 0
    %6854 = vmatprep.subr.bf16.mxu0 0
    %6855 = vmatpush2.bf16.xpose.msra.mxu0 0
    %6856 = vmatprep.subr.bf16.mxu0 0
    %6857 = vmatpush2.bf16.xpose.msra.mxu0 0
    %6858 = vmatprep.subr.bf16.mxu0 0
    %6859 = vmatpush2.bf16.xpose.msra.mxu0 0
    %6860 = vmatprep.subr.bf16.mxu0 0
    %6861 = vmatpush2.bf16.xpose.msra.mxu0 0
    %6862 = vmatprep.subr.bf16.mxu0 0
    %6863 = vmatpush2.bf16.xpose.msra.mxu0 0
    %6864 = vmatprep.mubr.bf16.mxu0 0
    %6865 = vmatmul.mubr.bf16.gmra.mxu0 %v6827
    %v6866 = vpop.f32.mrf.mxu0
    %v6867 = vadd.f32 0.0, %v6866
    %v6868 = vpop.f32.mrf.mxu0
    %v6869 = vpop.f32.mrf.mxu0
    %v6870 = vpop.f32.mrf.mxu0
    %6871 = vdwg.mxu0
    %v6873 = vsel %vm381, %v6583, 0
    %v6876 = vsel %vm381, %v6615, 0
    %6878 = vmatprep.subr.bf16.mxu0 0
    %6879 = vmatpush1.bf16.xpose.msra.mxu0 0
    %6880 = vmatprep.subr.bf16.mxu0 0
    %6881 = vmatpush1.bf16.xpose.msra.mxu0 0
    %6882 = vmatprep.subr.bf16.mxu0 0
    %6883 = vmatpush1.bf16.xpose.msra.mxu0 0
    %6884 = vmatprep.subr.bf16.mxu0 0
    %6885 = vmatpush1.bf16.xpose.msra.mxu0 0
    %6886 = vmatprep.subr.bf16.mxu0 0
    %6887 = vmatpush1.bf16.xpose.msra.mxu0 0
    %6888 = vmatprep.subr.bf16.mxu0 0
    %6889 = vmatpush1.bf16.xpose.msra.mxu0 0
    %6890 = vmatprep.subr.bf16.mxu0 0
    %6891 = vmatpush1.bf16.xpose.msra.mxu0 0
    %6892 = vmatprep.subr.bf16.mxu0 0
    %6893 = vmatpush1.bf16.xpose.msra.mxu0 %v6876
    %6894 = vmatprep.subr.bf16.mxu0 0
    %6895 = vmatpush2.bf16.xpose.msra.mxu0 0
    %6896 = vmatprep.subr.bf16.mxu0 0
    %6897 = vmatpush2.bf16.xpose.msra.mxu0 0
    %6898 = vmatprep.subr.bf16.mxu0 0
    %6899 = vmatpush2.bf16.xpose.msra.mxu0 0
    %6900 = vmatprep.subr.bf16.mxu0 0
    %6901 = vmatpush2.bf16.xpose.msra.mxu0 0
    %6902 = vmatprep.subr.bf16.mxu0 0
    %6903 = vmatpush2.bf16.xpose.msra.mxu0 0
    %6904 = vmatprep.subr.bf16.mxu0 0
    %6905 = vmatpush2.bf16.xpose.msra.mxu0 0
    %6906 = vmatprep.subr.bf16.mxu0 0
    %6907 = vmatpush2.bf16.xpose.msra.mxu0 0
    %6908 = vmatprep.subr.bf16.mxu0 0
    %6909 = vmatpush2.bf16.xpose.msra.mxu0 0
    %6910 = vmatprep.mubr.bf16.mxu0 0
    %6911 = vmatmul.mubr.bf16.gmra.mxu0 %v6873
    %v6912 = vpop.f32.mrf.mxu0
    %v6913 = vadd.f32 0.0, %v6912
    %v6914 = vpop.f32.mrf.mxu0
    %v6915 = vpop.f32.mrf.mxu0
    %v6916 = vpop.f32.mrf.mxu0
    %6917 = vdwg.mxu0
    %v6919 = vsel %vm381, %v6584, 0
    %v6922 = vsel %vm381, %v6616, 0
    %6924 = vmatprep.subr.bf16.mxu0 0
    %6925 = vmatpush1.bf16.xpose.msra.mxu0 0
    %6926 = vmatprep.subr.bf16.mxu0 0
    %6927 = vmatpush1.bf16.xpose.msra.mxu0 0
    %6928 = vmatprep.subr.bf16.mxu0 0
    %6929 = vmatpush1.bf16.xpose.msra.mxu0 0
    %6930 = vmatprep.subr.bf16.mxu0 0
    %6931 = vmatpush1.bf16.xpose.msra.mxu0 0
    %6932 = vmatprep.subr.bf16.mxu0 0
    %6933 = vmatpush1.bf16.xpose.msra.mxu0 0
    %6934 = vmatprep.subr.bf16.mxu0 0
    %6935 = vmatpush1.bf16.xpose.msra.mxu0 0
    %6936 = vmatprep.subr.bf16.mxu0 0
    %6937 = vmatpush1.bf16.xpose.msra.mxu0 0
    %6938 = vmatprep.subr.bf16.mxu0 0
    %6939 = vmatpush1.bf16.xpose.msra.mxu0 %v6922
    %6940 = vmatprep.subr.bf16.mxu0 0
    %6941 = vmatpush2.bf16.xpose.msra.mxu0 0
    %6942 = vmatprep.subr.bf16.mxu0 0
    %6943 = vmatpush2.bf16.xpose.msra.mxu0 0
    %6944 = vmatprep.subr.bf16.mxu0 0
    %6945 = vmatpush2.bf16.xpose.msra.mxu0 0
    %6946 = vmatprep.subr.bf16.mxu0 0
    %6947 = vmatpush2.bf16.xpose.msra.mxu0 0
    %6948 = vmatprep.subr.bf16.mxu0 0
    %6949 = vmatpush2.bf16.xpose.msra.mxu0 0
    %6950 = vmatprep.subr.bf16.mxu0 0
    %6951 = vmatpush2.bf16.xpose.msra.mxu0 0
    %6952 = vmatprep.subr.bf16.mxu0 0
    %6953 = vmatpush2.bf16.xpose.msra.mxu0 0
    %6954 = vmatprep.subr.bf16.mxu0 0
    %6955 = vmatpush2.bf16.xpose.msra.mxu0 0
    %6956 = vmatprep.mubr.bf16.mxu0 0
    %6957 = vmatmul.mubr.bf16.gmra.mxu0 %v6919
    %v6958 = vpop.f32.mrf.mxu0
    %v6959 = vadd.f32 0.0, %v6958
    %v6960 = vpop.f32.mrf.mxu0
    %v6961 = vpop.f32.mrf.mxu0
    %v6962 = vpop.f32.mrf.mxu0
    %6963 = vdwg.mxu0
    %v6965 = vsel %vm381, %v6585, 0
    %v6968 = vsel %vm381, %v6617, 0
    %6970 = vmatprep.subr.bf16.mxu0 0
    %6971 = vmatpush1.bf16.xpose.msra.mxu0 0
    %6972 = vmatprep.subr.bf16.mxu0 0
    %6973 = vmatpush1.bf16.xpose.msra.mxu0 0
    %6974 = vmatprep.subr.bf16.mxu0 0
    %6975 = vmatpush1.bf16.xpose.msra.mxu0 0
    %6976 = vmatprep.subr.bf16.mxu0 0
    %6977 = vmatpush1.bf16.xpose.msra.mxu0 0
    %6978 = vmatprep.subr.bf16.mxu0 0
    %6979 = vmatpush1.bf16.xpose.msra.mxu0 0
    %6980 = vmatprep.subr.bf16.mxu0 0
    %6981 = vmatpush1.bf16.xpose.msra.mxu0 0
    %6982 = vmatprep.subr.bf16.mxu0 0
    %6983 = vmatpush1.bf16.xpose.msra.mxu0 0
    %6984 = vmatprep.subr.bf16.mxu0 0
    %6985 = vmatpush1.bf16.xpose.msra.mxu0 %v6968
    %6986 = vmatprep.subr.bf16.mxu0 0
    %6987 = vmatpush2.bf16.xpose.msra.mxu0 0
    %6988 = vmatprep.subr.bf16.mxu0 0
    %6989 = vmatpush2.bf16.xpose.msra.mxu0 0
    %6990 = vmatprep.subr.bf16.mxu0 0
    %6991 = vmatpush2.bf16.xpose.msra.mxu0 0
    %6992 = vmatprep.subr.bf16.mxu0 0
    %6993 = vmatpush2.bf16.xpose.msra.mxu0 0
    %6994 = vmatprep.subr.bf16.mxu0 0
    %6995 = vmatpush2.bf16.xpose.msra.mxu0 0
    %6996 = vmatprep.subr.bf16.mxu0 0
    %6997 = vmatpush2.bf16.xpose.msra.mxu0 0
    %6998 = vmatprep.subr.bf16.mxu0 0
    %6999 = vmatpush2.bf16.xpose.msra.mxu0 0
    %7000 = vmatprep.subr.bf16.mxu0 0
    %7001 = vmatpush2.bf16.xpose.msra.mxu0 0
    %7002 = vmatprep.mubr.bf16.mxu0 0
    %7003 = vmatmul.mubr.bf16.gmra.mxu0 %v6965
    %v7004 = vpop.f32.mrf.mxu0
    %v7005 = vadd.f32 0.0, %v7004
    %v7006 = vpop.f32.mrf.mxu0
    %v7007 = vpop.f32.mrf.mxu0
    %v7008 = vpop.f32.mrf.mxu0
    %7009 = vdwg.mxu0
    %v7011 = vsel %vm381, %v6586, 0
    %v7014 = vsel %vm381, %v6618, 0
    %7016 = vmatprep.subr.bf16.mxu0 0
    %7017 = vmatpush1.bf16.xpose.msra.mxu0 0
    %7018 = vmatprep.subr.bf16.mxu0 0
    %7019 = vmatpush1.bf16.xpose.msra.mxu0 0
    %7020 = vmatprep.subr.bf16.mxu0 0
    %7021 = vmatpush1.bf16.xpose.msra.mxu0 0
    %7022 = vmatprep.subr.bf16.mxu0 0
    %7023 = vmatpush1.bf16.xpose.msra.mxu0 0
    %7024 = vmatprep.subr.bf16.mxu0 0
    %7025 = vmatpush1.bf16.xpose.msra.mxu0 0
    %7026 = vmatprep.subr.bf16.mxu0 0
    %7027 = vmatpush1.bf16.xpose.msra.mxu0 0
    %7028 = vmatprep.subr.bf16.mxu0 0
    %7029 = vmatpush1.bf16.xpose.msra.mxu0 0
    %7030 = vmatprep.subr.bf16.mxu0 0
    %7031 = vmatpush1.bf16.xpose.msra.mxu0 %v7014
    %7032 = vmatprep.subr.bf16.mxu0 0
    %7033 = vmatpush2.bf16.xpose.msra.mxu0 0
    %7034 = vmatprep.subr.bf16.mxu0 0
    %7035 = vmatpush2.bf16.xpose.msra.mxu0 0
    %7036 = vmatprep.subr.bf16.mxu0 0
    %7037 = vmatpush2.bf16.xpose.msra.mxu0 0
    %7038 = vmatprep.subr.bf16.mxu0 0
    %7039 = vmatpush2.bf16.xpose.msra.mxu0 0
    %7040 = vmatprep.subr.bf16.mxu0 0
    %7041 = vmatpush2.bf16.xpose.msra.mxu0 0
    %7042 = vmatprep.subr.bf16.mxu0 0
    %7043 = vmatpush2.bf16.xpose.msra.mxu0 0
    %7044 = vmatprep.subr.bf16.mxu0 0
    %7045 = vmatpush2.bf16.xpose.msra.mxu0 0
    %7046 = vmatprep.subr.bf16.mxu0 0
    %7047 = vmatpush2.bf16.xpose.msra.mxu0 0
    %7048 = vmatprep.mubr.bf16.mxu0 0
    %7049 = vmatmul.mubr.bf16.gmra.mxu0 %v7011
    %v7050 = vpop.f32.mrf.mxu0
    %v7051 = vadd.f32 0.0, %v7050
    %v7052 = vpop.f32.mrf.mxu0
    %v7053 = vpop.f32.mrf.mxu0
    %v7054 = vpop.f32.mrf.mxu0
    %7055 = vdwg.mxu0
    %v7057 = vsel %vm381, %v6587, 0
    %v7060 = vsel %vm381, %v6619, 0
    %7062 = vmatprep.subr.bf16.mxu0 0
    %7063 = vmatpush1.bf16.xpose.msra.mxu0 0
    %7064 = vmatprep.subr.bf16.mxu0 0
    %7065 = vmatpush1.bf16.xpose.msra.mxu0 0
    %7066 = vmatprep.subr.bf16.mxu0 0
    %7067 = vmatpush1.bf16.xpose.msra.mxu0 0
    %7068 = vmatprep.subr.bf16.mxu0 0
    %7069 = vmatpush1.bf16.xpose.msra.mxu0 0
    %7070 = vmatprep.subr.bf16.mxu0 0
    %7071 = vmatpush1.bf16.xpose.msra.mxu0 0
    %7072 = vmatprep.subr.bf16.mxu0 0
    %7073 = vmatpush1.bf16.xpose.msra.mxu0 0
    %7074 = vmatprep.subr.bf16.mxu0 0
    %7075 = vmatpush1.bf16.xpose.msra.mxu0 0
    %7076 = vmatprep.subr.bf16.mxu0 0
    %7077 = vmatpush1.bf16.xpose.msra.mxu0 %v7060
    %7078 = vmatprep.subr.bf16.mxu0 0
    %7079 = vmatpush2.bf16.xpose.msra.mxu0 0
    %7080 = vmatprep.subr.bf16.mxu0 0
    %7081 = vmatpush2.bf16.xpose.msra.mxu0 0
    %7082 = vmatprep.subr.bf16.mxu0 0
    %7083 = vmatpush2.bf16.xpose.msra.mxu0 0
    %7084 = vmatprep.subr.bf16.mxu0 0
    %7085 = vmatpush2.bf16.xpose.msra.mxu0 0
    %7086 = vmatprep.subr.bf16.mxu0 0
    %7087 = vmatpush2.bf16.xpose.msra.mxu0 0
    %7088 = vmatprep.subr.bf16.mxu0 0
    %7089 = vmatpush2.bf16.xpose.msra.mxu0 0
    %7090 = vmatprep.subr.bf16.mxu0 0
    %7091 = vmatpush2.bf16.xpose.msra.mxu0 0
    %7092 = vmatprep.subr.bf16.mxu0 0
    %7093 = vmatpush2.bf16.xpose.msra.mxu0 0
    %7094 = vmatprep.mubr.bf16.mxu0 0
    %7095 = vmatmul.mubr.bf16.gmra.mxu0 %v7057
    %v7096 = vpop.f32.mrf.mxu0
    %v7097 = vadd.f32 0.0, %v7096
    %v7098 = vpop.f32.mrf.mxu0
    %v7099 = vpop.f32.mrf.mxu0
    %v7100 = vpop.f32.mrf.mxu0
    %7101 = vdwg.mxu0
    %v7103 = vsel %vm381, %v6588, 0
    %v7106 = vsel %vm381, %v6620, 0
    %7108 = vmatprep.subr.bf16.mxu0 0
    %7109 = vmatpush1.bf16.xpose.msra.mxu0 0
    %7110 = vmatprep.subr.bf16.mxu0 0
    %7111 = vmatpush1.bf16.xpose.msra.mxu0 0
    %7112 = vmatprep.subr.bf16.mxu0 0
    %7113 = vmatpush1.bf16.xpose.msra.mxu0 0
    %7114 = vmatprep.subr.bf16.mxu0 0
    %7115 = vmatpush1.bf16.xpose.msra.mxu0 0
    %7116 = vmatprep.subr.bf16.mxu0 0
    %7117 = vmatpush1.bf16.xpose.msra.mxu0 0
    %7118 = vmatprep.subr.bf16.mxu0 0
    %7119 = vmatpush1.bf16.xpose.msra.mxu0 0
    %7120 = vmatprep.subr.bf16.mxu0 0
    %7121 = vmatpush1.bf16.xpose.msra.mxu0 0
    %7122 = vmatprep.subr.bf16.mxu0 0
    %7123 = vmatpush1.bf16.xpose.msra.mxu0 %v7106
    %7124 = vmatprep.subr.bf16.mxu0 0
    %7125 = vmatpush2.bf16.xpose.msra.mxu0 0
    %7126 = vmatprep.subr.bf16.mxu0 0
    %7127 = vmatpush2.bf16.xpose.msra.mxu0 0
    %7128 = vmatprep.subr.bf16.mxu0 0
    %7129 = vmatpush2.bf16.xpose.msra.mxu0 0
    %7130 = vmatprep.subr.bf16.mxu0 0
    %7131 = vmatpush2.bf16.xpose.msra.mxu0 0
    %7132 = vmatprep.subr.bf16.mxu0 0
    %7133 = vmatpush2.bf16.xpose.msra.mxu0 0
    %7134 = vmatprep.subr.bf16.mxu0 0
    %7135 = vmatpush2.bf16.xpose.msra.mxu0 0
    %7136 = vmatprep.subr.bf16.mxu0 0
    %7137 = vmatpush2.bf16.xpose.msra.mxu0 0
    %7138 = vmatprep.subr.bf16.mxu0 0
    %7139 = vmatpush2.bf16.xpose.msra.mxu0 0
    %7140 = vmatprep.mubr.bf16.mxu0 0
    %7141 = vmatmul.mubr.bf16.gmra.mxu0 %v7103
    %v7142 = vpop.f32.mrf.mxu0
    %v7143 = vadd.f32 0.0, %v7142
    %v7144 = vpop.f32.mrf.mxu0
    %v7145 = vpop.f32.mrf.mxu0
    %v7146 = vpop.f32.mrf.mxu0
    %7147 = vdwg.mxu0
    %v7149 = vsel %vm381, %v6589, 0
    %v7152 = vsel %vm381, %v6621, 0
    %7154 = vmatprep.subr.bf16.mxu0 0
    %7155 = vmatpush1.bf16.xpose.msra.mxu0 0
    %7156 = vmatprep.subr.bf16.mxu0 0
    %7157 = vmatpush1.bf16.xpose.msra.mxu0 0
    %7158 = vmatprep.subr.bf16.mxu0 0
    %7159 = vmatpush1.bf16.xpose.msra.mxu0 0
    %7160 = vmatprep.subr.bf16.mxu0 0
    %7161 = vmatpush1.bf16.xpose.msra.mxu0 0
    %7162 = vmatprep.subr.bf16.mxu0 0
    %7163 = vmatpush1.bf16.xpose.msra.mxu0 0
    %7164 = vmatprep.subr.bf16.mxu0 0
    %7165 = vmatpush1.bf16.xpose.msra.mxu0 0
    %7166 = vmatprep.subr.bf16.mxu0 0
    %7167 = vmatpush1.bf16.xpose.msra.mxu0 0
    %7168 = vmatprep.subr.bf16.mxu0 0
    %7169 = vmatpush1.bf16.xpose.msra.mxu0 %v7152
    %7170 = vmatprep.subr.bf16.mxu0 0
    %7171 = vmatpush2.bf16.xpose.msra.mxu0 0
    %7172 = vmatprep.subr.bf16.mxu0 0
    %7173 = vmatpush2.bf16.xpose.msra.mxu0 0
    %7174 = vmatprep.subr.bf16.mxu0 0
    %7175 = vmatpush2.bf16.xpose.msra.mxu0 0
    %7176 = vmatprep.subr.bf16.mxu0 0
    %7177 = vmatpush2.bf16.xpose.msra.mxu0 0
    %7178 = vmatprep.subr.bf16.mxu0 0
    %7179 = vmatpush2.bf16.xpose.msra.mxu0 0
    %7180 = vmatprep.subr.bf16.mxu0 0
    %7181 = vmatpush2.bf16.xpose.msra.mxu0 0
    %7182 = vmatprep.subr.bf16.mxu0 0
    %7183 = vmatpush2.bf16.xpose.msra.mxu0 0
    %7184 = vmatprep.subr.bf16.mxu0 0
    %7185 = vmatpush2.bf16.xpose.msra.mxu0 0
    %7186 = vmatprep.mubr.bf16.mxu0 0
    %7187 = vmatmul.mubr.bf16.gmra.mxu0 %v7149
    %v7188 = vpop.f32.mrf.mxu0
    %v7189 = vadd.f32 0.0, %v7188
    %v7190 = vpop.f32.mrf.mxu0
    %v7191 = vpop.f32.mrf.mxu0
    %v7192 = vpop.f32.mrf.mxu0
    %7193 = vdwg.mxu0
    %v7195 = vsel %vm381, %v6590, 0
    %v7198 = vsel %vm381, %v6622, 0
    %7200 = vmatprep.subr.bf16.mxu0 0
    %7201 = vmatpush1.bf16.xpose.msra.mxu0 0
    %7202 = vmatprep.subr.bf16.mxu0 0
    %7203 = vmatpush1.bf16.xpose.msra.mxu0 0
    %7204 = vmatprep.subr.bf16.mxu0 0
    %7205 = vmatpush1.bf16.xpose.msra.mxu0 0
    %7206 = vmatprep.subr.bf16.mxu0 0
    %7207 = vmatpush1.bf16.xpose.msra.mxu0 0
    %7208 = vmatprep.subr.bf16.mxu0 0
    %7209 = vmatpush1.bf16.xpose.msra.mxu0 0
    %7210 = vmatprep.subr.bf16.mxu0 0
    %7211 = vmatpush1.bf16.xpose.msra.mxu0 0
    %7212 = vmatprep.subr.bf16.mxu0 0
    %7213 = vmatpush1.bf16.xpose.msra.mxu0 0
    %7214 = vmatprep.subr.bf16.mxu0 0
    %7215 = vmatpush1.bf16.xpose.msra.mxu0 %v7198
    %7216 = vmatprep.subr.bf16.mxu0 0
    %7217 = vmatpush2.bf16.xpose.msra.mxu0 0
    %7218 = vmatprep.subr.bf16.mxu0 0
    %7219 = vmatpush2.bf16.xpose.msra.mxu0 0
    %7220 = vmatprep.subr.bf16.mxu0 0
    %7221 = vmatpush2.bf16.xpose.msra.mxu0 0
    %7222 = vmatprep.subr.bf16.mxu0 0
    %7223 = vmatpush2.bf16.xpose.msra.mxu0 0
    %7224 = vmatprep.subr.bf16.mxu0 0
    %7225 = vmatpush2.bf16.xpose.msra.mxu0 0
    %7226 = vmatprep.subr.bf16.mxu0 0
    %7227 = vmatpush2.bf16.xpose.msra.mxu0 0
    %7228 = vmatprep.subr.bf16.mxu0 0
    %7229 = vmatpush2.bf16.xpose.msra.mxu0 0
    %7230 = vmatprep.subr.bf16.mxu0 0
    %7231 = vmatpush2.bf16.xpose.msra.mxu0 0
    %7232 = vmatprep.mubr.bf16.mxu0 0
    %7233 = vmatmul.mubr.bf16.gmra.mxu0 %v7195
    %v7234 = vpop.f32.mrf.mxu0
    %v7235 = vadd.f32 0.0, %v7234
    %v7236 = vpop.f32.mrf.mxu0
    %v7237 = vpop.f32.mrf.mxu0
    %v7238 = vpop.f32.mrf.mxu0
    %7239 = vdwg.mxu0
    %v7241 = vsel %vm381, %v6591, 0
    %v7244 = vsel %vm381, %v6623, 0
    %7246 = vmatprep.subr.bf16.mxu0 0
    %7247 = vmatpush1.bf16.xpose.msra.mxu0 0
    %7248 = vmatprep.subr.bf16.mxu0 0
    %7249 = vmatpush1.bf16.xpose.msra.mxu0 0
    %7250 = vmatprep.subr.bf16.mxu0 0
    %7251 = vmatpush1.bf16.xpose.msra.mxu0 0
    %7252 = vmatprep.subr.bf16.mxu0 0
    %7253 = vmatpush1.bf16.xpose.msra.mxu0 0
    %7254 = vmatprep.subr.bf16.mxu0 0
    %7255 = vmatpush1.bf16.xpose.msra.mxu0 0
    %7256 = vmatprep.subr.bf16.mxu0 0
    %7257 = vmatpush1.bf16.xpose.msra.mxu0 0
    %7258 = vmatprep.subr.bf16.mxu0 0
    %7259 = vmatpush1.bf16.xpose.msra.mxu0 0
    %7260 = vmatprep.subr.bf16.mxu0 0
    %7261 = vmatpush1.bf16.xpose.msra.mxu0 %v7244
    %7262 = vmatprep.subr.bf16.mxu0 0
    %7263 = vmatpush2.bf16.xpose.msra.mxu0 0
    %7264 = vmatprep.subr.bf16.mxu0 0
    %7265 = vmatpush2.bf16.xpose.msra.mxu0 0
    %7266 = vmatprep.subr.bf16.mxu0 0
    %7267 = vmatpush2.bf16.xpose.msra.mxu0 0
    %7268 = vmatprep.subr.bf16.mxu0 0
    %7269 = vmatpush2.bf16.xpose.msra.mxu0 0
    %7270 = vmatprep.subr.bf16.mxu0 0
    %7271 = vmatpush2.bf16.xpose.msra.mxu0 0
    %7272 = vmatprep.subr.bf16.mxu0 0
    %7273 = vmatpush2.bf16.xpose.msra.mxu0 0
    %7274 = vmatprep.subr.bf16.mxu0 0
    %7275 = vmatpush2.bf16.xpose.msra.mxu0 0
    %7276 = vmatprep.subr.bf16.mxu0 0
    %7277 = vmatpush2.bf16.xpose.msra.mxu0 0
    %7278 = vmatprep.mubr.bf16.mxu0 0
    %7279 = vmatmul.mubr.bf16.gmra.mxu0 %v7241
    %v7280 = vpop.f32.mrf.mxu0
    %v7281 = vadd.f32 0.0, %v7280
    %v7282 = vpop.f32.mrf.mxu0
    %v7283 = vpop.f32.mrf.mxu0
    %v7284 = vpop.f32.mrf.mxu0
    %7285 = vdwg.mxu0
    %v7287 = vsel %vm381, %v6592, 0
    %v7290 = vsel %vm381, %v6624, 0
    %7292 = vmatprep.subr.bf16.mxu0 0
    %7293 = vmatpush1.bf16.xpose.msra.mxu0 0
    %7294 = vmatprep.subr.bf16.mxu0 0
    %7295 = vmatpush1.bf16.xpose.msra.mxu0 0
    %7296 = vmatprep.subr.bf16.mxu0 0
    %7297 = vmatpush1.bf16.xpose.msra.mxu0 0
    %7298 = vmatprep.subr.bf16.mxu0 0
    %7299 = vmatpush1.bf16.xpose.msra.mxu0 0
    %7300 = vmatprep.subr.bf16.mxu0 0
    %7301 = vmatpush1.bf16.xpose.msra.mxu0 0
    %7302 = vmatprep.subr.bf16.mxu0 0
    %7303 = vmatpush1.bf16.xpose.msra.mxu0 0
    %7304 = vmatprep.subr.bf16.mxu0 0
    %7305 = vmatpush1.bf16.xpose.msra.mxu0 0
    %7306 = vmatprep.subr.bf16.mxu0 0
    %7307 = vmatpush1.bf16.xpose.msra.mxu0 %v7290
    %7308 = vmatprep.subr.bf16.mxu0 0
    %7309 = vmatpush2.bf16.xpose.msra.mxu0 0
    %7310 = vmatprep.subr.bf16.mxu0 0
    %7311 = vmatpush2.bf16.xpose.msra.mxu0 0
    %7312 = vmatprep.subr.bf16.mxu0 0
    %7313 = vmatpush2.bf16.xpose.msra.mxu0 0
    %7314 = vmatprep.subr.bf16.mxu0 0
    %7315 = vmatpush2.bf16.xpose.msra.mxu0 0
    %7316 = vmatprep.subr.bf16.mxu0 0
    %7317 = vmatpush2.bf16.xpose.msra.mxu0 0
    %7318 = vmatprep.subr.bf16.mxu0 0
    %7319 = vmatpush2.bf16.xpose.msra.mxu0 0
    %7320 = vmatprep.subr.bf16.mxu0 0
    %7321 = vmatpush2.bf16.xpose.msra.mxu0 0
    %7322 = vmatprep.subr.bf16.mxu0 0
    %7323 = vmatpush2.bf16.xpose.msra.mxu0 0
    %7324 = vmatprep.mubr.bf16.mxu0 0
    %7325 = vmatmul.mubr.bf16.gmra.mxu0 %v7287
    %v7326 = vpop.f32.mrf.mxu0
    %v7327 = vadd.f32 0.0, %v7326
    %v7328 = vpop.f32.mrf.mxu0
    %v7329 = vpop.f32.mrf.mxu0
    %v7330 = vpop.f32.mrf.mxu0
    %7331 = vdwg.mxu0
    %v7333 = vsel %vm381, %v6593, 0
    %v7336 = vsel %vm381, %v6625, 0
    %7338 = vmatprep.subr.bf16.mxu0 0
    %7339 = vmatpush1.bf16.xpose.msra.mxu0 0
    %7340 = vmatprep.subr.bf16.mxu0 0
    %7341 = vmatpush1.bf16.xpose.msra.mxu0 0
    %7342 = vmatprep.subr.bf16.mxu0 0
    %7343 = vmatpush1.bf16.xpose.msra.mxu0 0
    %7344 = vmatprep.subr.bf16.mxu0 0
    %7345 = vmatpush1.bf16.xpose.msra.mxu0 0
    %7346 = vmatprep.subr.bf16.mxu0 0
    %7347 = vmatpush1.bf16.xpose.msra.mxu0 0
    %7348 = vmatprep.subr.bf16.mxu0 0
    %7349 = vmatpush1.bf16.xpose.msra.mxu0 0
    %7350 = vmatprep.subr.bf16.mxu0 0
    %7351 = vmatpush1.bf16.xpose.msra.mxu0 0
    %7352 = vmatprep.subr.bf16.mxu0 0
    %7353 = vmatpush1.bf16.xpose.msra.mxu0 %v7336
    %7354 = vmatprep.subr.bf16.mxu0 0
    %7355 = vmatpush2.bf16.xpose.msra.mxu0 0
    %7356 = vmatprep.subr.bf16.mxu0 0
    %7357 = vmatpush2.bf16.xpose.msra.mxu0 0
    %7358 = vmatprep.subr.bf16.mxu0 0
    %7359 = vmatpush2.bf16.xpose.msra.mxu0 0
    %7360 = vmatprep.subr.bf16.mxu0 0
    %7361 = vmatpush2.bf16.xpose.msra.mxu0 0
    %7362 = vmatprep.subr.bf16.mxu0 0
    %7363 = vmatpush2.bf16.xpose.msra.mxu0 0
    %7364 = vmatprep.subr.bf16.mxu0 0
    %7365 = vmatpush2.bf16.xpose.msra.mxu0 0
    %7366 = vmatprep.subr.bf16.mxu0 0
    %7367 = vmatpush2.bf16.xpose.msra.mxu0 0
    %7368 = vmatprep.subr.bf16.mxu0 0
    %7369 = vmatpush2.bf16.xpose.msra.mxu0 0
    %7370 = vmatprep.mubr.bf16.mxu0 0
    %7371 = vmatmul.mubr.bf16.gmra.mxu0 %v7333
    %v7372 = vpop.f32.mrf.mxu0
    %v7373 = vadd.f32 0.0, %v7372
    %v7374 = vpop.f32.mrf.mxu0
    %v7375 = vpop.f32.mrf.mxu0
    %v7376 = vpop.f32.mrf.mxu0
    %7377 = vdwg.mxu0
    %v7379 = vsel %vm381, %v6594, 0
    %v7382 = vsel %vm381, %v6626, 0
    %7384 = vmatprep.subr.bf16.mxu0 0
    %7385 = vmatpush1.bf16.xpose.msra.mxu0 0
    %7386 = vmatprep.subr.bf16.mxu0 0
    %7387 = vmatpush1.bf16.xpose.msra.mxu0 0
    %7388 = vmatprep.subr.bf16.mxu0 0
    %7389 = vmatpush1.bf16.xpose.msra.mxu0 0
    %7390 = vmatprep.subr.bf16.mxu0 0
    %7391 = vmatpush1.bf16.xpose.msra.mxu0 0
    %7392 = vmatprep.subr.bf16.mxu0 0
    %7393 = vmatpush1.bf16.xpose.msra.mxu0 0
    %7394 = vmatprep.subr.bf16.mxu0 0
    %7395 = vmatpush1.bf16.xpose.msra.mxu0 0
    %7396 = vmatprep.subr.bf16.mxu0 0
    %7397 = vmatpush1.bf16.xpose.msra.mxu0 0
    %7398 = vmatprep.subr.bf16.mxu0 0
    %7399 = vmatpush1.bf16.xpose.msra.mxu0 %v7382
    %7400 = vmatprep.subr.bf16.mxu0 0
    %7401 = vmatpush2.bf16.xpose.msra.mxu0 0
    %7402 = vmatprep.subr.bf16.mxu0 0
    %7403 = vmatpush2.bf16.xpose.msra.mxu0 0
    %7404 = vmatprep.subr.bf16.mxu0 0
    %7405 = vmatpush2.bf16.xpose.msra.mxu0 0
    %7406 = vmatprep.subr.bf16.mxu0 0
    %7407 = vmatpush2.bf16.xpose.msra.mxu0 0
    %7408 = vmatprep.subr.bf16.mxu0 0
    %7409 = vmatpush2.bf16.xpose.msra.mxu0 0
    %7410 = vmatprep.subr.bf16.mxu0 0
    %7411 = vmatpush2.bf16.xpose.msra.mxu0 0
    %7412 = vmatprep.subr.bf16.mxu0 0
    %7413 = vmatpush2.bf16.xpose.msra.mxu0 0
    %7414 = vmatprep.subr.bf16.mxu0 0
    %7415 = vmatpush2.bf16.xpose.msra.mxu0 0
    %7416 = vmatprep.mubr.bf16.mxu0 0
    %7417 = vmatmul.mubr.bf16.gmra.mxu0 %v7379
    %v7418 = vpop.f32.mrf.mxu0
    %v7419 = vadd.f32 0.0, %v7418
    %v7420 = vpop.f32.mrf.mxu0
    %v7421 = vpop.f32.mrf.mxu0
    %v7422 = vpop.f32.mrf.mxu0
    %7423 = vdwg.mxu0
    %v7425 = vsel %vm381, %v6595, 0
    %v7428 = vsel %vm381, %v6627, 0
    %7430 = vmatprep.subr.bf16.mxu0 0
    %7431 = vmatpush1.bf16.xpose.msra.mxu0 0
    %7432 = vmatprep.subr.bf16.mxu0 0
    %7433 = vmatpush1.bf16.xpose.msra.mxu0 0
    %7434 = vmatprep.subr.bf16.mxu0 0
    %7435 = vmatpush1.bf16.xpose.msra.mxu0 0
    %7436 = vmatprep.subr.bf16.mxu0 0
    %7437 = vmatpush1.bf16.xpose.msra.mxu0 0
    %7438 = vmatprep.subr.bf16.mxu0 0
    %7439 = vmatpush1.bf16.xpose.msra.mxu0 0
    %7440 = vmatprep.subr.bf16.mxu0 0
    %7441 = vmatpush1.bf16.xpose.msra.mxu0 0
    %7442 = vmatprep.subr.bf16.mxu0 0
    %7443 = vmatpush1.bf16.xpose.msra.mxu0 0
    %7444 = vmatprep.subr.bf16.mxu0 0
    %7445 = vmatpush1.bf16.xpose.msra.mxu0 %v7428
    %7446 = vmatprep.subr.bf16.mxu0 0
    %7447 = vmatpush2.bf16.xpose.msra.mxu0 0
    %7448 = vmatprep.subr.bf16.mxu0 0
    %7449 = vmatpush2.bf16.xpose.msra.mxu0 0
    %7450 = vmatprep.subr.bf16.mxu0 0
    %7451 = vmatpush2.bf16.xpose.msra.mxu0 0
    %7452 = vmatprep.subr.bf16.mxu0 0
    %7453 = vmatpush2.bf16.xpose.msra.mxu0 0
    %7454 = vmatprep.subr.bf16.mxu0 0
    %7455 = vmatpush2.bf16.xpose.msra.mxu0 0
    %7456 = vmatprep.subr.bf16.mxu0 0
    %7457 = vmatpush2.bf16.xpose.msra.mxu0 0
    %7458 = vmatprep.subr.bf16.mxu0 0
    %7459 = vmatpush2.bf16.xpose.msra.mxu0 0
    %7460 = vmatprep.subr.bf16.mxu0 0
    %7461 = vmatpush2.bf16.xpose.msra.mxu0 0
    %7462 = vmatprep.mubr.bf16.mxu0 0
    %7463 = vmatmul.mubr.bf16.gmra.mxu0 %v7425
    %v7464 = vpop.f32.mrf.mxu0
    %v7465 = vadd.f32 0.0, %v7464
    %v7466 = vpop.f32.mrf.mxu0
    %v7467 = vpop.f32.mrf.mxu0
    %v7468 = vpop.f32.mrf.mxu0
    %7469 = vdwg.mxu0
    %v7471 = vsel %vm381, %v6596, 0
    %v7474 = vsel %vm381, %v6628, 0
    %7476 = vmatprep.subr.bf16.mxu0 0
    %7477 = vmatpush1.bf16.xpose.msra.mxu0 0
    %7478 = vmatprep.subr.bf16.mxu0 0
    %7479 = vmatpush1.bf16.xpose.msra.mxu0 0
    %7480 = vmatprep.subr.bf16.mxu0 0
    %7481 = vmatpush1.bf16.xpose.msra.mxu0 0
    %7482 = vmatprep.subr.bf16.mxu0 0
    %7483 = vmatpush1.bf16.xpose.msra.mxu0 0
    %7484 = vmatprep.subr.bf16.mxu0 0
    %7485 = vmatpush1.bf16.xpose.msra.mxu0 0
    %7486 = vmatprep.subr.bf16.mxu0 0
    %7487 = vmatpush1.bf16.xpose.msra.mxu0 0
    %7488 = vmatprep.subr.bf16.mxu0 0
    %7489 = vmatpush1.bf16.xpose.msra.mxu0 0
    %7490 = vmatprep.subr.bf16.mxu0 0
    %7491 = vmatpush1.bf16.xpose.msra.mxu0 %v7474
    %7492 = vmatprep.subr.bf16.mxu0 0
    %7493 = vmatpush2.bf16.xpose.msra.mxu0 0
    %7494 = vmatprep.subr.bf16.mxu0 0
    %7495 = vmatpush2.bf16.xpose.msra.mxu0 0
    %7496 = vmatprep.subr.bf16.mxu0 0
    %7497 = vmatpush2.bf16.xpose.msra.mxu0 0
    %7498 = vmatprep.subr.bf16.mxu0 0
    %7499 = vmatpush2.bf16.xpose.msra.mxu0 0
    %7500 = vmatprep.subr.bf16.mxu0 0
    %7501 = vmatpush2.bf16.xpose.msra.mxu0 0
    %7502 = vmatprep.subr.bf16.mxu0 0
    %7503 = vmatpush2.bf16.xpose.msra.mxu0 0
    %7504 = vmatprep.subr.bf16.mxu0 0
    %7505 = vmatpush2.bf16.xpose.msra.mxu0 0
    %7506 = vmatprep.subr.bf16.mxu0 0
    %7507 = vmatpush2.bf16.xpose.msra.mxu0 0
    %7508 = vmatprep.mubr.bf16.mxu0 0
    %7509 = vmatmul.mubr.bf16.gmra.mxu0 %v7471
    %v7510 = vpop.f32.mrf.mxu0
    %v7511 = vadd.f32 0.0, %v7510
    %v7512 = vpop.f32.mrf.mxu0
    %v7513 = vpop.f32.mrf.mxu0
    %v7514 = vpop.f32.mrf.mxu0
    %7515 = vdwg.mxu0
    %v7517 = vsel %vm381, %v6597, 0
    %v7520 = vsel %vm381, %v6629, 0
    %7522 = vmatprep.subr.bf16.mxu0 0
    %7523 = vmatpush1.bf16.xpose.msra.mxu0 0
    %7524 = vmatprep.subr.bf16.mxu0 0
    %7525 = vmatpush1.bf16.xpose.msra.mxu0 0
    %7526 = vmatprep.subr.bf16.mxu0 0
    %7527 = vmatpush1.bf16.xpose.msra.mxu0 0
    %7528 = vmatprep.subr.bf16.mxu0 0
    %7529 = vmatpush1.bf16.xpose.msra.mxu0 0
    %7530 = vmatprep.subr.bf16.mxu0 0
    %7531 = vmatpush1.bf16.xpose.msra.mxu0 0
    %7532 = vmatprep.subr.bf16.mxu0 0
    %7533 = vmatpush1.bf16.xpose.msra.mxu0 0
    %7534 = vmatprep.subr.bf16.mxu0 0
    %7535 = vmatpush1.bf16.xpose.msra.mxu0 0
    %7536 = vmatprep.subr.bf16.mxu0 0
    %7537 = vmatpush1.bf16.xpose.msra.mxu0 %v7520
    %7538 = vmatprep.subr.bf16.mxu0 0
    %7539 = vmatpush2.bf16.xpose.msra.mxu0 0
    %7540 = vmatprep.subr.bf16.mxu0 0
    %7541 = vmatpush2.bf16.xpose.msra.mxu0 0
    %7542 = vmatprep.subr.bf16.mxu0 0
    %7543 = vmatpush2.bf16.xpose.msra.mxu0 0
    %7544 = vmatprep.subr.bf16.mxu0 0
    %7545 = vmatpush2.bf16.xpose.msra.mxu0 0
    %7546 = vmatprep.subr.bf16.mxu0 0
    %7547 = vmatpush2.bf16.xpose.msra.mxu0 0
    %7548 = vmatprep.subr.bf16.mxu0 0
    %7549 = vmatpush2.bf16.xpose.msra.mxu0 0
    %7550 = vmatprep.subr.bf16.mxu0 0
    %7551 = vmatpush2.bf16.xpose.msra.mxu0 0
    %7552 = vmatprep.subr.bf16.mxu0 0
    %7553 = vmatpush2.bf16.xpose.msra.mxu0 0
    %7554 = vmatprep.mubr.bf16.mxu0 0
    %7555 = vmatmul.mubr.bf16.gmra.mxu0 %v7517
    %v7556 = vpop.f32.mrf.mxu0
    %v7557 = vadd.f32 0.0, %v7556
    %v7558 = vpop.f32.mrf.mxu0
    %v7559 = vpop.f32.mrf.mxu0
    %v7560 = vpop.f32.mrf.mxu0
    %7561 = vdwg.mxu0
    %v7563 = vsel %vm381, %v6598, 0
    %v7566 = vsel %vm381, %v6630, 0
    %7568 = vmatprep.subr.bf16.mxu0 0
    %7569 = vmatpush1.bf16.xpose.msra.mxu0 0
    %7570 = vmatprep.subr.bf16.mxu0 0
    %7571 = vmatpush1.bf16.xpose.msra.mxu0 0
    %7572 = vmatprep.subr.bf16.mxu0 0
    %7573 = vmatpush1.bf16.xpose.msra.mxu0 0
    %7574 = vmatprep.subr.bf16.mxu0 0
    %7575 = vmatpush1.bf16.xpose.msra.mxu0 0
    %7576 = vmatprep.subr.bf16.mxu0 0
    %7577 = vmatpush1.bf16.xpose.msra.mxu0 0
    %7578 = vmatprep.subr.bf16.mxu0 0
    %7579 = vmatpush1.bf16.xpose.msra.mxu0 0
    %7580 = vmatprep.subr.bf16.mxu0 0
    %7581 = vmatpush1.bf16.xpose.msra.mxu0 0
    %7582 = vmatprep.subr.bf16.mxu0 0
    %7583 = vmatpush1.bf16.xpose.msra.mxu0 %v7566
    %7584 = vmatprep.subr.bf16.mxu0 0
    %7585 = vmatpush2.bf16.xpose.msra.mxu0 0
    %7586 = vmatprep.subr.bf16.mxu0 0
    %7587 = vmatpush2.bf16.xpose.msra.mxu0 0
    %7588 = vmatprep.subr.bf16.mxu0 0
    %7589 = vmatpush2.bf16.xpose.msra.mxu0 0
    %7590 = vmatprep.subr.bf16.mxu0 0
    %7591 = vmatpush2.bf16.xpose.msra.mxu0 0
    %7592 = vmatprep.subr.bf16.mxu0 0
    %7593 = vmatpush2.bf16.xpose.msra.mxu0 0
    %7594 = vmatprep.subr.bf16.mxu0 0
    %7595 = vmatpush2.bf16.xpose.msra.mxu0 0
    %7596 = vmatprep.subr.bf16.mxu0 0
    %7597 = vmatpush2.bf16.xpose.msra.mxu0 0
    %7598 = vmatprep.subr.bf16.mxu0 0
    %7599 = vmatpush2.bf16.xpose.msra.mxu0 0
    %7600 = vmatprep.mubr.bf16.mxu0 0
    %7601 = vmatmul.mubr.bf16.gmra.mxu0 %v7563
    %v7602 = vpop.f32.mrf.mxu0
    %v7603 = vadd.f32 0.0, %v7602
    %v7604 = vpop.f32.mrf.mxu0
    %v7605 = vpop.f32.mrf.mxu0
    %v7606 = vpop.f32.mrf.mxu0
    %7607 = vdwg.mxu0
    %v7609 = vsel %vm381, %v6599, 0
    %v7612 = vsel %vm381, %v6631, 0
    %7614 = vmatprep.subr.bf16.mxu0 0
    %7615 = vmatpush1.bf16.xpose.msra.mxu0 0
    %7616 = vmatprep.subr.bf16.mxu0 0
    %7617 = vmatpush1.bf16.xpose.msra.mxu0 0
    %7618 = vmatprep.subr.bf16.mxu0 0
    %7619 = vmatpush1.bf16.xpose.msra.mxu0 0
    %7620 = vmatprep.subr.bf16.mxu0 0
    %7621 = vmatpush1.bf16.xpose.msra.mxu0 0
    %7622 = vmatprep.subr.bf16.mxu0 0
    %7623 = vmatpush1.bf16.xpose.msra.mxu0 0
    %7624 = vmatprep.subr.bf16.mxu0 0
    %7625 = vmatpush1.bf16.xpose.msra.mxu0 0
    %7626 = vmatprep.subr.bf16.mxu0 0
    %7627 = vmatpush1.bf16.xpose.msra.mxu0 0
    %7628 = vmatprep.subr.bf16.mxu0 0
    %7629 = vmatpush1.bf16.xpose.msra.mxu0 %v7612
    %7630 = vmatprep.subr.bf16.mxu0 0
    %7631 = vmatpush2.bf16.xpose.msra.mxu0 0
    %7632 = vmatprep.subr.bf16.mxu0 0
    %7633 = vmatpush2.bf16.xpose.msra.mxu0 0
    %7634 = vmatprep.subr.bf16.mxu0 0
    %7635 = vmatpush2.bf16.xpose.msra.mxu0 0
    %7636 = vmatprep.subr.bf16.mxu0 0
    %7637 = vmatpush2.bf16.xpose.msra.mxu0 0
    %7638 = vmatprep.subr.bf16.mxu0 0
    %7639 = vmatpush2.bf16.xpose.msra.mxu0 0
    %7640 = vmatprep.subr.bf16.mxu0 0
    %7641 = vmatpush2.bf16.xpose.msra.mxu0 0
    %7642 = vmatprep.subr.bf16.mxu0 0
    %7643 = vmatpush2.bf16.xpose.msra.mxu0 0
    %7644 = vmatprep.subr.bf16.mxu0 0
    %7645 = vmatpush2.bf16.xpose.msra.mxu0 0
    %7646 = vmatprep.mubr.bf16.mxu0 0
    %7647 = vmatmul.mubr.bf16.gmra.mxu0 %v7609
    %v7648 = vpop.f32.mrf.mxu0
    %v7649 = vadd.f32 0.0, %v7648
    %v7650 = vpop.f32.mrf.mxu0
    %v7651 = vpop.f32.mrf.mxu0
    %v7652 = vpop.f32.mrf.mxu0
    %7653 = vdwg.mxu0
    %v7655 = vsel %vm381, %v6600, 0
    %v7658 = vsel %vm381, %v6632, 0
    %7660 = vmatprep.subr.bf16.mxu0 0
    %7661 = vmatpush1.bf16.xpose.msra.mxu0 0
    %7662 = vmatprep.subr.bf16.mxu0 0
    %7663 = vmatpush1.bf16.xpose.msra.mxu0 0
    %7664 = vmatprep.subr.bf16.mxu0 0
    %7665 = vmatpush1.bf16.xpose.msra.mxu0 0
    %7666 = vmatprep.subr.bf16.mxu0 0
    %7667 = vmatpush1.bf16.xpose.msra.mxu0 0
    %7668 = vmatprep.subr.bf16.mxu0 0
    %7669 = vmatpush1.bf16.xpose.msra.mxu0 0
    %7670 = vmatprep.subr.bf16.mxu0 0
    %7671 = vmatpush1.bf16.xpose.msra.mxu0 0
    %7672 = vmatprep.subr.bf16.mxu0 0
    %7673 = vmatpush1.bf16.xpose.msra.mxu0 0
    %7674 = vmatprep.subr.bf16.mxu0 0
    %7675 = vmatpush1.bf16.xpose.msra.mxu0 %v7658
    %7676 = vmatprep.subr.bf16.mxu0 0
    %7677 = vmatpush2.bf16.xpose.msra.mxu0 0
    %7678 = vmatprep.subr.bf16.mxu0 0
    %7679 = vmatpush2.bf16.xpose.msra.mxu0 0
    %7680 = vmatprep.subr.bf16.mxu0 0
    %7681 = vmatpush2.bf16.xpose.msra.mxu0 0
    %7682 = vmatprep.subr.bf16.mxu0 0
    %7683 = vmatpush2.bf16.xpose.msra.mxu0 0
    %7684 = vmatprep.subr.bf16.mxu0 0
    %7685 = vmatpush2.bf16.xpose.msra.mxu0 0
    %7686 = vmatprep.subr.bf16.mxu0 0
    %7687 = vmatpush2.bf16.xpose.msra.mxu0 0
    %7688 = vmatprep.subr.bf16.mxu0 0
    %7689 = vmatpush2.bf16.xpose.msra.mxu0 0
    %7690 = vmatprep.subr.bf16.mxu0 0
    %7691 = vmatpush2.bf16.xpose.msra.mxu0 0
    %7692 = vmatprep.mubr.bf16.mxu0 0
    %7693 = vmatmul.mubr.bf16.gmra.mxu0 %v7655
    %v7694 = vpop.f32.mrf.mxu0
    %v7695 = vadd.f32 0.0, %v7694
    %v7696 = vpop.f32.mrf.mxu0
    %v7697 = vpop.f32.mrf.mxu0
    %v7698 = vpop.f32.mrf.mxu0
    %7699 = vdwg.mxu0
    %v7701 = vsel %vm381, %v6601, 0
    %v7704 = vsel %vm381, %v6633, 0
    %7706 = vmatprep.subr.bf16.mxu0 0
    %7707 = vmatpush1.bf16.xpose.msra.mxu0 0
    %7708 = vmatprep.subr.bf16.mxu0 0
    %7709 = vmatpush1.bf16.xpose.msra.mxu0 0
    %7710 = vmatprep.subr.bf16.mxu0 0
    %7711 = vmatpush1.bf16.xpose.msra.mxu0 0
    %7712 = vmatprep.subr.bf16.mxu0 0
    %7713 = vmatpush1.bf16.xpose.msra.mxu0 0
    %7714 = vmatprep.subr.bf16.mxu0 0
    %7715 = vmatpush1.bf16.xpose.msra.mxu0 0
    %7716 = vmatprep.subr.bf16.mxu0 0
    %7717 = vmatpush1.bf16.xpose.msra.mxu0 0
    %7718 = vmatprep.subr.bf16.mxu0 0
    %7719 = vmatpush1.bf16.xpose.msra.mxu0 0
    %7720 = vmatprep.subr.bf16.mxu0 0
    %7721 = vmatpush1.bf16.xpose.msra.mxu0 %v7704
    %7722 = vmatprep.subr.bf16.mxu0 0
    %7723 = vmatpush2.bf16.xpose.msra.mxu0 0
    %7724 = vmatprep.subr.bf16.mxu0 0
    %7725 = vmatpush2.bf16.xpose.msra.mxu0 0
    %7726 = vmatprep.subr.bf16.mxu0 0
    %7727 = vmatpush2.bf16.xpose.msra.mxu0 0
    %7728 = vmatprep.subr.bf16.mxu0 0
    %7729 = vmatpush2.bf16.xpose.msra.mxu0 0
    %7730 = vmatprep.subr.bf16.mxu0 0
    %7731 = vmatpush2.bf16.xpose.msra.mxu0 0
    %7732 = vmatprep.subr.bf16.mxu0 0
    %7733 = vmatpush2.bf16.xpose.msra.mxu0 0
    %7734 = vmatprep.subr.bf16.mxu0 0
    %7735 = vmatpush2.bf16.xpose.msra.mxu0 0
    %7736 = vmatprep.subr.bf16.mxu0 0
    %7737 = vmatpush2.bf16.xpose.msra.mxu0 0
    %7738 = vmatprep.mubr.bf16.mxu0 0
    %7739 = vmatmul.mubr.bf16.gmra.mxu0 %v7701
    %v7740 = vpop.f32.mrf.mxu0
    %v7741 = vadd.f32 0.0, %v7740
    %v7742 = vpop.f32.mrf.mxu0
    %v7743 = vpop.f32.mrf.mxu0
    %v7744 = vpop.f32.mrf.mxu0
    %7745 = vdwg.mxu0
    %v7747 = vsel %vm381, %v6602, 0
    %v7750 = vsel %vm381, %v6634, 0
    %7752 = vmatprep.subr.bf16.mxu0 0
    %7753 = vmatpush1.bf16.xpose.msra.mxu0 0
    %7754 = vmatprep.subr.bf16.mxu0 0
    %7755 = vmatpush1.bf16.xpose.msra.mxu0 0
    %7756 = vmatprep.subr.bf16.mxu0 0
    %7757 = vmatpush1.bf16.xpose.msra.mxu0 0
    %7758 = vmatprep.subr.bf16.mxu0 0
    %7759 = vmatpush1.bf16.xpose.msra.mxu0 0
    %7760 = vmatprep.subr.bf16.mxu0 0
    %7761 = vmatpush1.bf16.xpose.msra.mxu0 0
    %7762 = vmatprep.subr.bf16.mxu0 0
    %7763 = vmatpush1.bf16.xpose.msra.mxu0 0
    %7764 = vmatprep.subr.bf16.mxu0 0
    %7765 = vmatpush1.bf16.xpose.msra.mxu0 0
    %7766 = vmatprep.subr.bf16.mxu0 0
    %7767 = vmatpush1.bf16.xpose.msra.mxu0 %v7750
    %7768 = vmatprep.subr.bf16.mxu0 0
    %7769 = vmatpush2.bf16.xpose.msra.mxu0 0
    %7770 = vmatprep.subr.bf16.mxu0 0
    %7771 = vmatpush2.bf16.xpose.msra.mxu0 0
    %7772 = vmatprep.subr.bf16.mxu0 0
    %7773 = vmatpush2.bf16.xpose.msra.mxu0 0
    %7774 = vmatprep.subr.bf16.mxu0 0
    %7775 = vmatpush2.bf16.xpose.msra.mxu0 0
    %7776 = vmatprep.subr.bf16.mxu0 0
    %7777 = vmatpush2.bf16.xpose.msra.mxu0 0
    %7778 = vmatprep.subr.bf16.mxu0 0
    %7779 = vmatpush2.bf16.xpose.msra.mxu0 0
    %7780 = vmatprep.subr.bf16.mxu0 0
    %7781 = vmatpush2.bf16.xpose.msra.mxu0 0
    %7782 = vmatprep.subr.bf16.mxu0 0
    %7783 = vmatpush2.bf16.xpose.msra.mxu0 0
    %7784 = vmatprep.mubr.bf16.mxu0 0
    %7785 = vmatmul.mubr.bf16.gmra.mxu0 %v7747
    %v7786 = vpop.f32.mrf.mxu0
    %v7787 = vadd.f32 0.0, %v7786
    %v7788 = vpop.f32.mrf.mxu0
    %v7789 = vpop.f32.mrf.mxu0
    %v7790 = vpop.f32.mrf.mxu0
    %7791 = vdwg.mxu0
    %v7793 = vsel %vm381, %v6603, 0
    %v7796 = vsel %vm381, %v6635, 0
    %7798 = vmatprep.subr.bf16.mxu0 0
    %7799 = vmatpush1.bf16.xpose.msra.mxu0 0
    %7800 = vmatprep.subr.bf16.mxu0 0
    %7801 = vmatpush1.bf16.xpose.msra.mxu0 0
    %7802 = vmatprep.subr.bf16.mxu0 0
    %7803 = vmatpush1.bf16.xpose.msra.mxu0 0
    %7804 = vmatprep.subr.bf16.mxu0 0
    %7805 = vmatpush1.bf16.xpose.msra.mxu0 0
    %7806 = vmatprep.subr.bf16.mxu0 0
    %7807 = vmatpush1.bf16.xpose.msra.mxu0 0
    %7808 = vmatprep.subr.bf16.mxu0 0
    %7809 = vmatpush1.bf16.xpose.msra.mxu0 0
    %7810 = vmatprep.subr.bf16.mxu0 0
    %7811 = vmatpush1.bf16.xpose.msra.mxu0 0
    %7812 = vmatprep.subr.bf16.mxu0 0
    %7813 = vmatpush1.bf16.xpose.msra.mxu0 %v7796
    %7814 = vmatprep.subr.bf16.mxu0 0
    %7815 = vmatpush2.bf16.xpose.msra.mxu0 0
    %7816 = vmatprep.subr.bf16.mxu0 0
    %7817 = vmatpush2.bf16.xpose.msra.mxu0 0
    %7818 = vmatprep.subr.bf16.mxu0 0
    %7819 = vmatpush2.bf16.xpose.msra.mxu0 0
    %7820 = vmatprep.subr.bf16.mxu0 0
    %7821 = vmatpush2.bf16.xpose.msra.mxu0 0
    %7822 = vmatprep.subr.bf16.mxu0 0
    %7823 = vmatpush2.bf16.xpose.msra.mxu0 0
    %7824 = vmatprep.subr.bf16.mxu0 0
    %7825 = vmatpush2.bf16.xpose.msra.mxu0 0
    %7826 = vmatprep.subr.bf16.mxu0 0
    %7827 = vmatpush2.bf16.xpose.msra.mxu0 0
    %7828 = vmatprep.subr.bf16.mxu0 0
    %7829 = vmatpush2.bf16.xpose.msra.mxu0 0
    %7830 = vmatprep.mubr.bf16.mxu0 0
    %7831 = vmatmul.mubr.bf16.gmra.mxu0 %v7793
    %v7832 = vpop.f32.mrf.mxu0
    %v7833 = vadd.f32 0.0, %v7832
    %v7834 = vpop.f32.mrf.mxu0
    %v7835 = vpop.f32.mrf.mxu0
    %v7836 = vpop.f32.mrf.mxu0
    %7837 = vdwg.mxu0
    %v7839 = vsel %vm381, %v6604, 0
    %v7842 = vsel %vm381, %v6636, 0
    %7844 = vmatprep.subr.bf16.mxu0 0
    %7845 = vmatpush1.bf16.xpose.msra.mxu0 0
    %7846 = vmatprep.subr.bf16.mxu0 0
    %7847 = vmatpush1.bf16.xpose.msra.mxu0 0
    %7848 = vmatprep.subr.bf16.mxu0 0
    %7849 = vmatpush1.bf16.xpose.msra.mxu0 0
    %7850 = vmatprep.subr.bf16.mxu0 0
    %7851 = vmatpush1.bf16.xpose.msra.mxu0 0
    %7852 = vmatprep.subr.bf16.mxu0 0
    %7853 = vmatpush1.bf16.xpose.msra.mxu0 0
    %7854 = vmatprep.subr.bf16.mxu0 0
    %7855 = vmatpush1.bf16.xpose.msra.mxu0 0
    %7856 = vmatprep.subr.bf16.mxu0 0
    %7857 = vmatpush1.bf16.xpose.msra.mxu0 0
    %7858 = vmatprep.subr.bf16.mxu0 0
    %7859 = vmatpush1.bf16.xpose.msra.mxu0 %v7842
    %7860 = vmatprep.subr.bf16.mxu0 0
    %7861 = vmatpush2.bf16.xpose.msra.mxu0 0
    %7862 = vmatprep.subr.bf16.mxu0 0
    %7863 = vmatpush2.bf16.xpose.msra.mxu0 0
    %7864 = vmatprep.subr.bf16.mxu0 0
    %7865 = vmatpush2.bf16.xpose.msra.mxu0 0
    %7866 = vmatprep.subr.bf16.mxu0 0
    %7867 = vmatpush2.bf16.xpose.msra.mxu0 0
    %7868 = vmatprep.subr.bf16.mxu0 0
    %7869 = vmatpush2.bf16.xpose.msra.mxu0 0
    %7870 = vmatprep.subr.bf16.mxu0 0
    %7871 = vmatpush2.bf16.xpose.msra.mxu0 0
    %7872 = vmatprep.subr.bf16.mxu0 0
    %7873 = vmatpush2.bf16.xpose.msra.mxu0 0
    %7874 = vmatprep.subr.bf16.mxu0 0
    %7875 = vmatpush2.bf16.xpose.msra.mxu0 0
    %7876 = vmatprep.mubr.bf16.mxu0 0
    %7877 = vmatmul.mubr.bf16.gmra.mxu0 %v7839
    %v7878 = vpop.f32.mrf.mxu0
    %v7879 = vadd.f32 0.0, %v7878
    %v7880 = vpop.f32.mrf.mxu0
    %v7881 = vpop.f32.mrf.mxu0
    %v7882 = vpop.f32.mrf.mxu0
    %7883 = vdwg.mxu0
    %v7885 = vsel %vm381, %v6605, 0
    %v7888 = vsel %vm381, %v6637, 0
    %7890 = vmatprep.subr.bf16.mxu0 0
    %7891 = vmatpush1.bf16.xpose.msra.mxu0 0
    %7892 = vmatprep.subr.bf16.mxu0 0
    %7893 = vmatpush1.bf16.xpose.msra.mxu0 0
    %7894 = vmatprep.subr.bf16.mxu0 0
    %7895 = vmatpush1.bf16.xpose.msra.mxu0 0
    %7896 = vmatprep.subr.bf16.mxu0 0
    %7897 = vmatpush1.bf16.xpose.msra.mxu0 0
    %7898 = vmatprep.subr.bf16.mxu0 0
    %7899 = vmatpush1.bf16.xpose.msra.mxu0 0
    %7900 = vmatprep.subr.bf16.mxu0 0
    %7901 = vmatpush1.bf16.xpose.msra.mxu0 0
    %7902 = vmatprep.subr.bf16.mxu0 0
    %7903 = vmatpush1.bf16.xpose.msra.mxu0 0
    %7904 = vmatprep.subr.bf16.mxu0 0
    %7905 = vmatpush1.bf16.xpose.msra.mxu0 %v7888
    %7906 = vmatprep.subr.bf16.mxu0 0
    %7907 = vmatpush2.bf16.xpose.msra.mxu0 0
    %7908 = vmatprep.subr.bf16.mxu0 0
    %7909 = vmatpush2.bf16.xpose.msra.mxu0 0
    %7910 = vmatprep.subr.bf16.mxu0 0
    %7911 = vmatpush2.bf16.xpose.msra.mxu0 0
    %7912 = vmatprep.subr.bf16.mxu0 0
    %7913 = vmatpush2.bf16.xpose.msra.mxu0 0
    %7914 = vmatprep.subr.bf16.mxu0 0
    %7915 = vmatpush2.bf16.xpose.msra.mxu0 0
    %7916 = vmatprep.subr.bf16.mxu0 0
    %7917 = vmatpush2.bf16.xpose.msra.mxu0 0
    %7918 = vmatprep.subr.bf16.mxu0 0
    %7919 = vmatpush2.bf16.xpose.msra.mxu0 0
    %7920 = vmatprep.subr.bf16.mxu0 0
    %7921 = vmatpush2.bf16.xpose.msra.mxu0 0
    %7922 = vmatprep.mubr.bf16.mxu0 0
    %7923 = vmatmul.mubr.bf16.gmra.mxu0 %v7885
    %v7924 = vpop.f32.mrf.mxu0
    %v7925 = vadd.f32 0.0, %v7924
    %v7926 = vpop.f32.mrf.mxu0
    %v7927 = vpop.f32.mrf.mxu0
    %v7928 = vpop.f32.mrf.mxu0
    %7929 = vdwg.mxu0
    %v7931 = vsel %vm381, %v6606, 0
    %v7934 = vsel %vm381, %v6638, 0
    %7936 = vmatprep.subr.bf16.mxu0 0
    %7937 = vmatpush1.bf16.xpose.msra.mxu0 0
    %7938 = vmatprep.subr.bf16.mxu0 0
    %7939 = vmatpush1.bf16.xpose.msra.mxu0 0
    %7940 = vmatprep.subr.bf16.mxu0 0
    %7941 = vmatpush1.bf16.xpose.msra.mxu0 0
    %7942 = vmatprep.subr.bf16.mxu0 0
    %7943 = vmatpush1.bf16.xpose.msra.mxu0 0
    %7944 = vmatprep.subr.bf16.mxu0 0
    %7945 = vmatpush1.bf16.xpose.msra.mxu0 0
    %7946 = vmatprep.subr.bf16.mxu0 0
    %7947 = vmatpush1.bf16.xpose.msra.mxu0 0
    %7948 = vmatprep.subr.bf16.mxu0 0
    %7949 = vmatpush1.bf16.xpose.msra.mxu0 0
    %7950 = vmatprep.subr.bf16.mxu0 0
    %7951 = vmatpush1.bf16.xpose.msra.mxu0 %v7934
    %7952 = vmatprep.subr.bf16.mxu0 0
    %7953 = vmatpush2.bf16.xpose.msra.mxu0 0
    %7954 = vmatprep.subr.bf16.mxu0 0
    %7955 = vmatpush2.bf16.xpose.msra.mxu0 0
    %7956 = vmatprep.subr.bf16.mxu0 0
    %7957 = vmatpush2.bf16.xpose.msra.mxu0 0
    %7958 = vmatprep.subr.bf16.mxu0 0
    %7959 = vmatpush2.bf16.xpose.msra.mxu0 0
    %7960 = vmatprep.subr.bf16.mxu0 0
    %7961 = vmatpush2.bf16.xpose.msra.mxu0 0
    %7962 = vmatprep.subr.bf16.mxu0 0
    %7963 = vmatpush2.bf16.xpose.msra.mxu0 0
    %7964 = vmatprep.subr.bf16.mxu0 0
    %7965 = vmatpush2.bf16.xpose.msra.mxu0 0
    %7966 = vmatprep.subr.bf16.mxu0 0
    %7967 = vmatpush2.bf16.xpose.msra.mxu0 0
    %7968 = vmatprep.mubr.bf16.mxu0 0
    %7969 = vmatmul.mubr.bf16.gmra.mxu0 %v7931
    %v7970 = vpop.f32.mrf.mxu0
    %v7971 = vadd.f32 0.0, %v7970
    %v7972 = vpop.f32.mrf.mxu0
    %v7973 = vpop.f32.mrf.mxu0
    %v7974 = vpop.f32.mrf.mxu0
    %7975 = vdwg.mxu0
    %v7977 = vsel %vm381, %v6607, 0
    %v7980 = vsel %vm381, %v6639, 0
    %7982 = vmatprep.subr.bf16.mxu0 0
    %7983 = vmatpush1.bf16.xpose.msra.mxu0 0
    %7984 = vmatprep.subr.bf16.mxu0 0
    %7985 = vmatpush1.bf16.xpose.msra.mxu0 0
    %7986 = vmatprep.subr.bf16.mxu0 0
    %7987 = vmatpush1.bf16.xpose.msra.mxu0 0
    %7988 = vmatprep.subr.bf16.mxu0 0
    %7989 = vmatpush1.bf16.xpose.msra.mxu0 0
    %7990 = vmatprep.subr.bf16.mxu0 0
    %7991 = vmatpush1.bf16.xpose.msra.mxu0 0
    %7992 = vmatprep.subr.bf16.mxu0 0
    %7993 = vmatpush1.bf16.xpose.msra.mxu0 0
    %7994 = vmatprep.subr.bf16.mxu0 0
    %7995 = vmatpush1.bf16.xpose.msra.mxu0 0
    %7996 = vmatprep.subr.bf16.mxu0 0
    %7997 = vmatpush1.bf16.xpose.msra.mxu0 %v7980
    %7998 = vmatprep.subr.bf16.mxu0 0
    %7999 = vmatpush2.bf16.xpose.msra.mxu0 0
    %8000 = vmatprep.subr.bf16.mxu0 0
    %8001 = vmatpush2.bf16.xpose.msra.mxu0 0
    %8002 = vmatprep.subr.bf16.mxu0 0
    %8003 = vmatpush2.bf16.xpose.msra.mxu0 0
    %8004 = vmatprep.subr.bf16.mxu0 0
    %8005 = vmatpush2.bf16.xpose.msra.mxu0 0
    %8006 = vmatprep.subr.bf16.mxu0 0
    %8007 = vmatpush2.bf16.xpose.msra.mxu0 0
    %8008 = vmatprep.subr.bf16.mxu0 0
    %8009 = vmatpush2.bf16.xpose.msra.mxu0 0
    %8010 = vmatprep.subr.bf16.mxu0 0
    %8011 = vmatpush2.bf16.xpose.msra.mxu0 0
    %8012 = vmatprep.subr.bf16.mxu0 0
    %8013 = vmatpush2.bf16.xpose.msra.mxu0 0
    %8014 = vmatprep.mubr.bf16.mxu0 0
    %8015 = vmatmul.mubr.bf16.gmra.mxu0 %v7977
    %v8016 = vpop.f32.mrf.mxu0
    %v8017 = vadd.f32 0.0, %v8016
    %v8018 = vpop.f32.mrf.mxu0
    %v8019 = vpop.f32.mrf.mxu0
    %v8020 = vpop.f32.mrf.mxu0
    %8021 = vdwg.mxu0
    %v8023 = vsel %vm381, %v6608, 0
    %v8026 = vsel %vm381, %v6640, 0
    %8028 = vmatprep.subr.bf16.mxu0 0
    %8029 = vmatpush1.bf16.xpose.msra.mxu0 0
    %8030 = vmatprep.subr.bf16.mxu0 0
    %8031 = vmatpush1.bf16.xpose.msra.mxu0 0
    %8032 = vmatprep.subr.bf16.mxu0 0
    %8033 = vmatpush1.bf16.xpose.msra.mxu0 0
    %8034 = vmatprep.subr.bf16.mxu0 0
    %8035 = vmatpush1.bf16.xpose.msra.mxu0 0
    %8036 = vmatprep.subr.bf16.mxu0 0
    %8037 = vmatpush1.bf16.xpose.msra.mxu0 0
    %8038 = vmatprep.subr.bf16.mxu0 0
    %8039 = vmatpush1.bf16.xpose.msra.mxu0 0
    %8040 = vmatprep.subr.bf16.mxu0 0
    %8041 = vmatpush1.bf16.xpose.msra.mxu0 0
    %8042 = vmatprep.subr.bf16.mxu0 0
    %8043 = vmatpush1.bf16.xpose.msra.mxu0 %v8026
    %8044 = vmatprep.subr.bf16.mxu0 0
    %8045 = vmatpush2.bf16.xpose.msra.mxu0 0
    %8046 = vmatprep.subr.bf16.mxu0 0
    %8047 = vmatpush2.bf16.xpose.msra.mxu0 0
    %8048 = vmatprep.subr.bf16.mxu0 0
    %8049 = vmatpush2.bf16.xpose.msra.mxu0 0
    %8050 = vmatprep.subr.bf16.mxu0 0
    %8051 = vmatpush2.bf16.xpose.msra.mxu0 0
    %8052 = vmatprep.subr.bf16.mxu0 0
    %8053 = vmatpush2.bf16.xpose.msra.mxu0 0
    %8054 = vmatprep.subr.bf16.mxu0 0
    %8055 = vmatpush2.bf16.xpose.msra.mxu0 0
    %8056 = vmatprep.subr.bf16.mxu0 0
    %8057 = vmatpush2.bf16.xpose.msra.mxu0 0
    %8058 = vmatprep.subr.bf16.mxu0 0
    %8059 = vmatpush2.bf16.xpose.msra.mxu0 0
    %8060 = vmatprep.mubr.bf16.mxu0 0
    %8061 = vmatmul.mubr.bf16.gmra.mxu0 %v8023
    %v8062 = vpop.f32.mrf.mxu0
    %v8063 = vadd.f32 0.0, %v8062
    %v8064 = vpop.f32.mrf.mxu0
    %v8065 = vpop.f32.mrf.mxu0
    %v8066 = vpop.f32.mrf.mxu0
    %8067 = vdwg.mxu0
    %v8069 = vsel %vm381, %v6609, 0
    %v8072 = vsel %vm381, %v6641, 0
    %8074 = vmatprep.subr.bf16.mxu0 0
    %8075 = vmatpush1.bf16.xpose.msra.mxu0 0
    %8076 = vmatprep.subr.bf16.mxu0 0
    %8077 = vmatpush1.bf16.xpose.msra.mxu0 0
    %8078 = vmatprep.subr.bf16.mxu0 0
    %8079 = vmatpush1.bf16.xpose.msra.mxu0 0
    %8080 = vmatprep.subr.bf16.mxu0 0
    %8081 = vmatpush1.bf16.xpose.msra.mxu0 0
    %8082 = vmatprep.subr.bf16.mxu0 0
    %8083 = vmatpush1.bf16.xpose.msra.mxu0 0
    %8084 = vmatprep.subr.bf16.mxu0 0
    %8085 = vmatpush1.bf16.xpose.msra.mxu0 0
    %8086 = vmatprep.subr.bf16.mxu0 0
    %8087 = vmatpush1.bf16.xpose.msra.mxu0 0
    %8088 = vmatprep.subr.bf16.mxu0 0
    %8089 = vmatpush1.bf16.xpose.msra.mxu0 %v8072
    %8090 = vmatprep.subr.bf16.mxu0 0
    %8091 = vmatpush2.bf16.xpose.msra.mxu0 0
    %8092 = vmatprep.subr.bf16.mxu0 0
    %8093 = vmatpush2.bf16.xpose.msra.mxu0 0
    %8094 = vmatprep.subr.bf16.mxu0 0
    %8095 = vmatpush2.bf16.xpose.msra.mxu0 0
    %8096 = vmatprep.subr.bf16.mxu0 0
    %8097 = vmatpush2.bf16.xpose.msra.mxu0 0
    %8098 = vmatprep.subr.bf16.mxu0 0
    %8099 = vmatpush2.bf16.xpose.msra.mxu0 0
    %8100 = vmatprep.subr.bf16.mxu0 0
    %8101 = vmatpush2.bf16.xpose.msra.mxu0 0
    %8102 = vmatprep.subr.bf16.mxu0 0
    %8103 = vmatpush2.bf16.xpose.msra.mxu0 0
    %8104 = vmatprep.subr.bf16.mxu0 0
    %8105 = vmatpush2.bf16.xpose.msra.mxu0 0
    %8106 = vmatprep.mubr.bf16.mxu0 0
    %8107 = vmatmul.mubr.bf16.gmra.mxu0 %v8069
    %v8108 = vpop.f32.mrf.mxu0
    %v8109 = vadd.f32 0.0, %v8108
    %v8110 = vpop.f32.mrf.mxu0
    %v8111 = vpop.f32.mrf.mxu0
    %v8112 = vpop.f32.mrf.mxu0
    %8113 = vdwg.mxu0
    %v8114 = vsel %vm2329, %v6683, -inf
    %8115 = vmax.xlane.f32.xlu0 %v8114
    %v8116 = vpop.xlane.xlu0 %8115
    %v8117 = vsel %vm2329, %v6729, -inf
    %8118 = vmax.xlane.f32.xlu0 %v8117
    %v8119 = vpop.xlane.xlu0 %8118
    %v8120 = vsel %vm2329, %v6775, -inf
    %8121 = vmax.xlane.f32.xlu0 %v8120
    %v8122 = vpop.xlane.xlu0 %8121
    %v8123 = vsel %vm2329, %v6821, -inf
    %8124 = vmax.xlane.f32.xlu0 %v8123
    %v8125 = vpop.xlane.xlu0 %8124
    %v8126 = vsel %vm2329, %v6867, -inf
    %8127 = vmax.xlane.f32.xlu0 %v8126
    %v8128 = vpop.xlane.xlu0 %8127
    %v8129 = vsel %vm2329, %v6913, -inf
    %8130 = vmax.xlane.f32.xlu0 %v8129
    %v8131 = vpop.xlane.xlu0 %8130
    %v8132 = vsel %vm2329, %v6959, -inf
    %8133 = vmax.xlane.f32.xlu0 %v8132
    %v8134 = vpop.xlane.xlu0 %8133
    %v8135 = vsel %vm2329, %v7005, -inf
    %8136 = vmax.xlane.f32.xlu0 %v8135
    %v8137 = vpop.xlane.xlu0 %8136
    %v8138 = vsel %vm2329, %v7051, -inf
    %8139 = vmax.xlane.f32.xlu0 %v8138
    %v8140 = vpop.xlane.xlu0 %8139
    %v8141 = vsel %vm2329, %v7097, -inf
    %8142 = vmax.xlane.f32.xlu0 %v8141
    %v8143 = vpop.xlane.xlu0 %8142
    %v8144 = vsel %vm2329, %v7143, -inf
    %8145 = vmax.xlane.f32.xlu0 %v8144
    %v8146 = vpop.xlane.xlu0 %8145
    %v8147 = vsel %vm2329, %v7189, -inf
    %8148 = vmax.xlane.f32.xlu0 %v8147
    %v8149 = vpop.xlane.xlu0 %8148
    %v8150 = vsel %vm2329, %v7235, -inf
    %8151 = vmax.xlane.f32.xlu0 %v8150
    %v8152 = vpop.xlane.xlu0 %8151
    %v8153 = vsel %vm2329, %v7281, -inf
    %8154 = vmax.xlane.f32.xlu0 %v8153
    %v8155 = vpop.xlane.xlu0 %8154
    %v8156 = vsel %vm2329, %v7327, -inf
    %8157 = vmax.xlane.f32.xlu0 %v8156
    %v8158 = vpop.xlane.xlu0 %8157
    %v8159 = vsel %vm2329, %v7373, -inf
    %8160 = vmax.xlane.f32.xlu0 %v8159
    %v8161 = vpop.xlane.xlu0 %8160
    %v8162 = vsel %vm2329, %v7419, -inf
    %8163 = vmax.xlane.f32.xlu0 %v8162
    %v8164 = vpop.xlane.xlu0 %8163
    %v8165 = vsel %vm2329, %v7465, -inf
    %8166 = vmax.xlane.f32.xlu0 %v8165
    %v8167 = vpop.xlane.xlu0 %8166
    %v8168 = vsel %vm2329, %v7511, -inf
    %8169 = vmax.xlane.f32.xlu0 %v8168
    %v8170 = vpop.xlane.xlu0 %8169
    %v8171 = vsel %vm2329, %v7557, -inf
    %8172 = vmax.xlane.f32.xlu0 %v8171
    %v8173 = vpop.xlane.xlu0 %8172
    %v8174 = vsel %vm2329, %v7603, -inf
    %8175 = vmax.xlane.f32.xlu0 %v8174
    %v8176 = vpop.xlane.xlu0 %8175
    %v8177 = vsel %vm2329, %v7649, -inf
    %8178 = vmax.xlane.f32.xlu0 %v8177
    %v8179 = vpop.xlane.xlu0 %8178
    %v8180 = vsel %vm2329, %v7695, -inf
    %8181 = vmax.xlane.f32.xlu0 %v8180
    %v8182 = vpop.xlane.xlu0 %8181
    %v8183 = vsel %vm2329, %v7741, -inf
    %8184 = vmax.xlane.f32.xlu0 %v8183
    %v8185 = vpop.xlane.xlu0 %8184
    %v8186 = vsel %vm2329, %v7787, -inf
    %8187 = vmax.xlane.f32.xlu0 %v8186
    %v8188 = vpop.xlane.xlu0 %8187
    %v8189 = vsel %vm2329, %v7833, -inf
    %8190 = vmax.xlane.f32.xlu0 %v8189
    %v8191 = vpop.xlane.xlu0 %8190
    %v8192 = vsel %vm2329, %v7879, -inf
    %8193 = vmax.xlane.f32.xlu0 %v8192
    %v8194 = vpop.xlane.xlu0 %8193
    %v8195 = vsel %vm2329, %v7925, -inf
    %8196 = vmax.xlane.f32.xlu0 %v8195
    %v8197 = vpop.xlane.xlu0 %8196
    %v8198 = vsel %vm2329, %v7971, -inf
    %8199 = vmax.xlane.f32.xlu0 %v8198
    %v8200 = vpop.xlane.xlu0 %8199
    %v8201 = vsel %vm2329, %v8017, -inf
    %8202 = vmax.xlane.f32.xlu0 %v8201
    %v8203 = vpop.xlane.xlu0 %8202
    %v8204 = vsel %vm2329, %v8063, -inf
    %8205 = vmax.xlane.f32.xlu0 %v8204
    %v8206 = vpop.xlane.xlu0 %8205
    %v8207 = vsel %vm2329, %v8109, -inf
    %8208 = vmax.xlane.f32.xlu0 %v8207
    %v8209 = vpop.xlane.xlu0 %8208
    %v8210 = vsub.f32 %v6683, %v8116
    %v8211 = vsub.f32 %v6729, %v8119
    %v8212 = vsub.f32 %v6775, %v8122
    %v8213 = vsub.f32 %v6821, %v8125
    %v8214 = vsub.f32 %v6867, %v8128
    %v8215 = vsub.f32 %v6913, %v8131
    %v8216 = vsub.f32 %v6959, %v8134
    %v8217 = vsub.f32 %v7005, %v8137
    %v8218 = vsub.f32 %v7051, %v8140
    %v8219 = vsub.f32 %v7097, %v8143
    %v8220 = vsub.f32 %v7143, %v8146
    %v8221 = vsub.f32 %v7189, %v8149
    %v8222 = vsub.f32 %v7235, %v8152
    %v8223 = vsub.f32 %v7281, %v8155
    %v8224 = vsub.f32 %v7327, %v8158
    %v8225 = vsub.f32 %v7373, %v8161
    %v8226 = vsub.f32 %v7419, %v8164
    %v8227 = vsub.f32 %v7465, %v8167
    %v8228 = vsub.f32 %v7511, %v8170
    %v8229 = vsub.f32 %v7557, %v8173
    %v8230 = vsub.f32 %v7603, %v8176
    %v8231 = vsub.f32 %v7649, %v8179
    %v8232 = vsub.f32 %v7695, %v8182
    %v8233 = vsub.f32 %v7741, %v8185
    %v8234 = vsub.f32 %v7787, %v8188
    %v8235 = vsub.f32 %v7833, %v8191
    %v8236 = vsub.f32 %v7879, %v8194
    %v8237 = vsub.f32 %v7925, %v8197
    %v8238 = vsub.f32 %v7971, %v8200
    %v8239 = vsub.f32 %v8017, %v8203
    %v8240 = vsub.f32 %v8063, %v8206
    %v8241 = vsub.f32 %v8109, %v8209
    %v8242 = vmul.f32 %v8210, 1.442695
    %v8243 = vpow.pop %v8242
    %v8244 = vmul.f32 %v8211, 1.442695
    %v8245 = vpow.pop %v8244
    %v8246 = vmul.f32 %v8212, 1.442695
    %v8247 = vpow.pop %v8246
    %v8248 = vmul.f32 %v8213, 1.442695
    %v8249 = vpow.pop %v8248
    %v8250 = vmul.f32 %v8214, 1.442695
    %v8251 = vpow.pop %v8250
    %v8252 = vmul.f32 %v8215, 1.442695
    %v8253 = vpow.pop %v8252
    %v8254 = vmul.f32 %v8216, 1.442695
    %v8255 = vpow.pop %v8254
    %v8256 = vmul.f32 %v8217, 1.442695
    %v8257 = vpow.pop %v8256
    %v8258 = vmul.f32 %v8218, 1.442695
    %v8259 = vpow.pop %v8258
    %v8260 = vmul.f32 %v8219, 1.442695
    %v8261 = vpow.pop %v8260
    %v8262 = vmul.f32 %v8220, 1.442695
    %v8263 = vpow.pop %v8262
    %v8264 = vmul.f32 %v8221, 1.442695
    %v8265 = vpow.pop %v8264
    %v8266 = vmul.f32 %v8222, 1.442695
    %v8267 = vpow.pop %v8266
    %v8268 = vmul.f32 %v8223, 1.442695
    %v8269 = vpow.pop %v8268
    %v8270 = vmul.f32 %v8224, 1.442695
    %v8271 = vpow.pop %v8270
    %v8272 = vmul.f32 %v8225, 1.442695
    %v8273 = vpow.pop %v8272
    %v8274 = vmul.f32 %v8226, 1.442695
    %v8275 = vpow.pop %v8274
    %v8276 = vmul.f32 %v8227, 1.442695
    %v8277 = vpow.pop %v8276
    %v8278 = vmul.f32 %v8228, 1.442695
    %v8279 = vpow.pop %v8278
    %v8280 = vmul.f32 %v8229, 1.442695
    %v8281 = vpow.pop %v8280
    %v8282 = vmul.f32 %v8230, 1.442695
    %v8283 = vpow.pop %v8282
    %v8284 = vmul.f32 %v8231, 1.442695
    %v8285 = vpow.pop %v8284
    %v8286 = vmul.f32 %v8232, 1.442695
    %v8287 = vpow.pop %v8286
    %v8288 = vmul.f32 %v8233, 1.442695
    %v8289 = vpow.pop %v8288
    %v8290 = vmul.f32 %v8234, 1.442695
    %v8291 = vpow.pop %v8290
    %v8292 = vmul.f32 %v8235, 1.442695
    %v8293 = vpow.pop %v8292
    %v8294 = vmul.f32 %v8236, 1.442695
    %v8295 = vpow.pop %v8294
    %v8296 = vmul.f32 %v8237, 1.442695
    %v8297 = vpow.pop %v8296
    %v8298 = vmul.f32 %v8238, 1.442695
    %v8299 = vpow.pop %v8298
    %v8300 = vmul.f32 %v8239, 1.442695
    %v8301 = vpow.pop %v8300
    %v8302 = vmul.f32 %v8240, 1.442695
    %v8303 = vpow.pop %v8302
    %v8304 = vmul.f32 %v8241, 1.442695
    %v8305 = vpow.pop %v8304
    %v8306 = vsel %vm2329, %v8243, 0.0
    %8307 = vadd.xlane.f32.xlu0 %v8306
    %v8308 = vpop.xlane.xlu0 %8307
    %v8309 = vsel %vm2329, %v8245, 0.0
    %8310 = vadd.xlane.f32.xlu0 %v8309
    %v8311 = vpop.xlane.xlu0 %8310
    %v8312 = vsel %vm2329, %v8247, 0.0
    %8313 = vadd.xlane.f32.xlu0 %v8312
    %v8314 = vpop.xlane.xlu0 %8313
    %v8315 = vsel %vm2329, %v8249, 0.0
    %8316 = vadd.xlane.f32.xlu0 %v8315
    %v8317 = vpop.xlane.xlu0 %8316
    %v8318 = vsel %vm2329, %v8251, 0.0
    %8319 = vadd.xlane.f32.xlu0 %v8318
    %v8320 = vpop.xlane.xlu0 %8319
    %v8321 = vsel %vm2329, %v8253, 0.0
    %8322 = vadd.xlane.f32.xlu0 %v8321
    %v8323 = vpop.xlane.xlu0 %8322
    %v8324 = vsel %vm2329, %v8255, 0.0
    %8325 = vadd.xlane.f32.xlu0 %v8324
    %v8326 = vpop.xlane.xlu0 %8325
    %v8327 = vsel %vm2329, %v8257, 0.0
    %8328 = vadd.xlane.f32.xlu0 %v8327
    %v8329 = vpop.xlane.xlu0 %8328
    %v8330 = vsel %vm2329, %v8259, 0.0
    %8331 = vadd.xlane.f32.xlu0 %v8330
    %v8332 = vpop.xlane.xlu0 %8331
    %v8333 = vsel %vm2329, %v8261, 0.0
    %8334 = vadd.xlane.f32.xlu0 %v8333
    %v8335 = vpop.xlane.xlu0 %8334
    %v8336 = vsel %vm2329, %v8263, 0.0
    %8337 = vadd.xlane.f32.xlu0 %v8336
    %v8338 = vpop.xlane.xlu0 %8337
    %v8339 = vsel %vm2329, %v8265, 0.0
    %8340 = vadd.xlane.f32.xlu0 %v8339
    %v8341 = vpop.xlane.xlu0 %8340
    %v8342 = vsel %vm2329, %v8267, 0.0
    %8343 = vadd.xlane.f32.xlu0 %v8342
    %v8344 = vpop.xlane.xlu0 %8343
    %v8345 = vsel %vm2329, %v8269, 0.0
    %8346 = vadd.xlane.f32.xlu0 %v8345
    %v8347 = vpop.xlane.xlu0 %8346
    %v8348 = vsel %vm2329, %v8271, 0.0
    %8349 = vadd.xlane.f32.xlu0 %v8348
    %v8350 = vpop.xlane.xlu0 %8349
    %v8351 = vsel %vm2329, %v8273, 0.0
    %8352 = vadd.xlane.f32.xlu0 %v8351
    %v8353 = vpop.xlane.xlu0 %8352
    %v8354 = vsel %vm2329, %v8275, 0.0
    %8355 = vadd.xlane.f32.xlu0 %v8354
    %v8356 = vpop.xlane.xlu0 %8355
    %v8357 = vsel %vm2329, %v8277, 0.0
    %8358 = vadd.xlane.f32.xlu0 %v8357
    %v8359 = vpop.xlane.xlu0 %8358
    %v8360 = vsel %vm2329, %v8279, 0.0
    %8361 = vadd.xlane.f32.xlu0 %v8360
    %v8362 = vpop.xlane.xlu0 %8361
    %v8363 = vsel %vm2329, %v8281, 0.0
    %8364 = vadd.xlane.f32.xlu0 %v8363
    %v8365 = vpop.xlane.xlu0 %8364
    %v8366 = vsel %vm2329, %v8283, 0.0
    %8367 = vadd.xlane.f32.xlu0 %v8366
    %v8368 = vpop.xlane.xlu0 %8367
    %v8369 = vsel %vm2329, %v8285, 0.0
    %8370 = vadd.xlane.f32.xlu0 %v8369
    %v8371 = vpop.xlane.xlu0 %8370
    %v8372 = vsel %vm2329, %v8287, 0.0
    %8373 = vadd.xlane.f32.xlu0 %v8372
    %v8374 = vpop.xlane.xlu0 %8373
    %v8375 = vsel %vm2329, %v8289, 0.0
    %8376 = vadd.xlane.f32.xlu0 %v8375
    %v8377 = vpop.xlane.xlu0 %8376
    %v8378 = vsel %vm2329, %v8291, 0.0
    %8379 = vadd.xlane.f32.xlu0 %v8378
    %v8380 = vpop.xlane.xlu0 %8379
    %v8381 = vsel %vm2329, %v8293, 0.0
    %8382 = vadd.xlane.f32.xlu0 %v8381
    %v8383 = vpop.xlane.xlu0 %8382
    %v8384 = vsel %vm2329, %v8295, 0.0
    %8385 = vadd.xlane.f32.xlu0 %v8384
    %v8386 = vpop.xlane.xlu0 %8385
    %v8387 = vsel %vm2329, %v8297, 0.0
    %8388 = vadd.xlane.f32.xlu0 %v8387
    %v8389 = vpop.xlane.xlu0 %8388
    %v8390 = vsel %vm2329, %v8299, 0.0
    %8391 = vadd.xlane.f32.xlu0 %v8390
    %v8392 = vpop.xlane.xlu0 %8391
    %v8393 = vsel %vm2329, %v8301, 0.0
    %8394 = vadd.xlane.f32.xlu0 %v8393
    %v8395 = vpop.xlane.xlu0 %8394
    %v8396 = vsel %vm2329, %v8303, 0.0
    %8397 = vadd.xlane.f32.xlu0 %v8396
    %v8398 = vpop.xlane.xlu0 %8397
    %v8399 = vsel %vm2329, %v8305, 0.0
    %8400 = vadd.xlane.f32.xlu0 %v8399
    %v8401 = vpop.xlane.xlu0 %8400
    %v8402 = vrcp.pop %v8308
    %v8403 = vmul.f32 %v8243, %v8402
    %v8404 = vrcp.pop %v8311
    %v8405 = vmul.f32 %v8245, %v8404
    %v8406 = vrcp.pop %v8314
    %v8407 = vmul.f32 %v8247, %v8406
    %v8408 = vrcp.pop %v8317
    %v8409 = vmul.f32 %v8249, %v8408
    %v8410 = vrcp.pop %v8320
    %v8411 = vmul.f32 %v8251, %v8410
    %v8412 = vrcp.pop %v8323
    %v8413 = vmul.f32 %v8253, %v8412
    %v8414 = vrcp.pop %v8326
    %v8415 = vmul.f32 %v8255, %v8414
    %v8416 = vrcp.pop %v8329
    %v8417 = vmul.f32 %v8257, %v8416
    %v8418 = vrcp.pop %v8332
    %v8419 = vmul.f32 %v8259, %v8418
    %v8420 = vrcp.pop %v8335
    %v8421 = vmul.f32 %v8261, %v8420
    %v8422 = vrcp.pop %v8338
    %v8423 = vmul.f32 %v8263, %v8422
    %v8424 = vrcp.pop %v8341
    %v8425 = vmul.f32 %v8265, %v8424
    %v8426 = vrcp.pop %v8344
    %v8427 = vmul.f32 %v8267, %v8426
    %v8428 = vrcp.pop %v8347
    %v8429 = vmul.f32 %v8269, %v8428
    %v8430 = vrcp.pop %v8350
    %v8431 = vmul.f32 %v8271, %v8430
    %v8432 = vrcp.pop %v8353
    %v8433 = vmul.f32 %v8273, %v8432
    %v8434 = vrcp.pop %v8356
    %v8435 = vmul.f32 %v8275, %v8434
    %v8436 = vrcp.pop %v8359
    %v8437 = vmul.f32 %v8277, %v8436
    %v8438 = vrcp.pop %v8362
    %v8439 = vmul.f32 %v8279, %v8438
    %v8440 = vrcp.pop %v8365
    %v8441 = vmul.f32 %v8281, %v8440
    %v8442 = vrcp.pop %v8368
    %v8443 = vmul.f32 %v8283, %v8442
    %v8444 = vrcp.pop %v8371
    %v8445 = vmul.f32 %v8285, %v8444
    %v8446 = vrcp.pop %v8374
    %v8447 = vmul.f32 %v8287, %v8446
    %v8448 = vrcp.pop %v8377
    %v8449 = vmul.f32 %v8289, %v8448
    %v8450 = vrcp.pop %v8380
    %v8451 = vmul.f32 %v8291, %v8450
    %v8452 = vrcp.pop %v8383
    %v8453 = vmul.f32 %v8293, %v8452
    %v8454 = vrcp.pop %v8386
    %v8455 = vmul.f32 %v8295, %v8454
    %v8456 = vrcp.pop %v8389
    %v8457 = vmul.f32 %v8297, %v8456
    %v8458 = vrcp.pop %v8392
    %v8459 = vmul.f32 %v8299, %v8458
    %v8460 = vrcp.pop %v8395
    %v8461 = vmul.f32 %v8301, %v8460
    %v8462 = vrcp.pop %v8398
    %v8463 = vmul.f32 %v8303, %v8462
    %v8464 = vrcp.pop %v8401
    %v8465 = vmul.f32 %v8305, %v8464
    %v8466 = vsel %vm2329, %v8403, 0.0
    %v8467 = vsel %vm2329, %v8435, 0.0
    %v8468 = vadd.f32 %v8466, %v8467
    %v8469 = vsel %vm2329, %v8405, 0.0
    %v8470 = vsel %vm2329, %v8437, 0.0
    %v8471 = vadd.f32 %v8469, %v8470
    %v8472 = vsel %vm2329, %v8407, 0.0
    %v8473 = vsel %vm2329, %v8439, 0.0
    %v8474 = vadd.f32 %v8472, %v8473
    %v8475 = vsel %vm2329, %v8409, 0.0
    %v8476 = vsel %vm2329, %v8441, 0.0
    %v8477 = vadd.f32 %v8475, %v8476
    %v8478 = vsel %vm2329, %v8411, 0.0
    %v8479 = vsel %vm2329, %v8443, 0.0
    %v8480 = vadd.f32 %v8478, %v8479
    %v8481 = vsel %vm2329, %v8413, 0.0
    %v8482 = vsel %vm2329, %v8445, 0.0
    %v8483 = vadd.f32 %v8481, %v8482
    %v8484 = vsel %vm2329, %v8415, 0.0
    %v8485 = vsel %vm2329, %v8447, 0.0
    %v8486 = vadd.f32 %v8484, %v8485
    %v8487 = vsel %vm2329, %v8417, 0.0
    %v8488 = vsel %vm2329, %v8449, 0.0
    %v8489 = vadd.f32 %v8487, %v8488
    %v8490 = vsel %vm2329, %v8419, 0.0
    %v8491 = vsel %vm2329, %v8451, 0.0
    %v8492 = vadd.f32 %v8490, %v8491
    %v8493 = vsel %vm2329, %v8421, 0.0
    %v8494 = vsel %vm2329, %v8453, 0.0
    %v8495 = vadd.f32 %v8493, %v8494
    %v8496 = vsel %vm2329, %v8423, 0.0
    %v8497 = vsel %vm2329, %v8455, 0.0
    %v8498 = vadd.f32 %v8496, %v8497
    %v8499 = vsel %vm2329, %v8425, 0.0
    %v8500 = vsel %vm2329, %v8457, 0.0
    %v8501 = vadd.f32 %v8499, %v8500
    %v8502 = vsel %vm2329, %v8427, 0.0
    %v8503 = vsel %vm2329, %v8459, 0.0
    %v8504 = vadd.f32 %v8502, %v8503
    %v8505 = vsel %vm2329, %v8429, 0.0
    %v8506 = vsel %vm2329, %v8461, 0.0
    %v8507 = vadd.f32 %v8505, %v8506
    %v8508 = vsel %vm2329, %v8431, 0.0
    %v8509 = vsel %vm2329, %v8463, 0.0
    %v8510 = vadd.f32 %v8508, %v8509
    %v8511 = vsel %vm2329, %v8433, 0.0
    %v8512 = vsel %vm2329, %v8465, 0.0
    %v8513 = vadd.f32 %v8511, %v8512
    %v8514 = vrcp.pop 2.0
    %v8515 = vmul.f32 %v8468, %v8514
    %v8516 = vmul.f32 %v8471, %v8514
    %v8517 = vmul.f32 %v8474, %v8514
    %v8518 = vmul.f32 %v8477, %v8514
    %v8519 = vmul.f32 %v8480, %v8514
    %v8520 = vmul.f32 %v8483, %v8514
    %v8521 = vmul.f32 %v8486, %v8514
    %v8522 = vmul.f32 %v8489, %v8514
    %v8523 = vmul.f32 %v8492, %v8514
    %v8524 = vmul.f32 %v8495, %v8514
    %v8525 = vmul.f32 %v8498, %v8514
    %v8526 = vmul.f32 %v8501, %v8514
    %v8527 = vmul.f32 %v8504, %v8514
    %v8528 = vmul.f32 %v8507, %v8514
    %v8529 = vmul.f32 %v8510, %v8514
    %v8530 = vmul.f32 %v8513, %v8514
    %v8531 = vcombine.low %v8515, %v8517
    %v8532 = vcombine.high %v8515, %v8517
    %v8534 = vunpack.c.l.s4 1983009808
    %v8535 = vunpack.c.0.s8 %v8534
    %v8536 = vlaneseq
    %v8537 = vshrl.u32 %v8536, 7
    %v8538 = vsub.s32 %v8535, %v8537
    %v8539 = vrot.slane %v8531, %v8538
    %v8541 = vunpack.c.l.s4 1983009808
    %v8542 = vunpack.c.0.s8 %v8541
    %v8543 = vlaneseq
    %v8544 = vshrl.u32 %v8543, 7
    %v8545 = vsub.s32 %v8542, %v8544
    %v8546 = vrot.slane %v8532, %v8545
    %v8547 = vcombine.low %v8516, %v8518
    %v8548 = vcombine.high %v8516, %v8518
    %v8550 = vunpack.c.l.s4 1983009808
    %v8551 = vunpack.c.0.s8 %v8550
    %v8552 = vlaneseq
    %v8553 = vshrl.u32 %v8552, 7
    %v8554 = vsub.s32 %v8551, %v8553
    %v8555 = vrot.slane %v8547, %v8554
    %v8557 = vunpack.c.l.s4 1983009808
    %v8558 = vunpack.c.0.s8 %v8557
    %v8559 = vlaneseq
    %v8560 = vshrl.u32 %v8559, 7
    %v8561 = vsub.s32 %v8558, %v8560
    %v8562 = vrot.slane %v8548, %v8561
    %v8563 = vcombine.low %v8519, %v8521
    %v8564 = vcombine.high %v8519, %v8521
    %v8566 = vunpack.c.l.s4 1983009808
    %v8567 = vunpack.c.0.s8 %v8566
    %v8568 = vlaneseq
    %v8569 = vshrl.u32 %v8568, 7
    %v8570 = vsub.s32 %v8567, %v8569
    %v8571 = vrot.slane %v8563, %v8570
    %v8573 = vunpack.c.l.s4 1983009808
    %v8574 = vunpack.c.0.s8 %v8573
    %v8575 = vlaneseq
    %v8576 = vshrl.u32 %v8575, 7
    %v8577 = vsub.s32 %v8574, %v8576
    %v8578 = vrot.slane %v8564, %v8577
    %v8579 = vcombine.low %v8520, %v8522
    %v8580 = vcombine.high %v8520, %v8522
    %v8582 = vunpack.c.l.s4 1983009808
    %v8583 = vunpack.c.0.s8 %v8582
    %v8584 = vlaneseq
    %v8585 = vshrl.u32 %v8584, 7
    %v8586 = vsub.s32 %v8583, %v8585
    %v8587 = vrot.slane %v8579, %v8586
    %v8589 = vunpack.c.l.s4 1983009808
    %v8590 = vunpack.c.0.s8 %v8589
    %v8591 = vlaneseq
    %v8592 = vshrl.u32 %v8591, 7
    %v8593 = vsub.s32 %v8590, %v8592
    %v8594 = vrot.slane %v8580, %v8593
    %v8595 = vcombine.low %v8539, %v8555
    %v8596 = vcombine.high %v8539, %v8555
    %v8598 = vunpack.c.l.s4 1934713408
    %v8599 = vunpack.c.0.s8 %v8598
    %v8600 = vlaneseq
    %v8601 = vshrl.u32 %v8600, 7
    %v8602 = vsub.s32 %v8599, %v8601
    %v8603 = vrot.slane %v8595, %v8602
    %v8605 = vunpack.c.l.s4 1934713408
    %v8606 = vunpack.c.0.s8 %v8605
    %v8607 = vlaneseq
    %v8608 = vshrl.u32 %v8607, 7
    %v8609 = vsub.s32 %v8606, %v8608
    %v8610 = vrot.slane %v8596, %v8609
    %v8611 = vcombine.low %v8546, %v8562
    %v8612 = vcombine.high %v8546, %v8562
    %v8614 = vunpack.c.l.s4 1934713408
    %v8615 = vunpack.c.0.s8 %v8614
    %v8616 = vlaneseq
    %v8617 = vshrl.u32 %v8616, 7
    %v8618 = vsub.s32 %v8615, %v8617
    %v8619 = vrot.slane %v8611, %v8618
    %v8621 = vunpack.c.l.s4 1934713408
    %v8622 = vunpack.c.0.s8 %v8621
    %v8623 = vlaneseq
    %v8624 = vshrl.u32 %v8623, 7
    %v8625 = vsub.s32 %v8622, %v8624
    %v8626 = vrot.slane %v8612, %v8625
    %v8627 = vcombine.low %v8571, %v8587
    %v8628 = vcombine.high %v8571, %v8587
    %v8630 = vunpack.c.l.s4 1934713408
    %v8631 = vunpack.c.0.s8 %v8630
    %v8632 = vlaneseq
    %v8633 = vshrl.u32 %v8632, 7
    %v8634 = vsub.s32 %v8631, %v8633
    %v8635 = vrot.slane %v8627, %v8634
    %v8637 = vunpack.c.l.s4 1934713408
    %v8638 = vunpack.c.0.s8 %v8637
    %v8639 = vlaneseq
    %v8640 = vshrl.u32 %v8639, 7
    %v8641 = vsub.s32 %v8638, %v8640
    %v8642 = vrot.slane %v8628, %v8641
    %v8643 = vcombine.low %v8578, %v8594
    %v8644 = vcombine.high %v8578, %v8594
    %v8646 = vunpack.c.l.s4 1934713408
    %v8647 = vunpack.c.0.s8 %v8646
    %v8648 = vlaneseq
    %v8649 = vshrl.u32 %v8648, 7
    %v8650 = vsub.s32 %v8647, %v8649
    %v8651 = vrot.slane %v8643, %v8650
    %v8653 = vunpack.c.l.s4 1934713408
    %v8654 = vunpack.c.0.s8 %v8653
    %v8655 = vlaneseq
    %v8656 = vshrl.u32 %v8655, 7
    %v8657 = vsub.s32 %v8654, %v8656
    %v8658 = vrot.slane %v8644, %v8657
    %v8659 = vcombine.low %v8603, %v8635
    %v8660 = vcombine.high %v8603, %v8635
    %v8661 = vcombine.low %v8610, %v8642
    %v8662 = vcombine.high %v8610, %v8642
    %v8663 = vcombine.low %v8619, %v8651
    %v8664 = vcombine.high %v8619, %v8651
    %v8665 = vcombine.low %v8626, %v8658
    %v8666 = vcombine.high %v8626, %v8658
    %v8667 = vcombine.low %v8523, %v8525
    %v8668 = vcombine.high %v8523, %v8525
    %v8670 = vunpack.c.l.s4 1983009808
    %v8671 = vunpack.c.0.s8 %v8670
    %v8672 = vlaneseq
    %v8673 = vshrl.u32 %v8672, 7
    %v8674 = vsub.s32 %v8671, %v8673
    %v8675 = vrot.slane %v8667, %v8674
    %v8677 = vunpack.c.l.s4 1983009808
    %v8678 = vunpack.c.0.s8 %v8677
    %v8679 = vlaneseq
    %v8680 = vshrl.u32 %v8679, 7
    %v8681 = vsub.s32 %v8678, %v8680
    %v8682 = vrot.slane %v8668, %v8681
    %v8683 = vcombine.low %v8524, %v8526
    %v8684 = vcombine.high %v8524, %v8526
    %v8686 = vunpack.c.l.s4 1983009808
    %v8687 = vunpack.c.0.s8 %v8686
    %v8688 = vlaneseq
    %v8689 = vshrl.u32 %v8688, 7
    %v8690 = vsub.s32 %v8687, %v8689
    %v8691 = vrot.slane %v8683, %v8690
    %v8693 = vunpack.c.l.s4 1983009808
    %v8694 = vunpack.c.0.s8 %v8693
    %v8695 = vlaneseq
    %v8696 = vshrl.u32 %v8695, 7
    %v8697 = vsub.s32 %v8694, %v8696
    %v8698 = vrot.slane %v8684, %v8697
    %v8699 = vcombine.low %v8527, %v8529
    %v8700 = vcombine.high %v8527, %v8529
    %v8702 = vunpack.c.l.s4 1983009808
    %v8703 = vunpack.c.0.s8 %v8702
    %v8704 = vlaneseq
    %v8705 = vshrl.u32 %v8704, 7
    %v8706 = vsub.s32 %v8703, %v8705
    %v8707 = vrot.slane %v8699, %v8706
    %v8709 = vunpack.c.l.s4 1983009808
    %v8710 = vunpack.c.0.s8 %v8709
    %v8711 = vlaneseq
    %v8712 = vshrl.u32 %v8711, 7
    %v8713 = vsub.s32 %v8710, %v8712
    %v8714 = vrot.slane %v8700, %v8713
    %v8715 = vcombine.low %v8528, %v8530
    %v8716 = vcombine.high %v8528, %v8530
    %v8718 = vunpack.c.l.s4 1983009808
    %v8719 = vunpack.c.0.s8 %v8718
    %v8720 = vlaneseq
    %v8721 = vshrl.u32 %v8720, 7
    %v8722 = vsub.s32 %v8719, %v8721
    %v8723 = vrot.slane %v8715, %v8722
    %v8725 = vunpack.c.l.s4 1983009808
    %v8726 = vunpack.c.0.s8 %v8725
    %v8727 = vlaneseq
    %v8728 = vshrl.u32 %v8727, 7
    %v8729 = vsub.s32 %v8726, %v8728
    %v8730 = vrot.slane %v8716, %v8729
    %v8731 = vcombine.low %v8675, %v8691
    %v8732 = vcombine.high %v8675, %v8691
    %v8734 = vunpack.c.l.s4 1934713408
    %v8735 = vunpack.c.0.s8 %v8734
    %v8736 = vlaneseq
    %v8737 = vshrl.u32 %v8736, 7
    %v8738 = vsub.s32 %v8735, %v8737
    %v8739 = vrot.slane %v8731, %v8738
    %v8741 = vunpack.c.l.s4 1934713408
    %v8742 = vunpack.c.0.s8 %v8741
    %v8743 = vlaneseq
    %v8744 = vshrl.u32 %v8743, 7
    %v8745 = vsub.s32 %v8742, %v8744
    %v8746 = vrot.slane %v8732, %v8745
    %v8747 = vcombine.low %v8682, %v8698
    %v8748 = vcombine.high %v8682, %v8698
    %v8750 = vunpack.c.l.s4 1934713408
    %v8751 = vunpack.c.0.s8 %v8750
    %v8752 = vlaneseq
    %v8753 = vshrl.u32 %v8752, 7
    %v8754 = vsub.s32 %v8751, %v8753
    %v8755 = vrot.slane %v8747, %v8754
    %v8757 = vunpack.c.l.s4 1934713408
    %v8758 = vunpack.c.0.s8 %v8757
    %v8759 = vlaneseq
    %v8760 = vshrl.u32 %v8759, 7
    %v8761 = vsub.s32 %v8758, %v8760
    %v8762 = vrot.slane %v8748, %v8761
    %v8763 = vcombine.low %v8707, %v8723
    %v8764 = vcombine.high %v8707, %v8723
    %v8766 = vunpack.c.l.s4 1934713408
    %v8767 = vunpack.c.0.s8 %v8766
    %v8768 = vlaneseq
    %v8769 = vshrl.u32 %v8768, 7
    %v8770 = vsub.s32 %v8767, %v8769
    %v8771 = vrot.slane %v8763, %v8770
    %v8773 = vunpack.c.l.s4 1934713408
    %v8774 = vunpack.c.0.s8 %v8773
    %v8775 = vlaneseq
    %v8776 = vshrl.u32 %v8775, 7
    %v8777 = vsub.s32 %v8774, %v8776
    %v8778 = vrot.slane %v8764, %v8777
    %v8779 = vcombine.low %v8714, %v8730
    %v8780 = vcombine.high %v8714, %v8730
    %v8782 = vunpack.c.l.s4 1934713408
    %v8783 = vunpack.c.0.s8 %v8782
    %v8784 = vlaneseq
    %v8785 = vshrl.u32 %v8784, 7
    %v8786 = vsub.s32 %v8783, %v8785
    %v8787 = vrot.slane %v8779, %v8786
    %v8789 = vunpack.c.l.s4 1934713408
    %v8790 = vunpack.c.0.s8 %v8789
    %v8791 = vlaneseq
    %v8792 = vshrl.u32 %v8791, 7
    %v8793 = vsub.s32 %v8790, %v8792
    %v8794 = vrot.slane %v8780, %v8793
    %v8795 = vcombine.low %v8739, %v8771
    %v8796 = vcombine.high %v8739, %v8771
    %v8797 = vcombine.low %v8746, %v8778
    %v8798 = vcombine.high %v8746, %v8778
    %v8799 = vcombine.low %v8755, %v8787
    %v8800 = vcombine.high %v8755, %v8787
    %v8801 = vcombine.low %v8762, %v8794
    %v8802 = vcombine.high %v8762, %v8794
    %8805 = vrot.lane.b32.xlu0 %v8660, 8
    %v8806 = vpop.permute.xlu0 %8805
    %8807 = vrot.lane.b32.xlu0 %v8796, 8
    %v8808 = vpop.permute.xlu0 %8807
    %8813 = vrot.lane.b32.xlu0 %v8661, 16
    %v8814 = vpop.permute.xlu0 %8813
    %8815 = vrot.lane.b32.xlu0 %v8797, 16
    %v8816 = vpop.permute.xlu0 %8815
    %8821 = vrot.lane.b32.xlu0 %v8662, 24
    %v8822 = vpop.permute.xlu0 %8821
    %8823 = vrot.lane.b32.xlu0 %v8798, 24
    %v8824 = vpop.permute.xlu0 %8823
    %8829 = vrot.lane.b32.xlu0 %v8663, 32
    %v8830 = vpop.permute.xlu0 %8829
    %8831 = vrot.lane.b32.xlu0 %v8799, 32
    %v8832 = vpop.permute.xlu0 %8831
    %8837 = vrot.lane.b32.xlu0 %v8664, 40
    %v8838 = vpop.permute.xlu0 %8837
    %8839 = vrot.lane.b32.xlu0 %v8800, 40
    %v8840 = vpop.permute.xlu0 %8839
    %8845 = vrot.lane.b32.xlu0 %v8665, 48
    %v8846 = vpop.permute.xlu0 %8845
    %8847 = vrot.lane.b32.xlu0 %v8801, 48
    %v8848 = vpop.permute.xlu0 %8847
    %8853 = vrot.lane.b32.xlu0 %v8666, 56
    %v8854 = vpop.permute.xlu0 %8853
    %8855 = vrot.lane.b32.xlu0 %v8802, 56
    %v8856 = vpop.permute.xlu0 %8855
    %v8859 = vsel %vm2329, %v8659, %v8806
    %v8860 = vsel %vm2329, %v8795, %v8808
    %vm8861 = vcmask 130048
    %v8862 = vsel %vm8861, %v8859, %v8814
    %v8863 = vsel %vm8861, %v8860, %v8816
    %v8864 = vsel %vm763, %v8862, %v8822
    %v8865 = vsel %vm763, %v8863, %v8824
    %v8866 = vsel %vm6209, %v8864, %v8830
    %v8867 = vsel %vm6209, %v8865, %v8832
    %vm8868 = vcmask 326656
    %v8869 = vsel %vm8868, %v8866, %v8838
    %v8870 = vsel %vm8868, %v8867, %v8840
    %v8871 = vsel %vm381, %v8869, %v8846
    %v8872 = vsel %vm381, %v8870, %v8848
    %vm8873 = vcmask 457728
    %v8874 = vsel %vm8873, %v8871, %v8854
    %v8875 = vsel %vm8873, %v8872, %v8856
    %vm8876 = vcmask 523264
    %v8877 = vsel %vm8876, %v8874, 0.0
    %v8878 = vrot.slane %v8877, 4
    %v8879 = vadd.f32 %v8877, %v8878
    %v8880 = vrot.slane %v8879, 2
    %v8881 = vadd.f32 %v8879, %v8880
    %v8882 = vrot.slane %v8881, 1
    %v8883 = vadd.f32 %v8881, %v8882
    %v8884 = vsel %vm8876, %v8875, 0.0
    %v8885 = vrot.slane %v8884, 4
    %v8886 = vadd.f32 %v8884, %v8885
    %v8887 = vrot.slane %v8886, 2
    %v8888 = vadd.f32 %v8886, %v8887
    %v8889 = vrot.slane %v8888, 1
    %v8890 = vadd.f32 %v8888, %v8889
    %v8891 = vrcp.pop 8.0
    %v8892 = vmul.f32 %v8883, %v8891
    %v8893 = vmul.f32 %v8890, %v8891
    %v8894 = vmul.f32 %v8874, %v8892
    %v8895 = vmul.f32 %v8875, %v8893
    %v8896 = vld [vmem:[%s9] sm:$0xff]
    %v8897 = vld [vmem:[%s9 + $0x8] sm:$0xff]
    %v8898 = vld [vmem:[%s9 + $0x10] sm:$0xff]
    %v8899 = vld [vmem:[%s9 + $0x18] sm:$0xff]
    %v8900 = vld [vmem:[%s9 + $0x20] sm:$0xff]
    %v8901 = vld [vmem:[%s9 + $0x28] sm:$0xff]
    %v8902 = vld [vmem:[%s9 + $0x30] sm:$0xff]
    %v8903 = vld [vmem:[%s9 + $0x38] sm:$0xff]
    %v8904 = vld [vmem:[#allocation2 + $0x14] ss:$0 sm:$0xff]
    %v8906 = vsel %vm8876, %v8894, 0
    %v8909 = vsel %vm8876, %v8895, 0
    %8911 = vmatprep.subr.mxu0 0.0
    %8912 = vmatpush1.msra.mxu0 0.0
    %8913 = vmatprep.subr.mxu0 0.0
    %8914 = vmatpush1.msra.mxu0 0.0
    %8915 = vmatprep.subr.mxu0 0.0
    %8916 = vmatpush1.msra.mxu0 0.0
    %8917 = vmatprep.subr.mxu0 0.0
    %8918 = vmatpush1.msra.mxu0 0.0
    %8919 = vmatprep.subr.mxu0 0.0
    %8920 = vmatpush1.msra.mxu0 0.0
    %8921 = vmatprep.subr.mxu0 0.0
    %8922 = vmatpush1.msra.mxu0 0.0
    %8923 = vmatprep.subr.mxu0 0.0
    %8924 = vmatpush1.msra.mxu0 0.0
    %8925 = vmatprep.subr.mxu0 0.0
    %8926 = vmatpush1.msra.mxu0 0.0
    %8927 = vmatprep.subr.mxu0 0.0
    %8928 = vmatpush1.msra.mxu0 %v8903
    %8929 = vmatprep.subr.mxu0 0.0
    %8930 = vmatpush1.msra.mxu0 %v8902
    %8931 = vmatprep.subr.mxu0 0.0
    %8932 = vmatpush1.msra.mxu0 %v8901
    %8933 = vmatprep.subr.mxu0 0.0
    %8934 = vmatpush1.msra.mxu0 %v8900
    %8935 = vmatprep.subr.mxu0 0.0
    %8936 = vmatpush1.msra.mxu0 %v8899
    %8937 = vmatprep.subr.mxu0 0.0
    %8938 = vmatpush1.msra.mxu0 %v8898
    %8939 = vmatprep.subr.mxu0 0.0
    %8940 = vmatpush1.msra.mxu0 %v8897
    %8941 = vmatprep.subr.mxu0 0.0
    %8942 = vmatpush1.msra.mxu0 %v8896
    %8943 = vmatprep.subr.mxu0 0.0
    %8944 = vmatpush2.msra.mxu0 0.0
    %8945 = vmatprep.subr.mxu0 0.0
    %8946 = vmatpush2.msra.mxu0 0.0
    %8947 = vmatprep.subr.mxu0 0.0
    %8948 = vmatpush2.msra.mxu0 0.0
    %8949 = vmatprep.subr.mxu0 0.0
    %8950 = vmatpush2.msra.mxu0 0.0
    %8951 = vmatprep.subr.mxu0 0.0
    %8952 = vmatpush2.msra.mxu0 0.0
    %8953 = vmatprep.subr.mxu0 0.0
    %8954 = vmatpush2.msra.mxu0 0.0
    %8955 = vmatprep.subr.mxu0 0.0
    %8956 = vmatpush2.msra.mxu0 0.0
    %8957 = vmatprep.subr.mxu0 0.0
    %8958 = vmatpush2.msra.mxu0 0.0
    %8959 = vmatprep.subr.mxu0 0.0
    %8960 = vmatpush2.msra.mxu0 0.0
    %8961 = vmatprep.subr.mxu0 0.0
    %8962 = vmatpush2.msra.mxu0 0.0
    %8963 = vmatprep.subr.mxu0 0.0
    %8964 = vmatpush2.msra.mxu0 0.0
    %8965 = vmatprep.subr.mxu0 0.0
    %8966 = vmatpush2.msra.mxu0 0.0
    %8967 = vmatprep.subr.mxu0 0.0
    %8968 = vmatpush2.msra.mxu0 0.0
    %8969 = vmatprep.subr.mxu0 0.0
    %8970 = vmatpush2.msra.mxu0 0.0
    %8971 = vmatprep.subr.mxu0 0.0
    %8972 = vmatpush2.msra.mxu0 0.0
    %8973 = vmatprep.subr.mxu0 0.0
    %8974 = vmatpush2.msra.mxu0 0.0
    %8975 = vmatprep.mubr.f32.mxu0 0.0
    %8976 = vmatmul.mubr.f32.gmra.mxu0 %v8906
    %v8977 = vpop.f32.mrf.mxu0
    %v8978 = vadd.f32 %v8904, %v8977
    %v8979 = vpop.f32.mrf.mxu0
    %8980 = vmatprep.mubr.f32.mxu0 0.0
    %8981 = vmatmul.mubr.f32.gmra.mxu0 %v8909
    %v8982 = vpop.f32.mrf.mxu0
    %v8983 = vadd.f32 %v8904, %v8982
    %v8984 = vpop.f32.mrf.mxu0
    %8985 = vdwg.mxu0
    %v8986 = vld [vmem:[#allocation2 + $0x17] ss:$0 sm:$0xff]
    %v8987 = vsub.f32 %v8978, %v8986
    %v8988 = vsub.f32 %v8983, %v8986
    %v8989 = vld [vmem:[#allocation2 + $0x20] ss:$0 sm:$0xff]
    %v8990 = vadd.f32 %v8989, 1e-05
    %v8991 = vrsqrt.pop %v8990
    %v8992 = vmul.f32 %v8987, %v8991
    %v8993 = vmul.f32 %v8988, %v8991
    %v8994 = vld [vmem:[#allocation2 + $0x15] ss:$0 sm:$0xff]
    %v8995 = vmul.f32 %v8992, %v8994
    %v8996 = vmul.f32 %v8993, %v8994
    %v8997 = vld [vmem:[#allocation2 + $0x16] ss:$0 sm:$0xff]
    %v8998 = vadd.f32 %v8995, %v8997
    %v8999 = vadd.f32 %v8996, %v8997
    %v9000 = vmax.f32 %v8998, 0.0
    %v9001 = vmax.f32 %v8999, 0.0
    %v9002 = vld [vmem:[%s10] sm:$0xff]
    %v9003 = vld [vmem:[#allocation2 + $0x21] ss:$0 sm:$0xff]
    %v9005 = vsel %vm2329, %v9000, 0
    %v9008 = vsel %vm2329, %v9001, 0
    %9010 = vmatprep.subr.mxu0 0.0
    %9011 = vmatpush1.msra.mxu0 0.0
    %9012 = vmatprep.subr.mxu0 0.0
    %9013 = vmatpush1.msra.mxu0 0.0
    %9014 = vmatprep.subr.mxu0 0.0
    %9015 = vmatpush1.msra.mxu0 0.0
    %9016 = vmatprep.subr.mxu0 0.0
    %9017 = vmatpush1.msra.mxu0 0.0
    %9018 = vmatprep.subr.mxu0 0.0
    %9019 = vmatpush1.msra.mxu0 0.0
    %9020 = vmatprep.subr.mxu0 0.0
    %9021 = vmatpush1.msra.mxu0 0.0
    %9022 = vmatprep.subr.mxu0 0.0
    %9023 = vmatpush1.msra.mxu0 0.0
    %9024 = vmatprep.subr.mxu0 0.0
    %9025 = vmatpush1.msra.mxu0 0.0
    %9026 = vmatprep.subr.mxu0 0.0
    %9027 = vmatpush1.msra.mxu0 0.0
    %9028 = vmatprep.subr.mxu0 0.0
    %9029 = vmatpush1.msra.mxu0 0.0
    %9030 = vmatprep.subr.mxu0 0.0
    %9031 = vmatpush1.msra.mxu0 0.0
    %9032 = vmatprep.subr.mxu0 0.0
    %9033 = vmatpush1.msra.mxu0 0.0
    %9034 = vmatprep.subr.mxu0 0.0
    %9035 = vmatpush1.msra.mxu0 0.0
    %9036 = vmatprep.subr.mxu0 0.0
    %9037 = vmatpush1.msra.mxu0 0.0
    %9038 = vmatprep.subr.mxu0 0.0
    %9039 = vmatpush1.msra.mxu0 0.0
    %9040 = vmatprep.subr.mxu0 0.0
    %9041 = vmatpush1.msra.mxu0 %v9002
    %9042 = vmatprep.subr.mxu0 0.0
    %9043 = vmatpush2.msra.mxu0 0.0
    %9044 = vmatprep.subr.mxu0 0.0
    %9045 = vmatpush2.msra.mxu0 0.0
    %9046 = vmatprep.subr.mxu0 0.0
    %9047 = vmatpush2.msra.mxu0 0.0
    %9048 = vmatprep.subr.mxu0 0.0
    %9049 = vmatpush2.msra.mxu0 0.0
    %9050 = vmatprep.subr.mxu0 0.0
    %9051 = vmatpush2.msra.mxu0 0.0
    %9052 = vmatprep.subr.mxu0 0.0
    %9053 = vmatpush2.msra.mxu0 0.0
    %9054 = vmatprep.subr.mxu0 0.0
    %9055 = vmatpush2.msra.mxu0 0.0
    %9056 = vmatprep.subr.mxu0 0.0
    %9057 = vmatpush2.msra.mxu0 0.0
    %9058 = vmatprep.subr.mxu0 0.0
    %9059 = vmatpush2.msra.mxu0 0.0
    %9060 = vmatprep.subr.mxu0 0.0
    %9061 = vmatpush2.msra.mxu0 0.0
    %9062 = vmatprep.subr.mxu0 0.0
    %9063 = vmatpush2.msra.mxu0 0.0
    %9064 = vmatprep.subr.mxu0 0.0
    %9065 = vmatpush2.msra.mxu0 0.0
    %9066 = vmatprep.subr.mxu0 0.0
    %9067 = vmatpush2.msra.mxu0 0.0
    %9068 = vmatprep.subr.mxu0 0.0
    %9069 = vmatpush2.msra.mxu0 0.0
    %9070 = vmatprep.subr.mxu0 0.0
    %9071 = vmatpush2.msra.mxu0 0.0
    %9072 = vmatprep.subr.mxu0 0.0
    %9073 = vmatpush2.msra.mxu0 0.0
    %9074 = vmatprep.mubr.f32.mxu0 0.0
    %9075 = vmatmul.mubr.f32.gmra.mxu0 %v9005
    %v9076 = vpop.f32.mrf.mxu0
    %v9077 = vadd.f32 %v9003, %v9076
    %v9078 = vpop.f32.mrf.mxu0
    %9079 = vmatprep.mubr.f32.mxu0 0.0
    %9080 = vmatmul.mubr.f32.gmra.mxu0 %v9008
    %v9081 = vpop.f32.mrf.mxu0
    %v9082 = vadd.f32 %v9003, %v9081
    %v9083 = vpop.f32.mrf.mxu0
    %9084 = vdwg.mxu0
    %v9085 = vmax.f32 %v9077, 0.0
    %v9086 = vmax.f32 %v9082, 0.0
    %v9087 = vld [vmem:[#allocation2 + $0x22] ss:$0 sm:$0xff]
    %v9088 = vmul.f32 %v9085, %v9087
    %v9089 = vmul.f32 %v9086, %v9087
    %v9090 = vsel %vm6209, %v9088, 0.0
    %9091 = vadd.xlane.f32.xlu0 %v9090
    %v9092 = vpop.xlane.xlu0 %9091
    %v9093 = vsel %vm6209, %v9089, 0.0
    %9094 = vadd.xlane.f32.xlu0 %v9093
    %v9095 = vpop.xlane.xlu0 %9094
    %v9096 = vld [vmem:[#allocation2 + $0x23] ss:$0 sm:$0xff]
    %v9097 = vadd.f32 %v9092, %v9096
    %v9098 = vadd.f32 %v9095, %v9096
    %v9099 = vadd.f32 %v9097, 3.0
    %v9100 = vadd.f32 %v9098, 3.0
    %v9101 = vmax.f32 %v9099, 0.0
    %v9102 = vmax.f32 %v9100, 0.0
    %v9103 = vmin.f32 %v9101, 6.0
    %v9104 = vmin.f32 %v9102, 6.0
    %v9105 = vmul.f32 %v9097, %v9103
    %v9106 = vmul.f32 %v9098, %v9104
    %v9107 = vmul.f32 %v9105, 0.16666667
    %v9108 = vmul.f32 %v9106, 0.16666667
    %9110 = vset.pattern.permute.xlu0 0
    %9111 = vperm.xlu0 %9110, %v9107
    %v9112 = vpop.permute.xlu0 %9111
    %9115 = vset.pattern.permute.xlu0 0
    %9116 = vperm.xlu0 %9115, %v9108
    %v9117 = vpop.permute.xlu0 %9116
    %v9119 = vmul.f32 %v8874, %v9112
    %v9120 = vmul.f32 %v8875, %v9117
    %v9121 = vsel %vm8876, %v9119, 0.0
    %v9122 = vrot.slane %v9121, 4
    %v9123 = vadd.f32 %v9121, %v9122
    %v9124 = vrot.slane %v9123, 2
    %v9125 = vadd.f32 %v9123, %v9124
    %v9126 = vrot.slane %v9125, 1
    %v9127 = vadd.f32 %v9125, %v9126
    %v9128 = vsel %vm8876, %v9120, 0.0
    %v9129 = vrot.slane %v9128, 4
    %v9130 = vadd.f32 %v9128, %v9129
    %v9131 = vrot.slane %v9130, 2
    %v9132 = vadd.f32 %v9130, %v9131
    %v9133 = vrot.slane %v9132, 1
    %v9134 = vadd.f32 %v9132, %v9133
    %v9135 = vmul.f32 %v9127, %v8891
    %v9136 = vmul.f32 %v9134, %v8891
    %v9137 = vld [vmem:[%s11] sm:$0xff]
    %v9138 = vld [vmem:[%s11 + $0x8] sm:$0xff]
    %v9139 = vld [vmem:[%s11 + $0x10] sm:$0xff]
    %v9140 = vld [vmem:[%s11 + $0x18] sm:$0xff]
    %v9141 = vld [vmem:[%s11 + $0x20] sm:$0xff]
    %v9142 = vld [vmem:[%s11 + $0x28] sm:$0xff]
    %v9143 = vld [vmem:[%s11 + $0x30] sm:$0xff]
    %v9144 = vld [vmem:[%s11 + $0x38] sm:$0xff]
    %v9145 = vld [vmem:[#allocation2 + $0x24] ss:$0 sm:$0xff]
    %vm9148 = vcmask 1041409
    %v9149 = vsel %vm9148, %v9136, %v9135
    %v9150 = vsel %vm8876, %v9149, 0
    %9152 = vmatprep.subr.mxu0 0.0
    %9153 = vmatpush1.msra.mxu0 0.0
    %9154 = vmatprep.subr.mxu0 0.0
    %9155 = vmatpush1.msra.mxu0 0.0
    %9156 = vmatprep.subr.mxu0 0.0
    %9157 = vmatpush1.msra.mxu0 0.0
    %9158 = vmatprep.subr.mxu0 0.0
    %9159 = vmatpush1.msra.mxu0 0.0
    %9160 = vmatprep.subr.mxu0 0.0
    %9161 = vmatpush1.msra.mxu0 0.0
    %9162 = vmatprep.subr.mxu0 0.0
    %9163 = vmatpush1.msra.mxu0 0.0
    %9164 = vmatprep.subr.mxu0 0.0
    %9165 = vmatpush1.msra.mxu0 0.0
    %9166 = vmatprep.subr.mxu0 0.0
    %9167 = vmatpush1.msra.mxu0 0.0
    %9168 = vmatprep.subr.mxu0 0.0
    %9169 = vmatpush1.msra.mxu0 %v9144
    %9170 = vmatprep.subr.mxu0 0.0
    %9171 = vmatpush1.msra.mxu0 %v9143
    %9172 = vmatprep.subr.mxu0 0.0
    %9173 = vmatpush1.msra.mxu0 %v9142
    %9174 = vmatprep.subr.mxu0 0.0
    %9175 = vmatpush1.msra.mxu0 %v9141
    %9176 = vmatprep.subr.mxu0 0.0
    %9177 = vmatpush1.msra.mxu0 %v9140
    %9178 = vmatprep.subr.mxu0 0.0
    %9179 = vmatpush1.msra.mxu0 %v9139
    %9180 = vmatprep.subr.mxu0 0.0
    %9181 = vmatpush1.msra.mxu0 %v9138
    %9182 = vmatprep.subr.mxu0 0.0
    %9183 = vmatpush1.msra.mxu0 %v9137
    %9184 = vmatprep.subr.mxu0 0.0
    %9185 = vmatpush2.msra.mxu0 0.0
    %9186 = vmatprep.subr.mxu0 0.0
    %9187 = vmatpush2.msra.mxu0 0.0
    %9188 = vmatprep.subr.mxu0 0.0
    %9189 = vmatpush2.msra.mxu0 0.0
    %9190 = vmatprep.subr.mxu0 0.0
    %9191 = vmatpush2.msra.mxu0 0.0
    %9192 = vmatprep.subr.mxu0 0.0
    %9193 = vmatpush2.msra.mxu0 0.0
    %9194 = vmatprep.subr.mxu0 0.0
    %9195 = vmatpush2.msra.mxu0 0.0
    %9196 = vmatprep.subr.mxu0 0.0
    %9197 = vmatpush2.msra.mxu0 0.0
    %9198 = vmatprep.subr.mxu0 0.0
    %9199 = vmatpush2.msra.mxu0 0.0
    %9200 = vmatprep.subr.mxu0 0.0
    %9201 = vmatpush2.msra.mxu0 0.0
    %9202 = vmatprep.subr.mxu0 0.0
    %9203 = vmatpush2.msra.mxu0 0.0
    %9204 = vmatprep.subr.mxu0 0.0
    %9205 = vmatpush2.msra.mxu0 0.0
    %9206 = vmatprep.subr.mxu0 0.0
    %9207 = vmatpush2.msra.mxu0 0.0
    %9208 = vmatprep.subr.mxu0 0.0
    %9209 = vmatpush2.msra.mxu0 0.0
    %9210 = vmatprep.subr.mxu0 0.0
    %9211 = vmatpush2.msra.mxu0 0.0
    %9212 = vmatprep.subr.mxu0 0.0
    %9213 = vmatpush2.msra.mxu0 0.0
    %9214 = vmatprep.subr.mxu0 0.0
    %9215 = vmatpush2.msra.mxu0 0.0
    %9216 = vmatprep.mubr.f32.mxu0 0.0
    %9217 = vmatmul.mubr.f32.gmra.mxu0 %v9150
    %v9218 = vpop.f32.mrf.mxu0
    %v9219 = vadd.f32 %v9145, %v9218
    %v9220 = vpop.f32.mrf.mxu0
    %9221 = vdwg.mxu0
    %9222 = vrot.lane.b32.xlu0 %v9149, 2
    %v9223 = vpop.permute.xlu0 %9222
    %v9225 = vlaneseq
    %v9226 = vand.u32 %v9225, 127
    %v9227 = vadd.s32 %v9226, 4294967230
    %v9228 = vlaneseq
    %v9229 = vshrl.u32 %v9228, 7
    %v9230 = vsub.s32 %v9227, %v9229
    %v9231 = vrot.slane %v9112, %v9230
    %v9232 = vlaneseq
    %v9233 = vshrl.u32 %v9232, 7
    %v9234 = vsub.s32 %v9227, %v9233
    %v9235 = vrot.slane %v9117, %v9234
    %v9236 = vsel %vm9148, %v9235, %v9231
    %vm9238 = vcmask 15360
    %v9239 = vsel %vm9238, %v9219, %v9223
    %vm9240 = vcmask 539648
    %v9241 = vsel %vm9240, %v9239, %v9236
    %vm9242 = vcmask 605184
    %v9243 = vsel %vm9242, %v9241, 0.0
    %9244 = vst [vmem:[#allocation10] sm:$0x3] %v9243
    // Predicated region
    $region66: #{tpu_custom_call.1} parent=1 // pred_check
      _
    $region67: #{tpu_custom_call.1} parent=1 // pred_check_branch
      %9246 = sbr.rel (0) target = $region69
    $region68: #{tpu_custom_call.1} parent=1 // pred_region
      %s9248 = ssub.s32 32, 32
      %9249 = vsyncadd [#allocation4], %s9248
      %s9251 = sshll.u32 [#allocation10], 4
      %s9252 = int_to_ptr.vmem [resolvable:$true] %s9251
      %9254 = dma.vmem_to_hbm [thread:$0]  %s9252, 32, %s12, [#allocation4]
    $region69: #{tpu_custom_call.1} parent=1 // pred_fallthru
      _
    // Predicated region
    $region70: #{tpu_custom_call.1} parent=1 // pred_check
      _
    $region71: #{tpu_custom_call.1} parent=1 // pred_check_branch
      %9256 = sbr.rel (0) target = $region73
    $region72: #{tpu_custom_call.1} parent=1 // pred_region
      %9257 = dma.done [#allocation4], 32
    $region73: #{tpu_custom_call.1} parent=1 // pred_fallthru
      _
    %9258 = vsyncpa [#allocation3], 1
    %9259 = vsyncpa [#allocation6], 1
    %9260 = vsyncpa [#allocation9], 1
    %9261 = vsyncpa [#allocation4], 1

</llo_original>
